<compile_context>
chip_gen: v6e
topology: v6e:2x2x1
jax: 0.10.0
libtpu: 0.0.40
codegen_flags: <defaults>
</compile_context>

<pallas_src>
import jax
import jax.numpy as jnp
from jax.experimental import pallas as pl
from jax.experimental.pallas import tpu as pltpu


def _round_up(x, m):
    return ((x + m - 1) // m) * m


# --------------------------- conv as matmul kernel ---------------------------

def _matmul_kernel(x_ref, w_ref, o_ref):
    # LeakyReLU(True) == LeakyReLU(negative_slope=1.0) == identity, so the
    # epilogue is just a cast.
    o_ref[...] = jnp.dot(
        x_ref[...], w_ref[...], preferred_element_type=jnp.float32
    ).astype(o_ref.dtype)


def _pallas_matmul(patches, w_mat, out_dtype=jnp.bfloat16):
    """patches: (M, K), w_mat: (K, OC) -> (M, OC) in out_dtype (fused conv)."""
    M, K = patches.shape
    K2, OC = w_mat.shape
    assert K == K2

    Kp = _round_up(K, 128)            # lane-dense contraction dim
    OCp = _round_up(OC, 128)          # lane-dense output (unmasked stores)
    tm = min(2048, _round_up(M, 16))  # big M tile, multiple of 16 (bf16 pack)
    Mp = _round_up(M, tm)

    patches = jnp.pad(patches, ((0, Mp - M), (0, Kp - K))).astype(jnp.bfloat16)
    w_mat = jnp.pad(w_mat, ((0, Kp - K), (0, OCp - OC))).astype(jnp.bfloat16)

    out = pl.pallas_call(
        _matmul_kernel,
        out_shape=jax.ShapeDtypeStruct((Mp, OCp), out_dtype),
        grid_spec=pltpu.PrefetchScalarGridSpec(
            num_scalar_prefetch=0,
            grid=(Mp // tm,),
            in_specs=[
                pl.BlockSpec((tm, Kp), lambda i: (i, 0)),
                pl.BlockSpec((Kp, OCp), lambda i: (0, 0)),
            ],
            out_specs=pl.BlockSpec((tm, OCp), lambda i: (i, 0)),
        ),
        compiler_params=pltpu.CompilerParams(
            dimension_semantics=("parallel",)),
    )(patches, w_mat)
    return out[:M, :OC]


def _im2col_nhwc(x, kh, kw, stride, pad):
    """x: (N, H, W, C) -> patches (N*OH*OW, kh*kw*C); K order = (kh, kw, C)."""
    N, H, W, C = x.shape
    xp = jnp.pad(x, ((0, 0), (pad, pad), (pad, pad), (0, 0)))
    OH = (H + 2 * pad - kh) // stride + 1
    OW = (W + 2 * pad - kw) // stride + 1
    cols = []
    for i in range(kh):
        for j in range(kw):
            cols.append(
                xp[:, i:i + stride * OH:stride, j:j + stride * OW:stride, :])
    p = jnp.stack(cols, axis=3)                     # (N, OH, OW, kh*kw, C)
    return p.reshape(N * OH * OW, kh * kw * C), OH, OW


def conv2d_nhwc(x, w, stride, pad, out_dtype=jnp.bfloat16):
    """x: (N, H, W, C); w: PyTorch layout (OC, C, KH, KW); bias=False."""
    N = x.shape[0]
    OC, C, KH, KW = w.shape
    patches, OH, OW = _im2col_nhwc(x, KH, KW, stride, pad)
    w_mat = jnp.transpose(w, (2, 3, 1, 0)).reshape(KH * KW * C, OC)
    out = _pallas_matmul(patches, w_mat, out_dtype)
    return out.reshape(N, OH, OW, OC)


# --------------------- fused tail: conv4 + conv5 + sigmoid --------------------

def _tail_kernel(x_ref, w4_ref, w5_ref, gt_ref, o_ref):
    # x_ref : (N*64, K4p) bf16  im2col patches of the conv4 input
    # w4_ref: (K4p, OCp) bf16   conv4 weights, OC zero-padded to 128
    # w5_ref: (N*64, OCp) f32   conv5 weights laid out per (spatial,row) pair
    # gt_ref: (N, N*64)   f32   per-batch row-selection matrix
    h4 = jnp.dot(x_ref[...], w4_ref[...],
                 preferred_element_type=jnp.float32)            # (N*64, OCp)
    rowsum = jnp.sum(h4 * w5_ref[...], axis=1, keepdims=True)   # (N*64, 1)
    y = jnp.dot(gt_ref[...], rowsum,
                preferred_element_type=jnp.float32)             # (N, 1)
    # Exact sigmoid (keeps output strictly inside [0, 1]); pl.reciprocal
    # (approx=True) would only matter at much larger M.
    o_ref[...] = 1.0 / (1.0 + jnp.exp(-y))


def fused_tail(h3, w4, w5):
    """Fused conv4 (k4,s2,p1) + conv5 (k8,s1,p0) + sigmoid -> (N, 1)."""
    N = h3.shape[0]
    OC4, C4, KH4, KW4 = w4.shape
    OC5, C5, KH5, KW5 = w5.shape
    assert OC5 == 1 and C5 == OC4

    patches, OH, OW = _im2col_nhwc(h3, KH4, KW4, stride=2, pad=1)
    # The DCGAN discriminator's final conv collapses an 8x8 map to 1x1.
    assert (OH, OW) == (KH5, KW5), "final conv must reduce to a 1x1 output"
    S = OH * OW                                    # 64 rows per batch element
    K4 = KH4 * KW4 * C4
    K4p = _round_up(K4, 128)
    OCp = _round_up(OC4, 128)

    patches = jnp.pad(patches, ((0, 0), (0, K4p - K4))).astype(jnp.bfloat16)
    w4_mat = jnp.pad(jnp.transpose(w4, (2, 3, 1, 0)).reshape(K4, OC4),
                     ((0, K4p - K4), (0, OCp - OC4))).astype(jnp.bfloat16)
    # conv5 weight arranged to match h4's (row = oh*OW + ow, col = channel)
    # layout, padded channels are zero so padded OC columns contribute nothing.
    w5r = jnp.pad(jnp.transpose(w5[0], (1, 2, 0)).reshape(S, OC4),
                  ((0, 0), (0, OCp - OC4))).astype(jnp.float32)
    w5_big = jnp.tile(w5r, (N, 1))                               # (N*S, OCp)
    gt = jnp.repeat(jnp.eye(N, dtype=jnp.float32), S, axis=1)    # (N, N*S)

    # Everything fits VMEM comfortably -> single invocation, whole-array blocks.
    return pl.pallas_call(
        _tail_kernel,
        out_shape=jax.ShapeDtypeStruct((N, 1), jnp.float32),
    )(patches, w4_mat, w5_big, gt)


# --------------------------------- model -------------------------------------

def init_discriminator_params(key, n_channels, factor):
    specs = [
        (factor, n_channels, 4, 4),
        (factor * 2, factor, 4, 4),
        (factor * 4, factor * 2, 4, 4),
        (factor * 2, factor * 4, 4, 4),
        (1, factor * 2, 8, 8),
    ]
    params = []
    for shape in specs:
        key, sub = jax.random.split(key)
        params.append(0.02 * jax.random.normal(sub, shape, dtype=jnp.float32))
    return params


def discriminator_forward(params, x):
    """x: (N, C, H, W) float32 (PyTorch layout) -> (N, 1, 1, 1) float32."""
    w1, w2, w3, w4, w5 = params
    h = jnp.transpose(x, (0, 2, 3, 1))            # NCHW -> NHWC once
    # LeakyReLU(True) has negative_slope == 1.0 (identity) -> no activation op.
    h = conv2d_nhwc(h, w1, stride=2, pad=1)
    h = conv2d_nhwc(h, w2, stride=2, pad=1)
    h = conv2d_nhwc(h, w3, stride=2, pad=1)
    out = fused_tail(h, w4, w5)                   # conv4 + conv5 + sigmoid
    return out.reshape(x.shape[0], 1, 1, 1)


if __name__ == "__main__":
    key = jax.random.PRNGKey(0)
    kx, kp = jax.random.split(key)

    n_channels, factor, batch = 3, 4, 2
    # 128x128 is the minimal spatial size consistent with the final
    # kernel_size=8, padding=0 conv after four stride-2 convs (-> 1x1 output).
    x = jax.random.normal(kx, (batch, n_channels, 128, 128), dtype=jnp.float32)
    params = init_discriminator_params(kp, n_channels, factor)

    out = jax.jit(discriminator_forward)(params, x)
    jax.block_until_ready(out)

    assert out.shape == (batch, 1, 1, 1), out.shape
    assert bool(jnp.all((out >= 0.0) & (out <= 1.0)))
    print("KERNEL_OK")
</pallas_src>

<mosaic_0001>
module attributes {stable_mosaic.version = 11 : i64} {
  func.func @_matmul_kernel(%arg0: i32, %arg1: memref<2048x128xbf16, #tpu.memory_space<vmem>>, %arg2: memref<128x128xbf16, #tpu.memory_space<vmem>>, %arg3: memref<2048x128xbf16, #tpu.memory_space<vmem>>) attributes {dimension_semantics = [#tpu.dimension_semantics<parallel>], iteration_bounds = array<i64: 4>, scalar_prefetch = 0 : i64, scratch_operands = 0 : i64, tpu.core_type = #tpu.core_type<tc>, window_params = [{transform_indices = @transform_0, window_bounds = array<i64: 2048, 128>}, {pipeline_mode = #tpu.pipeline_mode<synchronous>, transform_indices = @transform_1, window_bounds = array<i64: 128, 128>}, {transform_indices = @transform_2, window_bounds = array<i64: 2048, 128>}]} {
    %c0 = arith.constant 0 : index
    %c0_0 = arith.constant 0 : index
    %0 = vector.load %arg1[%c0, %c0_0] : memref<2048x128xbf16, #tpu.memory_space<vmem>>, vector<2048x128xbf16>
    %c0_1 = arith.constant 0 : index
    %c0_2 = arith.constant 0 : index
    %1 = vector.load %arg2[%c0_1, %c0_2] : memref<128x128xbf16, #tpu.memory_space<vmem>>, vector<128x128xbf16>
    %cst = arith.constant dense<0.000000e+00> : vector<2048x128xf32>
    %2 = tpu.matmul %0, %1, %cst {dimension_numbers = #tpu.dot_dimension_numbers<[1], [0], [0], [1], [0, 0, 1, 1], [], []>} : vector<2048x128xbf16>, vector<128x128xbf16>, vector<2048x128xf32> -> vector<2048x128xf32>
    %3 = arith.truncf %2 : vector<2048x128xf32> to vector<2048x128xbf16>
    %c0_3 = arith.constant 0 : index
    %c0_4 = arith.constant 0 : index
    %4 = vector.load %arg3[%c0_3, %c0_4] : memref<2048x128xbf16, #tpu.memory_space<vmem>>, vector<2048x128xbf16>
    tpu.vector_store %arg3[%c0_3, %c0_4], %3 {strides = array<i32>} : memref<2048x128xbf16, #tpu.memory_space<vmem>>, vector<2048x128xbf16>,
    return
  }
  func.func @transform_0(%arg0: i32) -> (i32, i32) {
    %c0_i32 = arith.constant 0 : i32
    %c0_i32_0 = arith.constant 0 : i32
    return %arg0, %c0_i32 : i32, i32
  }
  func.func @transform_1(%arg0: i32) -> (i32, i32) {
    %c0_i32 = arith.constant 0 : i32
    %c0_i32_0 = arith.constant 0 : i32
    %c0_i32_1 = arith.constant 0 : i32
    return %c0_i32, %c0_i32_0 : i32, i32
  }
  func.func @transform_2(%arg0: i32) -> (i32, i32) {
    %c0_i32 = arith.constant 0 : i32
    %c0_i32_0 = arith.constant 0 : i32
    return %arg0, %c0_i32 : i32, i32
  }
}

module attributes {stable_mosaic.version = 11 : i64} {
  func.func @_matmul_kernel(%arg0: i32, %arg1: memref<2048x128xbf16, #tpu.memory_space<vmem>>, %arg2: memref<128x128xbf16, #tpu.memory_space<vmem>>, %arg3: memref<2048x128xbf16, #tpu.memory_space<vmem>>) attributes {dimension_semantics = [#tpu.dimension_semantics<parallel>], iteration_bounds = array<i64: 1>, scalar_prefetch = 0 : i64, scratch_operands = 0 : i64, tpu.core_type = #tpu.core_type<tc>, window_params = [{transform_indices = @transform_0, window_bounds = array<i64: 2048, 128>}, {pipeline_mode = #tpu.pipeline_mode<synchronous>, transform_indices = @transform_1, window_bounds = array<i64: 128, 128>}, {transform_indices = @transform_2, window_bounds = array<i64: 2048, 128>}]} {
    %c0 = arith.constant 0 : index
    %c0_0 = arith.constant 0 : index
    %0 = vector.load %arg1[%c0, %c0_0] : memref<2048x128xbf16, #tpu.memory_space<vmem>>, vector<2048x128xbf16>
    %c0_1 = arith.constant 0 : index
    %c0_2 = arith.constant 0 : index
    %1 = vector.load %arg2[%c0_1, %c0_2] : memref<128x128xbf16, #tpu.memory_space<vmem>>, vector<128x128xbf16>
    %cst = arith.constant dense<0.000000e+00> : vector<2048x128xf32>
    %2 = tpu.matmul %0, %1, %cst {dimension_numbers = #tpu.dot_dimension_numbers<[1], [0], [0], [1], [0, 0, 1, 1], [], []>} : vector<2048x128xbf16>, vector<128x128xbf16>, vector<2048x128xf32> -> vector<2048x128xf32>
    %3 = arith.truncf %2 : vector<2048x128xf32> to vector<2048x128xbf16>
    %c0_3 = arith.constant 0 : index
    %c0_4 = arith.constant 0 : index
    %4 = vector.load %arg3[%c0_3, %c0_4] : memref<2048x128xbf16, #tpu.memory_space<vmem>>, vector<2048x128xbf16>
    tpu.vector_store %arg3[%c0_3, %c0_4], %3 {strides = array<i32>} : memref<2048x128xbf16, #tpu.memory_space<vmem>>, vector<2048x128xbf16>,
    return
  }
  func.func @transform_0(%arg0: i32) -> (i32, i32) {
    %c0_i32 = arith.constant 0 : i32
    %c0_i32_0 = arith.constant 0 : i32
    return %arg0, %c0_i32 : i32, i32
  }
  func.func @transform_1(%arg0: i32) -> (i32, i32) {
    %c0_i32 = arith.constant 0 : i32
    %c0_i32_0 = arith.constant 0 : i32
    %c0_i32_1 = arith.constant 0 : i32
    return %c0_i32, %c0_i32_0 : i32, i32
  }
  func.func @transform_2(%arg0: i32) -> (i32, i32) {
    %c0_i32 = arith.constant 0 : i32
    %c0_i32_0 = arith.constant 0 : i32
    return %arg0, %c0_i32 : i32, i32
  }
}

module attributes {stable_mosaic.version = 11 : i64} {
  func.func @_matmul_kernel(%arg0: i32, %arg1: memref<512x128xbf16, #tpu.memory_space<vmem>>, %arg2: memref<128x128xbf16, #tpu.memory_space<vmem>>, %arg3: memref<512x128xbf16, #tpu.memory_space<vmem>>) attributes {dimension_semantics = [#tpu.dimension_semantics<parallel>], iteration_bounds = array<i64: 1>, scalar_prefetch = 0 : i64, scratch_operands = 0 : i64, tpu.core_type = #tpu.core_type<tc>, window_params = [{transform_indices = @transform_0, window_bounds = array<i64: 512, 128>}, {pipeline_mode = #tpu.pipeline_mode<synchronous>, transform_indices = @transform_1, window_bounds = array<i64: 128, 128>}, {transform_indices = @transform_2, window_bounds = array<i64: 512, 128>}]} {
    %c0 = arith.constant 0 : index
    %c0_0 = arith.constant 0 : index
    %0 = vector.load %arg1[%c0, %c0_0] : memref<512x128xbf16, #tpu.memory_space<vmem>>, vector<512x128xbf16>
    %c0_1 = arith.constant 0 : index
    %c0_2 = arith.constant 0 : index
    %1 = vector.load %arg2[%c0_1, %c0_2] : memref<128x128xbf16, #tpu.memory_space<vmem>>, vector<128x128xbf16>
    %cst = arith.constant dense<0.000000e+00> : vector<512x128xf32>
    %2 = tpu.matmul %0, %1, %cst {dimension_numbers = #tpu.dot_dimension_numbers<[1], [0], [0], [1], [0, 0, 1, 1], [], []>} : vector<512x128xbf16>, vector<128x128xbf16>, vector<512x128xf32> -> vector<512x128xf32>
    %3 = arith.truncf %2 : vector<512x128xf32> to vector<512x128xbf16>
    %c0_3 = arith.constant 0 : index
    %c0_4 = arith.constant 0 : index
    %4 = vector.load %arg3[%c0_3, %c0_4] : memref<512x128xbf16, #tpu.memory_space<vmem>>, vector<512x128xbf16>
    tpu.vector_store %arg3[%c0_3, %c0_4], %3 {strides = array<i32>} : memref<512x128xbf16, #tpu.memory_space<vmem>>, vector<512x128xbf16>,
    return
  }
  func.func @transform_0(%arg0: i32) -> (i32, i32) {
    %c0_i32 = arith.constant 0 : i32
    %c0_i32_0 = arith.constant 0 : i32
    return %arg0, %c0_i32 : i32, i32
  }
  func.func @transform_1(%arg0: i32) -> (i32, i32) {
    %c0_i32 = arith.constant 0 : i32
    %c0_i32_0 = arith.constant 0 : i32
    %c0_i32_1 = arith.constant 0 : i32
    return %c0_i32, %c0_i32_0 : i32, i32
  }
  func.func @transform_2(%arg0: i32) -> (i32, i32) {
    %c0_i32 = arith.constant 0 : i32
    %c0_i32_0 = arith.constant 0 : i32
    return %arg0, %c0_i32 : i32, i32
  }
}

module attributes {stable_mosaic.version = 11 : i64} {
  func.func @_tail_kernel(%arg0: memref<128x256xbf16, #tpu.memory_space<vmem>>, %arg1: memref<256x128xbf16, #tpu.memory_space<vmem>>, %arg2: memref<128x128xf32, #tpu.memory_space<vmem>>, %arg3: memref<2x128xf32, #tpu.memory_space<vmem>>, %arg4: memref<2x1xf32, #tpu.memory_space<vmem>>) attributes {dimension_semantics = [], scalar_prefetch = 0 : i64, scratch_operands = 0 : i64, tpu.core_type = #tpu.core_type<tc>} {
    %c0 = arith.constant 0 : index
    %c0_0 = arith.constant 0 : index
    %0 = vector.load %arg0[%c0, %c0_0] : memref<128x256xbf16, #tpu.memory_space<vmem>>, vector<128x256xbf16>
    %c0_1 = arith.constant 0 : index
    %c0_2 = arith.constant 0 : index
    %1 = vector.load %arg1[%c0_1, %c0_2] : memref<256x128xbf16, #tpu.memory_space<vmem>>, vector<256x128xbf16>
    %cst = arith.constant dense<0.000000e+00> : vector<128x128xf32>
    %2 = tpu.matmul %0, %1, %cst {dimension_numbers = #tpu.dot_dimension_numbers<[1], [0], [0], [1], [0, 0, 1, 1], [], []>} : vector<128x256xbf16>, vector<256x128xbf16>, vector<128x128xf32> -> vector<128x128xf32>
    %c0_3 = arith.constant 0 : index
    %c0_4 = arith.constant 0 : index
    %3 = vector.load %arg2[%c0_3, %c0_4] : memref<128x128xf32, #tpu.memory_space<vmem>>, vector<128x128xf32>
    %4 = arith.mulf %2, %3 : vector<128x128xf32>
    %cst_5 = arith.constant dense<0.000000e+00> : vector<128xf32>
    %5 = vector.multi_reduction <add>, %4, %cst_5 [1] : vector<128x128xf32> to vector<128xf32>
    %6 = vector.shape_cast %5 : vector<128xf32> to vector<128x1xf32>
    %c0_6 = arith.constant 0 : index
    %c0_7 = arith.constant 0 : index
    %7 = vector.load %arg3[%c0_6, %c0_7] : memref<2x128xf32, #tpu.memory_space<vmem>>, vector<2x128xf32>
    %cst_8 = arith.constant dense<0.000000e+00> : vector<2x1xf32>
    %8 = tpu.matmul %7, %6, %cst_8 {dimension_numbers = #tpu.dot_dimension_numbers<[1], [0], [0], [1], [0, 0, 1, 1], [], []>} : vector<2x128xf32>, vector<128x1xf32>, vector<2x1xf32> -> vector<2x1xf32>
    %cst_9 = arith.constant 0.000000e+00 : f32
    %9 = vector.broadcast %cst_9 : f32 to vector<2x1xf32>
    %10 = arith.subf %9, %8 : vector<2x1xf32>
    %11 = math.exp %10 : vector<2x1xf32>
    %cst_10 = arith.constant 1.000000e+00 : f32
    %12 = vector.broadcast %cst_10 : f32 to vector<2x1xf32>
    %13 = arith.addf %12, %11 : vector<2x1xf32>
    %cst_11 = arith.constant 1.000000e+00 : f32
    %14 = vector.broadcast %cst_11 : f32 to vector<2x1xf32>
    %15 = arith.divf %14, %13 : vector<2x1xf32>
    %c0_12 = arith.constant 0 : index
    %c0_13 = arith.constant 0 : index
    %16 = vector.load %arg4[%c0_12, %c0_13] : memref<2x1xf32, #tpu.memory_space<vmem>>, vector<2x1xf32>
    tpu.vector_store %arg4[%c0_12, %c0_13], %15 {strides = array<i32>} : memref<2x1xf32, #tpu.memory_space<vmem>>, vector<2x1xf32>,
    return
  }
}

</mosaic_0001>

<llo_original>
// kernel: discriminator_forward.4
$region0: #{discriminator_forward.4}
  #allocation0 [shape = 'u32[]', space=smem, size = 0x4, offset = 0x4, fixed_abs, tag = 'smem constant byte address 0x4 - core index']
  #allocation1 [shape = 'u32[144,128]{1,0:T(1,128)}', space=vmem, size = 0x12000, scoped, tag = 'internal scratch']
  %s0 = inlined_call_operand.vmem [shape: bf16[8192,128], index: 0, kind: input, shape index: {}]
  %s1 = inlined_call_operand.vmem [shape: bf16[128,128], index: 1, kind: input, shape index: {}]
  %s2 = inlined_call_operand.vmem [shape: bf16[8192,128], index: 2, kind: output, shape index: {}]
  %s3 = sld [smem:[#allocation0]]
  $region41: #{discriminator_forward.4} parent=0
    _
  %s5 = ssub.s32 1, %s3
  %s6 = scalar_select 0, %s5, %s3
  loop: start=0, step=1, limit=6
  $region2: #{discriminator_forward.4} parent=0 // loop_pre_header
    _
  $region3: #{discriminator_forward.4} parent=0 // loop_header
    %s8 = sphi 0, %s12
    %p9 = scmp.ge.s32.totalorder %s8, 6
    %s18 = sphi 0, %s20
    %s21 = sphi 0, %s18
    %s22 = sphi 0, %s21
    %s38 = sphi 0, %s22
    %s42 = sphi 0, %s42
    %s44 = sphi 0, %s42
    %s45 = sphi 0, %s44
    %s59 = sphi 0, %s45
    %s65 = sphi 0, %s67
    %s68 = sphi 0, %s65
    %s69 = sphi 0, %s68
    %s85 = sphi 0, %s69
  $region4: #{discriminator_forward.4} parent=0 // loop_header_branch
    %11 = sbr.rel (%p9) target = $region8
  $region5: #{discriminator_forward.4} parent=0 // loop_body
    %s13 = ssub.s32 %s8, 1
    %s14 = ssub.s32 %s8, 2
    %s15 = sadd.s32 %s8, 1
    %s16 = ssub.s32 %s8, %s15
    %p17 = scmp.eq.s32.totalorder %s16, 0
    %s19 = sadd.s32 %s18, 1
    %s20 = scalar_select %p17, %s18, %s19
    %p23 = pneg %p17
    %p24 = scmp.eq.s32.totalorder %s8, 3
    %p25 = por %p23, %p24
    %p26 = scmp.ne.s32.totalorder %s18, %s21
    %p27 = scmp.eq.s32.totalorder %s8, 0
    %p28 = por %p26, %p27
    %p29 = scmp.ne.s32.totalorder %s18, %s21
    %p30 = scmp.eq.s32.totalorder %s13, 3
    %p31 = por %p29, %p30
    %p32 = scmp.ne.s32.totalorder %s21, %s22
    %p33 = scmp.eq.s32.totalorder %s13, 0
    %p34 = por %p32, %p33
    %p35 = scmp.ne.s32.totalorder %s21, %s22
    %p36 = scmp.eq.s32.totalorder %s14, 3
    %p37 = por %p35, %p36
    %p39 = scmp.ne.s32.totalorder %s22, %s38
    %p40 = scmp.eq.s32.totalorder %s14, 0
    %p41 = por %p39, %p40
    %s43 = sadd.s32 %s42, 1
    %p46 = scmp.eq.s32.totalorder %s8, 3
    %p47 = scmp.ne.s32.totalorder %s42, %s44
    %p48 = scmp.eq.s32.totalorder %s8, 0
    %p49 = por %p47, %p48
    %p50 = scmp.ne.s32.totalorder %s42, %s44
    %p51 = scmp.eq.s32.totalorder %s13, 3
    %p52 = por %p50, %p51
    %p53 = scmp.ne.s32.totalorder %s44, %s45
    %p54 = scmp.eq.s32.totalorder %s13, 0
    %p55 = por %p53, %p54
    %p56 = scmp.ne.s32.totalorder %s44, %s45
    %p57 = scmp.eq.s32.totalorder %s14, 3
    %p58 = por %p56, %p57
    %p60 = scmp.ne.s32.totalorder %s45, %s59
    %p61 = scmp.eq.s32.totalorder %s14, 0
    %p62 = por %p60, %p61
    %s63 = ssub.s32 %s8, %s15
    %p64 = scmp.eq.s32.totalorder %s63, 0
    %s66 = sadd.s32 %s65, 1
    %s67 = scalar_select %p64, %s65, %s66
    %p70 = pneg %p64
    %p71 = scmp.eq.s32.totalorder %s8, 3
    %p72 = por %p70, %p71
    %p73 = scmp.ne.s32.totalorder %s65, %s68
    %p74 = scmp.eq.s32.totalorder %s8, 0
    %p75 = por %p73, %p74
    %p76 = scmp.ne.s32.totalorder %s65, %s68
    %p77 = scmp.eq.s32.totalorder %s13, 3
    %p78 = por %p76, %p77
    %p79 = scmp.ne.s32.totalorder %s68, %s69
    %p80 = scmp.eq.s32.totalorder %s13, 0
    %p81 = por %p79, %p80
    %p82 = scmp.ne.s32.totalorder %s68, %s69
    %p83 = scmp.eq.s32.totalorder %s14, 3
    %p84 = por %p82, %p83
    %p86 = scmp.ne.s32.totalorder %s69, %s85
    %p87 = scmp.eq.s32.totalorder %s14, 0
    %p88 = por %p86, %p87
    %p89 = scmp.le.s32.totalorder 1, %s8
    %p90 = scmp.lt.s32.totalorder %s8, 5
    %p91 = pnand %p89, %p90
    %p92 = pneg %p91
    // Predicated region
    $region9: #{discriminator_forward.4} parent=5 // pred_check
      _
    $region10: #{discriminator_forward.4} parent=5 // pred_check_branch
      %94 = sbr.rel (%p91) target = $region12
    $region11: #{discriminator_forward.4} parent=5 // pred_region
      %s95 = ssub.s32 %s8, 1
      // Predicated region
      $region13: #{discriminator_forward.4} parent=11 // pred_check
        %p96 = pneg %p55
      $region14: #{discriminator_forward.4} parent=11 // pred_check_branch
        %98 = sbr.rel (%p96) target = $region16
      $region15: #{discriminator_forward.4} parent=11 // pred_region
        _
      $region16: #{discriminator_forward.4} parent=11 // pred_fallthru
        _
    $region12: #{discriminator_forward.4} parent=5 // pred_fallthru
      _
    %p99 = scmp.lt.s32.totalorder %s8, 4
    // Predicated region
    $region17: #{discriminator_forward.4} parent=5 // pred_check
      %p100 = pneg %p99
    $region18: #{discriminator_forward.4} parent=5 // pred_check_branch
      %102 = sbr.rel (%p100) target = $region20
    $region19: #{discriminator_forward.4} parent=5 // pred_region
      // Predicated region
      $region21: #{discriminator_forward.4} parent=19 // pred_check
        %p103 = pneg %p28
      $region22: #{discriminator_forward.4} parent=19 // pred_check_branch
        %105 = sbr.rel (%p103) target = $region24
      $region23: #{discriminator_forward.4} parent=19 // pred_region
        %s106 = smul.u32 256, %s8
        %p107 = scmp.lt.s32.totalorder %s106, 1023
        %s108 = scalar_select %p107, %s106, 1023
        %s109 = smul.addr %s108, 4
        %s110 = scalar_lea.vmem %s0, %s109
        %s111 = smul.u32 256, %s8
      $region24: #{discriminator_forward.4} parent=19 // pred_fallthru
        _
    $region20: #{discriminator_forward.4} parent=5 // pred_fallthru
      _
    %p112 = scmp.le.s32.totalorder 1, %s8
    %p113 = scmp.lt.s32.totalorder %s8, 5
    %p114 = pnand %p112, %p113
    %p115 = pneg %p114
    // Predicated region
    $region25: #{discriminator_forward.4} parent=5 // pred_check
      _
    $region26: #{discriminator_forward.4} parent=5 // pred_check_branch
      %117 = sbr.rel (%p114) target = $region28
    $region27: #{discriminator_forward.4} parent=5 // pred_region
      %s118 = ssub.s32 %s8, 1
      %s119 = smul.u32 256, %s13
      %p120 = scmp.lt.s32.totalorder %s119, 1023
      %s121 = scalar_select %p120, %s119, 1023
      %s122 = smul.addr %s121, 4
      %s123 = scalar_lea.vmem %s0, %s122
      %p124 = pneg %p34
      %p125 = pneg %p31
      %p126 = pneg %p55
      %p127 = pneg %p52
      %p128 = pneg %p81
      %p129 = pneg %p78
      %s130 = smul.u32 256, %s13
      %p131 = scmp.lt.s32.totalorder %s130, 1023
      %s132 = scalar_select %p131, %s130, 1023
      %s133 = smul.addr %s132, 4
      %s134 = scalar_lea.vmem %s2, %s133
      %s135 = smul.u32 256, %s13
      %p136 = scmp.lt.s32.totalorder %s135, 1023
      %s137 = scalar_select %p136, %s135, 1023
      %s138 = smul.addr %s137, 4
      %s139 = scalar_lea.vmem %s0, %s138
      %s140 = smul.u32 256, %s13
      %s141 = smul.u32 256, %s13
      %p142 = scmp.lt.s32.totalorder %s141, 1023
      %s143 = scalar_select %p142, %s141, 1023
      %s144 = smul.addr %s143, 4
      %s145 = scalar_lea.vmem %s2, %s144
      %s146 = smul.u32 256, %s13
      %v148 = vld [vmem:[%s139] sm:$0xf]
      %v149 = vld [vmem:[%s139 + $0x4] sm:$0xf]
      %v150 = vld [vmem:[%s139 + $0x8] sm:$0xf]
      %v151 = vld [vmem:[%s139 + $0xc] sm:$0xf]
      %v152 = vld [vmem:[%s139 + $0x10] sm:$0xf]
      %v153 = vld [vmem:[%s139 + $0x14] sm:$0xf]
      %v154 = vld [vmem:[%s139 + $0x18] sm:$0xf]
      %v155 = vld [vmem:[%s139 + $0x1c] sm:$0xf]
      %v156 = vld [vmem:[%s139 + $0x20] sm:$0xf]
      %v157 = vld [vmem:[%s139 + $0x24] sm:$0xf]
      %v158 = vld [vmem:[%s139 + $0x28] sm:$0xf]
      %v159 = vld [vmem:[%s139 + $0x2c] sm:$0xf]
      %v160 = vld [vmem:[%s139 + $0x30] sm:$0xf]
      %v161 = vld [vmem:[%s139 + $0x34] sm:$0xf]
      %v162 = vld [vmem:[%s139 + $0x38] sm:$0xf]
      %v163 = vld [vmem:[%s139 + $0x3c] sm:$0xf]
      %v164 = vld [vmem:[%s139 + $0x40] sm:$0xf]
      %v165 = vld [vmem:[%s139 + $0x44] sm:$0xf]
      %v166 = vld [vmem:[%s139 + $0x48] sm:$0xf]
      %v167 = vld [vmem:[%s139 + $0x4c] sm:$0xf]
      %v168 = vld [vmem:[%s139 + $0x50] sm:$0xf]
      %v169 = vld [vmem:[%s139 + $0x54] sm:$0xf]
      %v170 = vld [vmem:[%s139 + $0x58] sm:$0xf]
      %v171 = vld [vmem:[%s139 + $0x5c] sm:$0xf]
      %v172 = vld [vmem:[%s139 + $0x60] sm:$0xf]
      %v173 = vld [vmem:[%s139 + $0x64] sm:$0xf]
      %v174 = vld [vmem:[%s139 + $0x68] sm:$0xf]
      %v175 = vld [vmem:[%s139 + $0x6c] sm:$0xf]
      %v176 = vld [vmem:[%s139 + $0x70] sm:$0xf]
      %v177 = vld [vmem:[%s139 + $0x74] sm:$0xf]
      %v178 = vld [vmem:[%s139 + $0x78] sm:$0xf]
      %v179 = vld [vmem:[%s139 + $0x7c] sm:$0xf]
      %v180 = vld [vmem:[%s139 + $0x80] sm:$0xf]
      %v181 = vld [vmem:[%s139 + $0x84] sm:$0xf]
      %v182 = vld [vmem:[%s139 + $0x88] sm:$0xf]
      %v183 = vld [vmem:[%s139 + $0x8c] sm:$0xf]
      %v184 = vld [vmem:[%s139 + $0x90] sm:$0xf]
      %v185 = vld [vmem:[%s139 + $0x94] sm:$0xf]
      %v186 = vld [vmem:[%s139 + $0x98] sm:$0xf]
      %v187 = vld [vmem:[%s139 + $0x9c] sm:$0xf]
      %v188 = vld [vmem:[%s139 + $0xa0] sm:$0xf]
      %v189 = vld [vmem:[%s139 + $0xa4] sm:$0xf]
      %v190 = vld [vmem:[%s139 + $0xa8] sm:$0xf]
      %v191 = vld [vmem:[%s139 + $0xac] sm:$0xf]
      %v192 = vld [vmem:[%s139 + $0xb0] sm:$0xf]
      %v193 = vld [vmem:[%s139 + $0xb4] sm:$0xf]
      %v194 = vld [vmem:[%s139 + $0xb8] sm:$0xf]
      %v195 = vld [vmem:[%s139 + $0xbc] sm:$0xf]
      %v196 = vld [vmem:[%s139 + $0xc0] sm:$0xf]
      %v197 = vld [vmem:[%s139 + $0xc4] sm:$0xf]
      %v198 = vld [vmem:[%s139 + $0xc8] sm:$0xf]
      %v199 = vld [vmem:[%s139 + $0xcc] sm:$0xf]
      %v200 = vld [vmem:[%s139 + $0xd0] sm:$0xf]
      %v201 = vld [vmem:[%s139 + $0xd4] sm:$0xf]
      %v202 = vld [vmem:[%s139 + $0xd8] sm:$0xf]
      %v203 = vld [vmem:[%s139 + $0xdc] sm:$0xf]
      %v204 = vld [vmem:[%s139 + $0xe0] sm:$0xf]
      %v205 = vld [vmem:[%s139 + $0xe4] sm:$0xf]
      %v206 = vld [vmem:[%s139 + $0xe8] sm:$0xf]
      %v207 = vld [vmem:[%s139 + $0xec] sm:$0xf]
      %v208 = vld [vmem:[%s139 + $0xf0] sm:$0xf]
      %v209 = vld [vmem:[%s139 + $0xf4] sm:$0xf]
      %v210 = vld [vmem:[%s139 + $0xf8] sm:$0xf]
      %v211 = vld [vmem:[%s139 + $0xfc] sm:$0xf]
      %v212 = vld [vmem:[%s139 + $0x100] sm:$0xf]
      %v213 = vld [vmem:[%s139 + $0x104] sm:$0xf]
      %v214 = vld [vmem:[%s139 + $0x108] sm:$0xf]
      %v215 = vld [vmem:[%s139 + $0x10c] sm:$0xf]
      %v216 = vld [vmem:[%s139 + $0x110] sm:$0xf]
      %v217 = vld [vmem:[%s139 + $0x114] sm:$0xf]
      %v218 = vld [vmem:[%s139 + $0x118] sm:$0xf]
      %v219 = vld [vmem:[%s139 + $0x11c] sm:$0xf]
      %v220 = vld [vmem:[%s139 + $0x120] sm:$0xf]
      %v221 = vld [vmem:[%s139 + $0x124] sm:$0xf]
      %v222 = vld [vmem:[%s139 + $0x128] sm:$0xf]
      %v223 = vld [vmem:[%s139 + $0x12c] sm:$0xf]
      %v224 = vld [vmem:[%s139 + $0x130] sm:$0xf]
      %v225 = vld [vmem:[%s139 + $0x134] sm:$0xf]
      %v226 = vld [vmem:[%s139 + $0x138] sm:$0xf]
      %v227 = vld [vmem:[%s139 + $0x13c] sm:$0xf]
      %v228 = vld [vmem:[%s139 + $0x140] sm:$0xf]
      %v229 = vld [vmem:[%s139 + $0x144] sm:$0xf]
      %v230 = vld [vmem:[%s139 + $0x148] sm:$0xf]
      %v231 = vld [vmem:[%s139 + $0x14c] sm:$0xf]
      %v232 = vld [vmem:[%s139 + $0x150] sm:$0xf]
      %v233 = vld [vmem:[%s139 + $0x154] sm:$0xf]
      %v234 = vld [vmem:[%s139 + $0x158] sm:$0xf]
      %v235 = vld [vmem:[%s139 + $0x15c] sm:$0xf]
      %v236 = vld [vmem:[%s139 + $0x160] sm:$0xf]
      %v237 = vld [vmem:[%s139 + $0x164] sm:$0xf]
      %v238 = vld [vmem:[%s139 + $0x168] sm:$0xf]
      %v239 = vld [vmem:[%s139 + $0x16c] sm:$0xf]
      %v240 = vld [vmem:[%s139 + $0x170] sm:$0xf]
      %v241 = vld [vmem:[%s139 + $0x174] sm:$0xf]
      %v242 = vld [vmem:[%s139 + $0x178] sm:$0xf]
      %v243 = vld [vmem:[%s139 + $0x17c] sm:$0xf]
      %v244 = vld [vmem:[%s139 + $0x180] sm:$0xf]
      %v245 = vld [vmem:[%s139 + $0x184] sm:$0xf]
      %v246 = vld [vmem:[%s139 + $0x188] sm:$0xf]
      %v247 = vld [vmem:[%s139 + $0x18c] sm:$0xf]
      %v248 = vld [vmem:[%s139 + $0x190] sm:$0xf]
      %v249 = vld [vmem:[%s139 + $0x194] sm:$0xf]
      %v250 = vld [vmem:[%s139 + $0x198] sm:$0xf]
      %v251 = vld [vmem:[%s139 + $0x19c] sm:$0xf]
      %v252 = vld [vmem:[%s139 + $0x1a0] sm:$0xf]
      %v253 = vld [vmem:[%s139 + $0x1a4] sm:$0xf]
      %v254 = vld [vmem:[%s139 + $0x1a8] sm:$0xf]
      %v255 = vld [vmem:[%s139 + $0x1ac] sm:$0xf]
      %v256 = vld [vmem:[%s139 + $0x1b0] sm:$0xf]
      %v257 = vld [vmem:[%s139 + $0x1b4] sm:$0xf]
      %v258 = vld [vmem:[%s139 + $0x1b8] sm:$0xf]
      %v259 = vld [vmem:[%s139 + $0x1bc] sm:$0xf]
      %v260 = vld [vmem:[%s139 + $0x1c0] sm:$0xf]
      %v261 = vld [vmem:[%s139 + $0x1c4] sm:$0xf]
      %v262 = vld [vmem:[%s139 + $0x1c8] sm:$0xf]
      %v263 = vld [vmem:[%s139 + $0x1cc] sm:$0xf]
      %v264 = vld [vmem:[%s139 + $0x1d0] sm:$0xf]
      %v265 = vld [vmem:[%s139 + $0x1d4] sm:$0xf]
      %v266 = vld [vmem:[%s139 + $0x1d8] sm:$0xf]
      %v267 = vld [vmem:[%s139 + $0x1dc] sm:$0xf]
      %v268 = vld [vmem:[%s139 + $0x1e0] sm:$0xf]
      %v269 = vld [vmem:[%s139 + $0x1e4] sm:$0xf]
      %v270 = vld [vmem:[%s139 + $0x1e8] sm:$0xf]
      %v271 = vld [vmem:[%s139 + $0x1ec] sm:$0xf]
      %v272 = vld [vmem:[%s139 + $0x1f0] sm:$0xf]
      %v273 = vld [vmem:[%s139 + $0x1f4] sm:$0xf]
      %v274 = vld [vmem:[%s139 + $0x1f8] sm:$0xf]
      %v275 = vld [vmem:[%s139 + $0x1fc] sm:$0xf]
      %v276 = vld [vmem:[%s139 + $0x200] sm:$0xf]
      %v277 = vld [vmem:[%s139 + $0x204] sm:$0xf]
      %v278 = vld [vmem:[%s139 + $0x208] sm:$0xf]
      %v279 = vld [vmem:[%s139 + $0x20c] sm:$0xf]
      %v280 = vld [vmem:[%s139 + $0x210] sm:$0xf]
      %v281 = vld [vmem:[%s139 + $0x214] sm:$0xf]
      %v282 = vld [vmem:[%s139 + $0x218] sm:$0xf]
      %v283 = vld [vmem:[%s139 + $0x21c] sm:$0xf]
      %v284 = vld [vmem:[%s139 + $0x220] sm:$0xf]
      %v285 = vld [vmem:[%s139 + $0x224] sm:$0xf]
      %v286 = vld [vmem:[%s139 + $0x228] sm:$0xf]
      %v287 = vld [vmem:[%s139 + $0x22c] sm:$0xf]
      %v288 = vld [vmem:[%s139 + $0x230] sm:$0xf]
      %v289 = vld [vmem:[%s139 + $0x234] sm:$0xf]
      %v290 = vld [vmem:[%s139 + $0x238] sm:$0xf]
      %v291 = vld [vmem:[%s139 + $0x23c] sm:$0xf]
      %v292 = vld [vmem:[%s139 + $0x240] sm:$0xf]
      %v293 = vld [vmem:[%s139 + $0x244] sm:$0xf]
      %v294 = vld [vmem:[%s139 + $0x248] sm:$0xf]
      %v295 = vld [vmem:[%s139 + $0x24c] sm:$0xf]
      %v296 = vld [vmem:[%s139 + $0x250] sm:$0xf]
      %v297 = vld [vmem:[%s139 + $0x254] sm:$0xf]
      %v298 = vld [vmem:[%s139 + $0x258] sm:$0xf]
      %v299 = vld [vmem:[%s139 + $0x25c] sm:$0xf]
      %v300 = vld [vmem:[%s139 + $0x260] sm:$0xf]
      %v301 = vld [vmem:[%s139 + $0x264] sm:$0xf]
      %v302 = vld [vmem:[%s139 + $0x268] sm:$0xf]
      %v303 = vld [vmem:[%s139 + $0x26c] sm:$0xf]
      %v304 = vld [vmem:[%s139 + $0x270] sm:$0xf]
      %v305 = vld [vmem:[%s139 + $0x274] sm:$0xf]
      %v306 = vld [vmem:[%s139 + $0x278] sm:$0xf]
      %v307 = vld [vmem:[%s139 + $0x27c] sm:$0xf]
      %v308 = vld [vmem:[%s139 + $0x280] sm:$0xf]
      %v309 = vld [vmem:[%s139 + $0x284] sm:$0xf]
      %v310 = vld [vmem:[%s139 + $0x288] sm:$0xf]
      %v311 = vld [vmem:[%s139 + $0x28c] sm:$0xf]
      %v312 = vld [vmem:[%s139 + $0x290] sm:$0xf]
      %v313 = vld [vmem:[%s139 + $0x294] sm:$0xf]
      %v314 = vld [vmem:[%s139 + $0x298] sm:$0xf]
      %v315 = vld [vmem:[%s139 + $0x29c] sm:$0xf]
      %v316 = vld [vmem:[%s139 + $0x2a0] sm:$0xf]
      %v317 = vld [vmem:[%s139 + $0x2a4] sm:$0xf]
      %v318 = vld [vmem:[%s139 + $0x2a8] sm:$0xf]
      %v319 = vld [vmem:[%s139 + $0x2ac] sm:$0xf]
      %v320 = vld [vmem:[%s139 + $0x2b0] sm:$0xf]
      %v321 = vld [vmem:[%s139 + $0x2b4] sm:$0xf]
      %v322 = vld [vmem:[%s139 + $0x2b8] sm:$0xf]
      %v323 = vld [vmem:[%s139 + $0x2bc] sm:$0xf]
      %v324 = vld [vmem:[%s139 + $0x2c0] sm:$0xf]
      %v325 = vld [vmem:[%s139 + $0x2c4] sm:$0xf]
      %v326 = vld [vmem:[%s139 + $0x2c8] sm:$0xf]
      %v327 = vld [vmem:[%s139 + $0x2cc] sm:$0xf]
      %v328 = vld [vmem:[%s139 + $0x2d0] sm:$0xf]
      %v329 = vld [vmem:[%s139 + $0x2d4] sm:$0xf]
      %v330 = vld [vmem:[%s139 + $0x2d8] sm:$0xf]
      %v331 = vld [vmem:[%s139 + $0x2dc] sm:$0xf]
      %v332 = vld [vmem:[%s139 + $0x2e0] sm:$0xf]
      %v333 = vld [vmem:[%s139 + $0x2e4] sm:$0xf]
      %v334 = vld [vmem:[%s139 + $0x2e8] sm:$0xf]
      %v335 = vld [vmem:[%s139 + $0x2ec] sm:$0xf]
      %v336 = vld [vmem:[%s139 + $0x2f0] sm:$0xf]
      %v337 = vld [vmem:[%s139 + $0x2f4] sm:$0xf]
      %v338 = vld [vmem:[%s139 + $0x2f8] sm:$0xf]
      %v339 = vld [vmem:[%s139 + $0x2fc] sm:$0xf]
      %v340 = vld [vmem:[%s139 + $0x300] sm:$0xf]
      %v341 = vld [vmem:[%s139 + $0x304] sm:$0xf]
      %v342 = vld [vmem:[%s139 + $0x308] sm:$0xf]
      %v343 = vld [vmem:[%s139 + $0x30c] sm:$0xf]
      %v344 = vld [vmem:[%s139 + $0x310] sm:$0xf]
      %v345 = vld [vmem:[%s139 + $0x314] sm:$0xf]
      %v346 = vld [vmem:[%s139 + $0x318] sm:$0xf]
      %v347 = vld [vmem:[%s139 + $0x31c] sm:$0xf]
      %v348 = vld [vmem:[%s139 + $0x320] sm:$0xf]
      %v349 = vld [vmem:[%s139 + $0x324] sm:$0xf]
      %v350 = vld [vmem:[%s139 + $0x328] sm:$0xf]
      %v351 = vld [vmem:[%s139 + $0x32c] sm:$0xf]
      %v352 = vld [vmem:[%s139 + $0x330] sm:$0xf]
      %v353 = vld [vmem:[%s139 + $0x334] sm:$0xf]
      %v354 = vld [vmem:[%s139 + $0x338] sm:$0xf]
      %v355 = vld [vmem:[%s139 + $0x33c] sm:$0xf]
      %v356 = vld [vmem:[%s139 + $0x340] sm:$0xf]
      %v357 = vld [vmem:[%s139 + $0x344] sm:$0xf]
      %v358 = vld [vmem:[%s139 + $0x348] sm:$0xf]
      %v359 = vld [vmem:[%s139 + $0x34c] sm:$0xf]
      %v360 = vld [vmem:[%s139 + $0x350] sm:$0xf]
      %v361 = vld [vmem:[%s139 + $0x354] sm:$0xf]
      %v362 = vld [vmem:[%s139 + $0x358] sm:$0xf]
      %v363 = vld [vmem:[%s139 + $0x35c] sm:$0xf]
      %v364 = vld [vmem:[%s139 + $0x360] sm:$0xf]
      %v365 = vld [vmem:[%s139 + $0x364] sm:$0xf]
      %v366 = vld [vmem:[%s139 + $0x368] sm:$0xf]
      %v367 = vld [vmem:[%s139 + $0x36c] sm:$0xf]
      %v368 = vld [vmem:[%s139 + $0x370] sm:$0xf]
      %v369 = vld [vmem:[%s139 + $0x374] sm:$0xf]
      %v370 = vld [vmem:[%s139 + $0x378] sm:$0xf]
      %v371 = vld [vmem:[%s139 + $0x37c] sm:$0xf]
      %v372 = vld [vmem:[%s139 + $0x380] sm:$0xf]
      %v373 = vld [vmem:[%s139 + $0x384] sm:$0xf]
      %v374 = vld [vmem:[%s139 + $0x388] sm:$0xf]
      %v375 = vld [vmem:[%s139 + $0x38c] sm:$0xf]
      %v376 = vld [vmem:[%s139 + $0x390] sm:$0xf]
      %v377 = vld [vmem:[%s139 + $0x394] sm:$0xf]
      %v378 = vld [vmem:[%s139 + $0x398] sm:$0xf]
      %v379 = vld [vmem:[%s139 + $0x39c] sm:$0xf]
      %v380 = vld [vmem:[%s139 + $0x3a0] sm:$0xf]
      %v381 = vld [vmem:[%s139 + $0x3a4] sm:$0xf]
      %v382 = vld [vmem:[%s139 + $0x3a8] sm:$0xf]
      %v383 = vld [vmem:[%s139 + $0x3ac] sm:$0xf]
      %v384 = vld [vmem:[%s139 + $0x3b0] sm:$0xf]
      %v385 = vld [vmem:[%s139 + $0x3b4] sm:$0xf]
      %v386 = vld [vmem:[%s139 + $0x3b8] sm:$0xf]
      %v387 = vld [vmem:[%s139 + $0x3bc] sm:$0xf]
      %v388 = vld [vmem:[%s139 + $0x3c0] sm:$0xf]
      %v389 = vld [vmem:[%s139 + $0x3c4] sm:$0xf]
      %v390 = vld [vmem:[%s139 + $0x3c8] sm:$0xf]
      %v391 = vld [vmem:[%s139 + $0x3cc] sm:$0xf]
      %v392 = vld [vmem:[%s139 + $0x3d0] sm:$0xf]
      %v393 = vld [vmem:[%s139 + $0x3d4] sm:$0xf]
      %v394 = vld [vmem:[%s139 + $0x3d8] sm:$0xf]
      %v395 = vld [vmem:[%s139 + $0x3dc] sm:$0xf]
      %v396 = vld [vmem:[%s139 + $0x3e0] sm:$0xf]
      %v397 = vld [vmem:[%s139 + $0x3e4] sm:$0xf]
      %v398 = vld [vmem:[%s139 + $0x3e8] sm:$0xf]
      %v399 = vld [vmem:[%s139 + $0x3ec] sm:$0xf]
      %v400 = vld [vmem:[%s139 + $0x3f0] sm:$0xf]
      %v401 = vld [vmem:[%s139 + $0x3f4] sm:$0xf]
      %v402 = vld [vmem:[%s139 + $0x3f8] sm:$0xf]
      %v403 = vld [vmem:[%s139 + $0x3fc] sm:$0xf]
      %v404 = vld [vmem:[%s1] sm:$0xf]
      %v405 = vld [vmem:[%s1 + $0x4] sm:$0xf]
      %v406 = vld [vmem:[%s1 + $0x8] sm:$0xf]
      %v407 = vld [vmem:[%s1 + $0xc] sm:$0xf]
      %v408 = vld [vmem:[%s1 + $0x10] sm:$0xf]
      %v409 = vld [vmem:[%s1 + $0x14] sm:$0xf]
      %v410 = vld [vmem:[%s1 + $0x18] sm:$0xf]
      %v411 = vld [vmem:[%s1 + $0x1c] sm:$0xf]
      %v412 = vld [vmem:[%s1 + $0x20] sm:$0xf]
      %v413 = vld [vmem:[%s1 + $0x24] sm:$0xf]
      %v414 = vld [vmem:[%s1 + $0x28] sm:$0xf]
      %v415 = vld [vmem:[%s1 + $0x2c] sm:$0xf]
      %v416 = vld [vmem:[%s1 + $0x30] sm:$0xf]
      %v417 = vld [vmem:[%s1 + $0x34] sm:$0xf]
      %v418 = vld [vmem:[%s1 + $0x38] sm:$0xf]
      %v419 = vld [vmem:[%s1 + $0x3c] sm:$0xf]
      %v676 = vunpack.c.l.b16 %v148
      %v677 = vunpack.c.l.b16 %v149
      %v678 = vunpack.c.l.b16 %v150
      %v679 = vunpack.c.l.b16 %v151
      %v680 = vunpack.c.l.b16 %v152
      %v681 = vunpack.c.l.b16 %v153
      %v682 = vunpack.c.l.b16 %v154
      %v683 = vunpack.c.l.b16 %v155
      %v684 = vunpack.c.l.b16 %v156
      %v685 = vunpack.c.l.b16 %v157
      %v686 = vunpack.c.l.b16 %v158
      %v687 = vunpack.c.l.b16 %v159
      %v688 = vunpack.c.l.b16 %v160
      %v689 = vunpack.c.l.b16 %v161
      %v690 = vunpack.c.l.b16 %v162
      %v691 = vunpack.c.l.b16 %v163
      %v692 = vunpack.c.l.b16 %v164
      %v693 = vunpack.c.l.b16 %v165
      %v694 = vunpack.c.l.b16 %v166
      %v695 = vunpack.c.l.b16 %v167
      %v696 = vunpack.c.l.b16 %v168
      %v697 = vunpack.c.l.b16 %v169
      %v698 = vunpack.c.l.b16 %v170
      %v699 = vunpack.c.l.b16 %v171
      %v700 = vunpack.c.l.b16 %v172
      %v701 = vunpack.c.l.b16 %v173
      %v702 = vunpack.c.l.b16 %v174
      %v703 = vunpack.c.l.b16 %v175
      %v704 = vunpack.c.l.b16 %v176
      %v705 = vunpack.c.l.b16 %v177
      %v706 = vunpack.c.l.b16 %v178
      %v707 = vunpack.c.l.b16 %v179
      %v708 = vunpack.c.l.b16 %v180
      %v709 = vunpack.c.l.b16 %v181
      %v710 = vunpack.c.l.b16 %v182
      %v711 = vunpack.c.l.b16 %v183
      %v712 = vunpack.c.l.b16 %v184
      %v713 = vunpack.c.l.b16 %v185
      %v714 = vunpack.c.l.b16 %v186
      %v715 = vunpack.c.l.b16 %v187
      %v716 = vunpack.c.l.b16 %v188
      %v717 = vunpack.c.l.b16 %v189
      %v718 = vunpack.c.l.b16 %v190
      %v719 = vunpack.c.l.b16 %v191
      %v720 = vunpack.c.l.b16 %v192
      %v721 = vunpack.c.l.b16 %v193
      %v722 = vunpack.c.l.b16 %v194
      %v723 = vunpack.c.l.b16 %v195
      %v724 = vunpack.c.l.b16 %v196
      %v725 = vunpack.c.l.b16 %v197
      %v726 = vunpack.c.l.b16 %v198
      %v727 = vunpack.c.l.b16 %v199
      %v728 = vunpack.c.l.b16 %v200
      %v729 = vunpack.c.l.b16 %v201
      %v730 = vunpack.c.l.b16 %v202
      %v731 = vunpack.c.l.b16 %v203
      %v732 = vunpack.c.l.b16 %v204
      %v733 = vunpack.c.l.b16 %v205
      %v734 = vunpack.c.l.b16 %v206
      %v735 = vunpack.c.l.b16 %v207
      %v736 = vunpack.c.l.b16 %v208
      %v737 = vunpack.c.l.b16 %v209
      %v738 = vunpack.c.l.b16 %v210
      %v739 = vunpack.c.l.b16 %v211
      %v740 = vunpack.c.l.b16 %v212
      %v741 = vunpack.c.l.b16 %v213
      %v742 = vunpack.c.l.b16 %v214
      %v743 = vunpack.c.l.b16 %v215
      %v744 = vunpack.c.l.b16 %v216
      %v745 = vunpack.c.l.b16 %v217
      %v746 = vunpack.c.l.b16 %v218
      %v747 = vunpack.c.l.b16 %v219
      %v748 = vunpack.c.l.b16 %v220
      %v749 = vunpack.c.l.b16 %v221
      %v750 = vunpack.c.l.b16 %v222
      %v751 = vunpack.c.l.b16 %v223
      %v752 = vunpack.c.l.b16 %v224
      %v753 = vunpack.c.l.b16 %v225
      %v754 = vunpack.c.l.b16 %v226
      %v755 = vunpack.c.l.b16 %v227
      %v756 = vunpack.c.l.b16 %v228
      %v757 = vunpack.c.l.b16 %v229
      %v758 = vunpack.c.l.b16 %v230
      %v759 = vunpack.c.l.b16 %v231
      %v760 = vunpack.c.l.b16 %v232
      %v761 = vunpack.c.l.b16 %v233
      %v762 = vunpack.c.l.b16 %v234
      %v763 = vunpack.c.l.b16 %v235
      %v764 = vunpack.c.l.b16 %v236
      %v765 = vunpack.c.l.b16 %v237
      %v766 = vunpack.c.l.b16 %v238
      %v767 = vunpack.c.l.b16 %v239
      %v768 = vunpack.c.l.b16 %v240
      %v769 = vunpack.c.l.b16 %v241
      %v770 = vunpack.c.l.b16 %v242
      %v771 = vunpack.c.l.b16 %v243
      %v772 = vunpack.c.l.b16 %v244
      %v773 = vunpack.c.l.b16 %v245
      %v774 = vunpack.c.l.b16 %v246
      %v775 = vunpack.c.l.b16 %v247
      %v776 = vunpack.c.l.b16 %v248
      %v777 = vunpack.c.l.b16 %v249
      %v778 = vunpack.c.l.b16 %v250
      %v779 = vunpack.c.l.b16 %v251
      %v780 = vunpack.c.l.b16 %v252
      %v781 = vunpack.c.l.b16 %v253
      %v782 = vunpack.c.l.b16 %v254
      %v783 = vunpack.c.l.b16 %v255
      %v784 = vunpack.c.l.b16 %v256
      %v785 = vunpack.c.l.b16 %v257
      %v786 = vunpack.c.l.b16 %v258
      %v787 = vunpack.c.l.b16 %v259
      %v788 = vunpack.c.l.b16 %v260
      %v789 = vunpack.c.l.b16 %v261
      %v790 = vunpack.c.l.b16 %v262
      %v791 = vunpack.c.l.b16 %v263
      %v792 = vunpack.c.l.b16 %v264
      %v793 = vunpack.c.l.b16 %v265
      %v794 = vunpack.c.l.b16 %v266
      %v795 = vunpack.c.l.b16 %v267
      %v796 = vunpack.c.l.b16 %v268
      %v797 = vunpack.c.l.b16 %v269
      %v798 = vunpack.c.l.b16 %v270
      %v799 = vunpack.c.l.b16 %v271
      %v800 = vunpack.c.l.b16 %v272
      %v801 = vunpack.c.l.b16 %v273
      %v802 = vunpack.c.l.b16 %v274
      %v803 = vunpack.c.l.b16 %v275
      %v804 = vunpack.c.l.b16 %v276
      %v805 = vunpack.c.l.b16 %v277
      %v806 = vunpack.c.l.b16 %v278
      %v807 = vunpack.c.l.b16 %v279
      %v808 = vunpack.c.l.b16 %v280
      %v809 = vunpack.c.l.b16 %v281
      %v810 = vunpack.c.l.b16 %v282
      %v811 = vunpack.c.l.b16 %v283
      %v812 = vunpack.c.l.b16 %v284
      %v813 = vunpack.c.l.b16 %v285
      %v814 = vunpack.c.l.b16 %v286
      %v815 = vunpack.c.l.b16 %v287
      %v816 = vunpack.c.l.b16 %v288
      %v817 = vunpack.c.l.b16 %v289
      %v818 = vunpack.c.l.b16 %v290
      %v819 = vunpack.c.l.b16 %v291
      %v820 = vunpack.c.l.b16 %v292
      %v821 = vunpack.c.l.b16 %v293
      %v822 = vunpack.c.l.b16 %v294
      %v823 = vunpack.c.l.b16 %v295
      %v824 = vunpack.c.l.b16 %v296
      %v825 = vunpack.c.l.b16 %v297
      %v826 = vunpack.c.l.b16 %v298
      %v827 = vunpack.c.l.b16 %v299
      %v828 = vunpack.c.l.b16 %v300
      %v829 = vunpack.c.l.b16 %v301
      %v830 = vunpack.c.l.b16 %v302
      %v831 = vunpack.c.l.b16 %v303
      %v832 = vunpack.c.l.b16 %v304
      %v833 = vunpack.c.l.b16 %v305
      %v834 = vunpack.c.l.b16 %v306
      %v835 = vunpack.c.l.b16 %v307
      %v836 = vunpack.c.l.b16 %v308
      %v837 = vunpack.c.l.b16 %v309
      %v838 = vunpack.c.l.b16 %v310
      %v839 = vunpack.c.l.b16 %v311
      %v840 = vunpack.c.l.b16 %v312
      %v841 = vunpack.c.l.b16 %v313
      %v842 = vunpack.c.l.b16 %v314
      %v843 = vunpack.c.l.b16 %v315
      %v844 = vunpack.c.l.b16 %v316
      %v845 = vunpack.c.l.b16 %v317
      %v846 = vunpack.c.l.b16 %v318
      %v847 = vunpack.c.l.b16 %v319
      %v848 = vunpack.c.l.b16 %v320
      %v849 = vunpack.c.l.b16 %v321
      %v850 = vunpack.c.l.b16 %v322
      %v851 = vunpack.c.l.b16 %v323
      %v852 = vunpack.c.l.b16 %v324
      %v853 = vunpack.c.l.b16 %v325
      %v854 = vunpack.c.l.b16 %v326
      %v855 = vunpack.c.l.b16 %v327
      %v856 = vunpack.c.l.b16 %v328
      %v857 = vunpack.c.l.b16 %v329
      %v858 = vunpack.c.l.b16 %v330
      %v859 = vunpack.c.l.b16 %v331
      %v860 = vunpack.c.l.b16 %v332
      %v861 = vunpack.c.l.b16 %v333
      %v862 = vunpack.c.l.b16 %v334
      %v863 = vunpack.c.l.b16 %v335
      %v864 = vunpack.c.l.b16 %v336
      %v865 = vunpack.c.l.b16 %v337
      %v866 = vunpack.c.l.b16 %v338
      %v867 = vunpack.c.l.b16 %v339
      %v868 = vunpack.c.l.b16 %v340
      %v869 = vunpack.c.l.b16 %v341
      %v870 = vunpack.c.l.b16 %v342
      %v871 = vunpack.c.l.b16 %v343
      %v872 = vunpack.c.l.b16 %v344
      %v873 = vunpack.c.l.b16 %v345
      %v874 = vunpack.c.l.b16 %v346
      %v875 = vunpack.c.l.b16 %v347
      %v876 = vunpack.c.l.b16 %v348
      %v877 = vunpack.c.l.b16 %v349
      %v878 = vunpack.c.l.b16 %v350
      %v879 = vunpack.c.l.b16 %v351
      %v880 = vunpack.c.l.b16 %v352
      %v881 = vunpack.c.l.b16 %v353
      %v882 = vunpack.c.l.b16 %v354
      %v883 = vunpack.c.l.b16 %v355
      %v884 = vunpack.c.l.b16 %v356
      %v885 = vunpack.c.l.b16 %v357
      %v886 = vunpack.c.l.b16 %v358
      %v887 = vunpack.c.l.b16 %v359
      %v888 = vunpack.c.l.b16 %v360
      %v889 = vunpack.c.l.b16 %v361
      %v890 = vunpack.c.l.b16 %v362
      %v891 = vunpack.c.l.b16 %v363
      %v892 = vunpack.c.l.b16 %v364
      %v893 = vunpack.c.l.b16 %v365
      %v894 = vunpack.c.l.b16 %v366
      %v895 = vunpack.c.l.b16 %v367
      %v896 = vunpack.c.l.b16 %v368
      %v897 = vunpack.c.l.b16 %v369
      %v898 = vunpack.c.l.b16 %v370
      %v899 = vunpack.c.l.b16 %v371
      %v900 = vunpack.c.l.b16 %v372
      %v901 = vunpack.c.l.b16 %v373
      %v902 = vunpack.c.l.b16 %v374
      %v903 = vunpack.c.l.b16 %v375
      %v904 = vunpack.c.l.b16 %v376
      %v905 = vunpack.c.l.b16 %v377
      %v906 = vunpack.c.l.b16 %v378
      %v907 = vunpack.c.l.b16 %v379
      %v908 = vunpack.c.l.b16 %v380
      %v909 = vunpack.c.l.b16 %v381
      %v910 = vunpack.c.l.b16 %v382
      %v911 = vunpack.c.l.b16 %v383
      %v912 = vunpack.c.l.b16 %v384
      %v913 = vunpack.c.l.b16 %v385
      %v914 = vunpack.c.l.b16 %v386
      %v915 = vunpack.c.l.b16 %v387
      %v916 = vunpack.c.l.b16 %v388
      %v917 = vunpack.c.l.b16 %v389
      %v918 = vunpack.c.l.b16 %v390
      %v919 = vunpack.c.l.b16 %v391
      %v920 = vunpack.c.l.b16 %v392
      %v921 = vunpack.c.l.b16 %v393
      %v922 = vunpack.c.l.b16 %v394
      %v923 = vunpack.c.l.b16 %v395
      %v924 = vunpack.c.l.b16 %v396
      %v925 = vunpack.c.l.b16 %v397
      %v926 = vunpack.c.l.b16 %v398
      %v927 = vunpack.c.l.b16 %v399
      %v928 = vunpack.c.l.b16 %v400
      %v929 = vunpack.c.l.b16 %v401
      %v930 = vunpack.c.l.b16 %v402
      %v931 = vunpack.c.l.b16 %v403
      %v932 = vpack.c.b16 %v677, %v676
      %v933 = vpack.c.b16 %v679, %v678
      %v934 = vpack.c.b16 %v681, %v680
      %v935 = vpack.c.b16 %v683, %v682
      %v936 = vpack.c.b16 %v685, %v684
      %v937 = vpack.c.b16 %v687, %v686
      %v938 = vpack.c.b16 %v689, %v688
      %v939 = vpack.c.b16 %v691, %v690
      %v940 = vpack.c.b16 %v693, %v692
      %v941 = vpack.c.b16 %v695, %v694
      %v942 = vpack.c.b16 %v697, %v696
      %v943 = vpack.c.b16 %v699, %v698
      %v944 = vpack.c.b16 %v701, %v700
      %v945 = vpack.c.b16 %v703, %v702
      %v946 = vpack.c.b16 %v705, %v704
      %v947 = vpack.c.b16 %v707, %v706
      %v948 = vpack.c.b16 %v709, %v708
      %v949 = vpack.c.b16 %v711, %v710
      %v950 = vpack.c.b16 %v713, %v712
      %v951 = vpack.c.b16 %v715, %v714
      %v952 = vpack.c.b16 %v717, %v716
      %v953 = vpack.c.b16 %v719, %v718
      %v954 = vpack.c.b16 %v721, %v720
      %v955 = vpack.c.b16 %v723, %v722
      %v956 = vpack.c.b16 %v725, %v724
      %v957 = vpack.c.b16 %v727, %v726
      %v958 = vpack.c.b16 %v729, %v728
      %v959 = vpack.c.b16 %v731, %v730
      %v960 = vpack.c.b16 %v733, %v732
      %v961 = vpack.c.b16 %v735, %v734
      %v962 = vpack.c.b16 %v737, %v736
      %v963 = vpack.c.b16 %v739, %v738
      %v964 = vpack.c.b16 %v741, %v740
      %v965 = vpack.c.b16 %v743, %v742
      %v966 = vpack.c.b16 %v745, %v744
      %v967 = vpack.c.b16 %v747, %v746
      %v968 = vpack.c.b16 %v749, %v748
      %v969 = vpack.c.b16 %v751, %v750
      %v970 = vpack.c.b16 %v753, %v752
      %v971 = vpack.c.b16 %v755, %v754
      %v972 = vpack.c.b16 %v757, %v756
      %v973 = vpack.c.b16 %v759, %v758
      %v974 = vpack.c.b16 %v761, %v760
      %v975 = vpack.c.b16 %v763, %v762
      %v976 = vpack.c.b16 %v765, %v764
      %v977 = vpack.c.b16 %v767, %v766
      %v978 = vpack.c.b16 %v769, %v768
      %v979 = vpack.c.b16 %v771, %v770
      %v980 = vpack.c.b16 %v773, %v772
      %v981 = vpack.c.b16 %v775, %v774
      %v982 = vpack.c.b16 %v777, %v776
      %v983 = vpack.c.b16 %v779, %v778
      %v984 = vpack.c.b16 %v781, %v780
      %v985 = vpack.c.b16 %v783, %v782
      %v986 = vpack.c.b16 %v785, %v784
      %v987 = vpack.c.b16 %v787, %v786
      %v988 = vpack.c.b16 %v789, %v788
      %v989 = vpack.c.b16 %v791, %v790
      %v990 = vpack.c.b16 %v793, %v792
      %v991 = vpack.c.b16 %v795, %v794
      %v992 = vpack.c.b16 %v797, %v796
      %v993 = vpack.c.b16 %v799, %v798
      %v994 = vpack.c.b16 %v801, %v800
      %v995 = vpack.c.b16 %v803, %v802
      %v996 = vpack.c.b16 %v805, %v804
      %v997 = vpack.c.b16 %v807, %v806
      %v998 = vpack.c.b16 %v809, %v808
      %v999 = vpack.c.b16 %v811, %v810
      %v1000 = vpack.c.b16 %v813, %v812
      %v1001 = vpack.c.b16 %v815, %v814
      %v1002 = vpack.c.b16 %v817, %v816
      %v1003 = vpack.c.b16 %v819, %v818
      %v1004 = vpack.c.b16 %v821, %v820
      %v1005 = vpack.c.b16 %v823, %v822
      %v1006 = vpack.c.b16 %v825, %v824
      %v1007 = vpack.c.b16 %v827, %v826
      %v1008 = vpack.c.b16 %v829, %v828
      %v1009 = vpack.c.b16 %v831, %v830
      %v1010 = vpack.c.b16 %v833, %v832
      %v1011 = vpack.c.b16 %v835, %v834
      %v1012 = vpack.c.b16 %v837, %v836
      %v1013 = vpack.c.b16 %v839, %v838
      %v1014 = vpack.c.b16 %v841, %v840
      %v1015 = vpack.c.b16 %v843, %v842
      %v1016 = vpack.c.b16 %v845, %v844
      %v1017 = vpack.c.b16 %v847, %v846
      %v1018 = vpack.c.b16 %v849, %v848
      %v1019 = vpack.c.b16 %v851, %v850
      %v1020 = vpack.c.b16 %v853, %v852
      %v1021 = vpack.c.b16 %v855, %v854
      %v1022 = vpack.c.b16 %v857, %v856
      %v1023 = vpack.c.b16 %v859, %v858
      %v1024 = vpack.c.b16 %v861, %v860
      %v1025 = vpack.c.b16 %v863, %v862
      %v1026 = vpack.c.b16 %v865, %v864
      %v1027 = vpack.c.b16 %v867, %v866
      %v1028 = vpack.c.b16 %v869, %v868
      %v1029 = vpack.c.b16 %v871, %v870
      %v1030 = vpack.c.b16 %v873, %v872
      %v1031 = vpack.c.b16 %v875, %v874
      %v1032 = vpack.c.b16 %v877, %v876
      %v1033 = vpack.c.b16 %v879, %v878
      %v1034 = vpack.c.b16 %v881, %v880
      %v1035 = vpack.c.b16 %v883, %v882
      %v1036 = vpack.c.b16 %v885, %v884
      %v1037 = vpack.c.b16 %v887, %v886
      %v1038 = vpack.c.b16 %v889, %v888
      %v1039 = vpack.c.b16 %v891, %v890
      %v1040 = vpack.c.b16 %v893, %v892
      %v1041 = vpack.c.b16 %v895, %v894
      %v1042 = vpack.c.b16 %v897, %v896
      %v1043 = vpack.c.b16 %v899, %v898
      %v1044 = vpack.c.b16 %v901, %v900
      %v1045 = vpack.c.b16 %v903, %v902
      %v1046 = vpack.c.b16 %v905, %v904
      %v1047 = vpack.c.b16 %v907, %v906
      %v1048 = vpack.c.b16 %v909, %v908
      %v1049 = vpack.c.b16 %v911, %v910
      %v1050 = vpack.c.b16 %v913, %v912
      %v1051 = vpack.c.b16 %v915, %v914
      %v1052 = vpack.c.b16 %v917, %v916
      %v1053 = vpack.c.b16 %v919, %v918
      %v1054 = vpack.c.b16 %v921, %v920
      %v1055 = vpack.c.b16 %v923, %v922
      %v1056 = vpack.c.b16 %v925, %v924
      %v1057 = vpack.c.b16 %v927, %v926
      %v1058 = vpack.c.b16 %v929, %v928
      %v1059 = vpack.c.b16 %v931, %v930
      %v1204 = vunpack.c.l.b16 %v404
      %v1205 = vunpack.c.l.b16 %v405
      %v1206 = vunpack.c.l.b16 %v406
      %v1207 = vunpack.c.l.b16 %v407
      %v1208 = vunpack.c.l.b16 %v408
      %v1209 = vunpack.c.l.b16 %v409
      %v1210 = vunpack.c.l.b16 %v410
      %v1211 = vunpack.c.l.b16 %v411
      %v1212 = vunpack.c.l.b16 %v412
      %v1213 = vunpack.c.l.b16 %v413
      %v1214 = vunpack.c.l.b16 %v414
      %v1215 = vunpack.c.l.b16 %v415
      %v1216 = vunpack.c.l.b16 %v416
      %v1217 = vunpack.c.l.b16 %v417
      %v1218 = vunpack.c.l.b16 %v418
      %v1219 = vunpack.c.l.b16 %v419
      %v1220 = vpack.c.b16 %v1205, %v1204
      %v1221 = vpack.c.b16 %v1207, %v1206
      %v1222 = vpack.c.b16 %v1209, %v1208
      %v1223 = vpack.c.b16 %v1211, %v1210
      %v1224 = vpack.c.b16 %v1213, %v1212
      %v1225 = vpack.c.b16 %v1215, %v1214
      %v1226 = vpack.c.b16 %v1217, %v1216
      %v1227 = vpack.c.b16 %v1219, %v1218
      %1236 = vmatprep.subr.bf16.mxu0 0
      %1237 = vmatpush1.bf16.msra.mxu0 %v1227
      %1238 = vmatprep.subr.bf16.mxu0 0
      %1239 = vmatpush1.bf16.msra.mxu0 %v1226
      %1240 = vmatprep.subr.bf16.mxu0 0
      %1241 = vmatpush1.bf16.msra.mxu0 %v1225
      %1242 = vmatprep.subr.bf16.mxu0 0
      %1243 = vmatpush1.bf16.msra.mxu0 %v1224
      %1244 = vmatprep.subr.bf16.mxu0 0
      %1245 = vmatpush1.bf16.msra.mxu0 %v1223
      %1246 = vmatprep.subr.bf16.mxu0 0
      %1247 = vmatpush1.bf16.msra.mxu0 %v1222
      %1248 = vmatprep.subr.bf16.mxu0 0
      %1249 = vmatpush1.bf16.msra.mxu0 %v1221
      %1250 = vmatprep.subr.bf16.mxu0 0
      %1251 = vmatpush1.bf16.msra.mxu0 %v1220
      %1252 = vmatprep.subr.bf16.mxu0 0
      %1253 = vmatpush2.bf16.msra.mxu0 0
      %1254 = vmatprep.subr.bf16.mxu0 0
      %1255 = vmatpush2.bf16.msra.mxu0 0
      %1256 = vmatprep.subr.bf16.mxu0 0
      %1257 = vmatpush2.bf16.msra.mxu0 0
      %1258 = vmatprep.subr.bf16.mxu0 0
      %1259 = vmatpush2.bf16.msra.mxu0 0
      %1260 = vmatprep.subr.bf16.mxu0 0
      %1261 = vmatpush2.bf16.msra.mxu0 0
      %1262 = vmatprep.subr.bf16.mxu0 0
      %1263 = vmatpush2.bf16.msra.mxu0 0
      %1264 = vmatprep.subr.bf16.mxu0 0
      %1265 = vmatpush2.bf16.msra.mxu0 0
      %1266 = vmatprep.subr.bf16.mxu0 0
      %1267 = vmatpush2.bf16.msra.mxu0 0
      %1268 = vmatprep.mubr.bf16.mxu0 0
      %1269 = vmatmul.mubr.bf16.gmra.mxu0 %v932
      %v1270 = vpop.f32.mrf.mxu0
      %v1271 = vadd.f32 0.0, %v1270
      %v1272 = vpop.f32.mrf.mxu0
      %v1273 = vpop.f32.mrf.mxu0
      %v1274 = vadd.f32 0.0, %v1273
      %v1275 = vpop.f32.mrf.mxu0
      %1276 = vmatprep.mubr.bf16.mxu0 0
      %1277 = vmatmul.mubr.bf16.gmra.mxu0 %v933
      %v1278 = vpop.f32.mrf.mxu0
      %v1279 = vadd.f32 0.0, %v1278
      %v1280 = vpop.f32.mrf.mxu0
      %v1281 = vpop.f32.mrf.mxu0
      %v1282 = vadd.f32 0.0, %v1281
      %v1283 = vpop.f32.mrf.mxu0
      %1284 = vmatprep.mubr.bf16.mxu0 0
      %1285 = vmatmul.mubr.bf16.gmra.mxu0 %v934
      %v1286 = vpop.f32.mrf.mxu0
      %v1287 = vadd.f32 0.0, %v1286
      %v1288 = vpop.f32.mrf.mxu0
      %v1289 = vpop.f32.mrf.mxu0
      %v1290 = vadd.f32 0.0, %v1289
      %v1291 = vpop.f32.mrf.mxu0
      %1292 = vmatprep.mubr.bf16.mxu0 0
      %1293 = vmatmul.mubr.bf16.gmra.mxu0 %v935
      %v1294 = vpop.f32.mrf.mxu0
      %v1295 = vadd.f32 0.0, %v1294
      %v1296 = vpop.f32.mrf.mxu0
      %v1297 = vpop.f32.mrf.mxu0
      %v1298 = vadd.f32 0.0, %v1297
      %v1299 = vpop.f32.mrf.mxu0
      %1300 = vmatprep.mubr.bf16.mxu0 0
      %1301 = vmatmul.mubr.bf16.gmra.mxu0 %v936
      %v1302 = vpop.f32.mrf.mxu0
      %v1303 = vadd.f32 0.0, %v1302
      %v1304 = vpop.f32.mrf.mxu0
      %v1305 = vpop.f32.mrf.mxu0
      %v1306 = vadd.f32 0.0, %v1305
      %v1307 = vpop.f32.mrf.mxu0
      %1308 = vmatprep.mubr.bf16.mxu0 0
      %1309 = vmatmul.mubr.bf16.gmra.mxu0 %v937
      %v1310 = vpop.f32.mrf.mxu0
      %v1311 = vadd.f32 0.0, %v1310
      %v1312 = vpop.f32.mrf.mxu0
      %v1313 = vpop.f32.mrf.mxu0
      %v1314 = vadd.f32 0.0, %v1313
      %v1315 = vpop.f32.mrf.mxu0
      %1316 = vmatprep.mubr.bf16.mxu0 0
      %1317 = vmatmul.mubr.bf16.gmra.mxu0 %v938
      %v1318 = vpop.f32.mrf.mxu0
      %v1319 = vadd.f32 0.0, %v1318
      %v1320 = vpop.f32.mrf.mxu0
      %v1321 = vpop.f32.mrf.mxu0
      %v1322 = vadd.f32 0.0, %v1321
      %v1323 = vpop.f32.mrf.mxu0
      %1324 = vmatprep.mubr.bf16.mxu0 0
      %1325 = vmatmul.mubr.bf16.gmra.mxu0 %v939
      %v1326 = vpop.f32.mrf.mxu0
      %v1327 = vadd.f32 0.0, %v1326
      %v1328 = vpop.f32.mrf.mxu0
      %v1329 = vpop.f32.mrf.mxu0
      %v1330 = vadd.f32 0.0, %v1329
      %v1331 = vpop.f32.mrf.mxu0
      %1332 = vmatprep.mubr.bf16.mxu0 0
      %1333 = vmatmul.mubr.bf16.gmra.mxu0 %v940
      %v1334 = vpop.f32.mrf.mxu0
      %v1335 = vadd.f32 0.0, %v1334
      %v1336 = vpop.f32.mrf.mxu0
      %v1337 = vpop.f32.mrf.mxu0
      %v1338 = vadd.f32 0.0, %v1337
      %v1339 = vpop.f32.mrf.mxu0
      %1340 = vmatprep.mubr.bf16.mxu0 0
      %1341 = vmatmul.mubr.bf16.gmra.mxu0 %v941
      %v1342 = vpop.f32.mrf.mxu0
      %v1343 = vadd.f32 0.0, %v1342
      %v1344 = vpop.f32.mrf.mxu0
      %v1345 = vpop.f32.mrf.mxu0
      %v1346 = vadd.f32 0.0, %v1345
      %v1347 = vpop.f32.mrf.mxu0
      %1348 = vmatprep.mubr.bf16.mxu0 0
      %1349 = vmatmul.mubr.bf16.gmra.mxu0 %v942
      %v1350 = vpop.f32.mrf.mxu0
      %v1351 = vadd.f32 0.0, %v1350
      %v1352 = vpop.f32.mrf.mxu0
      %v1353 = vpop.f32.mrf.mxu0
      %v1354 = vadd.f32 0.0, %v1353
      %v1355 = vpop.f32.mrf.mxu0
      %1356 = vmatprep.mubr.bf16.mxu0 0
      %1357 = vmatmul.mubr.bf16.gmra.mxu0 %v943
      %v1358 = vpop.f32.mrf.mxu0
      %v1359 = vadd.f32 0.0, %v1358
      %v1360 = vpop.f32.mrf.mxu0
      %v1361 = vpop.f32.mrf.mxu0
      %v1362 = vadd.f32 0.0, %v1361
      %v1363 = vpop.f32.mrf.mxu0
      %1364 = vmatprep.mubr.bf16.mxu0 0
      %1365 = vmatmul.mubr.bf16.gmra.mxu0 %v944
      %v1366 = vpop.f32.mrf.mxu0
      %v1367 = vadd.f32 0.0, %v1366
      %v1368 = vpop.f32.mrf.mxu0
      %v1369 = vpop.f32.mrf.mxu0
      %v1370 = vadd.f32 0.0, %v1369
      %v1371 = vpop.f32.mrf.mxu0
      %1372 = vmatprep.mubr.bf16.mxu0 0
      %1373 = vmatmul.mubr.bf16.gmra.mxu0 %v945
      %v1374 = vpop.f32.mrf.mxu0
      %v1375 = vadd.f32 0.0, %v1374
      %v1376 = vpop.f32.mrf.mxu0
      %v1377 = vpop.f32.mrf.mxu0
      %v1378 = vadd.f32 0.0, %v1377
      %v1379 = vpop.f32.mrf.mxu0
      %1380 = vmatprep.mubr.bf16.mxu0 0
      %1381 = vmatmul.mubr.bf16.gmra.mxu0 %v946
      %v1382 = vpop.f32.mrf.mxu0
      %v1383 = vadd.f32 0.0, %v1382
      %v1384 = vpop.f32.mrf.mxu0
      %v1385 = vpop.f32.mrf.mxu0
      %v1386 = vadd.f32 0.0, %v1385
      %v1387 = vpop.f32.mrf.mxu0
      %1388 = vmatprep.mubr.bf16.mxu0 0
      %1389 = vmatmul.mubr.bf16.gmra.mxu0 %v947
      %v1390 = vpop.f32.mrf.mxu0
      %v1391 = vadd.f32 0.0, %v1390
      %v1392 = vpop.f32.mrf.mxu0
      %v1393 = vpop.f32.mrf.mxu0
      %v1394 = vadd.f32 0.0, %v1393
      %v1395 = vpop.f32.mrf.mxu0
      %1396 = vmatprep.mubr.bf16.mxu0 0
      %1397 = vmatmul.mubr.bf16.gmra.mxu0 %v948
      %v1398 = vpop.f32.mrf.mxu0
      %v1399 = vadd.f32 0.0, %v1398
      %v1400 = vpop.f32.mrf.mxu0
      %v1401 = vpop.f32.mrf.mxu0
      %v1402 = vadd.f32 0.0, %v1401
      %v1403 = vpop.f32.mrf.mxu0
      %1404 = vmatprep.mubr.bf16.mxu0 0
      %1405 = vmatmul.mubr.bf16.gmra.mxu0 %v949
      %v1406 = vpop.f32.mrf.mxu0
      %v1407 = vadd.f32 0.0, %v1406
      %v1408 = vpop.f32.mrf.mxu0
      %v1409 = vpop.f32.mrf.mxu0
      %v1410 = vadd.f32 0.0, %v1409
      %v1411 = vpop.f32.mrf.mxu0
      %1412 = vmatprep.mubr.bf16.mxu0 0
      %1413 = vmatmul.mubr.bf16.gmra.mxu0 %v950
      %v1414 = vpop.f32.mrf.mxu0
      %v1415 = vadd.f32 0.0, %v1414
      %v1416 = vpop.f32.mrf.mxu0
      %v1417 = vpop.f32.mrf.mxu0
      %v1418 = vadd.f32 0.0, %v1417
      %v1419 = vpop.f32.mrf.mxu0
      %1420 = vmatprep.mubr.bf16.mxu0 0
      %1421 = vmatmul.mubr.bf16.gmra.mxu0 %v951
      %v1422 = vpop.f32.mrf.mxu0
      %v1423 = vadd.f32 0.0, %v1422
      %v1424 = vpop.f32.mrf.mxu0
      %v1425 = vpop.f32.mrf.mxu0
      %v1426 = vadd.f32 0.0, %v1425
      %v1427 = vpop.f32.mrf.mxu0
      %1428 = vmatprep.mubr.bf16.mxu0 0
      %1429 = vmatmul.mubr.bf16.gmra.mxu0 %v952
      %v1430 = vpop.f32.mrf.mxu0
      %v1431 = vadd.f32 0.0, %v1430
      %v1432 = vpop.f32.mrf.mxu0
      %v1433 = vpop.f32.mrf.mxu0
      %v1434 = vadd.f32 0.0, %v1433
      %v1435 = vpop.f32.mrf.mxu0
      %1436 = vmatprep.mubr.bf16.mxu0 0
      %1437 = vmatmul.mubr.bf16.gmra.mxu0 %v953
      %v1438 = vpop.f32.mrf.mxu0
      %v1439 = vadd.f32 0.0, %v1438
      %v1440 = vpop.f32.mrf.mxu0
      %v1441 = vpop.f32.mrf.mxu0
      %v1442 = vadd.f32 0.0, %v1441
      %v1443 = vpop.f32.mrf.mxu0
      %1444 = vmatprep.mubr.bf16.mxu0 0
      %1445 = vmatmul.mubr.bf16.gmra.mxu0 %v954
      %v1446 = vpop.f32.mrf.mxu0
      %v1447 = vadd.f32 0.0, %v1446
      %v1448 = vpop.f32.mrf.mxu0
      %v1449 = vpop.f32.mrf.mxu0
      %v1450 = vadd.f32 0.0, %v1449
      %v1451 = vpop.f32.mrf.mxu0
      %1452 = vmatprep.mubr.bf16.mxu0 0
      %1453 = vmatmul.mubr.bf16.gmra.mxu0 %v955
      %v1454 = vpop.f32.mrf.mxu0
      %v1455 = vadd.f32 0.0, %v1454
      %v1456 = vpop.f32.mrf.mxu0
      %v1457 = vpop.f32.mrf.mxu0
      %v1458 = vadd.f32 0.0, %v1457
      %v1459 = vpop.f32.mrf.mxu0
      %1460 = vmatprep.mubr.bf16.mxu0 0
      %1461 = vmatmul.mubr.bf16.gmra.mxu0 %v956
      %v1462 = vpop.f32.mrf.mxu0
      %v1463 = vadd.f32 0.0, %v1462
      %v1464 = vpop.f32.mrf.mxu0
      %v1465 = vpop.f32.mrf.mxu0
      %v1466 = vadd.f32 0.0, %v1465
      %v1467 = vpop.f32.mrf.mxu0
      %1468 = vmatprep.mubr.bf16.mxu0 0
      %1469 = vmatmul.mubr.bf16.gmra.mxu0 %v957
      %v1470 = vpop.f32.mrf.mxu0
      %v1471 = vadd.f32 0.0, %v1470
      %v1472 = vpop.f32.mrf.mxu0
      %v1473 = vpop.f32.mrf.mxu0
      %v1474 = vadd.f32 0.0, %v1473
      %v1475 = vpop.f32.mrf.mxu0
      %1476 = vmatprep.mubr.bf16.mxu0 0
      %1477 = vmatmul.mubr.bf16.gmra.mxu0 %v958
      %v1478 = vpop.f32.mrf.mxu0
      %v1479 = vadd.f32 0.0, %v1478
      %v1480 = vpop.f32.mrf.mxu0
      %v1481 = vpop.f32.mrf.mxu0
      %v1482 = vadd.f32 0.0, %v1481
      %v1483 = vpop.f32.mrf.mxu0
      %1484 = vmatprep.mubr.bf16.mxu0 0
      %1485 = vmatmul.mubr.bf16.gmra.mxu0 %v959
      %v1486 = vpop.f32.mrf.mxu0
      %v1487 = vadd.f32 0.0, %v1486
      %v1488 = vpop.f32.mrf.mxu0
      %v1489 = vpop.f32.mrf.mxu0
      %v1490 = vadd.f32 0.0, %v1489
      %v1491 = vpop.f32.mrf.mxu0
      %1492 = vmatprep.mubr.bf16.mxu0 0
      %1493 = vmatmul.mubr.bf16.gmra.mxu0 %v960
      %v1494 = vpop.f32.mrf.mxu0
      %v1495 = vadd.f32 0.0, %v1494
      %v1496 = vpop.f32.mrf.mxu0
      %v1497 = vpop.f32.mrf.mxu0
      %v1498 = vadd.f32 0.0, %v1497
      %v1499 = vpop.f32.mrf.mxu0
      %1500 = vmatprep.mubr.bf16.mxu0 0
      %1501 = vmatmul.mubr.bf16.gmra.mxu0 %v961
      %v1502 = vpop.f32.mrf.mxu0
      %v1503 = vadd.f32 0.0, %v1502
      %v1504 = vpop.f32.mrf.mxu0
      %v1505 = vpop.f32.mrf.mxu0
      %v1506 = vadd.f32 0.0, %v1505
      %v1507 = vpop.f32.mrf.mxu0
      %1508 = vmatprep.mubr.bf16.mxu0 0
      %1509 = vmatmul.mubr.bf16.gmra.mxu0 %v962
      %v1510 = vpop.f32.mrf.mxu0
      %v1511 = vadd.f32 0.0, %v1510
      %v1512 = vpop.f32.mrf.mxu0
      %v1513 = vpop.f32.mrf.mxu0
      %v1514 = vadd.f32 0.0, %v1513
      %v1515 = vpop.f32.mrf.mxu0
      %1516 = vmatprep.mubr.bf16.mxu0 0
      %1517 = vmatmul.mubr.bf16.gmra.mxu0 %v963
      %v1518 = vpop.f32.mrf.mxu0
      %v1519 = vadd.f32 0.0, %v1518
      %v1520 = vpop.f32.mrf.mxu0
      %v1521 = vpop.f32.mrf.mxu0
      %v1522 = vadd.f32 0.0, %v1521
      %v1523 = vpop.f32.mrf.mxu0
      %1524 = vmatprep.mubr.bf16.mxu0 0
      %1525 = vmatmul.mubr.bf16.gmra.mxu0 %v964
      %v1526 = vpop.f32.mrf.mxu0
      %v1527 = vadd.f32 0.0, %v1526
      %v1528 = vpop.f32.mrf.mxu0
      %v1529 = vpop.f32.mrf.mxu0
      %v1530 = vadd.f32 0.0, %v1529
      %v1531 = vpop.f32.mrf.mxu0
      %1532 = vmatprep.mubr.bf16.mxu0 0
      %1533 = vmatmul.mubr.bf16.gmra.mxu0 %v965
      %v1534 = vpop.f32.mrf.mxu0
      %v1535 = vadd.f32 0.0, %v1534
      %v1536 = vpop.f32.mrf.mxu0
      %v1537 = vpop.f32.mrf.mxu0
      %v1538 = vadd.f32 0.0, %v1537
      %v1539 = vpop.f32.mrf.mxu0
      %1540 = vmatprep.mubr.bf16.mxu0 0
      %1541 = vmatmul.mubr.bf16.gmra.mxu0 %v966
      %v1542 = vpop.f32.mrf.mxu0
      %v1543 = vadd.f32 0.0, %v1542
      %v1544 = vpop.f32.mrf.mxu0
      %v1545 = vpop.f32.mrf.mxu0
      %v1546 = vadd.f32 0.0, %v1545
      %v1547 = vpop.f32.mrf.mxu0
      %1548 = vmatprep.mubr.bf16.mxu0 0
      %1549 = vmatmul.mubr.bf16.gmra.mxu0 %v967
      %v1550 = vpop.f32.mrf.mxu0
      %v1551 = vadd.f32 0.0, %v1550
      %v1552 = vpop.f32.mrf.mxu0
      %v1553 = vpop.f32.mrf.mxu0
      %v1554 = vadd.f32 0.0, %v1553
      %v1555 = vpop.f32.mrf.mxu0
      %1556 = vmatprep.mubr.bf16.mxu0 0
      %1557 = vmatmul.mubr.bf16.gmra.mxu0 %v968
      %v1558 = vpop.f32.mrf.mxu0
      %v1559 = vadd.f32 0.0, %v1558
      %v1560 = vpop.f32.mrf.mxu0
      %v1561 = vpop.f32.mrf.mxu0
      %v1562 = vadd.f32 0.0, %v1561
      %v1563 = vpop.f32.mrf.mxu0
      %1564 = vmatprep.mubr.bf16.mxu0 0
      %1565 = vmatmul.mubr.bf16.gmra.mxu0 %v969
      %v1566 = vpop.f32.mrf.mxu0
      %v1567 = vadd.f32 0.0, %v1566
      %v1568 = vpop.f32.mrf.mxu0
      %v1569 = vpop.f32.mrf.mxu0
      %v1570 = vadd.f32 0.0, %v1569
      %v1571 = vpop.f32.mrf.mxu0
      %1572 = vmatprep.mubr.bf16.mxu0 0
      %1573 = vmatmul.mubr.bf16.gmra.mxu0 %v970
      %v1574 = vpop.f32.mrf.mxu0
      %v1575 = vadd.f32 0.0, %v1574
      %v1576 = vpop.f32.mrf.mxu0
      %v1577 = vpop.f32.mrf.mxu0
      %v1578 = vadd.f32 0.0, %v1577
      %v1579 = vpop.f32.mrf.mxu0
      %1580 = vmatprep.mubr.bf16.mxu0 0
      %1581 = vmatmul.mubr.bf16.gmra.mxu0 %v971
      %v1582 = vpop.f32.mrf.mxu0
      %v1583 = vadd.f32 0.0, %v1582
      %v1584 = vpop.f32.mrf.mxu0
      %v1585 = vpop.f32.mrf.mxu0
      %v1586 = vadd.f32 0.0, %v1585
      %v1587 = vpop.f32.mrf.mxu0
      %1588 = vmatprep.mubr.bf16.mxu0 0
      %1589 = vmatmul.mubr.bf16.gmra.mxu0 %v972
      %v1590 = vpop.f32.mrf.mxu0
      %v1591 = vadd.f32 0.0, %v1590
      %v1592 = vpop.f32.mrf.mxu0
      %v1593 = vpop.f32.mrf.mxu0
      %v1594 = vadd.f32 0.0, %v1593
      %v1595 = vpop.f32.mrf.mxu0
      %1596 = vmatprep.mubr.bf16.mxu0 0
      %1597 = vmatmul.mubr.bf16.gmra.mxu0 %v973
      %v1598 = vpop.f32.mrf.mxu0
      %v1599 = vadd.f32 0.0, %v1598
      %v1600 = vpop.f32.mrf.mxu0
      %v1601 = vpop.f32.mrf.mxu0
      %v1602 = vadd.f32 0.0, %v1601
      %v1603 = vpop.f32.mrf.mxu0
      %1604 = vmatprep.mubr.bf16.mxu0 0
      %1605 = vmatmul.mubr.bf16.gmra.mxu0 %v974
      %v1606 = vpop.f32.mrf.mxu0
      %v1607 = vadd.f32 0.0, %v1606
      %v1608 = vpop.f32.mrf.mxu0
      %v1609 = vpop.f32.mrf.mxu0
      %v1610 = vadd.f32 0.0, %v1609
      %v1611 = vpop.f32.mrf.mxu0
      %1612 = vmatprep.mubr.bf16.mxu0 0
      %1613 = vmatmul.mubr.bf16.gmra.mxu0 %v975
      %v1614 = vpop.f32.mrf.mxu0
      %v1615 = vadd.f32 0.0, %v1614
      %v1616 = vpop.f32.mrf.mxu0
      %v1617 = vpop.f32.mrf.mxu0
      %v1618 = vadd.f32 0.0, %v1617
      %v1619 = vpop.f32.mrf.mxu0
      %1620 = vmatprep.mubr.bf16.mxu0 0
      %1621 = vmatmul.mubr.bf16.gmra.mxu0 %v976
      %v1622 = vpop.f32.mrf.mxu0
      %v1623 = vadd.f32 0.0, %v1622
      %v1624 = vpop.f32.mrf.mxu0
      %v1625 = vpop.f32.mrf.mxu0
      %v1626 = vadd.f32 0.0, %v1625
      %v1627 = vpop.f32.mrf.mxu0
      %1628 = vmatprep.mubr.bf16.mxu0 0
      %1629 = vmatmul.mubr.bf16.gmra.mxu0 %v977
      %v1630 = vpop.f32.mrf.mxu0
      %v1631 = vadd.f32 0.0, %v1630
      %v1632 = vpop.f32.mrf.mxu0
      %v1633 = vpop.f32.mrf.mxu0
      %v1634 = vadd.f32 0.0, %v1633
      %v1635 = vpop.f32.mrf.mxu0
      %1636 = vmatprep.mubr.bf16.mxu0 0
      %1637 = vmatmul.mubr.bf16.gmra.mxu0 %v978
      %v1638 = vpop.f32.mrf.mxu0
      %v1639 = vadd.f32 0.0, %v1638
      %v1640 = vpop.f32.mrf.mxu0
      %v1641 = vpop.f32.mrf.mxu0
      %v1642 = vadd.f32 0.0, %v1641
      %v1643 = vpop.f32.mrf.mxu0
      %1644 = vmatprep.mubr.bf16.mxu0 0
      %1645 = vmatmul.mubr.bf16.gmra.mxu0 %v979
      %v1646 = vpop.f32.mrf.mxu0
      %v1647 = vadd.f32 0.0, %v1646
      %v1648 = vpop.f32.mrf.mxu0
      %v1649 = vpop.f32.mrf.mxu0
      %v1650 = vadd.f32 0.0, %v1649
      %v1651 = vpop.f32.mrf.mxu0
      %1652 = vmatprep.mubr.bf16.mxu0 0
      %1653 = vmatmul.mubr.bf16.gmra.mxu0 %v980
      %v1654 = vpop.f32.mrf.mxu0
      %v1655 = vadd.f32 0.0, %v1654
      %v1656 = vpop.f32.mrf.mxu0
      %v1657 = vpop.f32.mrf.mxu0
      %v1658 = vadd.f32 0.0, %v1657
      %v1659 = vpop.f32.mrf.mxu0
      %1660 = vmatprep.mubr.bf16.mxu0 0
      %1661 = vmatmul.mubr.bf16.gmra.mxu0 %v981
      %v1662 = vpop.f32.mrf.mxu0
      %v1663 = vadd.f32 0.0, %v1662
      %v1664 = vpop.f32.mrf.mxu0
      %v1665 = vpop.f32.mrf.mxu0
      %v1666 = vadd.f32 0.0, %v1665
      %v1667 = vpop.f32.mrf.mxu0
      %1668 = vmatprep.mubr.bf16.mxu0 0
      %1669 = vmatmul.mubr.bf16.gmra.mxu0 %v982
      %v1670 = vpop.f32.mrf.mxu0
      %v1671 = vadd.f32 0.0, %v1670
      %v1672 = vpop.f32.mrf.mxu0
      %v1673 = vpop.f32.mrf.mxu0
      %v1674 = vadd.f32 0.0, %v1673
      %v1675 = vpop.f32.mrf.mxu0
      %1676 = vmatprep.mubr.bf16.mxu0 0
      %1677 = vmatmul.mubr.bf16.gmra.mxu0 %v983
      %v1678 = vpop.f32.mrf.mxu0
      %v1679 = vadd.f32 0.0, %v1678
      %v1680 = vpop.f32.mrf.mxu0
      %v1681 = vpop.f32.mrf.mxu0
      %v1682 = vadd.f32 0.0, %v1681
      %v1683 = vpop.f32.mrf.mxu0
      %1684 = vmatprep.mubr.bf16.mxu0 0
      %1685 = vmatmul.mubr.bf16.gmra.mxu0 %v984
      %v1686 = vpop.f32.mrf.mxu0
      %v1687 = vadd.f32 0.0, %v1686
      %v1688 = vpop.f32.mrf.mxu0
      %v1689 = vpop.f32.mrf.mxu0
      %v1690 = vadd.f32 0.0, %v1689
      %v1691 = vpop.f32.mrf.mxu0
      %1692 = vmatprep.mubr.bf16.mxu0 0
      %1693 = vmatmul.mubr.bf16.gmra.mxu0 %v985
      %v1694 = vpop.f32.mrf.mxu0
      %v1695 = vadd.f32 0.0, %v1694
      %v1696 = vpop.f32.mrf.mxu0
      %v1697 = vpop.f32.mrf.mxu0
      %v1698 = vadd.f32 0.0, %v1697
      %v1699 = vpop.f32.mrf.mxu0
      %1700 = vmatprep.mubr.bf16.mxu0 0
      %1701 = vmatmul.mubr.bf16.gmra.mxu0 %v986
      %v1702 = vpop.f32.mrf.mxu0
      %v1703 = vadd.f32 0.0, %v1702
      %v1704 = vpop.f32.mrf.mxu0
      %v1705 = vpop.f32.mrf.mxu0
      %v1706 = vadd.f32 0.0, %v1705
      %v1707 = vpop.f32.mrf.mxu0
      %1708 = vmatprep.mubr.bf16.mxu0 0
      %1709 = vmatmul.mubr.bf16.gmra.mxu0 %v987
      %v1710 = vpop.f32.mrf.mxu0
      %v1711 = vadd.f32 0.0, %v1710
      %v1712 = vpop.f32.mrf.mxu0
      %v1713 = vpop.f32.mrf.mxu0
      %v1714 = vadd.f32 0.0, %v1713
      %v1715 = vpop.f32.mrf.mxu0
      %1716 = vmatprep.mubr.bf16.mxu0 0
      %1717 = vmatmul.mubr.bf16.gmra.mxu0 %v988
      %v1718 = vpop.f32.mrf.mxu0
      %v1719 = vadd.f32 0.0, %v1718
      %v1720 = vpop.f32.mrf.mxu0
      %v1721 = vpop.f32.mrf.mxu0
      %v1722 = vadd.f32 0.0, %v1721
      %v1723 = vpop.f32.mrf.mxu0
      %1724 = vmatprep.mubr.bf16.mxu0 0
      %1725 = vmatmul.mubr.bf16.gmra.mxu0 %v989
      %v1726 = vpop.f32.mrf.mxu0
      %v1727 = vadd.f32 0.0, %v1726
      %v1728 = vpop.f32.mrf.mxu0
      %v1729 = vpop.f32.mrf.mxu0
      %v1730 = vadd.f32 0.0, %v1729
      %v1731 = vpop.f32.mrf.mxu0
      %1732 = vmatprep.mubr.bf16.mxu0 0
      %1733 = vmatmul.mubr.bf16.gmra.mxu0 %v990
      %v1734 = vpop.f32.mrf.mxu0
      %v1735 = vadd.f32 0.0, %v1734
      %v1736 = vpop.f32.mrf.mxu0
      %v1737 = vpop.f32.mrf.mxu0
      %v1738 = vadd.f32 0.0, %v1737
      %v1739 = vpop.f32.mrf.mxu0
      %1740 = vmatprep.mubr.bf16.mxu0 0
      %1741 = vmatmul.mubr.bf16.gmra.mxu0 %v991
      %v1742 = vpop.f32.mrf.mxu0
      %v1743 = vadd.f32 0.0, %v1742
      %v1744 = vpop.f32.mrf.mxu0
      %v1745 = vpop.f32.mrf.mxu0
      %v1746 = vadd.f32 0.0, %v1745
      %v1747 = vpop.f32.mrf.mxu0
      %1748 = vmatprep.mubr.bf16.mxu0 0
      %1749 = vmatmul.mubr.bf16.gmra.mxu0 %v992
      %v1750 = vpop.f32.mrf.mxu0
      %v1751 = vadd.f32 0.0, %v1750
      %v1752 = vpop.f32.mrf.mxu0
      %v1753 = vpop.f32.mrf.mxu0
      %v1754 = vadd.f32 0.0, %v1753
      %v1755 = vpop.f32.mrf.mxu0
      %1756 = vmatprep.mubr.bf16.mxu0 0
      %1757 = vmatmul.mubr.bf16.gmra.mxu0 %v993
      %v1758 = vpop.f32.mrf.mxu0
      %v1759 = vadd.f32 0.0, %v1758
      %v1760 = vpop.f32.mrf.mxu0
      %v1761 = vpop.f32.mrf.mxu0
      %v1762 = vadd.f32 0.0, %v1761
      %v1763 = vpop.f32.mrf.mxu0
      %1764 = vmatprep.mubr.bf16.mxu0 0
      %1765 = vmatmul.mubr.bf16.gmra.mxu0 %v994
      %v1766 = vpop.f32.mrf.mxu0
      %v1767 = vadd.f32 0.0, %v1766
      %v1768 = vpop.f32.mrf.mxu0
      %v1769 = vpop.f32.mrf.mxu0
      %v1770 = vadd.f32 0.0, %v1769
      %v1771 = vpop.f32.mrf.mxu0
      %1772 = vmatprep.mubr.bf16.mxu0 0
      %1773 = vmatmul.mubr.bf16.gmra.mxu0 %v995
      %v1774 = vpop.f32.mrf.mxu0
      %v1775 = vadd.f32 0.0, %v1774
      %v1776 = vpop.f32.mrf.mxu0
      %v1777 = vpop.f32.mrf.mxu0
      %v1778 = vadd.f32 0.0, %v1777
      %v1779 = vpop.f32.mrf.mxu0
      %1780 = vmatprep.mubr.bf16.mxu0 0
      %1781 = vmatmul.mubr.bf16.gmra.mxu0 %v996
      %v1782 = vpop.f32.mrf.mxu0
      %v1783 = vadd.f32 0.0, %v1782
      %v1784 = vpop.f32.mrf.mxu0
      %v1785 = vpop.f32.mrf.mxu0
      %v1786 = vadd.f32 0.0, %v1785
      %v1787 = vpop.f32.mrf.mxu0
      %1788 = vmatprep.mubr.bf16.mxu0 0
      %1789 = vmatmul.mubr.bf16.gmra.mxu0 %v997
      %v1790 = vpop.f32.mrf.mxu0
      %v1791 = vadd.f32 0.0, %v1790
      %v1792 = vpop.f32.mrf.mxu0
      %v1793 = vpop.f32.mrf.mxu0
      %v1794 = vadd.f32 0.0, %v1793
      %v1795 = vpop.f32.mrf.mxu0
      %1796 = vmatprep.mubr.bf16.mxu0 0
      %1797 = vmatmul.mubr.bf16.gmra.mxu0 %v998
      %v1798 = vpop.f32.mrf.mxu0
      %v1799 = vadd.f32 0.0, %v1798
      %v1800 = vpop.f32.mrf.mxu0
      %v1801 = vpop.f32.mrf.mxu0
      %v1802 = vadd.f32 0.0, %v1801
      %v1803 = vpop.f32.mrf.mxu0
      %1804 = vmatprep.mubr.bf16.mxu0 0
      %1805 = vmatmul.mubr.bf16.gmra.mxu0 %v999
      %v1806 = vpop.f32.mrf.mxu0
      %v1807 = vadd.f32 0.0, %v1806
      %v1808 = vpop.f32.mrf.mxu0
      %v1809 = vpop.f32.mrf.mxu0
      %v1810 = vadd.f32 0.0, %v1809
      %v1811 = vpop.f32.mrf.mxu0
      %1812 = vmatprep.mubr.bf16.mxu0 0
      %1813 = vmatmul.mubr.bf16.gmra.mxu0 %v1000
      %v1814 = vpop.f32.mrf.mxu0
      %v1815 = vadd.f32 0.0, %v1814
      %v1816 = vpop.f32.mrf.mxu0
      %v1817 = vpop.f32.mrf.mxu0
      %v1818 = vadd.f32 0.0, %v1817
      %v1819 = vpop.f32.mrf.mxu0
      %1820 = vmatprep.mubr.bf16.mxu0 0
      %1821 = vmatmul.mubr.bf16.gmra.mxu0 %v1001
      %v1822 = vpop.f32.mrf.mxu0
      %v1823 = vadd.f32 0.0, %v1822
      %v1824 = vpop.f32.mrf.mxu0
      %v1825 = vpop.f32.mrf.mxu0
      %v1826 = vadd.f32 0.0, %v1825
      %v1827 = vpop.f32.mrf.mxu0
      %1828 = vmatprep.mubr.bf16.mxu0 0
      %1829 = vmatmul.mubr.bf16.gmra.mxu0 %v1002
      %v1830 = vpop.f32.mrf.mxu0
      %v1831 = vadd.f32 0.0, %v1830
      %v1832 = vpop.f32.mrf.mxu0
      %v1833 = vpop.f32.mrf.mxu0
      %v1834 = vadd.f32 0.0, %v1833
      %v1835 = vpop.f32.mrf.mxu0
      %1836 = vmatprep.mubr.bf16.mxu0 0
      %1837 = vmatmul.mubr.bf16.gmra.mxu0 %v1003
      %v1838 = vpop.f32.mrf.mxu0
      %v1839 = vadd.f32 0.0, %v1838
      %v1840 = vpop.f32.mrf.mxu0
      %v1841 = vpop.f32.mrf.mxu0
      %v1842 = vadd.f32 0.0, %v1841
      %v1843 = vpop.f32.mrf.mxu0
      %1844 = vmatprep.mubr.bf16.mxu0 0
      %1845 = vmatmul.mubr.bf16.gmra.mxu0 %v1004
      %v1846 = vpop.f32.mrf.mxu0
      %v1847 = vadd.f32 0.0, %v1846
      %v1848 = vpop.f32.mrf.mxu0
      %v1849 = vpop.f32.mrf.mxu0
      %v1850 = vadd.f32 0.0, %v1849
      %v1851 = vpop.f32.mrf.mxu0
      %1852 = vmatprep.mubr.bf16.mxu0 0
      %1853 = vmatmul.mubr.bf16.gmra.mxu0 %v1005
      %v1854 = vpop.f32.mrf.mxu0
      %v1855 = vadd.f32 0.0, %v1854
      %v1856 = vpop.f32.mrf.mxu0
      %v1857 = vpop.f32.mrf.mxu0
      %v1858 = vadd.f32 0.0, %v1857
      %v1859 = vpop.f32.mrf.mxu0
      %1860 = vmatprep.mubr.bf16.mxu0 0
      %1861 = vmatmul.mubr.bf16.gmra.mxu0 %v1006
      %v1862 = vpop.f32.mrf.mxu0
      %v1863 = vadd.f32 0.0, %v1862
      %v1864 = vpop.f32.mrf.mxu0
      %v1865 = vpop.f32.mrf.mxu0
      %v1866 = vadd.f32 0.0, %v1865
      %v1867 = vpop.f32.mrf.mxu0
      %1868 = vmatprep.mubr.bf16.mxu0 0
      %1869 = vmatmul.mubr.bf16.gmra.mxu0 %v1007
      %v1870 = vpop.f32.mrf.mxu0
      %v1871 = vadd.f32 0.0, %v1870
      %v1872 = vpop.f32.mrf.mxu0
      %v1873 = vpop.f32.mrf.mxu0
      %v1874 = vadd.f32 0.0, %v1873
      %v1875 = vpop.f32.mrf.mxu0
      %1876 = vmatprep.mubr.bf16.mxu0 0
      %1877 = vmatmul.mubr.bf16.gmra.mxu0 %v1008
      %v1878 = vpop.f32.mrf.mxu0
      %v1879 = vadd.f32 0.0, %v1878
      %v1880 = vpop.f32.mrf.mxu0
      %v1881 = vpop.f32.mrf.mxu0
      %v1882 = vadd.f32 0.0, %v1881
      %v1883 = vpop.f32.mrf.mxu0
      %1884 = vmatprep.mubr.bf16.mxu0 0
      %1885 = vmatmul.mubr.bf16.gmra.mxu0 %v1009
      %v1886 = vpop.f32.mrf.mxu0
      %v1887 = vadd.f32 0.0, %v1886
      %v1888 = vpop.f32.mrf.mxu0
      %v1889 = vpop.f32.mrf.mxu0
      %v1890 = vadd.f32 0.0, %v1889
      %v1891 = vpop.f32.mrf.mxu0
      %1892 = vmatprep.mubr.bf16.mxu0 0
      %1893 = vmatmul.mubr.bf16.gmra.mxu0 %v1010
      %v1894 = vpop.f32.mrf.mxu0
      %v1895 = vadd.f32 0.0, %v1894
      %v1896 = vpop.f32.mrf.mxu0
      %v1897 = vpop.f32.mrf.mxu0
      %v1898 = vadd.f32 0.0, %v1897
      %v1899 = vpop.f32.mrf.mxu0
      %1900 = vmatprep.mubr.bf16.mxu0 0
      %1901 = vmatmul.mubr.bf16.gmra.mxu0 %v1011
      %v1902 = vpop.f32.mrf.mxu0
      %v1903 = vadd.f32 0.0, %v1902
      %v1904 = vpop.f32.mrf.mxu0
      %v1905 = vpop.f32.mrf.mxu0
      %v1906 = vadd.f32 0.0, %v1905
      %v1907 = vpop.f32.mrf.mxu0
      %1908 = vmatprep.mubr.bf16.mxu0 0
      %1909 = vmatmul.mubr.bf16.gmra.mxu0 %v1012
      %v1910 = vpop.f32.mrf.mxu0
      %v1911 = vadd.f32 0.0, %v1910
      %v1912 = vpop.f32.mrf.mxu0
      %v1913 = vpop.f32.mrf.mxu0
      %v1914 = vadd.f32 0.0, %v1913
      %v1915 = vpop.f32.mrf.mxu0
      %1916 = vmatprep.mubr.bf16.mxu0 0
      %1917 = vmatmul.mubr.bf16.gmra.mxu0 %v1013
      %v1918 = vpop.f32.mrf.mxu0
      %v1919 = vadd.f32 0.0, %v1918
      %v1920 = vpop.f32.mrf.mxu0
      %v1921 = vpop.f32.mrf.mxu0
      %v1922 = vadd.f32 0.0, %v1921
      %v1923 = vpop.f32.mrf.mxu0
      %1924 = vmatprep.mubr.bf16.mxu0 0
      %1925 = vmatmul.mubr.bf16.gmra.mxu0 %v1014
      %v1926 = vpop.f32.mrf.mxu0
      %v1927 = vadd.f32 0.0, %v1926
      %v1928 = vpop.f32.mrf.mxu0
      %v1929 = vpop.f32.mrf.mxu0
      %v1930 = vadd.f32 0.0, %v1929
      %v1931 = vpop.f32.mrf.mxu0
      %1932 = vmatprep.mubr.bf16.mxu0 0
      %1933 = vmatmul.mubr.bf16.gmra.mxu0 %v1015
      %v1934 = vpop.f32.mrf.mxu0
      %v1935 = vadd.f32 0.0, %v1934
      %v1936 = vpop.f32.mrf.mxu0
      %v1937 = vpop.f32.mrf.mxu0
      %v1938 = vadd.f32 0.0, %v1937
      %v1939 = vpop.f32.mrf.mxu0
      %1940 = vmatprep.mubr.bf16.mxu0 0
      %1941 = vmatmul.mubr.bf16.gmra.mxu0 %v1016
      %v1942 = vpop.f32.mrf.mxu0
      %v1943 = vadd.f32 0.0, %v1942
      %v1944 = vpop.f32.mrf.mxu0
      %v1945 = vpop.f32.mrf.mxu0
      %v1946 = vadd.f32 0.0, %v1945
      %v1947 = vpop.f32.mrf.mxu0
      %1948 = vmatprep.mubr.bf16.mxu0 0
      %1949 = vmatmul.mubr.bf16.gmra.mxu0 %v1017
      %v1950 = vpop.f32.mrf.mxu0
      %v1951 = vadd.f32 0.0, %v1950
      %v1952 = vpop.f32.mrf.mxu0
      %v1953 = vpop.f32.mrf.mxu0
      %v1954 = vadd.f32 0.0, %v1953
      %v1955 = vpop.f32.mrf.mxu0
      %1956 = vmatprep.mubr.bf16.mxu0 0
      %1957 = vmatmul.mubr.bf16.gmra.mxu0 %v1018
      %v1958 = vpop.f32.mrf.mxu0
      %v1959 = vadd.f32 0.0, %v1958
      %v1960 = vpop.f32.mrf.mxu0
      %v1961 = vpop.f32.mrf.mxu0
      %v1962 = vadd.f32 0.0, %v1961
      %v1963 = vpop.f32.mrf.mxu0
      %1964 = vmatprep.mubr.bf16.mxu0 0
      %1965 = vmatmul.mubr.bf16.gmra.mxu0 %v1019
      %v1966 = vpop.f32.mrf.mxu0
      %v1967 = vadd.f32 0.0, %v1966
      %v1968 = vpop.f32.mrf.mxu0
      %v1969 = vpop.f32.mrf.mxu0
      %v1970 = vadd.f32 0.0, %v1969
      %v1971 = vpop.f32.mrf.mxu0
      %1972 = vmatprep.mubr.bf16.mxu0 0
      %1973 = vmatmul.mubr.bf16.gmra.mxu0 %v1020
      %v1974 = vpop.f32.mrf.mxu0
      %v1975 = vadd.f32 0.0, %v1974
      %v1976 = vpop.f32.mrf.mxu0
      %v1977 = vpop.f32.mrf.mxu0
      %v1978 = vadd.f32 0.0, %v1977
      %v1979 = vpop.f32.mrf.mxu0
      %1980 = vmatprep.mubr.bf16.mxu0 0
      %1981 = vmatmul.mubr.bf16.gmra.mxu0 %v1021
      %v1982 = vpop.f32.mrf.mxu0
      %v1983 = vadd.f32 0.0, %v1982
      %v1984 = vpop.f32.mrf.mxu0
      %v1985 = vpop.f32.mrf.mxu0
      %v1986 = vadd.f32 0.0, %v1985
      %v1987 = vpop.f32.mrf.mxu0
      %1988 = vmatprep.mubr.bf16.mxu0 0
      %1989 = vmatmul.mubr.bf16.gmra.mxu0 %v1022
      %v1990 = vpop.f32.mrf.mxu0
      %v1991 = vadd.f32 0.0, %v1990
      %v1992 = vpop.f32.mrf.mxu0
      %v1993 = vpop.f32.mrf.mxu0
      %v1994 = vadd.f32 0.0, %v1993
      %v1995 = vpop.f32.mrf.mxu0
      %1996 = vmatprep.mubr.bf16.mxu0 0
      %1997 = vmatmul.mubr.bf16.gmra.mxu0 %v1023
      %v1998 = vpop.f32.mrf.mxu0
      %v1999 = vadd.f32 0.0, %v1998
      %v2000 = vpop.f32.mrf.mxu0
      %v2001 = vpop.f32.mrf.mxu0
      %v2002 = vadd.f32 0.0, %v2001
      %v2003 = vpop.f32.mrf.mxu0
      %2004 = vmatprep.mubr.bf16.mxu0 0
      %2005 = vmatmul.mubr.bf16.gmra.mxu0 %v1024
      %v2006 = vpop.f32.mrf.mxu0
      %v2007 = vadd.f32 0.0, %v2006
      %v2008 = vpop.f32.mrf.mxu0
      %v2009 = vpop.f32.mrf.mxu0
      %v2010 = vadd.f32 0.0, %v2009
      %v2011 = vpop.f32.mrf.mxu0
      %2012 = vmatprep.mubr.bf16.mxu0 0
      %2013 = vmatmul.mubr.bf16.gmra.mxu0 %v1025
      %v2014 = vpop.f32.mrf.mxu0
      %v2015 = vadd.f32 0.0, %v2014
      %v2016 = vpop.f32.mrf.mxu0
      %v2017 = vpop.f32.mrf.mxu0
      %v2018 = vadd.f32 0.0, %v2017
      %v2019 = vpop.f32.mrf.mxu0
      %2020 = vmatprep.mubr.bf16.mxu0 0
      %2021 = vmatmul.mubr.bf16.gmra.mxu0 %v1026
      %v2022 = vpop.f32.mrf.mxu0
      %v2023 = vadd.f32 0.0, %v2022
      %v2024 = vpop.f32.mrf.mxu0
      %v2025 = vpop.f32.mrf.mxu0
      %v2026 = vadd.f32 0.0, %v2025
      %v2027 = vpop.f32.mrf.mxu0
      %2028 = vmatprep.mubr.bf16.mxu0 0
      %2029 = vmatmul.mubr.bf16.gmra.mxu0 %v1027
      %v2030 = vpop.f32.mrf.mxu0
      %v2031 = vadd.f32 0.0, %v2030
      %v2032 = vpop.f32.mrf.mxu0
      %v2033 = vpop.f32.mrf.mxu0
      %v2034 = vadd.f32 0.0, %v2033
      %v2035 = vpop.f32.mrf.mxu0
      %2036 = vmatprep.mubr.bf16.mxu0 0
      %2037 = vmatmul.mubr.bf16.gmra.mxu0 %v1028
      %v2038 = vpop.f32.mrf.mxu0
      %v2039 = vadd.f32 0.0, %v2038
      %v2040 = vpop.f32.mrf.mxu0
      %v2041 = vpop.f32.mrf.mxu0
      %v2042 = vadd.f32 0.0, %v2041
      %v2043 = vpop.f32.mrf.mxu0
      %2044 = vmatprep.mubr.bf16.mxu0 0
      %2045 = vmatmul.mubr.bf16.gmra.mxu0 %v1029
      %v2046 = vpop.f32.mrf.mxu0
      %v2047 = vadd.f32 0.0, %v2046
      %v2048 = vpop.f32.mrf.mxu0
      %v2049 = vpop.f32.mrf.mxu0
      %v2050 = vadd.f32 0.0, %v2049
      %v2051 = vpop.f32.mrf.mxu0
      %2052 = vmatprep.mubr.bf16.mxu0 0
      %2053 = vmatmul.mubr.bf16.gmra.mxu0 %v1030
      %v2054 = vpop.f32.mrf.mxu0
      %v2055 = vadd.f32 0.0, %v2054
      %v2056 = vpop.f32.mrf.mxu0
      %v2057 = vpop.f32.mrf.mxu0
      %v2058 = vadd.f32 0.0, %v2057
      %v2059 = vpop.f32.mrf.mxu0
      %2060 = vmatprep.mubr.bf16.mxu0 0
      %2061 = vmatmul.mubr.bf16.gmra.mxu0 %v1031
      %v2062 = vpop.f32.mrf.mxu0
      %v2063 = vadd.f32 0.0, %v2062
      %v2064 = vpop.f32.mrf.mxu0
      %v2065 = vpop.f32.mrf.mxu0
      %v2066 = vadd.f32 0.0, %v2065
      %v2067 = vpop.f32.mrf.mxu0
      %2068 = vmatprep.mubr.bf16.mxu0 0
      %2069 = vmatmul.mubr.bf16.gmra.mxu0 %v1032
      %v2070 = vpop.f32.mrf.mxu0
      %v2071 = vadd.f32 0.0, %v2070
      %v2072 = vpop.f32.mrf.mxu0
      %v2073 = vpop.f32.mrf.mxu0
      %v2074 = vadd.f32 0.0, %v2073
      %v2075 = vpop.f32.mrf.mxu0
      %2076 = vmatprep.mubr.bf16.mxu0 0
      %2077 = vmatmul.mubr.bf16.gmra.mxu0 %v1033
      %v2078 = vpop.f32.mrf.mxu0
      %v2079 = vadd.f32 0.0, %v2078
      %v2080 = vpop.f32.mrf.mxu0
      %v2081 = vpop.f32.mrf.mxu0
      %v2082 = vadd.f32 0.0, %v2081
      %v2083 = vpop.f32.mrf.mxu0
      %2084 = vmatprep.mubr.bf16.mxu0 0
      %2085 = vmatmul.mubr.bf16.gmra.mxu0 %v1034
      %v2086 = vpop.f32.mrf.mxu0
      %v2087 = vadd.f32 0.0, %v2086
      %v2088 = vpop.f32.mrf.mxu0
      %v2089 = vpop.f32.mrf.mxu0
      %v2090 = vadd.f32 0.0, %v2089
      %v2091 = vpop.f32.mrf.mxu0
      %2092 = vmatprep.mubr.bf16.mxu0 0
      %2093 = vmatmul.mubr.bf16.gmra.mxu0 %v1035
      %v2094 = vpop.f32.mrf.mxu0
      %v2095 = vadd.f32 0.0, %v2094
      %v2096 = vpop.f32.mrf.mxu0
      %v2097 = vpop.f32.mrf.mxu0
      %v2098 = vadd.f32 0.0, %v2097
      %v2099 = vpop.f32.mrf.mxu0
      %2100 = vmatprep.mubr.bf16.mxu0 0
      %2101 = vmatmul.mubr.bf16.gmra.mxu0 %v1036
      %v2102 = vpop.f32.mrf.mxu0
      %v2103 = vadd.f32 0.0, %v2102
      %v2104 = vpop.f32.mrf.mxu0
      %v2105 = vpop.f32.mrf.mxu0
      %v2106 = vadd.f32 0.0, %v2105
      %v2107 = vpop.f32.mrf.mxu0
      %2108 = vmatprep.mubr.bf16.mxu0 0
      %2109 = vmatmul.mubr.bf16.gmra.mxu0 %v1037
      %v2110 = vpop.f32.mrf.mxu0
      %v2111 = vadd.f32 0.0, %v2110
      %v2112 = vpop.f32.mrf.mxu0
      %v2113 = vpop.f32.mrf.mxu0
      %v2114 = vadd.f32 0.0, %v2113
      %v2115 = vpop.f32.mrf.mxu0
      %2116 = vmatprep.mubr.bf16.mxu0 0
      %2117 = vmatmul.mubr.bf16.gmra.mxu0 %v1038
      %v2118 = vpop.f32.mrf.mxu0
      %v2119 = vadd.f32 0.0, %v2118
      %v2120 = vpop.f32.mrf.mxu0
      %v2121 = vpop.f32.mrf.mxu0
      %v2122 = vadd.f32 0.0, %v2121
      %v2123 = vpop.f32.mrf.mxu0
      %2124 = vmatprep.mubr.bf16.mxu0 0
      %2125 = vmatmul.mubr.bf16.gmra.mxu0 %v1039
      %v2126 = vpop.f32.mrf.mxu0
      %v2127 = vadd.f32 0.0, %v2126
      %v2128 = vpop.f32.mrf.mxu0
      %v2129 = vpop.f32.mrf.mxu0
      %v2130 = vadd.f32 0.0, %v2129
      %v2131 = vpop.f32.mrf.mxu0
      %2132 = vmatprep.mubr.bf16.mxu0 0
      %2133 = vmatmul.mubr.bf16.gmra.mxu0 %v1040
      %v2134 = vpop.f32.mrf.mxu0
      %v2135 = vadd.f32 0.0, %v2134
      %v2136 = vpop.f32.mrf.mxu0
      %v2137 = vpop.f32.mrf.mxu0
      %v2138 = vadd.f32 0.0, %v2137
      %v2139 = vpop.f32.mrf.mxu0
      %2140 = vmatprep.mubr.bf16.mxu0 0
      %2141 = vmatmul.mubr.bf16.gmra.mxu0 %v1041
      %v2142 = vpop.f32.mrf.mxu0
      %v2143 = vadd.f32 0.0, %v2142
      %v2144 = vpop.f32.mrf.mxu0
      %v2145 = vpop.f32.mrf.mxu0
      %v2146 = vadd.f32 0.0, %v2145
      %v2147 = vpop.f32.mrf.mxu0
      %2148 = vmatprep.mubr.bf16.mxu0 0
      %2149 = vmatmul.mubr.bf16.gmra.mxu0 %v1042
      %v2150 = vpop.f32.mrf.mxu0
      %v2151 = vadd.f32 0.0, %v2150
      %v2152 = vpop.f32.mrf.mxu0
      %v2153 = vpop.f32.mrf.mxu0
      %v2154 = vadd.f32 0.0, %v2153
      %v2155 = vpop.f32.mrf.mxu0
      %2156 = vmatprep.mubr.bf16.mxu0 0
      %2157 = vmatmul.mubr.bf16.gmra.mxu0 %v1043
      %v2158 = vpop.f32.mrf.mxu0
      %v2159 = vadd.f32 0.0, %v2158
      %v2160 = vpop.f32.mrf.mxu0
      %v2161 = vpop.f32.mrf.mxu0
      %v2162 = vadd.f32 0.0, %v2161
      %v2163 = vpop.f32.mrf.mxu0
      %2164 = vmatprep.mubr.bf16.mxu0 0
      %2165 = vmatmul.mubr.bf16.gmra.mxu0 %v1044
      %v2166 = vpop.f32.mrf.mxu0
      %v2167 = vadd.f32 0.0, %v2166
      %v2168 = vpop.f32.mrf.mxu0
      %v2169 = vpop.f32.mrf.mxu0
      %v2170 = vadd.f32 0.0, %v2169
      %v2171 = vpop.f32.mrf.mxu0
      %2172 = vmatprep.mubr.bf16.mxu0 0
      %2173 = vmatmul.mubr.bf16.gmra.mxu0 %v1045
      %v2174 = vpop.f32.mrf.mxu0
      %v2175 = vadd.f32 0.0, %v2174
      %v2176 = vpop.f32.mrf.mxu0
      %v2177 = vpop.f32.mrf.mxu0
      %v2178 = vadd.f32 0.0, %v2177
      %v2179 = vpop.f32.mrf.mxu0
      %2180 = vmatprep.mubr.bf16.mxu0 0
      %2181 = vmatmul.mubr.bf16.gmra.mxu0 %v1046
      %v2182 = vpop.f32.mrf.mxu0
      %v2183 = vadd.f32 0.0, %v2182
      %v2184 = vpop.f32.mrf.mxu0
      %v2185 = vpop.f32.mrf.mxu0
      %v2186 = vadd.f32 0.0, %v2185
      %v2187 = vpop.f32.mrf.mxu0
      %2188 = vmatprep.mubr.bf16.mxu0 0
      %2189 = vmatmul.mubr.bf16.gmra.mxu0 %v1047
      %v2190 = vpop.f32.mrf.mxu0
      %v2191 = vadd.f32 0.0, %v2190
      %v2192 = vpop.f32.mrf.mxu0
      %v2193 = vpop.f32.mrf.mxu0
      %v2194 = vadd.f32 0.0, %v2193
      %v2195 = vpop.f32.mrf.mxu0
      %2196 = vmatprep.mubr.bf16.mxu0 0
      %2197 = vmatmul.mubr.bf16.gmra.mxu0 %v1048
      %v2198 = vpop.f32.mrf.mxu0
      %v2199 = vadd.f32 0.0, %v2198
      %v2200 = vpop.f32.mrf.mxu0
      %v2201 = vpop.f32.mrf.mxu0
      %v2202 = vadd.f32 0.0, %v2201
      %v2203 = vpop.f32.mrf.mxu0
      %2204 = vmatprep.mubr.bf16.mxu0 0
      %2205 = vmatmul.mubr.bf16.gmra.mxu0 %v1049
      %v2206 = vpop.f32.mrf.mxu0
      %v2207 = vadd.f32 0.0, %v2206
      %v2208 = vpop.f32.mrf.mxu0
      %v2209 = vpop.f32.mrf.mxu0
      %v2210 = vadd.f32 0.0, %v2209
      %v2211 = vpop.f32.mrf.mxu0
      %2212 = vmatprep.mubr.bf16.mxu0 0
      %2213 = vmatmul.mubr.bf16.gmra.mxu0 %v1050
      %v2214 = vpop.f32.mrf.mxu0
      %v2215 = vadd.f32 0.0, %v2214
      %v2216 = vpop.f32.mrf.mxu0
      %v2217 = vpop.f32.mrf.mxu0
      %v2218 = vadd.f32 0.0, %v2217
      %v2219 = vpop.f32.mrf.mxu0
      %2220 = vmatprep.mubr.bf16.mxu0 0
      %2221 = vmatmul.mubr.bf16.gmra.mxu0 %v1051
      %v2222 = vpop.f32.mrf.mxu0
      %v2223 = vadd.f32 0.0, %v2222
      %v2224 = vpop.f32.mrf.mxu0
      %v2225 = vpop.f32.mrf.mxu0
      %v2226 = vadd.f32 0.0, %v2225
      %v2227 = vpop.f32.mrf.mxu0
      %2228 = vmatprep.mubr.bf16.mxu0 0
      %2229 = vmatmul.mubr.bf16.gmra.mxu0 %v1052
      %v2230 = vpop.f32.mrf.mxu0
      %v2231 = vadd.f32 0.0, %v2230
      %v2232 = vpop.f32.mrf.mxu0
      %v2233 = vpop.f32.mrf.mxu0
      %v2234 = vadd.f32 0.0, %v2233
      %v2235 = vpop.f32.mrf.mxu0
      %2236 = vmatprep.mubr.bf16.mxu0 0
      %2237 = vmatmul.mubr.bf16.gmra.mxu0 %v1053
      %v2238 = vpop.f32.mrf.mxu0
      %v2239 = vadd.f32 0.0, %v2238
      %v2240 = vpop.f32.mrf.mxu0
      %v2241 = vpop.f32.mrf.mxu0
      %v2242 = vadd.f32 0.0, %v2241
      %v2243 = vpop.f32.mrf.mxu0
      %2244 = vmatprep.mubr.bf16.mxu0 0
      %2245 = vmatmul.mubr.bf16.gmra.mxu0 %v1054
      %v2246 = vpop.f32.mrf.mxu0
      %v2247 = vadd.f32 0.0, %v2246
      %v2248 = vpop.f32.mrf.mxu0
      %v2249 = vpop.f32.mrf.mxu0
      %v2250 = vadd.f32 0.0, %v2249
      %v2251 = vpop.f32.mrf.mxu0
      %2252 = vmatprep.mubr.bf16.mxu0 0
      %2253 = vmatmul.mubr.bf16.gmra.mxu0 %v1055
      %v2254 = vpop.f32.mrf.mxu0
      %v2255 = vadd.f32 0.0, %v2254
      %v2256 = vpop.f32.mrf.mxu0
      %v2257 = vpop.f32.mrf.mxu0
      %v2258 = vadd.f32 0.0, %v2257
      %v2259 = vpop.f32.mrf.mxu0
      %2260 = vmatprep.mubr.bf16.mxu0 0
      %2261 = vmatmul.mubr.bf16.gmra.mxu0 %v1056
      %v2262 = vpop.f32.mrf.mxu0
      %v2263 = vadd.f32 0.0, %v2262
      %v2264 = vpop.f32.mrf.mxu0
      %v2265 = vpop.f32.mrf.mxu0
      %v2266 = vadd.f32 0.0, %v2265
      %v2267 = vpop.f32.mrf.mxu0
      %2268 = vmatprep.mubr.bf16.mxu0 0
      %2269 = vmatmul.mubr.bf16.gmra.mxu0 %v1057
      %v2270 = vpop.f32.mrf.mxu0
      %v2271 = vadd.f32 0.0, %v2270
      %v2272 = vpop.f32.mrf.mxu0
      %v2273 = vpop.f32.mrf.mxu0
      %v2274 = vadd.f32 0.0, %v2273
      %v2275 = vpop.f32.mrf.mxu0
      %2276 = vmatprep.mubr.bf16.mxu0 0
      %2277 = vmatmul.mubr.bf16.gmra.mxu0 %v1058
      %v2278 = vpop.f32.mrf.mxu0
      %v2279 = vadd.f32 0.0, %v2278
      %v2280 = vpop.f32.mrf.mxu0
      %v2281 = vpop.f32.mrf.mxu0
      %v2282 = vadd.f32 0.0, %v2281
      %v2283 = vpop.f32.mrf.mxu0
      %2284 = vmatprep.mubr.bf16.mxu0 0
      %2285 = vmatmul.mubr.bf16.gmra.mxu0 %v1059
      %v2286 = vpop.f32.mrf.mxu0
      %v2287 = vadd.f32 0.0, %v2286
      %v2288 = vpop.f32.mrf.mxu0
      %v2289 = vpop.f32.mrf.mxu0
      %v2290 = vadd.f32 0.0, %v2289
      %v2291 = vpop.f32.mrf.mxu0
      %2292 = vdwg.mxu0
      %v2293 = vpack.c.bf16 %v1274, %v1271
      %v2294 = vpack.c.bf16 %v1282, %v1279
      %v2295 = vpack.c.bf16 %v1290, %v1287
      %v2296 = vpack.c.bf16 %v1298, %v1295
      %v2297 = vpack.c.bf16 %v1306, %v1303
      %v2298 = vpack.c.bf16 %v1314, %v1311
      %v2299 = vpack.c.bf16 %v1322, %v1319
      %v2300 = vpack.c.bf16 %v1330, %v1327
      %v2301 = vpack.c.bf16 %v1338, %v1335
      %v2302 = vpack.c.bf16 %v1346, %v1343
      %v2303 = vpack.c.bf16 %v1354, %v1351
      %v2304 = vpack.c.bf16 %v1362, %v1359
      %v2305 = vpack.c.bf16 %v1370, %v1367
      %v2306 = vpack.c.bf16 %v1378, %v1375
      %v2307 = vpack.c.bf16 %v1386, %v1383
      %v2308 = vpack.c.bf16 %v1394, %v1391
      %v2309 = vpack.c.bf16 %v1402, %v1399
      %v2310 = vpack.c.bf16 %v1410, %v1407
      %v2311 = vpack.c.bf16 %v1418, %v1415
      %v2312 = vpack.c.bf16 %v1426, %v1423
      %v2313 = vpack.c.bf16 %v1434, %v1431
      %v2314 = vpack.c.bf16 %v1442, %v1439
      %v2315 = vpack.c.bf16 %v1450, %v1447
      %v2316 = vpack.c.bf16 %v1458, %v1455
      %v2317 = vpack.c.bf16 %v1466, %v1463
      %v2318 = vpack.c.bf16 %v1474, %v1471
      %v2319 = vpack.c.bf16 %v1482, %v1479
      %v2320 = vpack.c.bf16 %v1490, %v1487
      %v2321 = vpack.c.bf16 %v1498, %v1495
      %v2322 = vpack.c.bf16 %v1506, %v1503
      %v2323 = vpack.c.bf16 %v1514, %v1511
      %v2324 = vpack.c.bf16 %v1522, %v1519
      %v2325 = vpack.c.bf16 %v1530, %v1527
      %v2326 = vpack.c.bf16 %v1538, %v1535
      %v2327 = vpack.c.bf16 %v1546, %v1543
      %v2328 = vpack.c.bf16 %v1554, %v1551
      %v2329 = vpack.c.bf16 %v1562, %v1559
      %v2330 = vpack.c.bf16 %v1570, %v1567
      %v2331 = vpack.c.bf16 %v1578, %v1575
      %v2332 = vpack.c.bf16 %v1586, %v1583
      %v2333 = vpack.c.bf16 %v1594, %v1591
      %v2334 = vpack.c.bf16 %v1602, %v1599
      %v2335 = vpack.c.bf16 %v1610, %v1607
      %v2336 = vpack.c.bf16 %v1618, %v1615
      %v2337 = vpack.c.bf16 %v1626, %v1623
      %v2338 = vpack.c.bf16 %v1634, %v1631
      %v2339 = vpack.c.bf16 %v1642, %v1639
      %v2340 = vpack.c.bf16 %v1650, %v1647
      %v2341 = vpack.c.bf16 %v1658, %v1655
      %v2342 = vpack.c.bf16 %v1666, %v1663
      %v2343 = vpack.c.bf16 %v1674, %v1671
      %v2344 = vpack.c.bf16 %v1682, %v1679
      %v2345 = vpack.c.bf16 %v1690, %v1687
      %v2346 = vpack.c.bf16 %v1698, %v1695
      %v2347 = vpack.c.bf16 %v1706, %v1703
      %v2348 = vpack.c.bf16 %v1714, %v1711
      %v2349 = vpack.c.bf16 %v1722, %v1719
      %v2350 = vpack.c.bf16 %v1730, %v1727
      %v2351 = vpack.c.bf16 %v1738, %v1735
      %v2352 = vpack.c.bf16 %v1746, %v1743
      %v2353 = vpack.c.bf16 %v1754, %v1751
      %v2354 = vpack.c.bf16 %v1762, %v1759
      %v2355 = vpack.c.bf16 %v1770, %v1767
      %v2356 = vpack.c.bf16 %v1778, %v1775
      %v2357 = vpack.c.bf16 %v1786, %v1783
      %v2358 = vpack.c.bf16 %v1794, %v1791
      %v2359 = vpack.c.bf16 %v1802, %v1799
      %v2360 = vpack.c.bf16 %v1810, %v1807
      %v2361 = vpack.c.bf16 %v1818, %v1815
      %v2362 = vpack.c.bf16 %v1826, %v1823
      %v2363 = vpack.c.bf16 %v1834, %v1831
      %v2364 = vpack.c.bf16 %v1842, %v1839
      %v2365 = vpack.c.bf16 %v1850, %v1847
      %v2366 = vpack.c.bf16 %v1858, %v1855
      %v2367 = vpack.c.bf16 %v1866, %v1863
      %v2368 = vpack.c.bf16 %v1874, %v1871
      %v2369 = vpack.c.bf16 %v1882, %v1879
      %v2370 = vpack.c.bf16 %v1890, %v1887
      %v2371 = vpack.c.bf16 %v1898, %v1895
      %v2372 = vpack.c.bf16 %v1906, %v1903
      %v2373 = vpack.c.bf16 %v1914, %v1911
      %v2374 = vpack.c.bf16 %v1922, %v1919
      %v2375 = vpack.c.bf16 %v1930, %v1927
      %v2376 = vpack.c.bf16 %v1938, %v1935
      %v2377 = vpack.c.bf16 %v1946, %v1943
      %v2378 = vpack.c.bf16 %v1954, %v1951
      %v2379 = vpack.c.bf16 %v1962, %v1959
      %v2380 = vpack.c.bf16 %v1970, %v1967
      %v2381 = vpack.c.bf16 %v1978, %v1975
      %v2382 = vpack.c.bf16 %v1986, %v1983
      %v2383 = vpack.c.bf16 %v1994, %v1991
      %v2384 = vpack.c.bf16 %v2002, %v1999
      %v2385 = vpack.c.bf16 %v2010, %v2007
      %v2386 = vpack.c.bf16 %v2018, %v2015
      %v2387 = vpack.c.bf16 %v2026, %v2023
      %v2388 = vpack.c.bf16 %v2034, %v2031
      %v2389 = vpack.c.bf16 %v2042, %v2039
      %v2390 = vpack.c.bf16 %v2050, %v2047
      %v2391 = vpack.c.bf16 %v2058, %v2055
      %v2392 = vpack.c.bf16 %v2066, %v2063
      %v2393 = vpack.c.bf16 %v2074, %v2071
      %v2394 = vpack.c.bf16 %v2082, %v2079
      %v2395 = vpack.c.bf16 %v2090, %v2087
      %v2396 = vpack.c.bf16 %v2098, %v2095
      %v2397 = vpack.c.bf16 %v2106, %v2103
      %v2398 = vpack.c.bf16 %v2114, %v2111
      %v2399 = vpack.c.bf16 %v2122, %v2119
      %v2400 = vpack.c.bf16 %v2130, %v2127
      %v2401 = vpack.c.bf16 %v2138, %v2135
      %v2402 = vpack.c.bf16 %v2146, %v2143
      %v2403 = vpack.c.bf16 %v2154, %v2151
      %v2404 = vpack.c.bf16 %v2162, %v2159
      %v2405 = vpack.c.bf16 %v2170, %v2167
      %v2406 = vpack.c.bf16 %v2178, %v2175
      %v2407 = vpack.c.bf16 %v2186, %v2183
      %v2408 = vpack.c.bf16 %v2194, %v2191
      %v2409 = vpack.c.bf16 %v2202, %v2199
      %v2410 = vpack.c.bf16 %v2210, %v2207
      %v2411 = vpack.c.bf16 %v2218, %v2215
      %v2412 = vpack.c.bf16 %v2226, %v2223
      %v2413 = vpack.c.bf16 %v2234, %v2231
      %v2414 = vpack.c.bf16 %v2242, %v2239
      %v2415 = vpack.c.bf16 %v2250, %v2247
      %v2416 = vpack.c.bf16 %v2258, %v2255
      %v2417 = vpack.c.bf16 %v2266, %v2263
      %v2418 = vpack.c.bf16 %v2274, %v2271
      %v2419 = vpack.c.bf16 %v2282, %v2279
      %v2420 = vpack.c.bf16 %v2290, %v2287
      %v2549 = vunpack.c.l.b16 %v2293
      %v2550 = vunpack.c.h.b16 %v2293
      %v2551 = vunpack.c.l.b16 %v2294
      %v2552 = vunpack.c.h.b16 %v2294
      %v2553 = vunpack.c.l.b16 %v2295
      %v2554 = vunpack.c.h.b16 %v2295
      %v2555 = vunpack.c.l.b16 %v2296
      %v2556 = vunpack.c.h.b16 %v2296
      %v2557 = vunpack.c.l.b16 %v2297
      %v2558 = vunpack.c.h.b16 %v2297
      %v2559 = vunpack.c.l.b16 %v2298
      %v2560 = vunpack.c.h.b16 %v2298
      %v2561 = vunpack.c.l.b16 %v2299
      %v2562 = vunpack.c.h.b16 %v2299
      %v2563 = vunpack.c.l.b16 %v2300
      %v2564 = vunpack.c.h.b16 %v2300
      %v2565 = vunpack.c.l.b16 %v2301
      %v2566 = vunpack.c.h.b16 %v2301
      %v2567 = vunpack.c.l.b16 %v2302
      %v2568 = vunpack.c.h.b16 %v2302
      %v2569 = vunpack.c.l.b16 %v2303
      %v2570 = vunpack.c.h.b16 %v2303
      %v2571 = vunpack.c.l.b16 %v2304
      %v2572 = vunpack.c.h.b16 %v2304
      %v2573 = vunpack.c.l.b16 %v2305
      %v2574 = vunpack.c.h.b16 %v2305
      %v2575 = vunpack.c.l.b16 %v2306
      %v2576 = vunpack.c.h.b16 %v2306
      %v2577 = vunpack.c.l.b16 %v2307
      %v2578 = vunpack.c.h.b16 %v2307
      %v2579 = vunpack.c.l.b16 %v2308
      %v2580 = vunpack.c.h.b16 %v2308
      %v2581 = vunpack.c.l.b16 %v2309
      %v2582 = vunpack.c.h.b16 %v2309
      %v2583 = vunpack.c.l.b16 %v2310
      %v2584 = vunpack.c.h.b16 %v2310
      %v2585 = vunpack.c.l.b16 %v2311
      %v2586 = vunpack.c.h.b16 %v2311
      %v2587 = vunpack.c.l.b16 %v2312
      %v2588 = vunpack.c.h.b16 %v2312
      %v2589 = vunpack.c.l.b16 %v2313
      %v2590 = vunpack.c.h.b16 %v2313
      %v2591 = vunpack.c.l.b16 %v2314
      %v2592 = vunpack.c.h.b16 %v2314
      %v2593 = vunpack.c.l.b16 %v2315
      %v2594 = vunpack.c.h.b16 %v2315
      %v2595 = vunpack.c.l.b16 %v2316
      %v2596 = vunpack.c.h.b16 %v2316
      %v2597 = vunpack.c.l.b16 %v2317
      %v2598 = vunpack.c.h.b16 %v2317
      %v2599 = vunpack.c.l.b16 %v2318
      %v2600 = vunpack.c.h.b16 %v2318
      %v2601 = vunpack.c.l.b16 %v2319
      %v2602 = vunpack.c.h.b16 %v2319
      %v2603 = vunpack.c.l.b16 %v2320
      %v2604 = vunpack.c.h.b16 %v2320
      %v2605 = vunpack.c.l.b16 %v2321
      %v2606 = vunpack.c.h.b16 %v2321
      %v2607 = vunpack.c.l.b16 %v2322
      %v2608 = vunpack.c.h.b16 %v2322
      %v2609 = vunpack.c.l.b16 %v2323
      %v2610 = vunpack.c.h.b16 %v2323
      %v2611 = vunpack.c.l.b16 %v2324
      %v2612 = vunpack.c.h.b16 %v2324
      %v2613 = vunpack.c.l.b16 %v2325
      %v2614 = vunpack.c.h.b16 %v2325
      %v2615 = vunpack.c.l.b16 %v2326
      %v2616 = vunpack.c.h.b16 %v2326
      %v2617 = vunpack.c.l.b16 %v2327
      %v2618 = vunpack.c.h.b16 %v2327
      %v2619 = vunpack.c.l.b16 %v2328
      %v2620 = vunpack.c.h.b16 %v2328
      %v2621 = vunpack.c.l.b16 %v2329
      %v2622 = vunpack.c.h.b16 %v2329
      %v2623 = vunpack.c.l.b16 %v2330
      %v2624 = vunpack.c.h.b16 %v2330
      %v2625 = vunpack.c.l.b16 %v2331
      %v2626 = vunpack.c.h.b16 %v2331
      %v2627 = vunpack.c.l.b16 %v2332
      %v2628 = vunpack.c.h.b16 %v2332
      %v2629 = vunpack.c.l.b16 %v2333
      %v2630 = vunpack.c.h.b16 %v2333
      %v2631 = vunpack.c.l.b16 %v2334
      %v2632 = vunpack.c.h.b16 %v2334
      %v2633 = vunpack.c.l.b16 %v2335
      %v2634 = vunpack.c.h.b16 %v2335
      %v2635 = vunpack.c.l.b16 %v2336
      %v2636 = vunpack.c.h.b16 %v2336
      %v2637 = vunpack.c.l.b16 %v2337
      %v2638 = vunpack.c.h.b16 %v2337
      %v2639 = vunpack.c.l.b16 %v2338
      %v2640 = vunpack.c.h.b16 %v2338
      %v2641 = vunpack.c.l.b16 %v2339
      %v2642 = vunpack.c.h.b16 %v2339
      %v2643 = vunpack.c.l.b16 %v2340
      %v2644 = vunpack.c.h.b16 %v2340
      %v2645 = vunpack.c.l.b16 %v2341
      %v2646 = vunpack.c.h.b16 %v2341
      %v2647 = vunpack.c.l.b16 %v2342
      %v2648 = vunpack.c.h.b16 %v2342
      %v2649 = vunpack.c.l.b16 %v2343
      %v2650 = vunpack.c.h.b16 %v2343
      %v2651 = vunpack.c.l.b16 %v2344
      %v2652 = vunpack.c.h.b16 %v2344
      %v2653 = vunpack.c.l.b16 %v2345
      %v2654 = vunpack.c.h.b16 %v2345
      %v2655 = vunpack.c.l.b16 %v2346
      %v2656 = vunpack.c.h.b16 %v2346
      %v2657 = vunpack.c.l.b16 %v2347
      %v2658 = vunpack.c.h.b16 %v2347
      %v2659 = vunpack.c.l.b16 %v2348
      %v2660 = vunpack.c.h.b16 %v2348
      %v2661 = vunpack.c.l.b16 %v2349
      %v2662 = vunpack.c.h.b16 %v2349
      %v2663 = vunpack.c.l.b16 %v2350
      %v2664 = vunpack.c.h.b16 %v2350
      %v2665 = vunpack.c.l.b16 %v2351
      %v2666 = vunpack.c.h.b16 %v2351
      %v2667 = vunpack.c.l.b16 %v2352
      %v2668 = vunpack.c.h.b16 %v2352
      %v2669 = vunpack.c.l.b16 %v2353
      %v2670 = vunpack.c.h.b16 %v2353
      %v2671 = vunpack.c.l.b16 %v2354
      %v2672 = vunpack.c.h.b16 %v2354
      %v2673 = vunpack.c.l.b16 %v2355
      %v2674 = vunpack.c.h.b16 %v2355
      %v2675 = vunpack.c.l.b16 %v2356
      %v2676 = vunpack.c.h.b16 %v2356
      %v2677 = vunpack.c.l.b16 %v2357
      %v2678 = vunpack.c.h.b16 %v2357
      %v2679 = vunpack.c.l.b16 %v2358
      %v2680 = vunpack.c.h.b16 %v2358
      %v2681 = vunpack.c.l.b16 %v2359
      %v2682 = vunpack.c.h.b16 %v2359
      %v2683 = vunpack.c.l.b16 %v2360
      %v2684 = vunpack.c.h.b16 %v2360
      %v2685 = vunpack.c.l.b16 %v2361
      %v2686 = vunpack.c.h.b16 %v2361
      %v2687 = vunpack.c.l.b16 %v2362
      %v2688 = vunpack.c.h.b16 %v2362
      %v2689 = vunpack.c.l.b16 %v2363
      %v2690 = vunpack.c.h.b16 %v2363
      %v2691 = vunpack.c.l.b16 %v2364
      %v2692 = vunpack.c.h.b16 %v2364
      %v2693 = vunpack.c.l.b16 %v2365
      %v2694 = vunpack.c.h.b16 %v2365
      %v2695 = vunpack.c.l.b16 %v2366
      %v2696 = vunpack.c.h.b16 %v2366
      %v2697 = vunpack.c.l.b16 %v2367
      %v2698 = vunpack.c.h.b16 %v2367
      %v2699 = vunpack.c.l.b16 %v2368
      %v2700 = vunpack.c.h.b16 %v2368
      %v2701 = vunpack.c.l.b16 %v2369
      %v2702 = vunpack.c.h.b16 %v2369
      %v2703 = vunpack.c.l.b16 %v2370
      %v2704 = vunpack.c.h.b16 %v2370
      %v2705 = vunpack.c.l.b16 %v2371
      %v2706 = vunpack.c.h.b16 %v2371
      %v2707 = vunpack.c.l.b16 %v2372
      %v2708 = vunpack.c.h.b16 %v2372
      %v2709 = vunpack.c.l.b16 %v2373
      %v2710 = vunpack.c.h.b16 %v2373
      %v2711 = vunpack.c.l.b16 %v2374
      %v2712 = vunpack.c.h.b16 %v2374
      %v2713 = vunpack.c.l.b16 %v2375
      %v2714 = vunpack.c.h.b16 %v2375
      %v2715 = vunpack.c.l.b16 %v2376
      %v2716 = vunpack.c.h.b16 %v2376
      %v2717 = vunpack.c.l.b16 %v2377
      %v2718 = vunpack.c.h.b16 %v2377
      %v2719 = vunpack.c.l.b16 %v2378
      %v2720 = vunpack.c.h.b16 %v2378
      %v2721 = vunpack.c.l.b16 %v2379
      %v2722 = vunpack.c.h.b16 %v2379
      %v2723 = vunpack.c.l.b16 %v2380
      %v2724 = vunpack.c.h.b16 %v2380
      %v2725 = vunpack.c.l.b16 %v2381
      %v2726 = vunpack.c.h.b16 %v2381
      %v2727 = vunpack.c.l.b16 %v2382
      %v2728 = vunpack.c.h.b16 %v2382
      %v2729 = vunpack.c.l.b16 %v2383
      %v2730 = vunpack.c.h.b16 %v2383
      %v2731 = vunpack.c.l.b16 %v2384
      %v2732 = vunpack.c.h.b16 %v2384
      %v2733 = vunpack.c.l.b16 %v2385
      %v2734 = vunpack.c.h.b16 %v2385
      %v2735 = vunpack.c.l.b16 %v2386
      %v2736 = vunpack.c.h.b16 %v2386
      %v2737 = vunpack.c.l.b16 %v2387
      %v2738 = vunpack.c.h.b16 %v2387
      %v2739 = vunpack.c.l.b16 %v2388
      %v2740 = vunpack.c.h.b16 %v2388
      %v2741 = vunpack.c.l.b16 %v2389
      %v2742 = vunpack.c.h.b16 %v2389
      %v2743 = vunpack.c.l.b16 %v2390
      %v2744 = vunpack.c.h.b16 %v2390
      %v2745 = vunpack.c.l.b16 %v2391
      %v2746 = vunpack.c.h.b16 %v2391
      %v2747 = vunpack.c.l.b16 %v2392
      %v2748 = vunpack.c.h.b16 %v2392
      %v2749 = vunpack.c.l.b16 %v2393
      %v2750 = vunpack.c.h.b16 %v2393
      %v2751 = vunpack.c.l.b16 %v2394
      %v2752 = vunpack.c.h.b16 %v2394
      %v2753 = vunpack.c.l.b16 %v2395
      %v2754 = vunpack.c.h.b16 %v2395
      %v2755 = vunpack.c.l.b16 %v2396
      %v2756 = vunpack.c.h.b16 %v2396
      %v2757 = vunpack.c.l.b16 %v2397
      %v2758 = vunpack.c.h.b16 %v2397
      %v2759 = vunpack.c.l.b16 %v2398
      %v2760 = vunpack.c.h.b16 %v2398
      %v2761 = vunpack.c.l.b16 %v2399
      %v2762 = vunpack.c.h.b16 %v2399
      %v2763 = vunpack.c.l.b16 %v2400
      %v2764 = vunpack.c.h.b16 %v2400
      %v2765 = vunpack.c.l.b16 %v2401
      %v2766 = vunpack.c.h.b16 %v2401
      %v2767 = vunpack.c.l.b16 %v2402
      %v2768 = vunpack.c.h.b16 %v2402
      %v2769 = vunpack.c.l.b16 %v2403
      %v2770 = vunpack.c.h.b16 %v2403
      %v2771 = vunpack.c.l.b16 %v2404
      %v2772 = vunpack.c.h.b16 %v2404
      %v2773 = vunpack.c.l.b16 %v2405
      %v2774 = vunpack.c.h.b16 %v2405
      %v2775 = vunpack.c.l.b16 %v2406
      %v2776 = vunpack.c.h.b16 %v2406
      %v2777 = vunpack.c.l.b16 %v2407
      %v2778 = vunpack.c.h.b16 %v2407
      %v2779 = vunpack.c.l.b16 %v2408
      %v2780 = vunpack.c.h.b16 %v2408
      %v2781 = vunpack.c.l.b16 %v2409
      %v2782 = vunpack.c.h.b16 %v2409
      %v2783 = vunpack.c.l.b16 %v2410
      %v2784 = vunpack.c.h.b16 %v2410
      %v2785 = vunpack.c.l.b16 %v2411
      %v2786 = vunpack.c.h.b16 %v2411
      %v2787 = vunpack.c.l.b16 %v2412
      %v2788 = vunpack.c.h.b16 %v2412
      %v2789 = vunpack.c.l.b16 %v2413
      %v2790 = vunpack.c.h.b16 %v2413
      %v2791 = vunpack.c.l.b16 %v2414
      %v2792 = vunpack.c.h.b16 %v2414
      %v2793 = vunpack.c.l.b16 %v2415
      %v2794 = vunpack.c.h.b16 %v2415
      %v2795 = vunpack.c.l.b16 %v2416
      %v2796 = vunpack.c.h.b16 %v2416
      %v2797 = vunpack.c.l.b16 %v2417
      %v2798 = vunpack.c.h.b16 %v2417
      %v2799 = vunpack.c.l.b16 %v2418
      %v2800 = vunpack.c.h.b16 %v2418
      %v2801 = vunpack.c.l.b16 %v2419
      %v2802 = vunpack.c.h.b16 %v2419
      %v2803 = vunpack.c.l.b16 %v2420
      %v2804 = vunpack.c.h.b16 %v2420
      %v2805 = vpack.c.b16 %v2549, %v2549
      %v2806 = vpack.c.b16 %v2550, %v2550
      %v2807 = vpack.c.b16 %v2551, %v2551
      %v2808 = vpack.c.b16 %v2552, %v2552
      %v2809 = vpack.c.b16 %v2553, %v2553
      %v2810 = vpack.c.b16 %v2554, %v2554
      %v2811 = vpack.c.b16 %v2555, %v2555
      %v2812 = vpack.c.b16 %v2556, %v2556
      %v2813 = vpack.c.b16 %v2557, %v2557
      %v2814 = vpack.c.b16 %v2558, %v2558
      %v2815 = vpack.c.b16 %v2559, %v2559
      %v2816 = vpack.c.b16 %v2560, %v2560
      %v2817 = vpack.c.b16 %v2561, %v2561
      %v2818 = vpack.c.b16 %v2562, %v2562
      %v2819 = vpack.c.b16 %v2563, %v2563
      %v2820 = vpack.c.b16 %v2564, %v2564
      %v2821 = vpack.c.b16 %v2565, %v2565
      %v2822 = vpack.c.b16 %v2566, %v2566
      %v2823 = vpack.c.b16 %v2567, %v2567
      %v2824 = vpack.c.b16 %v2568, %v2568
      %v2825 = vpack.c.b16 %v2569, %v2569
      %v2826 = vpack.c.b16 %v2570, %v2570
      %v2827 = vpack.c.b16 %v2571, %v2571
      %v2828 = vpack.c.b16 %v2572, %v2572
      %v2829 = vpack.c.b16 %v2573, %v2573
      %v2830 = vpack.c.b16 %v2574, %v2574
      %v2831 = vpack.c.b16 %v2575, %v2575
      %v2832 = vpack.c.b16 %v2576, %v2576
      %v2833 = vpack.c.b16 %v2577, %v2577
      %v2834 = vpack.c.b16 %v2578, %v2578
      %v2835 = vpack.c.b16 %v2579, %v2579
      %v2836 = vpack.c.b16 %v2580, %v2580
      %v2837 = vpack.c.b16 %v2581, %v2581
      %v2838 = vpack.c.b16 %v2582, %v2582
      %v2839 = vpack.c.b16 %v2583, %v2583
      %v2840 = vpack.c.b16 %v2584, %v2584
      %v2841 = vpack.c.b16 %v2585, %v2585
      %v2842 = vpack.c.b16 %v2586, %v2586
      %v2843 = vpack.c.b16 %v2587, %v2587
      %v2844 = vpack.c.b16 %v2588, %v2588
      %v2845 = vpack.c.b16 %v2589, %v2589
      %v2846 = vpack.c.b16 %v2590, %v2590
      %v2847 = vpack.c.b16 %v2591, %v2591
      %v2848 = vpack.c.b16 %v2592, %v2592
      %v2849 = vpack.c.b16 %v2593, %v2593
      %v2850 = vpack.c.b16 %v2594, %v2594
      %v2851 = vpack.c.b16 %v2595, %v2595
      %v2852 = vpack.c.b16 %v2596, %v2596
      %v2853 = vpack.c.b16 %v2597, %v2597
      %v2854 = vpack.c.b16 %v2598, %v2598
      %v2855 = vpack.c.b16 %v2599, %v2599
      %v2856 = vpack.c.b16 %v2600, %v2600
      %v2857 = vpack.c.b16 %v2601, %v2601
      %v2858 = vpack.c.b16 %v2602, %v2602
      %v2859 = vpack.c.b16 %v2603, %v2603
      %v2860 = vpack.c.b16 %v2604, %v2604
      %v2861 = vpack.c.b16 %v2605, %v2605
      %v2862 = vpack.c.b16 %v2606, %v2606
      %v2863 = vpack.c.b16 %v2607, %v2607
      %v2864 = vpack.c.b16 %v2608, %v2608
      %v2865 = vpack.c.b16 %v2609, %v2609
      %v2866 = vpack.c.b16 %v2610, %v2610
      %v2867 = vpack.c.b16 %v2611, %v2611
      %v2868 = vpack.c.b16 %v2612, %v2612
      %v2869 = vpack.c.b16 %v2613, %v2613
      %v2870 = vpack.c.b16 %v2614, %v2614
      %v2871 = vpack.c.b16 %v2615, %v2615
      %v2872 = vpack.c.b16 %v2616, %v2616
      %v2873 = vpack.c.b16 %v2617, %v2617
      %v2874 = vpack.c.b16 %v2618, %v2618
      %v2875 = vpack.c.b16 %v2619, %v2619
      %v2876 = vpack.c.b16 %v2620, %v2620
      %v2877 = vpack.c.b16 %v2621, %v2621
      %v2878 = vpack.c.b16 %v2622, %v2622
      %v2879 = vpack.c.b16 %v2623, %v2623
      %v2880 = vpack.c.b16 %v2624, %v2624
      %v2881 = vpack.c.b16 %v2625, %v2625
      %v2882 = vpack.c.b16 %v2626, %v2626
      %v2883 = vpack.c.b16 %v2627, %v2627
      %v2884 = vpack.c.b16 %v2628, %v2628
      %v2885 = vpack.c.b16 %v2629, %v2629
      %v2886 = vpack.c.b16 %v2630, %v2630
      %v2887 = vpack.c.b16 %v2631, %v2631
      %v2888 = vpack.c.b16 %v2632, %v2632
      %v2889 = vpack.c.b16 %v2633, %v2633
      %v2890 = vpack.c.b16 %v2634, %v2634
      %v2891 = vpack.c.b16 %v2635, %v2635
      %v2892 = vpack.c.b16 %v2636, %v2636
      %v2893 = vpack.c.b16 %v2637, %v2637
      %v2894 = vpack.c.b16 %v2638, %v2638
      %v2895 = vpack.c.b16 %v2639, %v2639
      %v2896 = vpack.c.b16 %v2640, %v2640
      %v2897 = vpack.c.b16 %v2641, %v2641
      %v2898 = vpack.c.b16 %v2642, %v2642
      %v2899 = vpack.c.b16 %v2643, %v2643
      %v2900 = vpack.c.b16 %v2644, %v2644
      %v2901 = vpack.c.b16 %v2645, %v2645
      %v2902 = vpack.c.b16 %v2646, %v2646
      %v2903 = vpack.c.b16 %v2647, %v2647
      %v2904 = vpack.c.b16 %v2648, %v2648
      %v2905 = vpack.c.b16 %v2649, %v2649
      %v2906 = vpack.c.b16 %v2650, %v2650
      %v2907 = vpack.c.b16 %v2651, %v2651
      %v2908 = vpack.c.b16 %v2652, %v2652
      %v2909 = vpack.c.b16 %v2653, %v2653
      %v2910 = vpack.c.b16 %v2654, %v2654
      %v2911 = vpack.c.b16 %v2655, %v2655
      %v2912 = vpack.c.b16 %v2656, %v2656
      %v2913 = vpack.c.b16 %v2657, %v2657
      %v2914 = vpack.c.b16 %v2658, %v2658
      %v2915 = vpack.c.b16 %v2659, %v2659
      %v2916 = vpack.c.b16 %v2660, %v2660
      %v2917 = vpack.c.b16 %v2661, %v2661
      %v2918 = vpack.c.b16 %v2662, %v2662
      %v2919 = vpack.c.b16 %v2663, %v2663
      %v2920 = vpack.c.b16 %v2664, %v2664
      %v2921 = vpack.c.b16 %v2665, %v2665
      %v2922 = vpack.c.b16 %v2666, %v2666
      %v2923 = vpack.c.b16 %v2667, %v2667
      %v2924 = vpack.c.b16 %v2668, %v2668
      %v2925 = vpack.c.b16 %v2669, %v2669
      %v2926 = vpack.c.b16 %v2670, %v2670
      %v2927 = vpack.c.b16 %v2671, %v2671
      %v2928 = vpack.c.b16 %v2672, %v2672
      %v2929 = vpack.c.b16 %v2673, %v2673
      %v2930 = vpack.c.b16 %v2674, %v2674
      %v2931 = vpack.c.b16 %v2675, %v2675
      %v2932 = vpack.c.b16 %v2676, %v2676
      %v2933 = vpack.c.b16 %v2677, %v2677
      %v2934 = vpack.c.b16 %v2678, %v2678
      %v2935 = vpack.c.b16 %v2679, %v2679
      %v2936 = vpack.c.b16 %v2680, %v2680
      %v2937 = vpack.c.b16 %v2681, %v2681
      %v2938 = vpack.c.b16 %v2682, %v2682
      %v2939 = vpack.c.b16 %v2683, %v2683
      %v2940 = vpack.c.b16 %v2684, %v2684
      %v2941 = vpack.c.b16 %v2685, %v2685
      %v2942 = vpack.c.b16 %v2686, %v2686
      %v2943 = vpack.c.b16 %v2687, %v2687
      %v2944 = vpack.c.b16 %v2688, %v2688
      %v2945 = vpack.c.b16 %v2689, %v2689
      %v2946 = vpack.c.b16 %v2690, %v2690
      %v2947 = vpack.c.b16 %v2691, %v2691
      %v2948 = vpack.c.b16 %v2692, %v2692
      %v2949 = vpack.c.b16 %v2693, %v2693
      %v2950 = vpack.c.b16 %v2694, %v2694
      %v2951 = vpack.c.b16 %v2695, %v2695
      %v2952 = vpack.c.b16 %v2696, %v2696
      %v2953 = vpack.c.b16 %v2697, %v2697
      %v2954 = vpack.c.b16 %v2698, %v2698
      %v2955 = vpack.c.b16 %v2699, %v2699
      %v2956 = vpack.c.b16 %v2700, %v2700
      %v2957 = vpack.c.b16 %v2701, %v2701
      %v2958 = vpack.c.b16 %v2702, %v2702
      %v2959 = vpack.c.b16 %v2703, %v2703
      %v2960 = vpack.c.b16 %v2704, %v2704
      %v2961 = vpack.c.b16 %v2705, %v2705
      %v2962 = vpack.c.b16 %v2706, %v2706
      %v2963 = vpack.c.b16 %v2707, %v2707
      %v2964 = vpack.c.b16 %v2708, %v2708
      %v2965 = vpack.c.b16 %v2709, %v2709
      %v2966 = vpack.c.b16 %v2710, %v2710
      %v2967 = vpack.c.b16 %v2711, %v2711
      %v2968 = vpack.c.b16 %v2712, %v2712
      %v2969 = vpack.c.b16 %v2713, %v2713
      %v2970 = vpack.c.b16 %v2714, %v2714
      %v2971 = vpack.c.b16 %v2715, %v2715
      %v2972 = vpack.c.b16 %v2716, %v2716
      %v2973 = vpack.c.b16 %v2717, %v2717
      %v2974 = vpack.c.b16 %v2718, %v2718
      %v2975 = vpack.c.b16 %v2719, %v2719
      %v2976 = vpack.c.b16 %v2720, %v2720
      %v2977 = vpack.c.b16 %v2721, %v2721
      %v2978 = vpack.c.b16 %v2722, %v2722
      %v2979 = vpack.c.b16 %v2723, %v2723
      %v2980 = vpack.c.b16 %v2724, %v2724
      %v2981 = vpack.c.b16 %v2725, %v2725
      %v2982 = vpack.c.b16 %v2726, %v2726
      %v2983 = vpack.c.b16 %v2727, %v2727
      %v2984 = vpack.c.b16 %v2728, %v2728
      %v2985 = vpack.c.b16 %v2729, %v2729
      %v2986 = vpack.c.b16 %v2730, %v2730
      %v2987 = vpack.c.b16 %v2731, %v2731
      %v2988 = vpack.c.b16 %v2732, %v2732
      %v2989 = vpack.c.b16 %v2733, %v2733
      %v2990 = vpack.c.b16 %v2734, %v2734
      %v2991 = vpack.c.b16 %v2735, %v2735
      %v2992 = vpack.c.b16 %v2736, %v2736
      %v2993 = vpack.c.b16 %v2737, %v2737
      %v2994 = vpack.c.b16 %v2738, %v2738
      %v2995 = vpack.c.b16 %v2739, %v2739
      %v2996 = vpack.c.b16 %v2740, %v2740
      %v2997 = vpack.c.b16 %v2741, %v2741
      %v2998 = vpack.c.b16 %v2742, %v2742
      %v2999 = vpack.c.b16 %v2743, %v2743
      %v3000 = vpack.c.b16 %v2744, %v2744
      %v3001 = vpack.c.b16 %v2745, %v2745
      %v3002 = vpack.c.b16 %v2746, %v2746
      %v3003 = vpack.c.b16 %v2747, %v2747
      %v3004 = vpack.c.b16 %v2748, %v2748
      %v3005 = vpack.c.b16 %v2749, %v2749
      %v3006 = vpack.c.b16 %v2750, %v2750
      %v3007 = vpack.c.b16 %v2751, %v2751
      %v3008 = vpack.c.b16 %v2752, %v2752
      %v3009 = vpack.c.b16 %v2753, %v2753
      %v3010 = vpack.c.b16 %v2754, %v2754
      %v3011 = vpack.c.b16 %v2755, %v2755
      %v3012 = vpack.c.b16 %v2756, %v2756
      %v3013 = vpack.c.b16 %v2757, %v2757
      %v3014 = vpack.c.b16 %v2758, %v2758
      %v3015 = vpack.c.b16 %v2759, %v2759
      %v3016 = vpack.c.b16 %v2760, %v2760
      %v3017 = vpack.c.b16 %v2761, %v2761
      %v3018 = vpack.c.b16 %v2762, %v2762
      %v3019 = vpack.c.b16 %v2763, %v2763
      %v3020 = vpack.c.b16 %v2764, %v2764
      %v3021 = vpack.c.b16 %v2765, %v2765
      %v3022 = vpack.c.b16 %v2766, %v2766
      %v3023 = vpack.c.b16 %v2767, %v2767
      %v3024 = vpack.c.b16 %v2768, %v2768
      %v3025 = vpack.c.b16 %v2769, %v2769
      %v3026 = vpack.c.b16 %v2770, %v2770
      %v3027 = vpack.c.b16 %v2771, %v2771
      %v3028 = vpack.c.b16 %v2772, %v2772
      %v3029 = vpack.c.b16 %v2773, %v2773
      %v3030 = vpack.c.b16 %v2774, %v2774
      %v3031 = vpack.c.b16 %v2775, %v2775
      %v3032 = vpack.c.b16 %v2776, %v2776
      %v3033 = vpack.c.b16 %v2777, %v2777
      %v3034 = vpack.c.b16 %v2778, %v2778
      %v3035 = vpack.c.b16 %v2779, %v2779
      %v3036 = vpack.c.b16 %v2780, %v2780
      %v3037 = vpack.c.b16 %v2781, %v2781
      %v3038 = vpack.c.b16 %v2782, %v2782
      %v3039 = vpack.c.b16 %v2783, %v2783
      %v3040 = vpack.c.b16 %v2784, %v2784
      %v3041 = vpack.c.b16 %v2785, %v2785
      %v3042 = vpack.c.b16 %v2786, %v2786
      %v3043 = vpack.c.b16 %v2787, %v2787
      %v3044 = vpack.c.b16 %v2788, %v2788
      %v3045 = vpack.c.b16 %v2789, %v2789
      %v3046 = vpack.c.b16 %v2790, %v2790
      %v3047 = vpack.c.b16 %v2791, %v2791
      %v3048 = vpack.c.b16 %v2792, %v2792
      %v3049 = vpack.c.b16 %v2793, %v2793
      %v3050 = vpack.c.b16 %v2794, %v2794
      %v3051 = vpack.c.b16 %v2795, %v2795
      %v3052 = vpack.c.b16 %v2796, %v2796
      %v3053 = vpack.c.b16 %v2797, %v2797
      %v3054 = vpack.c.b16 %v2798, %v2798
      %v3055 = vpack.c.b16 %v2799, %v2799
      %v3056 = vpack.c.b16 %v2800, %v2800
      %v3057 = vpack.c.b16 %v2801, %v2801
      %v3058 = vpack.c.b16 %v2802, %v2802
      %v3059 = vpack.c.b16 %v2803, %v2803
      %v3060 = vpack.c.b16 %v2804, %v2804
      %3317 = vst [vmem:[%s145] sm:$0xf] %v2805
      %3318 = vst [vmem:[%s145 + $0x4] sm:$0xf] %v2806
      %3319 = vst [vmem:[%s145 + $0x8] sm:$0xf] %v2807
      %3320 = vst [vmem:[%s145 + $0xc] sm:$0xf] %v2808
      %3321 = vst [vmem:[%s145 + $0x10] sm:$0xf] %v2809
      %3322 = vst [vmem:[%s145 + $0x14] sm:$0xf] %v2810
      %3323 = vst [vmem:[%s145 + $0x18] sm:$0xf] %v2811
      %3324 = vst [vmem:[%s145 + $0x1c] sm:$0xf] %v2812
      %3325 = vst [vmem:[%s145 + $0x20] sm:$0xf] %v2813
      %3326 = vst [vmem:[%s145 + $0x24] sm:$0xf] %v2814
      %3327 = vst [vmem:[%s145 + $0x28] sm:$0xf] %v2815
      %3328 = vst [vmem:[%s145 + $0x2c] sm:$0xf] %v2816
      %3329 = vst [vmem:[%s145 + $0x30] sm:$0xf] %v2817
      %3330 = vst [vmem:[%s145 + $0x34] sm:$0xf] %v2818
      %3331 = vst [vmem:[%s145 + $0x38] sm:$0xf] %v2819
      %3332 = vst [vmem:[%s145 + $0x3c] sm:$0xf] %v2820
      %3333 = vst [vmem:[%s145 + $0x40] sm:$0xf] %v2821
      %3334 = vst [vmem:[%s145 + $0x44] sm:$0xf] %v2822
      %3335 = vst [vmem:[%s145 + $0x48] sm:$0xf] %v2823
      %3336 = vst [vmem:[%s145 + $0x4c] sm:$0xf] %v2824
      %3337 = vst [vmem:[%s145 + $0x50] sm:$0xf] %v2825
      %3338 = vst [vmem:[%s145 + $0x54] sm:$0xf] %v2826
      %3339 = vst [vmem:[%s145 + $0x58] sm:$0xf] %v2827
      %3340 = vst [vmem:[%s145 + $0x5c] sm:$0xf] %v2828
      %3341 = vst [vmem:[%s145 + $0x60] sm:$0xf] %v2829
      %3342 = vst [vmem:[%s145 + $0x64] sm:$0xf] %v2830
      %3343 = vst [vmem:[%s145 + $0x68] sm:$0xf] %v2831
      %3344 = vst [vmem:[%s145 + $0x6c] sm:$0xf] %v2832
      %3345 = vst [vmem:[%s145 + $0x70] sm:$0xf] %v2833
      %3346 = vst [vmem:[%s145 + $0x74] sm:$0xf] %v2834
      %3347 = vst [vmem:[%s145 + $0x78] sm:$0xf] %v2835
      %3348 = vst [vmem:[%s145 + $0x7c] sm:$0xf] %v2836
      %3349 = vst [vmem:[%s145 + $0x80] sm:$0xf] %v2837
      %3350 = vst [vmem:[%s145 + $0x84] sm:$0xf] %v2838
      %3351 = vst [vmem:[%s145 + $0x88] sm:$0xf] %v2839
      %3352 = vst [vmem:[%s145 + $0x8c] sm:$0xf] %v2840
      %3353 = vst [vmem:[%s145 + $0x90] sm:$0xf] %v2841
      %3354 = vst [vmem:[%s145 + $0x94] sm:$0xf] %v2842
      %3355 = vst [vmem:[%s145 + $0x98] sm:$0xf] %v2843
      %3356 = vst [vmem:[%s145 + $0x9c] sm:$0xf] %v2844
      %3357 = vst [vmem:[%s145 + $0xa0] sm:$0xf] %v2845
      %3358 = vst [vmem:[%s145 + $0xa4] sm:$0xf] %v2846
      %3359 = vst [vmem:[%s145 + $0xa8] sm:$0xf] %v2847
      %3360 = vst [vmem:[%s145 + $0xac] sm:$0xf] %v2848
      %3361 = vst [vmem:[%s145 + $0xb0] sm:$0xf] %v2849
      %3362 = vst [vmem:[%s145 + $0xb4] sm:$0xf] %v2850
      %3363 = vst [vmem:[%s145 + $0xb8] sm:$0xf] %v2851
      %3364 = vst [vmem:[%s145 + $0xbc] sm:$0xf] %v2852
      %3365 = vst [vmem:[%s145 + $0xc0] sm:$0xf] %v2853
      %3366 = vst [vmem:[%s145 + $0xc4] sm:$0xf] %v2854
      %3367 = vst [vmem:[%s145 + $0xc8] sm:$0xf] %v2855
      %3368 = vst [vmem:[%s145 + $0xcc] sm:$0xf] %v2856
      %3369 = vst [vmem:[%s145 + $0xd0] sm:$0xf] %v2857
      %3370 = vst [vmem:[%s145 + $0xd4] sm:$0xf] %v2858
      %3371 = vst [vmem:[%s145 + $0xd8] sm:$0xf] %v2859
      %3372 = vst [vmem:[%s145 + $0xdc] sm:$0xf] %v2860
      %3373 = vst [vmem:[%s145 + $0xe0] sm:$0xf] %v2861
      %3374 = vst [vmem:[%s145 + $0xe4] sm:$0xf] %v2862
      %3375 = vst [vmem:[%s145 + $0xe8] sm:$0xf] %v2863
      %3376 = vst [vmem:[%s145 + $0xec] sm:$0xf] %v2864
      %3377 = vst [vmem:[%s145 + $0xf0] sm:$0xf] %v2865
      %3378 = vst [vmem:[%s145 + $0xf4] sm:$0xf] %v2866
      %3379 = vst [vmem:[%s145 + $0xf8] sm:$0xf] %v2867
      %3380 = vst [vmem:[%s145 + $0xfc] sm:$0xf] %v2868
      %3381 = vst [vmem:[%s145 + $0x100] sm:$0xf] %v2869
      %3382 = vst [vmem:[%s145 + $0x104] sm:$0xf] %v2870
      %3383 = vst [vmem:[%s145 + $0x108] sm:$0xf] %v2871
      %3384 = vst [vmem:[%s145 + $0x10c] sm:$0xf] %v2872
      %3385 = vst [vmem:[%s145 + $0x110] sm:$0xf] %v2873
      %3386 = vst [vmem:[%s145 + $0x114] sm:$0xf] %v2874
      %3387 = vst [vmem:[%s145 + $0x118] sm:$0xf] %v2875
      %3388 = vst [vmem:[%s145 + $0x11c] sm:$0xf] %v2876
      %3389 = vst [vmem:[%s145 + $0x120] sm:$0xf] %v2877
      %3390 = vst [vmem:[%s145 + $0x124] sm:$0xf] %v2878
      %3391 = vst [vmem:[%s145 + $0x128] sm:$0xf] %v2879
      %3392 = vst [vmem:[%s145 + $0x12c] sm:$0xf] %v2880
      %3393 = vst [vmem:[%s145 + $0x130] sm:$0xf] %v2881
      %3394 = vst [vmem:[%s145 + $0x134] sm:$0xf] %v2882
      %3395 = vst [vmem:[%s145 + $0x138] sm:$0xf] %v2883
      %3396 = vst [vmem:[%s145 + $0x13c] sm:$0xf] %v2884
      %3397 = vst [vmem:[%s145 + $0x140] sm:$0xf] %v2885
      %3398 = vst [vmem:[%s145 + $0x144] sm:$0xf] %v2886
      %3399 = vst [vmem:[%s145 + $0x148] sm:$0xf] %v2887
      %3400 = vst [vmem:[%s145 + $0x14c] sm:$0xf] %v2888
      %3401 = vst [vmem:[%s145 + $0x150] sm:$0xf] %v2889
      %3402 = vst [vmem:[%s145 + $0x154] sm:$0xf] %v2890
      %3403 = vst [vmem:[%s145 + $0x158] sm:$0xf] %v2891
      %3404 = vst [vmem:[%s145 + $0x15c] sm:$0xf] %v2892
      %3405 = vst [vmem:[%s145 + $0x160] sm:$0xf] %v2893
      %3406 = vst [vmem:[%s145 + $0x164] sm:$0xf] %v2894
      %3407 = vst [vmem:[%s145 + $0x168] sm:$0xf] %v2895
      %3408 = vst [vmem:[%s145 + $0x16c] sm:$0xf] %v2896
      %3409 = vst [vmem:[%s145 + $0x170] sm:$0xf] %v2897
      %3410 = vst [vmem:[%s145 + $0x174] sm:$0xf] %v2898
      %3411 = vst [vmem:[%s145 + $0x178] sm:$0xf] %v2899
      %3412 = vst [vmem:[%s145 + $0x17c] sm:$0xf] %v2900
      %3413 = vst [vmem:[%s145 + $0x180] sm:$0xf] %v2901
      %3414 = vst [vmem:[%s145 + $0x184] sm:$0xf] %v2902
      %3415 = vst [vmem:[%s145 + $0x188] sm:$0xf] %v2903
      %3416 = vst [vmem:[%s145 + $0x18c] sm:$0xf] %v2904
      %3417 = vst [vmem:[%s145 + $0x190] sm:$0xf] %v2905
      %3418 = vst [vmem:[%s145 + $0x194] sm:$0xf] %v2906
      %3419 = vst [vmem:[%s145 + $0x198] sm:$0xf] %v2907
      %3420 = vst [vmem:[%s145 + $0x19c] sm:$0xf] %v2908
      %3421 = vst [vmem:[%s145 + $0x1a0] sm:$0xf] %v2909
      %3422 = vst [vmem:[%s145 + $0x1a4] sm:$0xf] %v2910
      %3423 = vst [vmem:[%s145 + $0x1a8] sm:$0xf] %v2911
      %3424 = vst [vmem:[%s145 + $0x1ac] sm:$0xf] %v2912
      %3425 = vst [vmem:[%s145 + $0x1b0] sm:$0xf] %v2913
      %3426 = vst [vmem:[%s145 + $0x1b4] sm:$0xf] %v2914
      %3427 = vst [vmem:[%s145 + $0x1b8] sm:$0xf] %v2915
      %3428 = vst [vmem:[%s145 + $0x1bc] sm:$0xf] %v2916
      %3429 = vst [vmem:[%s145 + $0x1c0] sm:$0xf] %v2917
      %3430 = vst [vmem:[%s145 + $0x1c4] sm:$0xf] %v2918
      %3431 = vst [vmem:[%s145 + $0x1c8] sm:$0xf] %v2919
      %3432 = vst [vmem:[%s145 + $0x1cc] sm:$0xf] %v2920
      %3433 = vst [vmem:[%s145 + $0x1d0] sm:$0xf] %v2921
      %3434 = vst [vmem:[%s145 + $0x1d4] sm:$0xf] %v2922
      %3435 = vst [vmem:[%s145 + $0x1d8] sm:$0xf] %v2923
      %3436 = vst [vmem:[%s145 + $0x1dc] sm:$0xf] %v2924
      %3437 = vst [vmem:[%s145 + $0x1e0] sm:$0xf] %v2925
      %3438 = vst [vmem:[%s145 + $0x1e4] sm:$0xf] %v2926
      %3439 = vst [vmem:[%s145 + $0x1e8] sm:$0xf] %v2927
      %3440 = vst [vmem:[%s145 + $0x1ec] sm:$0xf] %v2928
      %3441 = vst [vmem:[%s145 + $0x1f0] sm:$0xf] %v2929
      %3442 = vst [vmem:[%s145 + $0x1f4] sm:$0xf] %v2930
      %3443 = vst [vmem:[%s145 + $0x1f8] sm:$0xf] %v2931
      %3444 = vst [vmem:[%s145 + $0x1fc] sm:$0xf] %v2932
      %3445 = vst [vmem:[%s145 + $0x200] sm:$0xf] %v2933
      %3446 = vst [vmem:[%s145 + $0x204] sm:$0xf] %v2934
      %3447 = vst [vmem:[%s145 + $0x208] sm:$0xf] %v2935
      %3448 = vst [vmem:[%s145 + $0x20c] sm:$0xf] %v2936
      %3449 = vst [vmem:[%s145 + $0x210] sm:$0xf] %v2937
      %3450 = vst [vmem:[%s145 + $0x214] sm:$0xf] %v2938
      %3451 = vst [vmem:[%s145 + $0x218] sm:$0xf] %v2939
      %3452 = vst [vmem:[%s145 + $0x21c] sm:$0xf] %v2940
      %3453 = vst [vmem:[%s145 + $0x220] sm:$0xf] %v2941
      %3454 = vst [vmem:[%s145 + $0x224] sm:$0xf] %v2942
      %3455 = vst [vmem:[%s145 + $0x228] sm:$0xf] %v2943
      %3456 = vst [vmem:[%s145 + $0x22c] sm:$0xf] %v2944
      %3457 = vst [vmem:[%s145 + $0x230] sm:$0xf] %v2945
      %3458 = vst [vmem:[%s145 + $0x234] sm:$0xf] %v2946
      %3459 = vst [vmem:[%s145 + $0x238] sm:$0xf] %v2947
      %3460 = vst [vmem:[%s145 + $0x23c] sm:$0xf] %v2948
      %3461 = vst [vmem:[%s145 + $0x240] sm:$0xf] %v2949
      %3462 = vst [vmem:[%s145 + $0x244] sm:$0xf] %v2950
      %3463 = vst [vmem:[%s145 + $0x248] sm:$0xf] %v2951
      %3464 = vst [vmem:[%s145 + $0x24c] sm:$0xf] %v2952
      %3465 = vst [vmem:[%s145 + $0x250] sm:$0xf] %v2953
      %3466 = vst [vmem:[%s145 + $0x254] sm:$0xf] %v2954
      %3467 = vst [vmem:[%s145 + $0x258] sm:$0xf] %v2955
      %3468 = vst [vmem:[%s145 + $0x25c] sm:$0xf] %v2956
      %3469 = vst [vmem:[%s145 + $0x260] sm:$0xf] %v2957
      %3470 = vst [vmem:[%s145 + $0x264] sm:$0xf] %v2958
      %3471 = vst [vmem:[%s145 + $0x268] sm:$0xf] %v2959
      %3472 = vst [vmem:[%s145 + $0x26c] sm:$0xf] %v2960
      %3473 = vst [vmem:[%s145 + $0x270] sm:$0xf] %v2961
      %3474 = vst [vmem:[%s145 + $0x274] sm:$0xf] %v2962
      %3475 = vst [vmem:[%s145 + $0x278] sm:$0xf] %v2963
      %3476 = vst [vmem:[%s145 + $0x27c] sm:$0xf] %v2964
      %3477 = vst [vmem:[%s145 + $0x280] sm:$0xf] %v2965
      %3478 = vst [vmem:[%s145 + $0x284] sm:$0xf] %v2966
      %3479 = vst [vmem:[%s145 + $0x288] sm:$0xf] %v2967
      %3480 = vst [vmem:[%s145 + $0x28c] sm:$0xf] %v2968
      %3481 = vst [vmem:[%s145 + $0x290] sm:$0xf] %v2969
      %3482 = vst [vmem:[%s145 + $0x294] sm:$0xf] %v2970
      %3483 = vst [vmem:[%s145 + $0x298] sm:$0xf] %v2971
      %3484 = vst [vmem:[%s145 + $0x29c] sm:$0xf] %v2972
      %3485 = vst [vmem:[%s145 + $0x2a0] sm:$0xf] %v2973
      %3486 = vst [vmem:[%s145 + $0x2a4] sm:$0xf] %v2974
      %3487 = vst [vmem:[%s145 + $0x2a8] sm:$0xf] %v2975
      %3488 = vst [vmem:[%s145 + $0x2ac] sm:$0xf] %v2976
      %3489 = vst [vmem:[%s145 + $0x2b0] sm:$0xf] %v2977
      %3490 = vst [vmem:[%s145 + $0x2b4] sm:$0xf] %v2978
      %3491 = vst [vmem:[%s145 + $0x2b8] sm:$0xf] %v2979
      %3492 = vst [vmem:[%s145 + $0x2bc] sm:$0xf] %v2980
      %3493 = vst [vmem:[%s145 + $0x2c0] sm:$0xf] %v2981
      %3494 = vst [vmem:[%s145 + $0x2c4] sm:$0xf] %v2982
      %3495 = vst [vmem:[%s145 + $0x2c8] sm:$0xf] %v2983
      %3496 = vst [vmem:[%s145 + $0x2cc] sm:$0xf] %v2984
      %3497 = vst [vmem:[%s145 + $0x2d0] sm:$0xf] %v2985
      %3498 = vst [vmem:[%s145 + $0x2d4] sm:$0xf] %v2986
      %3499 = vst [vmem:[%s145 + $0x2d8] sm:$0xf] %v2987
      %3500 = vst [vmem:[%s145 + $0x2dc] sm:$0xf] %v2988
      %3501 = vst [vmem:[%s145 + $0x2e0] sm:$0xf] %v2989
      %3502 = vst [vmem:[%s145 + $0x2e4] sm:$0xf] %v2990
      %3503 = vst [vmem:[%s145 + $0x2e8] sm:$0xf] %v2991
      %3504 = vst [vmem:[%s145 + $0x2ec] sm:$0xf] %v2992
      %3505 = vst [vmem:[%s145 + $0x2f0] sm:$0xf] %v2993
      %3506 = vst [vmem:[%s145 + $0x2f4] sm:$0xf] %v2994
      %3507 = vst [vmem:[%s145 + $0x2f8] sm:$0xf] %v2995
      %3508 = vst [vmem:[%s145 + $0x2fc] sm:$0xf] %v2996
      %3509 = vst [vmem:[%s145 + $0x300] sm:$0xf] %v2997
      %3510 = vst [vmem:[%s145 + $0x304] sm:$0xf] %v2998
      %3511 = vst [vmem:[%s145 + $0x308] sm:$0xf] %v2999
      %3512 = vst [vmem:[%s145 + $0x30c] sm:$0xf] %v3000
      %3513 = vst [vmem:[%s145 + $0x310] sm:$0xf] %v3001
      %3514 = vst [vmem:[%s145 + $0x314] sm:$0xf] %v3002
      %3515 = vst [vmem:[%s145 + $0x318] sm:$0xf] %v3003
      %3516 = vst [vmem:[%s145 + $0x31c] sm:$0xf] %v3004
      %3517 = vst [vmem:[%s145 + $0x320] sm:$0xf] %v3005
      %3518 = vst [vmem:[%s145 + $0x324] sm:$0xf] %v3006
      %3519 = vst [vmem:[%s145 + $0x328] sm:$0xf] %v3007
      %3520 = vst [vmem:[%s145 + $0x32c] sm:$0xf] %v3008
      %3521 = vst [vmem:[%s145 + $0x330] sm:$0xf] %v3009
      %3522 = vst [vmem:[%s145 + $0x334] sm:$0xf] %v3010
      %3523 = vst [vmem:[%s145 + $0x338] sm:$0xf] %v3011
      %3524 = vst [vmem:[%s145 + $0x33c] sm:$0xf] %v3012
      %3525 = vst [vmem:[%s145 + $0x340] sm:$0xf] %v3013
      %3526 = vst [vmem:[%s145 + $0x344] sm:$0xf] %v3014
      %3527 = vst [vmem:[%s145 + $0x348] sm:$0xf] %v3015
      %3528 = vst [vmem:[%s145 + $0x34c] sm:$0xf] %v3016
      %3529 = vst [vmem:[%s145 + $0x350] sm:$0xf] %v3017
      %3530 = vst [vmem:[%s145 + $0x354] sm:$0xf] %v3018
      %3531 = vst [vmem:[%s145 + $0x358] sm:$0xf] %v3019
      %3532 = vst [vmem:[%s145 + $0x35c] sm:$0xf] %v3020
      %3533 = vst [vmem:[%s145 + $0x360] sm:$0xf] %v3021
      %3534 = vst [vmem:[%s145 + $0x364] sm:$0xf] %v3022
      %3535 = vst [vmem:[%s145 + $0x368] sm:$0xf] %v3023
      %3536 = vst [vmem:[%s145 + $0x36c] sm:$0xf] %v3024
      %3537 = vst [vmem:[%s145 + $0x370] sm:$0xf] %v3025
      %3538 = vst [vmem:[%s145 + $0x374] sm:$0xf] %v3026
      %3539 = vst [vmem:[%s145 + $0x378] sm:$0xf] %v3027
      %3540 = vst [vmem:[%s145 + $0x37c] sm:$0xf] %v3028
      %3541 = vst [vmem:[%s145 + $0x380] sm:$0xf] %v3029
      %3542 = vst [vmem:[%s145 + $0x384] sm:$0xf] %v3030
      %3543 = vst [vmem:[%s145 + $0x388] sm:$0xf] %v3031
      %3544 = vst [vmem:[%s145 + $0x38c] sm:$0xf] %v3032
      %3545 = vst [vmem:[%s145 + $0x390] sm:$0xf] %v3033
      %3546 = vst [vmem:[%s145 + $0x394] sm:$0xf] %v3034
      %3547 = vst [vmem:[%s145 + $0x398] sm:$0xf] %v3035
      %3548 = vst [vmem:[%s145 + $0x39c] sm:$0xf] %v3036
      %3549 = vst [vmem:[%s145 + $0x3a0] sm:$0xf] %v3037
      %3550 = vst [vmem:[%s145 + $0x3a4] sm:$0xf] %v3038
      %3551 = vst [vmem:[%s145 + $0x3a8] sm:$0xf] %v3039
      %3552 = vst [vmem:[%s145 + $0x3ac] sm:$0xf] %v3040
      %3553 = vst [vmem:[%s145 + $0x3b0] sm:$0xf] %v3041
      %3554 = vst [vmem:[%s145 + $0x3b4] sm:$0xf] %v3042
      %3555 = vst [vmem:[%s145 + $0x3b8] sm:$0xf] %v3043
      %3556 = vst [vmem:[%s145 + $0x3bc] sm:$0xf] %v3044
      %3557 = vst [vmem:[%s145 + $0x3c0] sm:$0xf] %v3045
      %3558 = vst [vmem:[%s145 + $0x3c4] sm:$0xf] %v3046
      %3559 = vst [vmem:[%s145 + $0x3c8] sm:$0xf] %v3047
      %3560 = vst [vmem:[%s145 + $0x3cc] sm:$0xf] %v3048
      %3561 = vst [vmem:[%s145 + $0x3d0] sm:$0xf] %v3049
      %3562 = vst [vmem:[%s145 + $0x3d4] sm:$0xf] %v3050
      %3563 = vst [vmem:[%s145 + $0x3d8] sm:$0xf] %v3051
      %3564 = vst [vmem:[%s145 + $0x3dc] sm:$0xf] %v3052
      %3565 = vst [vmem:[%s145 + $0x3e0] sm:$0xf] %v3053
      %3566 = vst [vmem:[%s145 + $0x3e4] sm:$0xf] %v3054
      %3567 = vst [vmem:[%s145 + $0x3e8] sm:$0xf] %v3055
      %3568 = vst [vmem:[%s145 + $0x3ec] sm:$0xf] %v3056
      %3569 = vst [vmem:[%s145 + $0x3f0] sm:$0xf] %v3057
      %3570 = vst [vmem:[%s145 + $0x3f4] sm:$0xf] %v3058
      %3571 = vst [vmem:[%s145 + $0x3f8] sm:$0xf] %v3059
      %3572 = vst [vmem:[%s145 + $0x3fc] sm:$0xf] %v3060
      %s3573 = smul.u32 256, %s13
      %p3574 = scmp.lt.s32.totalorder %s3573, 1023
      %s3575 = scalar_select %p3574, %s3573, 1023
      %s3576 = smul.addr %s3575, 4
      %s3577 = scalar_lea.vmem %s2, %s3576
      // Predicated region
      $region29: #{discriminator_forward.4} parent=27 // pred_check
        %p3578 = pneg %p78
      $region30: #{discriminator_forward.4} parent=27 // pred_check_branch
        %3580 = sbr.rel (%p3578) target = $region32
      $region31: #{discriminator_forward.4} parent=27 // pred_region
        %s3581 = smul.u32 256, %s13
      $region32: #{discriminator_forward.4} parent=27 // pred_fallthru
        _
    $region28: #{discriminator_forward.4} parent=5 // pred_fallthru
      _
    %p3582 = scmp.le.s32.totalorder 2, %s8
    // Predicated region
    $region33: #{discriminator_forward.4} parent=5 // pred_check
      %p3583 = pneg %p3582
    $region34: #{discriminator_forward.4} parent=5 // pred_check_branch
      %3585 = sbr.rel (%p3583) target = $region36
    $region35: #{discriminator_forward.4} parent=5 // pred_region
      %s3586 = ssub.s32 %s8, 2
      // Predicated region
      $region37: #{discriminator_forward.4} parent=35 // pred_check
        %p3587 = pneg %p84
      $region38: #{discriminator_forward.4} parent=35 // pred_check_branch
        %3589 = sbr.rel (%p3587) target = $region40
      $region39: #{discriminator_forward.4} parent=35 // pred_region
        %s3590 = smul.u32 256, %s14
        %p3591 = scmp.lt.s32.totalorder %s3590, 1023
        %s3592 = scalar_select %p3591, %s3590, 1023
        %s3593 = smul.addr %s3592, 4
        %s3594 = scalar_lea.vmem %s2, %s3593
      $region40: #{discriminator_forward.4} parent=35 // pred_fallthru
        _
    $region36: #{discriminator_forward.4} parent=5 // pred_fallthru
      _
  $region6: #{discriminator_forward.4} parent=0 // loop_footer
    %s12 = sadd.s32 1, %s8
  $region7: #{discriminator_forward.4} parent=0 // loop_footer_branch
    %7 = sbr.rel target = $region3
  $region8: #{discriminator_forward.4} parent=0 // loop_exit
    _

// kernel: discriminator_forward.5
$region0: #{discriminator_forward.5}
  #allocation0 [shape = 'u32[]', space=smem, size = 0x4, offset = 0x4, fixed_abs, tag = 'smem constant byte address 0x4 - core index']
  #allocation1 [shape = 'u32[144,128]{1,0:T(1,128)}', space=vmem, size = 0x12000, scoped, tag = 'internal scratch']
  %s0 = inlined_call_operand.vmem [shape: bf16[2048,128], index: 0, kind: input, shape index: {}]
  %s1 = inlined_call_operand.vmem [shape: bf16[128,128], index: 1, kind: input, shape index: {}]
  %s2 = inlined_call_operand.vmem [shape: bf16[2048,128], index: 2, kind: output, shape index: {}]
  %s3 = sld [smem:[#allocation0]]
  $region18: #{discriminator_forward.5} parent=0
    _
  %s5 = ssub.s32 1, %s3
  %s6 = scalar_select 0, %s5, %s3
  // Predicated region
  $region2: #{discriminator_forward.5} parent=0 // pred_check
    _
  $region3: #{discriminator_forward.5} parent=0 // pred_check_branch
    %8 = sbr.rel (0) target = $region5
  $region4: #{discriminator_forward.5} parent=0 // pred_region
    _
  $region5: #{discriminator_forward.5} parent=0 // pred_fallthru
    _
  // Predicated region
  $region6: #{discriminator_forward.5} parent=0 // pred_check
    _
  $region7: #{discriminator_forward.5} parent=0 // pred_check_branch
    %10 = sbr.rel (0) target = $region9
  $region8: #{discriminator_forward.5} parent=0 // pred_region
    _
  $region9: #{discriminator_forward.5} parent=0 // pred_fallthru
    _
  %v12 = vld [vmem:[%s0] sm:$0xf]
  %v13 = vld [vmem:[%s0 + $0x4] sm:$0xf]
  %v14 = vld [vmem:[%s0 + $0x8] sm:$0xf]
  %v15 = vld [vmem:[%s0 + $0xc] sm:$0xf]
  %v16 = vld [vmem:[%s0 + $0x10] sm:$0xf]
  %v17 = vld [vmem:[%s0 + $0x14] sm:$0xf]
  %v18 = vld [vmem:[%s0 + $0x18] sm:$0xf]
  %v19 = vld [vmem:[%s0 + $0x1c] sm:$0xf]
  %v20 = vld [vmem:[%s0 + $0x20] sm:$0xf]
  %v21 = vld [vmem:[%s0 + $0x24] sm:$0xf]
  %v22 = vld [vmem:[%s0 + $0x28] sm:$0xf]
  %v23 = vld [vmem:[%s0 + $0x2c] sm:$0xf]
  %v24 = vld [vmem:[%s0 + $0x30] sm:$0xf]
  %v25 = vld [vmem:[%s0 + $0x34] sm:$0xf]
  %v26 = vld [vmem:[%s0 + $0x38] sm:$0xf]
  %v27 = vld [vmem:[%s0 + $0x3c] sm:$0xf]
  %v28 = vld [vmem:[%s0 + $0x40] sm:$0xf]
  %v29 = vld [vmem:[%s0 + $0x44] sm:$0xf]
  %v30 = vld [vmem:[%s0 + $0x48] sm:$0xf]
  %v31 = vld [vmem:[%s0 + $0x4c] sm:$0xf]
  %v32 = vld [vmem:[%s0 + $0x50] sm:$0xf]
  %v33 = vld [vmem:[%s0 + $0x54] sm:$0xf]
  %v34 = vld [vmem:[%s0 + $0x58] sm:$0xf]
  %v35 = vld [vmem:[%s0 + $0x5c] sm:$0xf]
  %v36 = vld [vmem:[%s0 + $0x60] sm:$0xf]
  %v37 = vld [vmem:[%s0 + $0x64] sm:$0xf]
  %v38 = vld [vmem:[%s0 + $0x68] sm:$0xf]
  %v39 = vld [vmem:[%s0 + $0x6c] sm:$0xf]
  %v40 = vld [vmem:[%s0 + $0x70] sm:$0xf]
  %v41 = vld [vmem:[%s0 + $0x74] sm:$0xf]
  %v42 = vld [vmem:[%s0 + $0x78] sm:$0xf]
  %v43 = vld [vmem:[%s0 + $0x7c] sm:$0xf]
  %v44 = vld [vmem:[%s0 + $0x80] sm:$0xf]
  %v45 = vld [vmem:[%s0 + $0x84] sm:$0xf]
  %v46 = vld [vmem:[%s0 + $0x88] sm:$0xf]
  %v47 = vld [vmem:[%s0 + $0x8c] sm:$0xf]
  %v48 = vld [vmem:[%s0 + $0x90] sm:$0xf]
  %v49 = vld [vmem:[%s0 + $0x94] sm:$0xf]
  %v50 = vld [vmem:[%s0 + $0x98] sm:$0xf]
  %v51 = vld [vmem:[%s0 + $0x9c] sm:$0xf]
  %v52 = vld [vmem:[%s0 + $0xa0] sm:$0xf]
  %v53 = vld [vmem:[%s0 + $0xa4] sm:$0xf]
  %v54 = vld [vmem:[%s0 + $0xa8] sm:$0xf]
  %v55 = vld [vmem:[%s0 + $0xac] sm:$0xf]
  %v56 = vld [vmem:[%s0 + $0xb0] sm:$0xf]
  %v57 = vld [vmem:[%s0 + $0xb4] sm:$0xf]
  %v58 = vld [vmem:[%s0 + $0xb8] sm:$0xf]
  %v59 = vld [vmem:[%s0 + $0xbc] sm:$0xf]
  %v60 = vld [vmem:[%s0 + $0xc0] sm:$0xf]
  %v61 = vld [vmem:[%s0 + $0xc4] sm:$0xf]
  %v62 = vld [vmem:[%s0 + $0xc8] sm:$0xf]
  %v63 = vld [vmem:[%s0 + $0xcc] sm:$0xf]
  %v64 = vld [vmem:[%s0 + $0xd0] sm:$0xf]
  %v65 = vld [vmem:[%s0 + $0xd4] sm:$0xf]
  %v66 = vld [vmem:[%s0 + $0xd8] sm:$0xf]
  %v67 = vld [vmem:[%s0 + $0xdc] sm:$0xf]
  %v68 = vld [vmem:[%s0 + $0xe0] sm:$0xf]
  %v69 = vld [vmem:[%s0 + $0xe4] sm:$0xf]
  %v70 = vld [vmem:[%s0 + $0xe8] sm:$0xf]
  %v71 = vld [vmem:[%s0 + $0xec] sm:$0xf]
  %v72 = vld [vmem:[%s0 + $0xf0] sm:$0xf]
  %v73 = vld [vmem:[%s0 + $0xf4] sm:$0xf]
  %v74 = vld [vmem:[%s0 + $0xf8] sm:$0xf]
  %v75 = vld [vmem:[%s0 + $0xfc] sm:$0xf]
  %v76 = vld [vmem:[%s0 + $0x100] sm:$0xf]
  %v77 = vld [vmem:[%s0 + $0x104] sm:$0xf]
  %v78 = vld [vmem:[%s0 + $0x108] sm:$0xf]
  %v79 = vld [vmem:[%s0 + $0x10c] sm:$0xf]
  %v80 = vld [vmem:[%s0 + $0x110] sm:$0xf]
  %v81 = vld [vmem:[%s0 + $0x114] sm:$0xf]
  %v82 = vld [vmem:[%s0 + $0x118] sm:$0xf]
  %v83 = vld [vmem:[%s0 + $0x11c] sm:$0xf]
  %v84 = vld [vmem:[%s0 + $0x120] sm:$0xf]
  %v85 = vld [vmem:[%s0 + $0x124] sm:$0xf]
  %v86 = vld [vmem:[%s0 + $0x128] sm:$0xf]
  %v87 = vld [vmem:[%s0 + $0x12c] sm:$0xf]
  %v88 = vld [vmem:[%s0 + $0x130] sm:$0xf]
  %v89 = vld [vmem:[%s0 + $0x134] sm:$0xf]
  %v90 = vld [vmem:[%s0 + $0x138] sm:$0xf]
  %v91 = vld [vmem:[%s0 + $0x13c] sm:$0xf]
  %v92 = vld [vmem:[%s0 + $0x140] sm:$0xf]
  %v93 = vld [vmem:[%s0 + $0x144] sm:$0xf]
  %v94 = vld [vmem:[%s0 + $0x148] sm:$0xf]
  %v95 = vld [vmem:[%s0 + $0x14c] sm:$0xf]
  %v96 = vld [vmem:[%s0 + $0x150] sm:$0xf]
  %v97 = vld [vmem:[%s0 + $0x154] sm:$0xf]
  %v98 = vld [vmem:[%s0 + $0x158] sm:$0xf]
  %v99 = vld [vmem:[%s0 + $0x15c] sm:$0xf]
  %v100 = vld [vmem:[%s0 + $0x160] sm:$0xf]
  %v101 = vld [vmem:[%s0 + $0x164] sm:$0xf]
  %v102 = vld [vmem:[%s0 + $0x168] sm:$0xf]
  %v103 = vld [vmem:[%s0 + $0x16c] sm:$0xf]
  %v104 = vld [vmem:[%s0 + $0x170] sm:$0xf]
  %v105 = vld [vmem:[%s0 + $0x174] sm:$0xf]
  %v106 = vld [vmem:[%s0 + $0x178] sm:$0xf]
  %v107 = vld [vmem:[%s0 + $0x17c] sm:$0xf]
  %v108 = vld [vmem:[%s0 + $0x180] sm:$0xf]
  %v109 = vld [vmem:[%s0 + $0x184] sm:$0xf]
  %v110 = vld [vmem:[%s0 + $0x188] sm:$0xf]
  %v111 = vld [vmem:[%s0 + $0x18c] sm:$0xf]
  %v112 = vld [vmem:[%s0 + $0x190] sm:$0xf]
  %v113 = vld [vmem:[%s0 + $0x194] sm:$0xf]
  %v114 = vld [vmem:[%s0 + $0x198] sm:$0xf]
  %v115 = vld [vmem:[%s0 + $0x19c] sm:$0xf]
  %v116 = vld [vmem:[%s0 + $0x1a0] sm:$0xf]
  %v117 = vld [vmem:[%s0 + $0x1a4] sm:$0xf]
  %v118 = vld [vmem:[%s0 + $0x1a8] sm:$0xf]
  %v119 = vld [vmem:[%s0 + $0x1ac] sm:$0xf]
  %v120 = vld [vmem:[%s0 + $0x1b0] sm:$0xf]
  %v121 = vld [vmem:[%s0 + $0x1b4] sm:$0xf]
  %v122 = vld [vmem:[%s0 + $0x1b8] sm:$0xf]
  %v123 = vld [vmem:[%s0 + $0x1bc] sm:$0xf]
  %v124 = vld [vmem:[%s0 + $0x1c0] sm:$0xf]
  %v125 = vld [vmem:[%s0 + $0x1c4] sm:$0xf]
  %v126 = vld [vmem:[%s0 + $0x1c8] sm:$0xf]
  %v127 = vld [vmem:[%s0 + $0x1cc] sm:$0xf]
  %v128 = vld [vmem:[%s0 + $0x1d0] sm:$0xf]
  %v129 = vld [vmem:[%s0 + $0x1d4] sm:$0xf]
  %v130 = vld [vmem:[%s0 + $0x1d8] sm:$0xf]
  %v131 = vld [vmem:[%s0 + $0x1dc] sm:$0xf]
  %v132 = vld [vmem:[%s0 + $0x1e0] sm:$0xf]
  %v133 = vld [vmem:[%s0 + $0x1e4] sm:$0xf]
  %v134 = vld [vmem:[%s0 + $0x1e8] sm:$0xf]
  %v135 = vld [vmem:[%s0 + $0x1ec] sm:$0xf]
  %v136 = vld [vmem:[%s0 + $0x1f0] sm:$0xf]
  %v137 = vld [vmem:[%s0 + $0x1f4] sm:$0xf]
  %v138 = vld [vmem:[%s0 + $0x1f8] sm:$0xf]
  %v139 = vld [vmem:[%s0 + $0x1fc] sm:$0xf]
  %v140 = vld [vmem:[%s0 + $0x200] sm:$0xf]
  %v141 = vld [vmem:[%s0 + $0x204] sm:$0xf]
  %v142 = vld [vmem:[%s0 + $0x208] sm:$0xf]
  %v143 = vld [vmem:[%s0 + $0x20c] sm:$0xf]
  %v144 = vld [vmem:[%s0 + $0x210] sm:$0xf]
  %v145 = vld [vmem:[%s0 + $0x214] sm:$0xf]
  %v146 = vld [vmem:[%s0 + $0x218] sm:$0xf]
  %v147 = vld [vmem:[%s0 + $0x21c] sm:$0xf]
  %v148 = vld [vmem:[%s0 + $0x220] sm:$0xf]
  %v149 = vld [vmem:[%s0 + $0x224] sm:$0xf]
  %v150 = vld [vmem:[%s0 + $0x228] sm:$0xf]
  %v151 = vld [vmem:[%s0 + $0x22c] sm:$0xf]
  %v152 = vld [vmem:[%s0 + $0x230] sm:$0xf]
  %v153 = vld [vmem:[%s0 + $0x234] sm:$0xf]
  %v154 = vld [vmem:[%s0 + $0x238] sm:$0xf]
  %v155 = vld [vmem:[%s0 + $0x23c] sm:$0xf]
  %v156 = vld [vmem:[%s0 + $0x240] sm:$0xf]
  %v157 = vld [vmem:[%s0 + $0x244] sm:$0xf]
  %v158 = vld [vmem:[%s0 + $0x248] sm:$0xf]
  %v159 = vld [vmem:[%s0 + $0x24c] sm:$0xf]
  %v160 = vld [vmem:[%s0 + $0x250] sm:$0xf]
  %v161 = vld [vmem:[%s0 + $0x254] sm:$0xf]
  %v162 = vld [vmem:[%s0 + $0x258] sm:$0xf]
  %v163 = vld [vmem:[%s0 + $0x25c] sm:$0xf]
  %v164 = vld [vmem:[%s0 + $0x260] sm:$0xf]
  %v165 = vld [vmem:[%s0 + $0x264] sm:$0xf]
  %v166 = vld [vmem:[%s0 + $0x268] sm:$0xf]
  %v167 = vld [vmem:[%s0 + $0x26c] sm:$0xf]
  %v168 = vld [vmem:[%s0 + $0x270] sm:$0xf]
  %v169 = vld [vmem:[%s0 + $0x274] sm:$0xf]
  %v170 = vld [vmem:[%s0 + $0x278] sm:$0xf]
  %v171 = vld [vmem:[%s0 + $0x27c] sm:$0xf]
  %v172 = vld [vmem:[%s0 + $0x280] sm:$0xf]
  %v173 = vld [vmem:[%s0 + $0x284] sm:$0xf]
  %v174 = vld [vmem:[%s0 + $0x288] sm:$0xf]
  %v175 = vld [vmem:[%s0 + $0x28c] sm:$0xf]
  %v176 = vld [vmem:[%s0 + $0x290] sm:$0xf]
  %v177 = vld [vmem:[%s0 + $0x294] sm:$0xf]
  %v178 = vld [vmem:[%s0 + $0x298] sm:$0xf]
  %v179 = vld [vmem:[%s0 + $0x29c] sm:$0xf]
  %v180 = vld [vmem:[%s0 + $0x2a0] sm:$0xf]
  %v181 = vld [vmem:[%s0 + $0x2a4] sm:$0xf]
  %v182 = vld [vmem:[%s0 + $0x2a8] sm:$0xf]
  %v183 = vld [vmem:[%s0 + $0x2ac] sm:$0xf]
  %v184 = vld [vmem:[%s0 + $0x2b0] sm:$0xf]
  %v185 = vld [vmem:[%s0 + $0x2b4] sm:$0xf]
  %v186 = vld [vmem:[%s0 + $0x2b8] sm:$0xf]
  %v187 = vld [vmem:[%s0 + $0x2bc] sm:$0xf]
  %v188 = vld [vmem:[%s0 + $0x2c0] sm:$0xf]
  %v189 = vld [vmem:[%s0 + $0x2c4] sm:$0xf]
  %v190 = vld [vmem:[%s0 + $0x2c8] sm:$0xf]
  %v191 = vld [vmem:[%s0 + $0x2cc] sm:$0xf]
  %v192 = vld [vmem:[%s0 + $0x2d0] sm:$0xf]
  %v193 = vld [vmem:[%s0 + $0x2d4] sm:$0xf]
  %v194 = vld [vmem:[%s0 + $0x2d8] sm:$0xf]
  %v195 = vld [vmem:[%s0 + $0x2dc] sm:$0xf]
  %v196 = vld [vmem:[%s0 + $0x2e0] sm:$0xf]
  %v197 = vld [vmem:[%s0 + $0x2e4] sm:$0xf]
  %v198 = vld [vmem:[%s0 + $0x2e8] sm:$0xf]
  %v199 = vld [vmem:[%s0 + $0x2ec] sm:$0xf]
  %v200 = vld [vmem:[%s0 + $0x2f0] sm:$0xf]
  %v201 = vld [vmem:[%s0 + $0x2f4] sm:$0xf]
  %v202 = vld [vmem:[%s0 + $0x2f8] sm:$0xf]
  %v203 = vld [vmem:[%s0 + $0x2fc] sm:$0xf]
  %v204 = vld [vmem:[%s0 + $0x300] sm:$0xf]
  %v205 = vld [vmem:[%s0 + $0x304] sm:$0xf]
  %v206 = vld [vmem:[%s0 + $0x308] sm:$0xf]
  %v207 = vld [vmem:[%s0 + $0x30c] sm:$0xf]
  %v208 = vld [vmem:[%s0 + $0x310] sm:$0xf]
  %v209 = vld [vmem:[%s0 + $0x314] sm:$0xf]
  %v210 = vld [vmem:[%s0 + $0x318] sm:$0xf]
  %v211 = vld [vmem:[%s0 + $0x31c] sm:$0xf]
  %v212 = vld [vmem:[%s0 + $0x320] sm:$0xf]
  %v213 = vld [vmem:[%s0 + $0x324] sm:$0xf]
  %v214 = vld [vmem:[%s0 + $0x328] sm:$0xf]
  %v215 = vld [vmem:[%s0 + $0x32c] sm:$0xf]
  %v216 = vld [vmem:[%s0 + $0x330] sm:$0xf]
  %v217 = vld [vmem:[%s0 + $0x334] sm:$0xf]
  %v218 = vld [vmem:[%s0 + $0x338] sm:$0xf]
  %v219 = vld [vmem:[%s0 + $0x33c] sm:$0xf]
  %v220 = vld [vmem:[%s0 + $0x340] sm:$0xf]
  %v221 = vld [vmem:[%s0 + $0x344] sm:$0xf]
  %v222 = vld [vmem:[%s0 + $0x348] sm:$0xf]
  %v223 = vld [vmem:[%s0 + $0x34c] sm:$0xf]
  %v224 = vld [vmem:[%s0 + $0x350] sm:$0xf]
  %v225 = vld [vmem:[%s0 + $0x354] sm:$0xf]
  %v226 = vld [vmem:[%s0 + $0x358] sm:$0xf]
  %v227 = vld [vmem:[%s0 + $0x35c] sm:$0xf]
  %v228 = vld [vmem:[%s0 + $0x360] sm:$0xf]
  %v229 = vld [vmem:[%s0 + $0x364] sm:$0xf]
  %v230 = vld [vmem:[%s0 + $0x368] sm:$0xf]
  %v231 = vld [vmem:[%s0 + $0x36c] sm:$0xf]
  %v232 = vld [vmem:[%s0 + $0x370] sm:$0xf]
  %v233 = vld [vmem:[%s0 + $0x374] sm:$0xf]
  %v234 = vld [vmem:[%s0 + $0x378] sm:$0xf]
  %v235 = vld [vmem:[%s0 + $0x37c] sm:$0xf]
  %v236 = vld [vmem:[%s0 + $0x380] sm:$0xf]
  %v237 = vld [vmem:[%s0 + $0x384] sm:$0xf]
  %v238 = vld [vmem:[%s0 + $0x388] sm:$0xf]
  %v239 = vld [vmem:[%s0 + $0x38c] sm:$0xf]
  %v240 = vld [vmem:[%s0 + $0x390] sm:$0xf]
  %v241 = vld [vmem:[%s0 + $0x394] sm:$0xf]
  %v242 = vld [vmem:[%s0 + $0x398] sm:$0xf]
  %v243 = vld [vmem:[%s0 + $0x39c] sm:$0xf]
  %v244 = vld [vmem:[%s0 + $0x3a0] sm:$0xf]
  %v245 = vld [vmem:[%s0 + $0x3a4] sm:$0xf]
  %v246 = vld [vmem:[%s0 + $0x3a8] sm:$0xf]
  %v247 = vld [vmem:[%s0 + $0x3ac] sm:$0xf]
  %v248 = vld [vmem:[%s0 + $0x3b0] sm:$0xf]
  %v249 = vld [vmem:[%s0 + $0x3b4] sm:$0xf]
  %v250 = vld [vmem:[%s0 + $0x3b8] sm:$0xf]
  %v251 = vld [vmem:[%s0 + $0x3bc] sm:$0xf]
  %v252 = vld [vmem:[%s0 + $0x3c0] sm:$0xf]
  %v253 = vld [vmem:[%s0 + $0x3c4] sm:$0xf]
  %v254 = vld [vmem:[%s0 + $0x3c8] sm:$0xf]
  %v255 = vld [vmem:[%s0 + $0x3cc] sm:$0xf]
  %v256 = vld [vmem:[%s0 + $0x3d0] sm:$0xf]
  %v257 = vld [vmem:[%s0 + $0x3d4] sm:$0xf]
  %v258 = vld [vmem:[%s0 + $0x3d8] sm:$0xf]
  %v259 = vld [vmem:[%s0 + $0x3dc] sm:$0xf]
  %v260 = vld [vmem:[%s0 + $0x3e0] sm:$0xf]
  %v261 = vld [vmem:[%s0 + $0x3e4] sm:$0xf]
  %v262 = vld [vmem:[%s0 + $0x3e8] sm:$0xf]
  %v263 = vld [vmem:[%s0 + $0x3ec] sm:$0xf]
  %v264 = vld [vmem:[%s0 + $0x3f0] sm:$0xf]
  %v265 = vld [vmem:[%s0 + $0x3f4] sm:$0xf]
  %v266 = vld [vmem:[%s0 + $0x3f8] sm:$0xf]
  %v267 = vld [vmem:[%s0 + $0x3fc] sm:$0xf]
  %v268 = vld [vmem:[%s1] sm:$0xf]
  %v269 = vld [vmem:[%s1 + $0x4] sm:$0xf]
  %v270 = vld [vmem:[%s1 + $0x8] sm:$0xf]
  %v271 = vld [vmem:[%s1 + $0xc] sm:$0xf]
  %v272 = vld [vmem:[%s1 + $0x10] sm:$0xf]
  %v273 = vld [vmem:[%s1 + $0x14] sm:$0xf]
  %v274 = vld [vmem:[%s1 + $0x18] sm:$0xf]
  %v275 = vld [vmem:[%s1 + $0x1c] sm:$0xf]
  %v276 = vld [vmem:[%s1 + $0x20] sm:$0xf]
  %v277 = vld [vmem:[%s1 + $0x24] sm:$0xf]
  %v278 = vld [vmem:[%s1 + $0x28] sm:$0xf]
  %v279 = vld [vmem:[%s1 + $0x2c] sm:$0xf]
  %v280 = vld [vmem:[%s1 + $0x30] sm:$0xf]
  %v281 = vld [vmem:[%s1 + $0x34] sm:$0xf]
  %v282 = vld [vmem:[%s1 + $0x38] sm:$0xf]
  %v283 = vld [vmem:[%s1 + $0x3c] sm:$0xf]
  %v540 = vunpack.c.l.b16 %v12
  %v541 = vunpack.c.l.b16 %v13
  %v542 = vunpack.c.l.b16 %v14
  %v543 = vunpack.c.l.b16 %v15
  %v544 = vunpack.c.l.b16 %v16
  %v545 = vunpack.c.l.b16 %v17
  %v546 = vunpack.c.l.b16 %v18
  %v547 = vunpack.c.l.b16 %v19
  %v548 = vunpack.c.l.b16 %v20
  %v549 = vunpack.c.l.b16 %v21
  %v550 = vunpack.c.l.b16 %v22
  %v551 = vunpack.c.l.b16 %v23
  %v552 = vunpack.c.l.b16 %v24
  %v553 = vunpack.c.l.b16 %v25
  %v554 = vunpack.c.l.b16 %v26
  %v555 = vunpack.c.l.b16 %v27
  %v556 = vunpack.c.l.b16 %v28
  %v557 = vunpack.c.l.b16 %v29
  %v558 = vunpack.c.l.b16 %v30
  %v559 = vunpack.c.l.b16 %v31
  %v560 = vunpack.c.l.b16 %v32
  %v561 = vunpack.c.l.b16 %v33
  %v562 = vunpack.c.l.b16 %v34
  %v563 = vunpack.c.l.b16 %v35
  %v564 = vunpack.c.l.b16 %v36
  %v565 = vunpack.c.l.b16 %v37
  %v566 = vunpack.c.l.b16 %v38
  %v567 = vunpack.c.l.b16 %v39
  %v568 = vunpack.c.l.b16 %v40
  %v569 = vunpack.c.l.b16 %v41
  %v570 = vunpack.c.l.b16 %v42
  %v571 = vunpack.c.l.b16 %v43
  %v572 = vunpack.c.l.b16 %v44
  %v573 = vunpack.c.l.b16 %v45
  %v574 = vunpack.c.l.b16 %v46
  %v575 = vunpack.c.l.b16 %v47
  %v576 = vunpack.c.l.b16 %v48
  %v577 = vunpack.c.l.b16 %v49
  %v578 = vunpack.c.l.b16 %v50
  %v579 = vunpack.c.l.b16 %v51
  %v580 = vunpack.c.l.b16 %v52
  %v581 = vunpack.c.l.b16 %v53
  %v582 = vunpack.c.l.b16 %v54
  %v583 = vunpack.c.l.b16 %v55
  %v584 = vunpack.c.l.b16 %v56
  %v585 = vunpack.c.l.b16 %v57
  %v586 = vunpack.c.l.b16 %v58
  %v587 = vunpack.c.l.b16 %v59
  %v588 = vunpack.c.l.b16 %v60
  %v589 = vunpack.c.l.b16 %v61
  %v590 = vunpack.c.l.b16 %v62
  %v591 = vunpack.c.l.b16 %v63
  %v592 = vunpack.c.l.b16 %v64
  %v593 = vunpack.c.l.b16 %v65
  %v594 = vunpack.c.l.b16 %v66
  %v595 = vunpack.c.l.b16 %v67
  %v596 = vunpack.c.l.b16 %v68
  %v597 = vunpack.c.l.b16 %v69
  %v598 = vunpack.c.l.b16 %v70
  %v599 = vunpack.c.l.b16 %v71
  %v600 = vunpack.c.l.b16 %v72
  %v601 = vunpack.c.l.b16 %v73
  %v602 = vunpack.c.l.b16 %v74
  %v603 = vunpack.c.l.b16 %v75
  %v604 = vunpack.c.l.b16 %v76
  %v605 = vunpack.c.l.b16 %v77
  %v606 = vunpack.c.l.b16 %v78
  %v607 = vunpack.c.l.b16 %v79
  %v608 = vunpack.c.l.b16 %v80
  %v609 = vunpack.c.l.b16 %v81
  %v610 = vunpack.c.l.b16 %v82
  %v611 = vunpack.c.l.b16 %v83
  %v612 = vunpack.c.l.b16 %v84
  %v613 = vunpack.c.l.b16 %v85
  %v614 = vunpack.c.l.b16 %v86
  %v615 = vunpack.c.l.b16 %v87
  %v616 = vunpack.c.l.b16 %v88
  %v617 = vunpack.c.l.b16 %v89
  %v618 = vunpack.c.l.b16 %v90
  %v619 = vunpack.c.l.b16 %v91
  %v620 = vunpack.c.l.b16 %v92
  %v621 = vunpack.c.l.b16 %v93
  %v622 = vunpack.c.l.b16 %v94
  %v623 = vunpack.c.l.b16 %v95
  %v624 = vunpack.c.l.b16 %v96
  %v625 = vunpack.c.l.b16 %v97
  %v626 = vunpack.c.l.b16 %v98
  %v627 = vunpack.c.l.b16 %v99
  %v628 = vunpack.c.l.b16 %v100
  %v629 = vunpack.c.l.b16 %v101
  %v630 = vunpack.c.l.b16 %v102
  %v631 = vunpack.c.l.b16 %v103
  %v632 = vunpack.c.l.b16 %v104
  %v633 = vunpack.c.l.b16 %v105
  %v634 = vunpack.c.l.b16 %v106
  %v635 = vunpack.c.l.b16 %v107
  %v636 = vunpack.c.l.b16 %v108
  %v637 = vunpack.c.l.b16 %v109
  %v638 = vunpack.c.l.b16 %v110
  %v639 = vunpack.c.l.b16 %v111
  %v640 = vunpack.c.l.b16 %v112
  %v641 = vunpack.c.l.b16 %v113
  %v642 = vunpack.c.l.b16 %v114
  %v643 = vunpack.c.l.b16 %v115
  %v644 = vunpack.c.l.b16 %v116
  %v645 = vunpack.c.l.b16 %v117
  %v646 = vunpack.c.l.b16 %v118
  %v647 = vunpack.c.l.b16 %v119
  %v648 = vunpack.c.l.b16 %v120
  %v649 = vunpack.c.l.b16 %v121
  %v650 = vunpack.c.l.b16 %v122
  %v651 = vunpack.c.l.b16 %v123
  %v652 = vunpack.c.l.b16 %v124
  %v653 = vunpack.c.l.b16 %v125
  %v654 = vunpack.c.l.b16 %v126
  %v655 = vunpack.c.l.b16 %v127
  %v656 = vunpack.c.l.b16 %v128
  %v657 = vunpack.c.l.b16 %v129
  %v658 = vunpack.c.l.b16 %v130
  %v659 = vunpack.c.l.b16 %v131
  %v660 = vunpack.c.l.b16 %v132
  %v661 = vunpack.c.l.b16 %v133
  %v662 = vunpack.c.l.b16 %v134
  %v663 = vunpack.c.l.b16 %v135
  %v664 = vunpack.c.l.b16 %v136
  %v665 = vunpack.c.l.b16 %v137
  %v666 = vunpack.c.l.b16 %v138
  %v667 = vunpack.c.l.b16 %v139
  %v668 = vunpack.c.l.b16 %v140
  %v669 = vunpack.c.l.b16 %v141
  %v670 = vunpack.c.l.b16 %v142
  %v671 = vunpack.c.l.b16 %v143
  %v672 = vunpack.c.l.b16 %v144
  %v673 = vunpack.c.l.b16 %v145
  %v674 = vunpack.c.l.b16 %v146
  %v675 = vunpack.c.l.b16 %v147
  %v676 = vunpack.c.l.b16 %v148
  %v677 = vunpack.c.l.b16 %v149
  %v678 = vunpack.c.l.b16 %v150
  %v679 = vunpack.c.l.b16 %v151
  %v680 = vunpack.c.l.b16 %v152
  %v681 = vunpack.c.l.b16 %v153
  %v682 = vunpack.c.l.b16 %v154
  %v683 = vunpack.c.l.b16 %v155
  %v684 = vunpack.c.l.b16 %v156
  %v685 = vunpack.c.l.b16 %v157
  %v686 = vunpack.c.l.b16 %v158
  %v687 = vunpack.c.l.b16 %v159
  %v688 = vunpack.c.l.b16 %v160
  %v689 = vunpack.c.l.b16 %v161
  %v690 = vunpack.c.l.b16 %v162
  %v691 = vunpack.c.l.b16 %v163
  %v692 = vunpack.c.l.b16 %v164
  %v693 = vunpack.c.l.b16 %v165
  %v694 = vunpack.c.l.b16 %v166
  %v695 = vunpack.c.l.b16 %v167
  %v696 = vunpack.c.l.b16 %v168
  %v697 = vunpack.c.l.b16 %v169
  %v698 = vunpack.c.l.b16 %v170
  %v699 = vunpack.c.l.b16 %v171
  %v700 = vunpack.c.l.b16 %v172
  %v701 = vunpack.c.l.b16 %v173
  %v702 = vunpack.c.l.b16 %v174
  %v703 = vunpack.c.l.b16 %v175
  %v704 = vunpack.c.l.b16 %v176
  %v705 = vunpack.c.l.b16 %v177
  %v706 = vunpack.c.l.b16 %v178
  %v707 = vunpack.c.l.b16 %v179
  %v708 = vunpack.c.l.b16 %v180
  %v709 = vunpack.c.l.b16 %v181
  %v710 = vunpack.c.l.b16 %v182
  %v711 = vunpack.c.l.b16 %v183
  %v712 = vunpack.c.l.b16 %v184
  %v713 = vunpack.c.l.b16 %v185
  %v714 = vunpack.c.l.b16 %v186
  %v715 = vunpack.c.l.b16 %v187
  %v716 = vunpack.c.l.b16 %v188
  %v717 = vunpack.c.l.b16 %v189
  %v718 = vunpack.c.l.b16 %v190
  %v719 = vunpack.c.l.b16 %v191
  %v720 = vunpack.c.l.b16 %v192
  %v721 = vunpack.c.l.b16 %v193
  %v722 = vunpack.c.l.b16 %v194
  %v723 = vunpack.c.l.b16 %v195
  %v724 = vunpack.c.l.b16 %v196
  %v725 = vunpack.c.l.b16 %v197
  %v726 = vunpack.c.l.b16 %v198
  %v727 = vunpack.c.l.b16 %v199
  %v728 = vunpack.c.l.b16 %v200
  %v729 = vunpack.c.l.b16 %v201
  %v730 = vunpack.c.l.b16 %v202
  %v731 = vunpack.c.l.b16 %v203
  %v732 = vunpack.c.l.b16 %v204
  %v733 = vunpack.c.l.b16 %v205
  %v734 = vunpack.c.l.b16 %v206
  %v735 = vunpack.c.l.b16 %v207
  %v736 = vunpack.c.l.b16 %v208
  %v737 = vunpack.c.l.b16 %v209
  %v738 = vunpack.c.l.b16 %v210
  %v739 = vunpack.c.l.b16 %v211
  %v740 = vunpack.c.l.b16 %v212
  %v741 = vunpack.c.l.b16 %v213
  %v742 = vunpack.c.l.b16 %v214
  %v743 = vunpack.c.l.b16 %v215
  %v744 = vunpack.c.l.b16 %v216
  %v745 = vunpack.c.l.b16 %v217
  %v746 = vunpack.c.l.b16 %v218
  %v747 = vunpack.c.l.b16 %v219
  %v748 = vunpack.c.l.b16 %v220
  %v749 = vunpack.c.l.b16 %v221
  %v750 = vunpack.c.l.b16 %v222
  %v751 = vunpack.c.l.b16 %v223
  %v752 = vunpack.c.l.b16 %v224
  %v753 = vunpack.c.l.b16 %v225
  %v754 = vunpack.c.l.b16 %v226
  %v755 = vunpack.c.l.b16 %v227
  %v756 = vunpack.c.l.b16 %v228
  %v757 = vunpack.c.l.b16 %v229
  %v758 = vunpack.c.l.b16 %v230
  %v759 = vunpack.c.l.b16 %v231
  %v760 = vunpack.c.l.b16 %v232
  %v761 = vunpack.c.l.b16 %v233
  %v762 = vunpack.c.l.b16 %v234
  %v763 = vunpack.c.l.b16 %v235
  %v764 = vunpack.c.l.b16 %v236
  %v765 = vunpack.c.l.b16 %v237
  %v766 = vunpack.c.l.b16 %v238
  %v767 = vunpack.c.l.b16 %v239
  %v768 = vunpack.c.l.b16 %v240
  %v769 = vunpack.c.l.b16 %v241
  %v770 = vunpack.c.l.b16 %v242
  %v771 = vunpack.c.l.b16 %v243
  %v772 = vunpack.c.l.b16 %v244
  %v773 = vunpack.c.l.b16 %v245
  %v774 = vunpack.c.l.b16 %v246
  %v775 = vunpack.c.l.b16 %v247
  %v776 = vunpack.c.l.b16 %v248
  %v777 = vunpack.c.l.b16 %v249
  %v778 = vunpack.c.l.b16 %v250
  %v779 = vunpack.c.l.b16 %v251
  %v780 = vunpack.c.l.b16 %v252
  %v781 = vunpack.c.l.b16 %v253
  %v782 = vunpack.c.l.b16 %v254
  %v783 = vunpack.c.l.b16 %v255
  %v784 = vunpack.c.l.b16 %v256
  %v785 = vunpack.c.l.b16 %v257
  %v786 = vunpack.c.l.b16 %v258
  %v787 = vunpack.c.l.b16 %v259
  %v788 = vunpack.c.l.b16 %v260
  %v789 = vunpack.c.l.b16 %v261
  %v790 = vunpack.c.l.b16 %v262
  %v791 = vunpack.c.l.b16 %v263
  %v792 = vunpack.c.l.b16 %v264
  %v793 = vunpack.c.l.b16 %v265
  %v794 = vunpack.c.l.b16 %v266
  %v795 = vunpack.c.l.b16 %v267
  %v796 = vpack.c.b16 %v541, %v540
  %v797 = vpack.c.b16 %v543, %v542
  %v798 = vpack.c.b16 %v545, %v544
  %v799 = vpack.c.b16 %v547, %v546
  %v800 = vpack.c.b16 %v549, %v548
  %v801 = vpack.c.b16 %v551, %v550
  %v802 = vpack.c.b16 %v553, %v552
  %v803 = vpack.c.b16 %v555, %v554
  %v804 = vpack.c.b16 %v557, %v556
  %v805 = vpack.c.b16 %v559, %v558
  %v806 = vpack.c.b16 %v561, %v560
  %v807 = vpack.c.b16 %v563, %v562
  %v808 = vpack.c.b16 %v565, %v564
  %v809 = vpack.c.b16 %v567, %v566
  %v810 = vpack.c.b16 %v569, %v568
  %v811 = vpack.c.b16 %v571, %v570
  %v812 = vpack.c.b16 %v573, %v572
  %v813 = vpack.c.b16 %v575, %v574
  %v814 = vpack.c.b16 %v577, %v576
  %v815 = vpack.c.b16 %v579, %v578
  %v816 = vpack.c.b16 %v581, %v580
  %v817 = vpack.c.b16 %v583, %v582
  %v818 = vpack.c.b16 %v585, %v584
  %v819 = vpack.c.b16 %v587, %v586
  %v820 = vpack.c.b16 %v589, %v588
  %v821 = vpack.c.b16 %v591, %v590
  %v822 = vpack.c.b16 %v593, %v592
  %v823 = vpack.c.b16 %v595, %v594
  %v824 = vpack.c.b16 %v597, %v596
  %v825 = vpack.c.b16 %v599, %v598
  %v826 = vpack.c.b16 %v601, %v600
  %v827 = vpack.c.b16 %v603, %v602
  %v828 = vpack.c.b16 %v605, %v604
  %v829 = vpack.c.b16 %v607, %v606
  %v830 = vpack.c.b16 %v609, %v608
  %v831 = vpack.c.b16 %v611, %v610
  %v832 = vpack.c.b16 %v613, %v612
  %v833 = vpack.c.b16 %v615, %v614
  %v834 = vpack.c.b16 %v617, %v616
  %v835 = vpack.c.b16 %v619, %v618
  %v836 = vpack.c.b16 %v621, %v620
  %v837 = vpack.c.b16 %v623, %v622
  %v838 = vpack.c.b16 %v625, %v624
  %v839 = vpack.c.b16 %v627, %v626
  %v840 = vpack.c.b16 %v629, %v628
  %v841 = vpack.c.b16 %v631, %v630
  %v842 = vpack.c.b16 %v633, %v632
  %v843 = vpack.c.b16 %v635, %v634
  %v844 = vpack.c.b16 %v637, %v636
  %v845 = vpack.c.b16 %v639, %v638
  %v846 = vpack.c.b16 %v641, %v640
  %v847 = vpack.c.b16 %v643, %v642
  %v848 = vpack.c.b16 %v645, %v644
  %v849 = vpack.c.b16 %v647, %v646
  %v850 = vpack.c.b16 %v649, %v648
  %v851 = vpack.c.b16 %v651, %v650
  %v852 = vpack.c.b16 %v653, %v652
  %v853 = vpack.c.b16 %v655, %v654
  %v854 = vpack.c.b16 %v657, %v656
  %v855 = vpack.c.b16 %v659, %v658
  %v856 = vpack.c.b16 %v661, %v660
  %v857 = vpack.c.b16 %v663, %v662
  %v858 = vpack.c.b16 %v665, %v664
  %v859 = vpack.c.b16 %v667, %v666
  %v860 = vpack.c.b16 %v669, %v668
  %v861 = vpack.c.b16 %v671, %v670
  %v862 = vpack.c.b16 %v673, %v672
  %v863 = vpack.c.b16 %v675, %v674
  %v864 = vpack.c.b16 %v677, %v676
  %v865 = vpack.c.b16 %v679, %v678
  %v866 = vpack.c.b16 %v681, %v680
  %v867 = vpack.c.b16 %v683, %v682
  %v868 = vpack.c.b16 %v685, %v684
  %v869 = vpack.c.b16 %v687, %v686
  %v870 = vpack.c.b16 %v689, %v688
  %v871 = vpack.c.b16 %v691, %v690
  %v872 = vpack.c.b16 %v693, %v692
  %v873 = vpack.c.b16 %v695, %v694
  %v874 = vpack.c.b16 %v697, %v696
  %v875 = vpack.c.b16 %v699, %v698
  %v876 = vpack.c.b16 %v701, %v700
  %v877 = vpack.c.b16 %v703, %v702
  %v878 = vpack.c.b16 %v705, %v704
  %v879 = vpack.c.b16 %v707, %v706
  %v880 = vpack.c.b16 %v709, %v708
  %v881 = vpack.c.b16 %v711, %v710
  %v882 = vpack.c.b16 %v713, %v712
  %v883 = vpack.c.b16 %v715, %v714
  %v884 = vpack.c.b16 %v717, %v716
  %v885 = vpack.c.b16 %v719, %v718
  %v886 = vpack.c.b16 %v721, %v720
  %v887 = vpack.c.b16 %v723, %v722
  %v888 = vpack.c.b16 %v725, %v724
  %v889 = vpack.c.b16 %v727, %v726
  %v890 = vpack.c.b16 %v729, %v728
  %v891 = vpack.c.b16 %v731, %v730
  %v892 = vpack.c.b16 %v733, %v732
  %v893 = vpack.c.b16 %v735, %v734
  %v894 = vpack.c.b16 %v737, %v736
  %v895 = vpack.c.b16 %v739, %v738
  %v896 = vpack.c.b16 %v741, %v740
  %v897 = vpack.c.b16 %v743, %v742
  %v898 = vpack.c.b16 %v745, %v744
  %v899 = vpack.c.b16 %v747, %v746
  %v900 = vpack.c.b16 %v749, %v748
  %v901 = vpack.c.b16 %v751, %v750
  %v902 = vpack.c.b16 %v753, %v752
  %v903 = vpack.c.b16 %v755, %v754
  %v904 = vpack.c.b16 %v757, %v756
  %v905 = vpack.c.b16 %v759, %v758
  %v906 = vpack.c.b16 %v761, %v760
  %v907 = vpack.c.b16 %v763, %v762
  %v908 = vpack.c.b16 %v765, %v764
  %v909 = vpack.c.b16 %v767, %v766
  %v910 = vpack.c.b16 %v769, %v768
  %v911 = vpack.c.b16 %v771, %v770
  %v912 = vpack.c.b16 %v773, %v772
  %v913 = vpack.c.b16 %v775, %v774
  %v914 = vpack.c.b16 %v777, %v776
  %v915 = vpack.c.b16 %v779, %v778
  %v916 = vpack.c.b16 %v781, %v780
  %v917 = vpack.c.b16 %v783, %v782
  %v918 = vpack.c.b16 %v785, %v784
  %v919 = vpack.c.b16 %v787, %v786
  %v920 = vpack.c.b16 %v789, %v788
  %v921 = vpack.c.b16 %v791, %v790
  %v922 = vpack.c.b16 %v793, %v792
  %v923 = vpack.c.b16 %v795, %v794
  %v1068 = vunpack.c.l.b16 %v268
  %v1069 = vunpack.c.l.b16 %v269
  %v1070 = vunpack.c.l.b16 %v270
  %v1071 = vunpack.c.l.b16 %v271
  %v1072 = vunpack.c.l.b16 %v272
  %v1073 = vunpack.c.l.b16 %v273
  %v1074 = vunpack.c.l.b16 %v274
  %v1075 = vunpack.c.l.b16 %v275
  %v1076 = vunpack.c.l.b16 %v276
  %v1077 = vunpack.c.l.b16 %v277
  %v1078 = vunpack.c.l.b16 %v278
  %v1079 = vunpack.c.l.b16 %v279
  %v1080 = vunpack.c.l.b16 %v280
  %v1081 = vunpack.c.l.b16 %v281
  %v1082 = vunpack.c.l.b16 %v282
  %v1083 = vunpack.c.l.b16 %v283
  %v1084 = vpack.c.b16 %v1069, %v1068
  %v1085 = vpack.c.b16 %v1071, %v1070
  %v1086 = vpack.c.b16 %v1073, %v1072
  %v1087 = vpack.c.b16 %v1075, %v1074
  %v1088 = vpack.c.b16 %v1077, %v1076
  %v1089 = vpack.c.b16 %v1079, %v1078
  %v1090 = vpack.c.b16 %v1081, %v1080
  %v1091 = vpack.c.b16 %v1083, %v1082
  %1100 = vmatprep.subr.bf16.mxu0 0
  %1101 = vmatpush1.bf16.msra.mxu0 %v1091
  %1102 = vmatprep.subr.bf16.mxu0 0
  %1103 = vmatpush1.bf16.msra.mxu0 %v1090
  %1104 = vmatprep.subr.bf16.mxu0 0
  %1105 = vmatpush1.bf16.msra.mxu0 %v1089
  %1106 = vmatprep.subr.bf16.mxu0 0
  %1107 = vmatpush1.bf16.msra.mxu0 %v1088
  %1108 = vmatprep.subr.bf16.mxu0 0
  %1109 = vmatpush1.bf16.msra.mxu0 %v1087
  %1110 = vmatprep.subr.bf16.mxu0 0
  %1111 = vmatpush1.bf16.msra.mxu0 %v1086
  %1112 = vmatprep.subr.bf16.mxu0 0
  %1113 = vmatpush1.bf16.msra.mxu0 %v1085
  %1114 = vmatprep.subr.bf16.mxu0 0
  %1115 = vmatpush1.bf16.msra.mxu0 %v1084
  %1116 = vmatprep.subr.bf16.mxu0 0
  %1117 = vmatpush2.bf16.msra.mxu0 0
  %1118 = vmatprep.subr.bf16.mxu0 0
  %1119 = vmatpush2.bf16.msra.mxu0 0
  %1120 = vmatprep.subr.bf16.mxu0 0
  %1121 = vmatpush2.bf16.msra.mxu0 0
  %1122 = vmatprep.subr.bf16.mxu0 0
  %1123 = vmatpush2.bf16.msra.mxu0 0
  %1124 = vmatprep.subr.bf16.mxu0 0
  %1125 = vmatpush2.bf16.msra.mxu0 0
  %1126 = vmatprep.subr.bf16.mxu0 0
  %1127 = vmatpush2.bf16.msra.mxu0 0
  %1128 = vmatprep.subr.bf16.mxu0 0
  %1129 = vmatpush2.bf16.msra.mxu0 0
  %1130 = vmatprep.subr.bf16.mxu0 0
  %1131 = vmatpush2.bf16.msra.mxu0 0
  %1132 = vmatprep.mubr.bf16.mxu0 0
  %1133 = vmatmul.mubr.bf16.gmra.mxu0 %v796
  %v1134 = vpop.f32.mrf.mxu0
  %v1135 = vadd.f32 0.0, %v1134
  %v1136 = vpop.f32.mrf.mxu0
  %v1137 = vpop.f32.mrf.mxu0
  %v1138 = vadd.f32 0.0, %v1137
  %v1139 = vpop.f32.mrf.mxu0
  %1140 = vmatprep.mubr.bf16.mxu0 0
  %1141 = vmatmul.mubr.bf16.gmra.mxu0 %v797
  %v1142 = vpop.f32.mrf.mxu0
  %v1143 = vadd.f32 0.0, %v1142
  %v1144 = vpop.f32.mrf.mxu0
  %v1145 = vpop.f32.mrf.mxu0
  %v1146 = vadd.f32 0.0, %v1145
  %v1147 = vpop.f32.mrf.mxu0
  %1148 = vmatprep.mubr.bf16.mxu0 0
  %1149 = vmatmul.mubr.bf16.gmra.mxu0 %v798
  %v1150 = vpop.f32.mrf.mxu0
  %v1151 = vadd.f32 0.0, %v1150
  %v1152 = vpop.f32.mrf.mxu0
  %v1153 = vpop.f32.mrf.mxu0
  %v1154 = vadd.f32 0.0, %v1153
  %v1155 = vpop.f32.mrf.mxu0
  %1156 = vmatprep.mubr.bf16.mxu0 0
  %1157 = vmatmul.mubr.bf16.gmra.mxu0 %v799
  %v1158 = vpop.f32.mrf.mxu0
  %v1159 = vadd.f32 0.0, %v1158
  %v1160 = vpop.f32.mrf.mxu0
  %v1161 = vpop.f32.mrf.mxu0
  %v1162 = vadd.f32 0.0, %v1161
  %v1163 = vpop.f32.mrf.mxu0
  %1164 = vmatprep.mubr.bf16.mxu0 0
  %1165 = vmatmul.mubr.bf16.gmra.mxu0 %v800
  %v1166 = vpop.f32.mrf.mxu0
  %v1167 = vadd.f32 0.0, %v1166
  %v1168 = vpop.f32.mrf.mxu0
  %v1169 = vpop.f32.mrf.mxu0
  %v1170 = vadd.f32 0.0, %v1169
  %v1171 = vpop.f32.mrf.mxu0
  %1172 = vmatprep.mubr.bf16.mxu0 0
  %1173 = vmatmul.mubr.bf16.gmra.mxu0 %v801
  %v1174 = vpop.f32.mrf.mxu0
  %v1175 = vadd.f32 0.0, %v1174
  %v1176 = vpop.f32.mrf.mxu0
  %v1177 = vpop.f32.mrf.mxu0
  %v1178 = vadd.f32 0.0, %v1177
  %v1179 = vpop.f32.mrf.mxu0
  %1180 = vmatprep.mubr.bf16.mxu0 0
  %1181 = vmatmul.mubr.bf16.gmra.mxu0 %v802
  %v1182 = vpop.f32.mrf.mxu0
  %v1183 = vadd.f32 0.0, %v1182
  %v1184 = vpop.f32.mrf.mxu0
  %v1185 = vpop.f32.mrf.mxu0
  %v1186 = vadd.f32 0.0, %v1185
  %v1187 = vpop.f32.mrf.mxu0
  %1188 = vmatprep.mubr.bf16.mxu0 0
  %1189 = vmatmul.mubr.bf16.gmra.mxu0 %v803
  %v1190 = vpop.f32.mrf.mxu0
  %v1191 = vadd.f32 0.0, %v1190
  %v1192 = vpop.f32.mrf.mxu0
  %v1193 = vpop.f32.mrf.mxu0
  %v1194 = vadd.f32 0.0, %v1193
  %v1195 = vpop.f32.mrf.mxu0
  %1196 = vmatprep.mubr.bf16.mxu0 0
  %1197 = vmatmul.mubr.bf16.gmra.mxu0 %v804
  %v1198 = vpop.f32.mrf.mxu0
  %v1199 = vadd.f32 0.0, %v1198
  %v1200 = vpop.f32.mrf.mxu0
  %v1201 = vpop.f32.mrf.mxu0
  %v1202 = vadd.f32 0.0, %v1201
  %v1203 = vpop.f32.mrf.mxu0
  %1204 = vmatprep.mubr.bf16.mxu0 0
  %1205 = vmatmul.mubr.bf16.gmra.mxu0 %v805
  %v1206 = vpop.f32.mrf.mxu0
  %v1207 = vadd.f32 0.0, %v1206
  %v1208 = vpop.f32.mrf.mxu0
  %v1209 = vpop.f32.mrf.mxu0
  %v1210 = vadd.f32 0.0, %v1209
  %v1211 = vpop.f32.mrf.mxu0
  %1212 = vmatprep.mubr.bf16.mxu0 0
  %1213 = vmatmul.mubr.bf16.gmra.mxu0 %v806
  %v1214 = vpop.f32.mrf.mxu0
  %v1215 = vadd.f32 0.0, %v1214
  %v1216 = vpop.f32.mrf.mxu0
  %v1217 = vpop.f32.mrf.mxu0
  %v1218 = vadd.f32 0.0, %v1217
  %v1219 = vpop.f32.mrf.mxu0
  %1220 = vmatprep.mubr.bf16.mxu0 0
  %1221 = vmatmul.mubr.bf16.gmra.mxu0 %v807
  %v1222 = vpop.f32.mrf.mxu0
  %v1223 = vadd.f32 0.0, %v1222
  %v1224 = vpop.f32.mrf.mxu0
  %v1225 = vpop.f32.mrf.mxu0
  %v1226 = vadd.f32 0.0, %v1225
  %v1227 = vpop.f32.mrf.mxu0
  %1228 = vmatprep.mubr.bf16.mxu0 0
  %1229 = vmatmul.mubr.bf16.gmra.mxu0 %v808
  %v1230 = vpop.f32.mrf.mxu0
  %v1231 = vadd.f32 0.0, %v1230
  %v1232 = vpop.f32.mrf.mxu0
  %v1233 = vpop.f32.mrf.mxu0
  %v1234 = vadd.f32 0.0, %v1233
  %v1235 = vpop.f32.mrf.mxu0
  %1236 = vmatprep.mubr.bf16.mxu0 0
  %1237 = vmatmul.mubr.bf16.gmra.mxu0 %v809
  %v1238 = vpop.f32.mrf.mxu0
  %v1239 = vadd.f32 0.0, %v1238
  %v1240 = vpop.f32.mrf.mxu0
  %v1241 = vpop.f32.mrf.mxu0
  %v1242 = vadd.f32 0.0, %v1241
  %v1243 = vpop.f32.mrf.mxu0
  %1244 = vmatprep.mubr.bf16.mxu0 0
  %1245 = vmatmul.mubr.bf16.gmra.mxu0 %v810
  %v1246 = vpop.f32.mrf.mxu0
  %v1247 = vadd.f32 0.0, %v1246
  %v1248 = vpop.f32.mrf.mxu0
  %v1249 = vpop.f32.mrf.mxu0
  %v1250 = vadd.f32 0.0, %v1249
  %v1251 = vpop.f32.mrf.mxu0
  %1252 = vmatprep.mubr.bf16.mxu0 0
  %1253 = vmatmul.mubr.bf16.gmra.mxu0 %v811
  %v1254 = vpop.f32.mrf.mxu0
  %v1255 = vadd.f32 0.0, %v1254
  %v1256 = vpop.f32.mrf.mxu0
  %v1257 = vpop.f32.mrf.mxu0
  %v1258 = vadd.f32 0.0, %v1257
  %v1259 = vpop.f32.mrf.mxu0
  %1260 = vmatprep.mubr.bf16.mxu0 0
  %1261 = vmatmul.mubr.bf16.gmra.mxu0 %v812
  %v1262 = vpop.f32.mrf.mxu0
  %v1263 = vadd.f32 0.0, %v1262
  %v1264 = vpop.f32.mrf.mxu0
  %v1265 = vpop.f32.mrf.mxu0
  %v1266 = vadd.f32 0.0, %v1265
  %v1267 = vpop.f32.mrf.mxu0
  %1268 = vmatprep.mubr.bf16.mxu0 0
  %1269 = vmatmul.mubr.bf16.gmra.mxu0 %v813
  %v1270 = vpop.f32.mrf.mxu0
  %v1271 = vadd.f32 0.0, %v1270
  %v1272 = vpop.f32.mrf.mxu0
  %v1273 = vpop.f32.mrf.mxu0
  %v1274 = vadd.f32 0.0, %v1273
  %v1275 = vpop.f32.mrf.mxu0
  %1276 = vmatprep.mubr.bf16.mxu0 0
  %1277 = vmatmul.mubr.bf16.gmra.mxu0 %v814
  %v1278 = vpop.f32.mrf.mxu0
  %v1279 = vadd.f32 0.0, %v1278
  %v1280 = vpop.f32.mrf.mxu0
  %v1281 = vpop.f32.mrf.mxu0
  %v1282 = vadd.f32 0.0, %v1281
  %v1283 = vpop.f32.mrf.mxu0
  %1284 = vmatprep.mubr.bf16.mxu0 0
  %1285 = vmatmul.mubr.bf16.gmra.mxu0 %v815
  %v1286 = vpop.f32.mrf.mxu0
  %v1287 = vadd.f32 0.0, %v1286
  %v1288 = vpop.f32.mrf.mxu0
  %v1289 = vpop.f32.mrf.mxu0
  %v1290 = vadd.f32 0.0, %v1289
  %v1291 = vpop.f32.mrf.mxu0
  %1292 = vmatprep.mubr.bf16.mxu0 0
  %1293 = vmatmul.mubr.bf16.gmra.mxu0 %v816
  %v1294 = vpop.f32.mrf.mxu0
  %v1295 = vadd.f32 0.0, %v1294
  %v1296 = vpop.f32.mrf.mxu0
  %v1297 = vpop.f32.mrf.mxu0
  %v1298 = vadd.f32 0.0, %v1297
  %v1299 = vpop.f32.mrf.mxu0
  %1300 = vmatprep.mubr.bf16.mxu0 0
  %1301 = vmatmul.mubr.bf16.gmra.mxu0 %v817
  %v1302 = vpop.f32.mrf.mxu0
  %v1303 = vadd.f32 0.0, %v1302
  %v1304 = vpop.f32.mrf.mxu0
  %v1305 = vpop.f32.mrf.mxu0
  %v1306 = vadd.f32 0.0, %v1305
  %v1307 = vpop.f32.mrf.mxu0
  %1308 = vmatprep.mubr.bf16.mxu0 0
  %1309 = vmatmul.mubr.bf16.gmra.mxu0 %v818
  %v1310 = vpop.f32.mrf.mxu0
  %v1311 = vadd.f32 0.0, %v1310
  %v1312 = vpop.f32.mrf.mxu0
  %v1313 = vpop.f32.mrf.mxu0
  %v1314 = vadd.f32 0.0, %v1313
  %v1315 = vpop.f32.mrf.mxu0
  %1316 = vmatprep.mubr.bf16.mxu0 0
  %1317 = vmatmul.mubr.bf16.gmra.mxu0 %v819
  %v1318 = vpop.f32.mrf.mxu0
  %v1319 = vadd.f32 0.0, %v1318
  %v1320 = vpop.f32.mrf.mxu0
  %v1321 = vpop.f32.mrf.mxu0
  %v1322 = vadd.f32 0.0, %v1321
  %v1323 = vpop.f32.mrf.mxu0
  %1324 = vmatprep.mubr.bf16.mxu0 0
  %1325 = vmatmul.mubr.bf16.gmra.mxu0 %v820
  %v1326 = vpop.f32.mrf.mxu0
  %v1327 = vadd.f32 0.0, %v1326
  %v1328 = vpop.f32.mrf.mxu0
  %v1329 = vpop.f32.mrf.mxu0
  %v1330 = vadd.f32 0.0, %v1329
  %v1331 = vpop.f32.mrf.mxu0
  %1332 = vmatprep.mubr.bf16.mxu0 0
  %1333 = vmatmul.mubr.bf16.gmra.mxu0 %v821
  %v1334 = vpop.f32.mrf.mxu0
  %v1335 = vadd.f32 0.0, %v1334
  %v1336 = vpop.f32.mrf.mxu0
  %v1337 = vpop.f32.mrf.mxu0
  %v1338 = vadd.f32 0.0, %v1337
  %v1339 = vpop.f32.mrf.mxu0
  %1340 = vmatprep.mubr.bf16.mxu0 0
  %1341 = vmatmul.mubr.bf16.gmra.mxu0 %v822
  %v1342 = vpop.f32.mrf.mxu0
  %v1343 = vadd.f32 0.0, %v1342
  %v1344 = vpop.f32.mrf.mxu0
  %v1345 = vpop.f32.mrf.mxu0
  %v1346 = vadd.f32 0.0, %v1345
  %v1347 = vpop.f32.mrf.mxu0
  %1348 = vmatprep.mubr.bf16.mxu0 0
  %1349 = vmatmul.mubr.bf16.gmra.mxu0 %v823
  %v1350 = vpop.f32.mrf.mxu0
  %v1351 = vadd.f32 0.0, %v1350
  %v1352 = vpop.f32.mrf.mxu0
  %v1353 = vpop.f32.mrf.mxu0
  %v1354 = vadd.f32 0.0, %v1353
  %v1355 = vpop.f32.mrf.mxu0
  %1356 = vmatprep.mubr.bf16.mxu0 0
  %1357 = vmatmul.mubr.bf16.gmra.mxu0 %v824
  %v1358 = vpop.f32.mrf.mxu0
  %v1359 = vadd.f32 0.0, %v1358
  %v1360 = vpop.f32.mrf.mxu0
  %v1361 = vpop.f32.mrf.mxu0
  %v1362 = vadd.f32 0.0, %v1361
  %v1363 = vpop.f32.mrf.mxu0
  %1364 = vmatprep.mubr.bf16.mxu0 0
  %1365 = vmatmul.mubr.bf16.gmra.mxu0 %v825
  %v1366 = vpop.f32.mrf.mxu0
  %v1367 = vadd.f32 0.0, %v1366
  %v1368 = vpop.f32.mrf.mxu0
  %v1369 = vpop.f32.mrf.mxu0
  %v1370 = vadd.f32 0.0, %v1369
  %v1371 = vpop.f32.mrf.mxu0
  %1372 = vmatprep.mubr.bf16.mxu0 0
  %1373 = vmatmul.mubr.bf16.gmra.mxu0 %v826
  %v1374 = vpop.f32.mrf.mxu0
  %v1375 = vadd.f32 0.0, %v1374
  %v1376 = vpop.f32.mrf.mxu0
  %v1377 = vpop.f32.mrf.mxu0
  %v1378 = vadd.f32 0.0, %v1377
  %v1379 = vpop.f32.mrf.mxu0
  %1380 = vmatprep.mubr.bf16.mxu0 0
  %1381 = vmatmul.mubr.bf16.gmra.mxu0 %v827
  %v1382 = vpop.f32.mrf.mxu0
  %v1383 = vadd.f32 0.0, %v1382
  %v1384 = vpop.f32.mrf.mxu0
  %v1385 = vpop.f32.mrf.mxu0
  %v1386 = vadd.f32 0.0, %v1385
  %v1387 = vpop.f32.mrf.mxu0
  %1388 = vmatprep.mubr.bf16.mxu0 0
  %1389 = vmatmul.mubr.bf16.gmra.mxu0 %v828
  %v1390 = vpop.f32.mrf.mxu0
  %v1391 = vadd.f32 0.0, %v1390
  %v1392 = vpop.f32.mrf.mxu0
  %v1393 = vpop.f32.mrf.mxu0
  %v1394 = vadd.f32 0.0, %v1393
  %v1395 = vpop.f32.mrf.mxu0
  %1396 = vmatprep.mubr.bf16.mxu0 0
  %1397 = vmatmul.mubr.bf16.gmra.mxu0 %v829
  %v1398 = vpop.f32.mrf.mxu0
  %v1399 = vadd.f32 0.0, %v1398
  %v1400 = vpop.f32.mrf.mxu0
  %v1401 = vpop.f32.mrf.mxu0
  %v1402 = vadd.f32 0.0, %v1401
  %v1403 = vpop.f32.mrf.mxu0
  %1404 = vmatprep.mubr.bf16.mxu0 0
  %1405 = vmatmul.mubr.bf16.gmra.mxu0 %v830
  %v1406 = vpop.f32.mrf.mxu0
  %v1407 = vadd.f32 0.0, %v1406
  %v1408 = vpop.f32.mrf.mxu0
  %v1409 = vpop.f32.mrf.mxu0
  %v1410 = vadd.f32 0.0, %v1409
  %v1411 = vpop.f32.mrf.mxu0
  %1412 = vmatprep.mubr.bf16.mxu0 0
  %1413 = vmatmul.mubr.bf16.gmra.mxu0 %v831
  %v1414 = vpop.f32.mrf.mxu0
  %v1415 = vadd.f32 0.0, %v1414
  %v1416 = vpop.f32.mrf.mxu0
  %v1417 = vpop.f32.mrf.mxu0
  %v1418 = vadd.f32 0.0, %v1417
  %v1419 = vpop.f32.mrf.mxu0
  %1420 = vmatprep.mubr.bf16.mxu0 0
  %1421 = vmatmul.mubr.bf16.gmra.mxu0 %v832
  %v1422 = vpop.f32.mrf.mxu0
  %v1423 = vadd.f32 0.0, %v1422
  %v1424 = vpop.f32.mrf.mxu0
  %v1425 = vpop.f32.mrf.mxu0
  %v1426 = vadd.f32 0.0, %v1425
  %v1427 = vpop.f32.mrf.mxu0
  %1428 = vmatprep.mubr.bf16.mxu0 0
  %1429 = vmatmul.mubr.bf16.gmra.mxu0 %v833
  %v1430 = vpop.f32.mrf.mxu0
  %v1431 = vadd.f32 0.0, %v1430
  %v1432 = vpop.f32.mrf.mxu0
  %v1433 = vpop.f32.mrf.mxu0
  %v1434 = vadd.f32 0.0, %v1433
  %v1435 = vpop.f32.mrf.mxu0
  %1436 = vmatprep.mubr.bf16.mxu0 0
  %1437 = vmatmul.mubr.bf16.gmra.mxu0 %v834
  %v1438 = vpop.f32.mrf.mxu0
  %v1439 = vadd.f32 0.0, %v1438
  %v1440 = vpop.f32.mrf.mxu0
  %v1441 = vpop.f32.mrf.mxu0
  %v1442 = vadd.f32 0.0, %v1441
  %v1443 = vpop.f32.mrf.mxu0
  %1444 = vmatprep.mubr.bf16.mxu0 0
  %1445 = vmatmul.mubr.bf16.gmra.mxu0 %v835
  %v1446 = vpop.f32.mrf.mxu0
  %v1447 = vadd.f32 0.0, %v1446
  %v1448 = vpop.f32.mrf.mxu0
  %v1449 = vpop.f32.mrf.mxu0
  %v1450 = vadd.f32 0.0, %v1449
  %v1451 = vpop.f32.mrf.mxu0
  %1452 = vmatprep.mubr.bf16.mxu0 0
  %1453 = vmatmul.mubr.bf16.gmra.mxu0 %v836
  %v1454 = vpop.f32.mrf.mxu0
  %v1455 = vadd.f32 0.0, %v1454
  %v1456 = vpop.f32.mrf.mxu0
  %v1457 = vpop.f32.mrf.mxu0
  %v1458 = vadd.f32 0.0, %v1457
  %v1459 = vpop.f32.mrf.mxu0
  %1460 = vmatprep.mubr.bf16.mxu0 0
  %1461 = vmatmul.mubr.bf16.gmra.mxu0 %v837
  %v1462 = vpop.f32.mrf.mxu0
  %v1463 = vadd.f32 0.0, %v1462
  %v1464 = vpop.f32.mrf.mxu0
  %v1465 = vpop.f32.mrf.mxu0
  %v1466 = vadd.f32 0.0, %v1465
  %v1467 = vpop.f32.mrf.mxu0
  %1468 = vmatprep.mubr.bf16.mxu0 0
  %1469 = vmatmul.mubr.bf16.gmra.mxu0 %v838
  %v1470 = vpop.f32.mrf.mxu0
  %v1471 = vadd.f32 0.0, %v1470
  %v1472 = vpop.f32.mrf.mxu0
  %v1473 = vpop.f32.mrf.mxu0
  %v1474 = vadd.f32 0.0, %v1473
  %v1475 = vpop.f32.mrf.mxu0
  %1476 = vmatprep.mubr.bf16.mxu0 0
  %1477 = vmatmul.mubr.bf16.gmra.mxu0 %v839
  %v1478 = vpop.f32.mrf.mxu0
  %v1479 = vadd.f32 0.0, %v1478
  %v1480 = vpop.f32.mrf.mxu0
  %v1481 = vpop.f32.mrf.mxu0
  %v1482 = vadd.f32 0.0, %v1481
  %v1483 = vpop.f32.mrf.mxu0
  %1484 = vmatprep.mubr.bf16.mxu0 0
  %1485 = vmatmul.mubr.bf16.gmra.mxu0 %v840
  %v1486 = vpop.f32.mrf.mxu0
  %v1487 = vadd.f32 0.0, %v1486
  %v1488 = vpop.f32.mrf.mxu0
  %v1489 = vpop.f32.mrf.mxu0
  %v1490 = vadd.f32 0.0, %v1489
  %v1491 = vpop.f32.mrf.mxu0
  %1492 = vmatprep.mubr.bf16.mxu0 0
  %1493 = vmatmul.mubr.bf16.gmra.mxu0 %v841
  %v1494 = vpop.f32.mrf.mxu0
  %v1495 = vadd.f32 0.0, %v1494
  %v1496 = vpop.f32.mrf.mxu0
  %v1497 = vpop.f32.mrf.mxu0
  %v1498 = vadd.f32 0.0, %v1497
  %v1499 = vpop.f32.mrf.mxu0
  %1500 = vmatprep.mubr.bf16.mxu0 0
  %1501 = vmatmul.mubr.bf16.gmra.mxu0 %v842
  %v1502 = vpop.f32.mrf.mxu0
  %v1503 = vadd.f32 0.0, %v1502
  %v1504 = vpop.f32.mrf.mxu0
  %v1505 = vpop.f32.mrf.mxu0
  %v1506 = vadd.f32 0.0, %v1505
  %v1507 = vpop.f32.mrf.mxu0
  %1508 = vmatprep.mubr.bf16.mxu0 0
  %1509 = vmatmul.mubr.bf16.gmra.mxu0 %v843
  %v1510 = vpop.f32.mrf.mxu0
  %v1511 = vadd.f32 0.0, %v1510
  %v1512 = vpop.f32.mrf.mxu0
  %v1513 = vpop.f32.mrf.mxu0
  %v1514 = vadd.f32 0.0, %v1513
  %v1515 = vpop.f32.mrf.mxu0
  %1516 = vmatprep.mubr.bf16.mxu0 0
  %1517 = vmatmul.mubr.bf16.gmra.mxu0 %v844
  %v1518 = vpop.f32.mrf.mxu0
  %v1519 = vadd.f32 0.0, %v1518
  %v1520 = vpop.f32.mrf.mxu0
  %v1521 = vpop.f32.mrf.mxu0
  %v1522 = vadd.f32 0.0, %v1521
  %v1523 = vpop.f32.mrf.mxu0
  %1524 = vmatprep.mubr.bf16.mxu0 0
  %1525 = vmatmul.mubr.bf16.gmra.mxu0 %v845
  %v1526 = vpop.f32.mrf.mxu0
  %v1527 = vadd.f32 0.0, %v1526
  %v1528 = vpop.f32.mrf.mxu0
  %v1529 = vpop.f32.mrf.mxu0
  %v1530 = vadd.f32 0.0, %v1529
  %v1531 = vpop.f32.mrf.mxu0
  %1532 = vmatprep.mubr.bf16.mxu0 0
  %1533 = vmatmul.mubr.bf16.gmra.mxu0 %v846
  %v1534 = vpop.f32.mrf.mxu0
  %v1535 = vadd.f32 0.0, %v1534
  %v1536 = vpop.f32.mrf.mxu0
  %v1537 = vpop.f32.mrf.mxu0
  %v1538 = vadd.f32 0.0, %v1537
  %v1539 = vpop.f32.mrf.mxu0
  %1540 = vmatprep.mubr.bf16.mxu0 0
  %1541 = vmatmul.mubr.bf16.gmra.mxu0 %v847
  %v1542 = vpop.f32.mrf.mxu0
  %v1543 = vadd.f32 0.0, %v1542
  %v1544 = vpop.f32.mrf.mxu0
  %v1545 = vpop.f32.mrf.mxu0
  %v1546 = vadd.f32 0.0, %v1545
  %v1547 = vpop.f32.mrf.mxu0
  %1548 = vmatprep.mubr.bf16.mxu0 0
  %1549 = vmatmul.mubr.bf16.gmra.mxu0 %v848
  %v1550 = vpop.f32.mrf.mxu0
  %v1551 = vadd.f32 0.0, %v1550
  %v1552 = vpop.f32.mrf.mxu0
  %v1553 = vpop.f32.mrf.mxu0
  %v1554 = vadd.f32 0.0, %v1553
  %v1555 = vpop.f32.mrf.mxu0
  %1556 = vmatprep.mubr.bf16.mxu0 0
  %1557 = vmatmul.mubr.bf16.gmra.mxu0 %v849
  %v1558 = vpop.f32.mrf.mxu0
  %v1559 = vadd.f32 0.0, %v1558
  %v1560 = vpop.f32.mrf.mxu0
  %v1561 = vpop.f32.mrf.mxu0
  %v1562 = vadd.f32 0.0, %v1561
  %v1563 = vpop.f32.mrf.mxu0
  %1564 = vmatprep.mubr.bf16.mxu0 0
  %1565 = vmatmul.mubr.bf16.gmra.mxu0 %v850
  %v1566 = vpop.f32.mrf.mxu0
  %v1567 = vadd.f32 0.0, %v1566
  %v1568 = vpop.f32.mrf.mxu0
  %v1569 = vpop.f32.mrf.mxu0
  %v1570 = vadd.f32 0.0, %v1569
  %v1571 = vpop.f32.mrf.mxu0
  %1572 = vmatprep.mubr.bf16.mxu0 0
  %1573 = vmatmul.mubr.bf16.gmra.mxu0 %v851
  %v1574 = vpop.f32.mrf.mxu0
  %v1575 = vadd.f32 0.0, %v1574
  %v1576 = vpop.f32.mrf.mxu0
  %v1577 = vpop.f32.mrf.mxu0
  %v1578 = vadd.f32 0.0, %v1577
  %v1579 = vpop.f32.mrf.mxu0
  %1580 = vmatprep.mubr.bf16.mxu0 0
  %1581 = vmatmul.mubr.bf16.gmra.mxu0 %v852
  %v1582 = vpop.f32.mrf.mxu0
  %v1583 = vadd.f32 0.0, %v1582
  %v1584 = vpop.f32.mrf.mxu0
  %v1585 = vpop.f32.mrf.mxu0
  %v1586 = vadd.f32 0.0, %v1585
  %v1587 = vpop.f32.mrf.mxu0
  %1588 = vmatprep.mubr.bf16.mxu0 0
  %1589 = vmatmul.mubr.bf16.gmra.mxu0 %v853
  %v1590 = vpop.f32.mrf.mxu0
  %v1591 = vadd.f32 0.0, %v1590
  %v1592 = vpop.f32.mrf.mxu0
  %v1593 = vpop.f32.mrf.mxu0
  %v1594 = vadd.f32 0.0, %v1593
  %v1595 = vpop.f32.mrf.mxu0
  %1596 = vmatprep.mubr.bf16.mxu0 0
  %1597 = vmatmul.mubr.bf16.gmra.mxu0 %v854
  %v1598 = vpop.f32.mrf.mxu0
  %v1599 = vadd.f32 0.0, %v1598
  %v1600 = vpop.f32.mrf.mxu0
  %v1601 = vpop.f32.mrf.mxu0
  %v1602 = vadd.f32 0.0, %v1601
  %v1603 = vpop.f32.mrf.mxu0
  %1604 = vmatprep.mubr.bf16.mxu0 0
  %1605 = vmatmul.mubr.bf16.gmra.mxu0 %v855
  %v1606 = vpop.f32.mrf.mxu0
  %v1607 = vadd.f32 0.0, %v1606
  %v1608 = vpop.f32.mrf.mxu0
  %v1609 = vpop.f32.mrf.mxu0
  %v1610 = vadd.f32 0.0, %v1609
  %v1611 = vpop.f32.mrf.mxu0
  %1612 = vmatprep.mubr.bf16.mxu0 0
  %1613 = vmatmul.mubr.bf16.gmra.mxu0 %v856
  %v1614 = vpop.f32.mrf.mxu0
  %v1615 = vadd.f32 0.0, %v1614
  %v1616 = vpop.f32.mrf.mxu0
  %v1617 = vpop.f32.mrf.mxu0
  %v1618 = vadd.f32 0.0, %v1617
  %v1619 = vpop.f32.mrf.mxu0
  %1620 = vmatprep.mubr.bf16.mxu0 0
  %1621 = vmatmul.mubr.bf16.gmra.mxu0 %v857
  %v1622 = vpop.f32.mrf.mxu0
  %v1623 = vadd.f32 0.0, %v1622
  %v1624 = vpop.f32.mrf.mxu0
  %v1625 = vpop.f32.mrf.mxu0
  %v1626 = vadd.f32 0.0, %v1625
  %v1627 = vpop.f32.mrf.mxu0
  %1628 = vmatprep.mubr.bf16.mxu0 0
  %1629 = vmatmul.mubr.bf16.gmra.mxu0 %v858
  %v1630 = vpop.f32.mrf.mxu0
  %v1631 = vadd.f32 0.0, %v1630
  %v1632 = vpop.f32.mrf.mxu0
  %v1633 = vpop.f32.mrf.mxu0
  %v1634 = vadd.f32 0.0, %v1633
  %v1635 = vpop.f32.mrf.mxu0
  %1636 = vmatprep.mubr.bf16.mxu0 0
  %1637 = vmatmul.mubr.bf16.gmra.mxu0 %v859
  %v1638 = vpop.f32.mrf.mxu0
  %v1639 = vadd.f32 0.0, %v1638
  %v1640 = vpop.f32.mrf.mxu0
  %v1641 = vpop.f32.mrf.mxu0
  %v1642 = vadd.f32 0.0, %v1641
  %v1643 = vpop.f32.mrf.mxu0
  %1644 = vmatprep.mubr.bf16.mxu0 0
  %1645 = vmatmul.mubr.bf16.gmra.mxu0 %v860
  %v1646 = vpop.f32.mrf.mxu0
  %v1647 = vadd.f32 0.0, %v1646
  %v1648 = vpop.f32.mrf.mxu0
  %v1649 = vpop.f32.mrf.mxu0
  %v1650 = vadd.f32 0.0, %v1649
  %v1651 = vpop.f32.mrf.mxu0
  %1652 = vmatprep.mubr.bf16.mxu0 0
  %1653 = vmatmul.mubr.bf16.gmra.mxu0 %v861
  %v1654 = vpop.f32.mrf.mxu0
  %v1655 = vadd.f32 0.0, %v1654
  %v1656 = vpop.f32.mrf.mxu0
  %v1657 = vpop.f32.mrf.mxu0
  %v1658 = vadd.f32 0.0, %v1657
  %v1659 = vpop.f32.mrf.mxu0
  %1660 = vmatprep.mubr.bf16.mxu0 0
  %1661 = vmatmul.mubr.bf16.gmra.mxu0 %v862
  %v1662 = vpop.f32.mrf.mxu0
  %v1663 = vadd.f32 0.0, %v1662
  %v1664 = vpop.f32.mrf.mxu0
  %v1665 = vpop.f32.mrf.mxu0
  %v1666 = vadd.f32 0.0, %v1665
  %v1667 = vpop.f32.mrf.mxu0
  %1668 = vmatprep.mubr.bf16.mxu0 0
  %1669 = vmatmul.mubr.bf16.gmra.mxu0 %v863
  %v1670 = vpop.f32.mrf.mxu0
  %v1671 = vadd.f32 0.0, %v1670
  %v1672 = vpop.f32.mrf.mxu0
  %v1673 = vpop.f32.mrf.mxu0
  %v1674 = vadd.f32 0.0, %v1673
  %v1675 = vpop.f32.mrf.mxu0
  %1676 = vmatprep.mubr.bf16.mxu0 0
  %1677 = vmatmul.mubr.bf16.gmra.mxu0 %v864
  %v1678 = vpop.f32.mrf.mxu0
  %v1679 = vadd.f32 0.0, %v1678
  %v1680 = vpop.f32.mrf.mxu0
  %v1681 = vpop.f32.mrf.mxu0
  %v1682 = vadd.f32 0.0, %v1681
  %v1683 = vpop.f32.mrf.mxu0
  %1684 = vmatprep.mubr.bf16.mxu0 0
  %1685 = vmatmul.mubr.bf16.gmra.mxu0 %v865
  %v1686 = vpop.f32.mrf.mxu0
  %v1687 = vadd.f32 0.0, %v1686
  %v1688 = vpop.f32.mrf.mxu0
  %v1689 = vpop.f32.mrf.mxu0
  %v1690 = vadd.f32 0.0, %v1689
  %v1691 = vpop.f32.mrf.mxu0
  %1692 = vmatprep.mubr.bf16.mxu0 0
  %1693 = vmatmul.mubr.bf16.gmra.mxu0 %v866
  %v1694 = vpop.f32.mrf.mxu0
  %v1695 = vadd.f32 0.0, %v1694
  %v1696 = vpop.f32.mrf.mxu0
  %v1697 = vpop.f32.mrf.mxu0
  %v1698 = vadd.f32 0.0, %v1697
  %v1699 = vpop.f32.mrf.mxu0
  %1700 = vmatprep.mubr.bf16.mxu0 0
  %1701 = vmatmul.mubr.bf16.gmra.mxu0 %v867
  %v1702 = vpop.f32.mrf.mxu0
  %v1703 = vadd.f32 0.0, %v1702
  %v1704 = vpop.f32.mrf.mxu0
  %v1705 = vpop.f32.mrf.mxu0
  %v1706 = vadd.f32 0.0, %v1705
  %v1707 = vpop.f32.mrf.mxu0
  %1708 = vmatprep.mubr.bf16.mxu0 0
  %1709 = vmatmul.mubr.bf16.gmra.mxu0 %v868
  %v1710 = vpop.f32.mrf.mxu0
  %v1711 = vadd.f32 0.0, %v1710
  %v1712 = vpop.f32.mrf.mxu0
  %v1713 = vpop.f32.mrf.mxu0
  %v1714 = vadd.f32 0.0, %v1713
  %v1715 = vpop.f32.mrf.mxu0
  %1716 = vmatprep.mubr.bf16.mxu0 0
  %1717 = vmatmul.mubr.bf16.gmra.mxu0 %v869
  %v1718 = vpop.f32.mrf.mxu0
  %v1719 = vadd.f32 0.0, %v1718
  %v1720 = vpop.f32.mrf.mxu0
  %v1721 = vpop.f32.mrf.mxu0
  %v1722 = vadd.f32 0.0, %v1721
  %v1723 = vpop.f32.mrf.mxu0
  %1724 = vmatprep.mubr.bf16.mxu0 0
  %1725 = vmatmul.mubr.bf16.gmra.mxu0 %v870
  %v1726 = vpop.f32.mrf.mxu0
  %v1727 = vadd.f32 0.0, %v1726
  %v1728 = vpop.f32.mrf.mxu0
  %v1729 = vpop.f32.mrf.mxu0
  %v1730 = vadd.f32 0.0, %v1729
  %v1731 = vpop.f32.mrf.mxu0
  %1732 = vmatprep.mubr.bf16.mxu0 0
  %1733 = vmatmul.mubr.bf16.gmra.mxu0 %v871
  %v1734 = vpop.f32.mrf.mxu0
  %v1735 = vadd.f32 0.0, %v1734
  %v1736 = vpop.f32.mrf.mxu0
  %v1737 = vpop.f32.mrf.mxu0
  %v1738 = vadd.f32 0.0, %v1737
  %v1739 = vpop.f32.mrf.mxu0
  %1740 = vmatprep.mubr.bf16.mxu0 0
  %1741 = vmatmul.mubr.bf16.gmra.mxu0 %v872
  %v1742 = vpop.f32.mrf.mxu0
  %v1743 = vadd.f32 0.0, %v1742
  %v1744 = vpop.f32.mrf.mxu0
  %v1745 = vpop.f32.mrf.mxu0
  %v1746 = vadd.f32 0.0, %v1745
  %v1747 = vpop.f32.mrf.mxu0
  %1748 = vmatprep.mubr.bf16.mxu0 0
  %1749 = vmatmul.mubr.bf16.gmra.mxu0 %v873
  %v1750 = vpop.f32.mrf.mxu0
  %v1751 = vadd.f32 0.0, %v1750
  %v1752 = vpop.f32.mrf.mxu0
  %v1753 = vpop.f32.mrf.mxu0
  %v1754 = vadd.f32 0.0, %v1753
  %v1755 = vpop.f32.mrf.mxu0
  %1756 = vmatprep.mubr.bf16.mxu0 0
  %1757 = vmatmul.mubr.bf16.gmra.mxu0 %v874
  %v1758 = vpop.f32.mrf.mxu0
  %v1759 = vadd.f32 0.0, %v1758
  %v1760 = vpop.f32.mrf.mxu0
  %v1761 = vpop.f32.mrf.mxu0
  %v1762 = vadd.f32 0.0, %v1761
  %v1763 = vpop.f32.mrf.mxu0
  %1764 = vmatprep.mubr.bf16.mxu0 0
  %1765 = vmatmul.mubr.bf16.gmra.mxu0 %v875
  %v1766 = vpop.f32.mrf.mxu0
  %v1767 = vadd.f32 0.0, %v1766
  %v1768 = vpop.f32.mrf.mxu0
  %v1769 = vpop.f32.mrf.mxu0
  %v1770 = vadd.f32 0.0, %v1769
  %v1771 = vpop.f32.mrf.mxu0
  %1772 = vmatprep.mubr.bf16.mxu0 0
  %1773 = vmatmul.mubr.bf16.gmra.mxu0 %v876
  %v1774 = vpop.f32.mrf.mxu0
  %v1775 = vadd.f32 0.0, %v1774
  %v1776 = vpop.f32.mrf.mxu0
  %v1777 = vpop.f32.mrf.mxu0
  %v1778 = vadd.f32 0.0, %v1777
  %v1779 = vpop.f32.mrf.mxu0
  %1780 = vmatprep.mubr.bf16.mxu0 0
  %1781 = vmatmul.mubr.bf16.gmra.mxu0 %v877
  %v1782 = vpop.f32.mrf.mxu0
  %v1783 = vadd.f32 0.0, %v1782
  %v1784 = vpop.f32.mrf.mxu0
  %v1785 = vpop.f32.mrf.mxu0
  %v1786 = vadd.f32 0.0, %v1785
  %v1787 = vpop.f32.mrf.mxu0
  %1788 = vmatprep.mubr.bf16.mxu0 0
  %1789 = vmatmul.mubr.bf16.gmra.mxu0 %v878
  %v1790 = vpop.f32.mrf.mxu0
  %v1791 = vadd.f32 0.0, %v1790
  %v1792 = vpop.f32.mrf.mxu0
  %v1793 = vpop.f32.mrf.mxu0
  %v1794 = vadd.f32 0.0, %v1793
  %v1795 = vpop.f32.mrf.mxu0
  %1796 = vmatprep.mubr.bf16.mxu0 0
  %1797 = vmatmul.mubr.bf16.gmra.mxu0 %v879
  %v1798 = vpop.f32.mrf.mxu0
  %v1799 = vadd.f32 0.0, %v1798
  %v1800 = vpop.f32.mrf.mxu0
  %v1801 = vpop.f32.mrf.mxu0
  %v1802 = vadd.f32 0.0, %v1801
  %v1803 = vpop.f32.mrf.mxu0
  %1804 = vmatprep.mubr.bf16.mxu0 0
  %1805 = vmatmul.mubr.bf16.gmra.mxu0 %v880
  %v1806 = vpop.f32.mrf.mxu0
  %v1807 = vadd.f32 0.0, %v1806
  %v1808 = vpop.f32.mrf.mxu0
  %v1809 = vpop.f32.mrf.mxu0
  %v1810 = vadd.f32 0.0, %v1809
  %v1811 = vpop.f32.mrf.mxu0
  %1812 = vmatprep.mubr.bf16.mxu0 0
  %1813 = vmatmul.mubr.bf16.gmra.mxu0 %v881
  %v1814 = vpop.f32.mrf.mxu0
  %v1815 = vadd.f32 0.0, %v1814
  %v1816 = vpop.f32.mrf.mxu0
  %v1817 = vpop.f32.mrf.mxu0
  %v1818 = vadd.f32 0.0, %v1817
  %v1819 = vpop.f32.mrf.mxu0
  %1820 = vmatprep.mubr.bf16.mxu0 0
  %1821 = vmatmul.mubr.bf16.gmra.mxu0 %v882
  %v1822 = vpop.f32.mrf.mxu0
  %v1823 = vadd.f32 0.0, %v1822
  %v1824 = vpop.f32.mrf.mxu0
  %v1825 = vpop.f32.mrf.mxu0
  %v1826 = vadd.f32 0.0, %v1825
  %v1827 = vpop.f32.mrf.mxu0
  %1828 = vmatprep.mubr.bf16.mxu0 0
  %1829 = vmatmul.mubr.bf16.gmra.mxu0 %v883
  %v1830 = vpop.f32.mrf.mxu0
  %v1831 = vadd.f32 0.0, %v1830
  %v1832 = vpop.f32.mrf.mxu0
  %v1833 = vpop.f32.mrf.mxu0
  %v1834 = vadd.f32 0.0, %v1833
  %v1835 = vpop.f32.mrf.mxu0
  %1836 = vmatprep.mubr.bf16.mxu0 0
  %1837 = vmatmul.mubr.bf16.gmra.mxu0 %v884
  %v1838 = vpop.f32.mrf.mxu0
  %v1839 = vadd.f32 0.0, %v1838
  %v1840 = vpop.f32.mrf.mxu0
  %v1841 = vpop.f32.mrf.mxu0
  %v1842 = vadd.f32 0.0, %v1841
  %v1843 = vpop.f32.mrf.mxu0
  %1844 = vmatprep.mubr.bf16.mxu0 0
  %1845 = vmatmul.mubr.bf16.gmra.mxu0 %v885
  %v1846 = vpop.f32.mrf.mxu0
  %v1847 = vadd.f32 0.0, %v1846
  %v1848 = vpop.f32.mrf.mxu0
  %v1849 = vpop.f32.mrf.mxu0
  %v1850 = vadd.f32 0.0, %v1849
  %v1851 = vpop.f32.mrf.mxu0
  %1852 = vmatprep.mubr.bf16.mxu0 0
  %1853 = vmatmul.mubr.bf16.gmra.mxu0 %v886
  %v1854 = vpop.f32.mrf.mxu0
  %v1855 = vadd.f32 0.0, %v1854
  %v1856 = vpop.f32.mrf.mxu0
  %v1857 = vpop.f32.mrf.mxu0
  %v1858 = vadd.f32 0.0, %v1857
  %v1859 = vpop.f32.mrf.mxu0
  %1860 = vmatprep.mubr.bf16.mxu0 0
  %1861 = vmatmul.mubr.bf16.gmra.mxu0 %v887
  %v1862 = vpop.f32.mrf.mxu0
  %v1863 = vadd.f32 0.0, %v1862
  %v1864 = vpop.f32.mrf.mxu0
  %v1865 = vpop.f32.mrf.mxu0
  %v1866 = vadd.f32 0.0, %v1865
  %v1867 = vpop.f32.mrf.mxu0
  %1868 = vmatprep.mubr.bf16.mxu0 0
  %1869 = vmatmul.mubr.bf16.gmra.mxu0 %v888
  %v1870 = vpop.f32.mrf.mxu0
  %v1871 = vadd.f32 0.0, %v1870
  %v1872 = vpop.f32.mrf.mxu0
  %v1873 = vpop.f32.mrf.mxu0
  %v1874 = vadd.f32 0.0, %v1873
  %v1875 = vpop.f32.mrf.mxu0
  %1876 = vmatprep.mubr.bf16.mxu0 0
  %1877 = vmatmul.mubr.bf16.gmra.mxu0 %v889
  %v1878 = vpop.f32.mrf.mxu0
  %v1879 = vadd.f32 0.0, %v1878
  %v1880 = vpop.f32.mrf.mxu0
  %v1881 = vpop.f32.mrf.mxu0
  %v1882 = vadd.f32 0.0, %v1881
  %v1883 = vpop.f32.mrf.mxu0
  %1884 = vmatprep.mubr.bf16.mxu0 0
  %1885 = vmatmul.mubr.bf16.gmra.mxu0 %v890
  %v1886 = vpop.f32.mrf.mxu0
  %v1887 = vadd.f32 0.0, %v1886
  %v1888 = vpop.f32.mrf.mxu0
  %v1889 = vpop.f32.mrf.mxu0
  %v1890 = vadd.f32 0.0, %v1889
  %v1891 = vpop.f32.mrf.mxu0
  %1892 = vmatprep.mubr.bf16.mxu0 0
  %1893 = vmatmul.mubr.bf16.gmra.mxu0 %v891
  %v1894 = vpop.f32.mrf.mxu0
  %v1895 = vadd.f32 0.0, %v1894
  %v1896 = vpop.f32.mrf.mxu0
  %v1897 = vpop.f32.mrf.mxu0
  %v1898 = vadd.f32 0.0, %v1897
  %v1899 = vpop.f32.mrf.mxu0
  %1900 = vmatprep.mubr.bf16.mxu0 0
  %1901 = vmatmul.mubr.bf16.gmra.mxu0 %v892
  %v1902 = vpop.f32.mrf.mxu0
  %v1903 = vadd.f32 0.0, %v1902
  %v1904 = vpop.f32.mrf.mxu0
  %v1905 = vpop.f32.mrf.mxu0
  %v1906 = vadd.f32 0.0, %v1905
  %v1907 = vpop.f32.mrf.mxu0
  %1908 = vmatprep.mubr.bf16.mxu0 0
  %1909 = vmatmul.mubr.bf16.gmra.mxu0 %v893
  %v1910 = vpop.f32.mrf.mxu0
  %v1911 = vadd.f32 0.0, %v1910
  %v1912 = vpop.f32.mrf.mxu0
  %v1913 = vpop.f32.mrf.mxu0
  %v1914 = vadd.f32 0.0, %v1913
  %v1915 = vpop.f32.mrf.mxu0
  %1916 = vmatprep.mubr.bf16.mxu0 0
  %1917 = vmatmul.mubr.bf16.gmra.mxu0 %v894
  %v1918 = vpop.f32.mrf.mxu0
  %v1919 = vadd.f32 0.0, %v1918
  %v1920 = vpop.f32.mrf.mxu0
  %v1921 = vpop.f32.mrf.mxu0
  %v1922 = vadd.f32 0.0, %v1921
  %v1923 = vpop.f32.mrf.mxu0
  %1924 = vmatprep.mubr.bf16.mxu0 0
  %1925 = vmatmul.mubr.bf16.gmra.mxu0 %v895
  %v1926 = vpop.f32.mrf.mxu0
  %v1927 = vadd.f32 0.0, %v1926
  %v1928 = vpop.f32.mrf.mxu0
  %v1929 = vpop.f32.mrf.mxu0
  %v1930 = vadd.f32 0.0, %v1929
  %v1931 = vpop.f32.mrf.mxu0
  %1932 = vmatprep.mubr.bf16.mxu0 0
  %1933 = vmatmul.mubr.bf16.gmra.mxu0 %v896
  %v1934 = vpop.f32.mrf.mxu0
  %v1935 = vadd.f32 0.0, %v1934
  %v1936 = vpop.f32.mrf.mxu0
  %v1937 = vpop.f32.mrf.mxu0
  %v1938 = vadd.f32 0.0, %v1937
  %v1939 = vpop.f32.mrf.mxu0
  %1940 = vmatprep.mubr.bf16.mxu0 0
  %1941 = vmatmul.mubr.bf16.gmra.mxu0 %v897
  %v1942 = vpop.f32.mrf.mxu0
  %v1943 = vadd.f32 0.0, %v1942
  %v1944 = vpop.f32.mrf.mxu0
  %v1945 = vpop.f32.mrf.mxu0
  %v1946 = vadd.f32 0.0, %v1945
  %v1947 = vpop.f32.mrf.mxu0
  %1948 = vmatprep.mubr.bf16.mxu0 0
  %1949 = vmatmul.mubr.bf16.gmra.mxu0 %v898
  %v1950 = vpop.f32.mrf.mxu0
  %v1951 = vadd.f32 0.0, %v1950
  %v1952 = vpop.f32.mrf.mxu0
  %v1953 = vpop.f32.mrf.mxu0
  %v1954 = vadd.f32 0.0, %v1953
  %v1955 = vpop.f32.mrf.mxu0
  %1956 = vmatprep.mubr.bf16.mxu0 0
  %1957 = vmatmul.mubr.bf16.gmra.mxu0 %v899
  %v1958 = vpop.f32.mrf.mxu0
  %v1959 = vadd.f32 0.0, %v1958
  %v1960 = vpop.f32.mrf.mxu0
  %v1961 = vpop.f32.mrf.mxu0
  %v1962 = vadd.f32 0.0, %v1961
  %v1963 = vpop.f32.mrf.mxu0
  %1964 = vmatprep.mubr.bf16.mxu0 0
  %1965 = vmatmul.mubr.bf16.gmra.mxu0 %v900
  %v1966 = vpop.f32.mrf.mxu0
  %v1967 = vadd.f32 0.0, %v1966
  %v1968 = vpop.f32.mrf.mxu0
  %v1969 = vpop.f32.mrf.mxu0
  %v1970 = vadd.f32 0.0, %v1969
  %v1971 = vpop.f32.mrf.mxu0
  %1972 = vmatprep.mubr.bf16.mxu0 0
  %1973 = vmatmul.mubr.bf16.gmra.mxu0 %v901
  %v1974 = vpop.f32.mrf.mxu0
  %v1975 = vadd.f32 0.0, %v1974
  %v1976 = vpop.f32.mrf.mxu0
  %v1977 = vpop.f32.mrf.mxu0
  %v1978 = vadd.f32 0.0, %v1977
  %v1979 = vpop.f32.mrf.mxu0
  %1980 = vmatprep.mubr.bf16.mxu0 0
  %1981 = vmatmul.mubr.bf16.gmra.mxu0 %v902
  %v1982 = vpop.f32.mrf.mxu0
  %v1983 = vadd.f32 0.0, %v1982
  %v1984 = vpop.f32.mrf.mxu0
  %v1985 = vpop.f32.mrf.mxu0
  %v1986 = vadd.f32 0.0, %v1985
  %v1987 = vpop.f32.mrf.mxu0
  %1988 = vmatprep.mubr.bf16.mxu0 0
  %1989 = vmatmul.mubr.bf16.gmra.mxu0 %v903
  %v1990 = vpop.f32.mrf.mxu0
  %v1991 = vadd.f32 0.0, %v1990
  %v1992 = vpop.f32.mrf.mxu0
  %v1993 = vpop.f32.mrf.mxu0
  %v1994 = vadd.f32 0.0, %v1993
  %v1995 = vpop.f32.mrf.mxu0
  %1996 = vmatprep.mubr.bf16.mxu0 0
  %1997 = vmatmul.mubr.bf16.gmra.mxu0 %v904
  %v1998 = vpop.f32.mrf.mxu0
  %v1999 = vadd.f32 0.0, %v1998
  %v2000 = vpop.f32.mrf.mxu0
  %v2001 = vpop.f32.mrf.mxu0
  %v2002 = vadd.f32 0.0, %v2001
  %v2003 = vpop.f32.mrf.mxu0
  %2004 = vmatprep.mubr.bf16.mxu0 0
  %2005 = vmatmul.mubr.bf16.gmra.mxu0 %v905
  %v2006 = vpop.f32.mrf.mxu0
  %v2007 = vadd.f32 0.0, %v2006
  %v2008 = vpop.f32.mrf.mxu0
  %v2009 = vpop.f32.mrf.mxu0
  %v2010 = vadd.f32 0.0, %v2009
  %v2011 = vpop.f32.mrf.mxu0
  %2012 = vmatprep.mubr.bf16.mxu0 0
  %2013 = vmatmul.mubr.bf16.gmra.mxu0 %v906
  %v2014 = vpop.f32.mrf.mxu0
  %v2015 = vadd.f32 0.0, %v2014
  %v2016 = vpop.f32.mrf.mxu0
  %v2017 = vpop.f32.mrf.mxu0
  %v2018 = vadd.f32 0.0, %v2017
  %v2019 = vpop.f32.mrf.mxu0
  %2020 = vmatprep.mubr.bf16.mxu0 0
  %2021 = vmatmul.mubr.bf16.gmra.mxu0 %v907
  %v2022 = vpop.f32.mrf.mxu0
  %v2023 = vadd.f32 0.0, %v2022
  %v2024 = vpop.f32.mrf.mxu0
  %v2025 = vpop.f32.mrf.mxu0
  %v2026 = vadd.f32 0.0, %v2025
  %v2027 = vpop.f32.mrf.mxu0
  %2028 = vmatprep.mubr.bf16.mxu0 0
  %2029 = vmatmul.mubr.bf16.gmra.mxu0 %v908
  %v2030 = vpop.f32.mrf.mxu0
  %v2031 = vadd.f32 0.0, %v2030
  %v2032 = vpop.f32.mrf.mxu0
  %v2033 = vpop.f32.mrf.mxu0
  %v2034 = vadd.f32 0.0, %v2033
  %v2035 = vpop.f32.mrf.mxu0
  %2036 = vmatprep.mubr.bf16.mxu0 0
  %2037 = vmatmul.mubr.bf16.gmra.mxu0 %v909
  %v2038 = vpop.f32.mrf.mxu0
  %v2039 = vadd.f32 0.0, %v2038
  %v2040 = vpop.f32.mrf.mxu0
  %v2041 = vpop.f32.mrf.mxu0
  %v2042 = vadd.f32 0.0, %v2041
  %v2043 = vpop.f32.mrf.mxu0
  %2044 = vmatprep.mubr.bf16.mxu0 0
  %2045 = vmatmul.mubr.bf16.gmra.mxu0 %v910
  %v2046 = vpop.f32.mrf.mxu0
  %v2047 = vadd.f32 0.0, %v2046
  %v2048 = vpop.f32.mrf.mxu0
  %v2049 = vpop.f32.mrf.mxu0
  %v2050 = vadd.f32 0.0, %v2049
  %v2051 = vpop.f32.mrf.mxu0
  %2052 = vmatprep.mubr.bf16.mxu0 0
  %2053 = vmatmul.mubr.bf16.gmra.mxu0 %v911
  %v2054 = vpop.f32.mrf.mxu0
  %v2055 = vadd.f32 0.0, %v2054
  %v2056 = vpop.f32.mrf.mxu0
  %v2057 = vpop.f32.mrf.mxu0
  %v2058 = vadd.f32 0.0, %v2057
  %v2059 = vpop.f32.mrf.mxu0
  %2060 = vmatprep.mubr.bf16.mxu0 0
  %2061 = vmatmul.mubr.bf16.gmra.mxu0 %v912
  %v2062 = vpop.f32.mrf.mxu0
  %v2063 = vadd.f32 0.0, %v2062
  %v2064 = vpop.f32.mrf.mxu0
  %v2065 = vpop.f32.mrf.mxu0
  %v2066 = vadd.f32 0.0, %v2065
  %v2067 = vpop.f32.mrf.mxu0
  %2068 = vmatprep.mubr.bf16.mxu0 0
  %2069 = vmatmul.mubr.bf16.gmra.mxu0 %v913
  %v2070 = vpop.f32.mrf.mxu0
  %v2071 = vadd.f32 0.0, %v2070
  %v2072 = vpop.f32.mrf.mxu0
  %v2073 = vpop.f32.mrf.mxu0
  %v2074 = vadd.f32 0.0, %v2073
  %v2075 = vpop.f32.mrf.mxu0
  %2076 = vmatprep.mubr.bf16.mxu0 0
  %2077 = vmatmul.mubr.bf16.gmra.mxu0 %v914
  %v2078 = vpop.f32.mrf.mxu0
  %v2079 = vadd.f32 0.0, %v2078
  %v2080 = vpop.f32.mrf.mxu0
  %v2081 = vpop.f32.mrf.mxu0
  %v2082 = vadd.f32 0.0, %v2081
  %v2083 = vpop.f32.mrf.mxu0
  %2084 = vmatprep.mubr.bf16.mxu0 0
  %2085 = vmatmul.mubr.bf16.gmra.mxu0 %v915
  %v2086 = vpop.f32.mrf.mxu0
  %v2087 = vadd.f32 0.0, %v2086
  %v2088 = vpop.f32.mrf.mxu0
  %v2089 = vpop.f32.mrf.mxu0
  %v2090 = vadd.f32 0.0, %v2089
  %v2091 = vpop.f32.mrf.mxu0
  %2092 = vmatprep.mubr.bf16.mxu0 0
  %2093 = vmatmul.mubr.bf16.gmra.mxu0 %v916
  %v2094 = vpop.f32.mrf.mxu0
  %v2095 = vadd.f32 0.0, %v2094
  %v2096 = vpop.f32.mrf.mxu0
  %v2097 = vpop.f32.mrf.mxu0
  %v2098 = vadd.f32 0.0, %v2097
  %v2099 = vpop.f32.mrf.mxu0
  %2100 = vmatprep.mubr.bf16.mxu0 0
  %2101 = vmatmul.mubr.bf16.gmra.mxu0 %v917
  %v2102 = vpop.f32.mrf.mxu0
  %v2103 = vadd.f32 0.0, %v2102
  %v2104 = vpop.f32.mrf.mxu0
  %v2105 = vpop.f32.mrf.mxu0
  %v2106 = vadd.f32 0.0, %v2105
  %v2107 = vpop.f32.mrf.mxu0
  %2108 = vmatprep.mubr.bf16.mxu0 0
  %2109 = vmatmul.mubr.bf16.gmra.mxu0 %v918
  %v2110 = vpop.f32.mrf.mxu0
  %v2111 = vadd.f32 0.0, %v2110
  %v2112 = vpop.f32.mrf.mxu0
  %v2113 = vpop.f32.mrf.mxu0
  %v2114 = vadd.f32 0.0, %v2113
  %v2115 = vpop.f32.mrf.mxu0
  %2116 = vmatprep.mubr.bf16.mxu0 0
  %2117 = vmatmul.mubr.bf16.gmra.mxu0 %v919
  %v2118 = vpop.f32.mrf.mxu0
  %v2119 = vadd.f32 0.0, %v2118
  %v2120 = vpop.f32.mrf.mxu0
  %v2121 = vpop.f32.mrf.mxu0
  %v2122 = vadd.f32 0.0, %v2121
  %v2123 = vpop.f32.mrf.mxu0
  %2124 = vmatprep.mubr.bf16.mxu0 0
  %2125 = vmatmul.mubr.bf16.gmra.mxu0 %v920
  %v2126 = vpop.f32.mrf.mxu0
  %v2127 = vadd.f32 0.0, %v2126
  %v2128 = vpop.f32.mrf.mxu0
  %v2129 = vpop.f32.mrf.mxu0
  %v2130 = vadd.f32 0.0, %v2129
  %v2131 = vpop.f32.mrf.mxu0
  %2132 = vmatprep.mubr.bf16.mxu0 0
  %2133 = vmatmul.mubr.bf16.gmra.mxu0 %v921
  %v2134 = vpop.f32.mrf.mxu0
  %v2135 = vadd.f32 0.0, %v2134
  %v2136 = vpop.f32.mrf.mxu0
  %v2137 = vpop.f32.mrf.mxu0
  %v2138 = vadd.f32 0.0, %v2137
  %v2139 = vpop.f32.mrf.mxu0
  %2140 = vmatprep.mubr.bf16.mxu0 0
  %2141 = vmatmul.mubr.bf16.gmra.mxu0 %v922
  %v2142 = vpop.f32.mrf.mxu0
  %v2143 = vadd.f32 0.0, %v2142
  %v2144 = vpop.f32.mrf.mxu0
  %v2145 = vpop.f32.mrf.mxu0
  %v2146 = vadd.f32 0.0, %v2145
  %v2147 = vpop.f32.mrf.mxu0
  %2148 = vmatprep.mubr.bf16.mxu0 0
  %2149 = vmatmul.mubr.bf16.gmra.mxu0 %v923
  %v2150 = vpop.f32.mrf.mxu0
  %v2151 = vadd.f32 0.0, %v2150
  %v2152 = vpop.f32.mrf.mxu0
  %v2153 = vpop.f32.mrf.mxu0
  %v2154 = vadd.f32 0.0, %v2153
  %v2155 = vpop.f32.mrf.mxu0
  %2156 = vdwg.mxu0
  %v2157 = vpack.c.bf16 %v1138, %v1135
  %v2158 = vpack.c.bf16 %v1146, %v1143
  %v2159 = vpack.c.bf16 %v1154, %v1151
  %v2160 = vpack.c.bf16 %v1162, %v1159
  %v2161 = vpack.c.bf16 %v1170, %v1167
  %v2162 = vpack.c.bf16 %v1178, %v1175
  %v2163 = vpack.c.bf16 %v1186, %v1183
  %v2164 = vpack.c.bf16 %v1194, %v1191
  %v2165 = vpack.c.bf16 %v1202, %v1199
  %v2166 = vpack.c.bf16 %v1210, %v1207
  %v2167 = vpack.c.bf16 %v1218, %v1215
  %v2168 = vpack.c.bf16 %v1226, %v1223
  %v2169 = vpack.c.bf16 %v1234, %v1231
  %v2170 = vpack.c.bf16 %v1242, %v1239
  %v2171 = vpack.c.bf16 %v1250, %v1247
  %v2172 = vpack.c.bf16 %v1258, %v1255
  %v2173 = vpack.c.bf16 %v1266, %v1263
  %v2174 = vpack.c.bf16 %v1274, %v1271
  %v2175 = vpack.c.bf16 %v1282, %v1279
  %v2176 = vpack.c.bf16 %v1290, %v1287
  %v2177 = vpack.c.bf16 %v1298, %v1295
  %v2178 = vpack.c.bf16 %v1306, %v1303
  %v2179 = vpack.c.bf16 %v1314, %v1311
  %v2180 = vpack.c.bf16 %v1322, %v1319
  %v2181 = vpack.c.bf16 %v1330, %v1327
  %v2182 = vpack.c.bf16 %v1338, %v1335
  %v2183 = vpack.c.bf16 %v1346, %v1343
  %v2184 = vpack.c.bf16 %v1354, %v1351
  %v2185 = vpack.c.bf16 %v1362, %v1359
  %v2186 = vpack.c.bf16 %v1370, %v1367
  %v2187 = vpack.c.bf16 %v1378, %v1375
  %v2188 = vpack.c.bf16 %v1386, %v1383
  %v2189 = vpack.c.bf16 %v1394, %v1391
  %v2190 = vpack.c.bf16 %v1402, %v1399
  %v2191 = vpack.c.bf16 %v1410, %v1407
  %v2192 = vpack.c.bf16 %v1418, %v1415
  %v2193 = vpack.c.bf16 %v1426, %v1423
  %v2194 = vpack.c.bf16 %v1434, %v1431
  %v2195 = vpack.c.bf16 %v1442, %v1439
  %v2196 = vpack.c.bf16 %v1450, %v1447
  %v2197 = vpack.c.bf16 %v1458, %v1455
  %v2198 = vpack.c.bf16 %v1466, %v1463
  %v2199 = vpack.c.bf16 %v1474, %v1471
  %v2200 = vpack.c.bf16 %v1482, %v1479
  %v2201 = vpack.c.bf16 %v1490, %v1487
  %v2202 = vpack.c.bf16 %v1498, %v1495
  %v2203 = vpack.c.bf16 %v1506, %v1503
  %v2204 = vpack.c.bf16 %v1514, %v1511
  %v2205 = vpack.c.bf16 %v1522, %v1519
  %v2206 = vpack.c.bf16 %v1530, %v1527
  %v2207 = vpack.c.bf16 %v1538, %v1535
  %v2208 = vpack.c.bf16 %v1546, %v1543
  %v2209 = vpack.c.bf16 %v1554, %v1551
  %v2210 = vpack.c.bf16 %v1562, %v1559
  %v2211 = vpack.c.bf16 %v1570, %v1567
  %v2212 = vpack.c.bf16 %v1578, %v1575
  %v2213 = vpack.c.bf16 %v1586, %v1583
  %v2214 = vpack.c.bf16 %v1594, %v1591
  %v2215 = vpack.c.bf16 %v1602, %v1599
  %v2216 = vpack.c.bf16 %v1610, %v1607
  %v2217 = vpack.c.bf16 %v1618, %v1615
  %v2218 = vpack.c.bf16 %v1626, %v1623
  %v2219 = vpack.c.bf16 %v1634, %v1631
  %v2220 = vpack.c.bf16 %v1642, %v1639
  %v2221 = vpack.c.bf16 %v1650, %v1647
  %v2222 = vpack.c.bf16 %v1658, %v1655
  %v2223 = vpack.c.bf16 %v1666, %v1663
  %v2224 = vpack.c.bf16 %v1674, %v1671
  %v2225 = vpack.c.bf16 %v1682, %v1679
  %v2226 = vpack.c.bf16 %v1690, %v1687
  %v2227 = vpack.c.bf16 %v1698, %v1695
  %v2228 = vpack.c.bf16 %v1706, %v1703
  %v2229 = vpack.c.bf16 %v1714, %v1711
  %v2230 = vpack.c.bf16 %v1722, %v1719
  %v2231 = vpack.c.bf16 %v1730, %v1727
  %v2232 = vpack.c.bf16 %v1738, %v1735
  %v2233 = vpack.c.bf16 %v1746, %v1743
  %v2234 = vpack.c.bf16 %v1754, %v1751
  %v2235 = vpack.c.bf16 %v1762, %v1759
  %v2236 = vpack.c.bf16 %v1770, %v1767
  %v2237 = vpack.c.bf16 %v1778, %v1775
  %v2238 = vpack.c.bf16 %v1786, %v1783
  %v2239 = vpack.c.bf16 %v1794, %v1791
  %v2240 = vpack.c.bf16 %v1802, %v1799
  %v2241 = vpack.c.bf16 %v1810, %v1807
  %v2242 = vpack.c.bf16 %v1818, %v1815
  %v2243 = vpack.c.bf16 %v1826, %v1823
  %v2244 = vpack.c.bf16 %v1834, %v1831
  %v2245 = vpack.c.bf16 %v1842, %v1839
  %v2246 = vpack.c.bf16 %v1850, %v1847
  %v2247 = vpack.c.bf16 %v1858, %v1855
  %v2248 = vpack.c.bf16 %v1866, %v1863
  %v2249 = vpack.c.bf16 %v1874, %v1871
  %v2250 = vpack.c.bf16 %v1882, %v1879
  %v2251 = vpack.c.bf16 %v1890, %v1887
  %v2252 = vpack.c.bf16 %v1898, %v1895
  %v2253 = vpack.c.bf16 %v1906, %v1903
  %v2254 = vpack.c.bf16 %v1914, %v1911
  %v2255 = vpack.c.bf16 %v1922, %v1919
  %v2256 = vpack.c.bf16 %v1930, %v1927
  %v2257 = vpack.c.bf16 %v1938, %v1935
  %v2258 = vpack.c.bf16 %v1946, %v1943
  %v2259 = vpack.c.bf16 %v1954, %v1951
  %v2260 = vpack.c.bf16 %v1962, %v1959
  %v2261 = vpack.c.bf16 %v1970, %v1967
  %v2262 = vpack.c.bf16 %v1978, %v1975
  %v2263 = vpack.c.bf16 %v1986, %v1983
  %v2264 = vpack.c.bf16 %v1994, %v1991
  %v2265 = vpack.c.bf16 %v2002, %v1999
  %v2266 = vpack.c.bf16 %v2010, %v2007
  %v2267 = vpack.c.bf16 %v2018, %v2015
  %v2268 = vpack.c.bf16 %v2026, %v2023
  %v2269 = vpack.c.bf16 %v2034, %v2031
  %v2270 = vpack.c.bf16 %v2042, %v2039
  %v2271 = vpack.c.bf16 %v2050, %v2047
  %v2272 = vpack.c.bf16 %v2058, %v2055
  %v2273 = vpack.c.bf16 %v2066, %v2063
  %v2274 = vpack.c.bf16 %v2074, %v2071
  %v2275 = vpack.c.bf16 %v2082, %v2079
  %v2276 = vpack.c.bf16 %v2090, %v2087
  %v2277 = vpack.c.bf16 %v2098, %v2095
  %v2278 = vpack.c.bf16 %v2106, %v2103
  %v2279 = vpack.c.bf16 %v2114, %v2111
  %v2280 = vpack.c.bf16 %v2122, %v2119
  %v2281 = vpack.c.bf16 %v2130, %v2127
  %v2282 = vpack.c.bf16 %v2138, %v2135
  %v2283 = vpack.c.bf16 %v2146, %v2143
  %v2284 = vpack.c.bf16 %v2154, %v2151
  %v2413 = vunpack.c.l.b16 %v2157
  %v2414 = vunpack.c.h.b16 %v2157
  %v2415 = vunpack.c.l.b16 %v2158
  %v2416 = vunpack.c.h.b16 %v2158
  %v2417 = vunpack.c.l.b16 %v2159
  %v2418 = vunpack.c.h.b16 %v2159
  %v2419 = vunpack.c.l.b16 %v2160
  %v2420 = vunpack.c.h.b16 %v2160
  %v2421 = vunpack.c.l.b16 %v2161
  %v2422 = vunpack.c.h.b16 %v2161
  %v2423 = vunpack.c.l.b16 %v2162
  %v2424 = vunpack.c.h.b16 %v2162
  %v2425 = vunpack.c.l.b16 %v2163
  %v2426 = vunpack.c.h.b16 %v2163
  %v2427 = vunpack.c.l.b16 %v2164
  %v2428 = vunpack.c.h.b16 %v2164
  %v2429 = vunpack.c.l.b16 %v2165
  %v2430 = vunpack.c.h.b16 %v2165
  %v2431 = vunpack.c.l.b16 %v2166
  %v2432 = vunpack.c.h.b16 %v2166
  %v2433 = vunpack.c.l.b16 %v2167
  %v2434 = vunpack.c.h.b16 %v2167
  %v2435 = vunpack.c.l.b16 %v2168
  %v2436 = vunpack.c.h.b16 %v2168
  %v2437 = vunpack.c.l.b16 %v2169
  %v2438 = vunpack.c.h.b16 %v2169
  %v2439 = vunpack.c.l.b16 %v2170
  %v2440 = vunpack.c.h.b16 %v2170
  %v2441 = vunpack.c.l.b16 %v2171
  %v2442 = vunpack.c.h.b16 %v2171
  %v2443 = vunpack.c.l.b16 %v2172
  %v2444 = vunpack.c.h.b16 %v2172
  %v2445 = vunpack.c.l.b16 %v2173
  %v2446 = vunpack.c.h.b16 %v2173
  %v2447 = vunpack.c.l.b16 %v2174
  %v2448 = vunpack.c.h.b16 %v2174
  %v2449 = vunpack.c.l.b16 %v2175
  %v2450 = vunpack.c.h.b16 %v2175
  %v2451 = vunpack.c.l.b16 %v2176
  %v2452 = vunpack.c.h.b16 %v2176
  %v2453 = vunpack.c.l.b16 %v2177
  %v2454 = vunpack.c.h.b16 %v2177
  %v2455 = vunpack.c.l.b16 %v2178
  %v2456 = vunpack.c.h.b16 %v2178
  %v2457 = vunpack.c.l.b16 %v2179
  %v2458 = vunpack.c.h.b16 %v2179
  %v2459 = vunpack.c.l.b16 %v2180
  %v2460 = vunpack.c.h.b16 %v2180
  %v2461 = vunpack.c.l.b16 %v2181
  %v2462 = vunpack.c.h.b16 %v2181
  %v2463 = vunpack.c.l.b16 %v2182
  %v2464 = vunpack.c.h.b16 %v2182
  %v2465 = vunpack.c.l.b16 %v2183
  %v2466 = vunpack.c.h.b16 %v2183
  %v2467 = vunpack.c.l.b16 %v2184
  %v2468 = vunpack.c.h.b16 %v2184
  %v2469 = vunpack.c.l.b16 %v2185
  %v2470 = vunpack.c.h.b16 %v2185
  %v2471 = vunpack.c.l.b16 %v2186
  %v2472 = vunpack.c.h.b16 %v2186
  %v2473 = vunpack.c.l.b16 %v2187
  %v2474 = vunpack.c.h.b16 %v2187
  %v2475 = vunpack.c.l.b16 %v2188
  %v2476 = vunpack.c.h.b16 %v2188
  %v2477 = vunpack.c.l.b16 %v2189
  %v2478 = vunpack.c.h.b16 %v2189
  %v2479 = vunpack.c.l.b16 %v2190
  %v2480 = vunpack.c.h.b16 %v2190
  %v2481 = vunpack.c.l.b16 %v2191
  %v2482 = vunpack.c.h.b16 %v2191
  %v2483 = vunpack.c.l.b16 %v2192
  %v2484 = vunpack.c.h.b16 %v2192
  %v2485 = vunpack.c.l.b16 %v2193
  %v2486 = vunpack.c.h.b16 %v2193
  %v2487 = vunpack.c.l.b16 %v2194
  %v2488 = vunpack.c.h.b16 %v2194
  %v2489 = vunpack.c.l.b16 %v2195
  %v2490 = vunpack.c.h.b16 %v2195
  %v2491 = vunpack.c.l.b16 %v2196
  %v2492 = vunpack.c.h.b16 %v2196
  %v2493 = vunpack.c.l.b16 %v2197
  %v2494 = vunpack.c.h.b16 %v2197
  %v2495 = vunpack.c.l.b16 %v2198
  %v2496 = vunpack.c.h.b16 %v2198
  %v2497 = vunpack.c.l.b16 %v2199
  %v2498 = vunpack.c.h.b16 %v2199
  %v2499 = vunpack.c.l.b16 %v2200
  %v2500 = vunpack.c.h.b16 %v2200
  %v2501 = vunpack.c.l.b16 %v2201
  %v2502 = vunpack.c.h.b16 %v2201
  %v2503 = vunpack.c.l.b16 %v2202
  %v2504 = vunpack.c.h.b16 %v2202
  %v2505 = vunpack.c.l.b16 %v2203
  %v2506 = vunpack.c.h.b16 %v2203
  %v2507 = vunpack.c.l.b16 %v2204
  %v2508 = vunpack.c.h.b16 %v2204
  %v2509 = vunpack.c.l.b16 %v2205
  %v2510 = vunpack.c.h.b16 %v2205
  %v2511 = vunpack.c.l.b16 %v2206
  %v2512 = vunpack.c.h.b16 %v2206
  %v2513 = vunpack.c.l.b16 %v2207
  %v2514 = vunpack.c.h.b16 %v2207
  %v2515 = vunpack.c.l.b16 %v2208
  %v2516 = vunpack.c.h.b16 %v2208
  %v2517 = vunpack.c.l.b16 %v2209
  %v2518 = vunpack.c.h.b16 %v2209
  %v2519 = vunpack.c.l.b16 %v2210
  %v2520 = vunpack.c.h.b16 %v2210
  %v2521 = vunpack.c.l.b16 %v2211
  %v2522 = vunpack.c.h.b16 %v2211
  %v2523 = vunpack.c.l.b16 %v2212
  %v2524 = vunpack.c.h.b16 %v2212
  %v2525 = vunpack.c.l.b16 %v2213
  %v2526 = vunpack.c.h.b16 %v2213
  %v2527 = vunpack.c.l.b16 %v2214
  %v2528 = vunpack.c.h.b16 %v2214
  %v2529 = vunpack.c.l.b16 %v2215
  %v2530 = vunpack.c.h.b16 %v2215
  %v2531 = vunpack.c.l.b16 %v2216
  %v2532 = vunpack.c.h.b16 %v2216
  %v2533 = vunpack.c.l.b16 %v2217
  %v2534 = vunpack.c.h.b16 %v2217
  %v2535 = vunpack.c.l.b16 %v2218
  %v2536 = vunpack.c.h.b16 %v2218
  %v2537 = vunpack.c.l.b16 %v2219
  %v2538 = vunpack.c.h.b16 %v2219
  %v2539 = vunpack.c.l.b16 %v2220
  %v2540 = vunpack.c.h.b16 %v2220
  %v2541 = vunpack.c.l.b16 %v2221
  %v2542 = vunpack.c.h.b16 %v2221
  %v2543 = vunpack.c.l.b16 %v2222
  %v2544 = vunpack.c.h.b16 %v2222
  %v2545 = vunpack.c.l.b16 %v2223
  %v2546 = vunpack.c.h.b16 %v2223
  %v2547 = vunpack.c.l.b16 %v2224
  %v2548 = vunpack.c.h.b16 %v2224
  %v2549 = vunpack.c.l.b16 %v2225
  %v2550 = vunpack.c.h.b16 %v2225
  %v2551 = vunpack.c.l.b16 %v2226
  %v2552 = vunpack.c.h.b16 %v2226
  %v2553 = vunpack.c.l.b16 %v2227
  %v2554 = vunpack.c.h.b16 %v2227
  %v2555 = vunpack.c.l.b16 %v2228
  %v2556 = vunpack.c.h.b16 %v2228
  %v2557 = vunpack.c.l.b16 %v2229
  %v2558 = vunpack.c.h.b16 %v2229
  %v2559 = vunpack.c.l.b16 %v2230
  %v2560 = vunpack.c.h.b16 %v2230
  %v2561 = vunpack.c.l.b16 %v2231
  %v2562 = vunpack.c.h.b16 %v2231
  %v2563 = vunpack.c.l.b16 %v2232
  %v2564 = vunpack.c.h.b16 %v2232
  %v2565 = vunpack.c.l.b16 %v2233
  %v2566 = vunpack.c.h.b16 %v2233
  %v2567 = vunpack.c.l.b16 %v2234
  %v2568 = vunpack.c.h.b16 %v2234
  %v2569 = vunpack.c.l.b16 %v2235
  %v2570 = vunpack.c.h.b16 %v2235
  %v2571 = vunpack.c.l.b16 %v2236
  %v2572 = vunpack.c.h.b16 %v2236
  %v2573 = vunpack.c.l.b16 %v2237
  %v2574 = vunpack.c.h.b16 %v2237
  %v2575 = vunpack.c.l.b16 %v2238
  %v2576 = vunpack.c.h.b16 %v2238
  %v2577 = vunpack.c.l.b16 %v2239
  %v2578 = vunpack.c.h.b16 %v2239
  %v2579 = vunpack.c.l.b16 %v2240
  %v2580 = vunpack.c.h.b16 %v2240
  %v2581 = vunpack.c.l.b16 %v2241
  %v2582 = vunpack.c.h.b16 %v2241
  %v2583 = vunpack.c.l.b16 %v2242
  %v2584 = vunpack.c.h.b16 %v2242
  %v2585 = vunpack.c.l.b16 %v2243
  %v2586 = vunpack.c.h.b16 %v2243
  %v2587 = vunpack.c.l.b16 %v2244
  %v2588 = vunpack.c.h.b16 %v2244
  %v2589 = vunpack.c.l.b16 %v2245
  %v2590 = vunpack.c.h.b16 %v2245
  %v2591 = vunpack.c.l.b16 %v2246
  %v2592 = vunpack.c.h.b16 %v2246
  %v2593 = vunpack.c.l.b16 %v2247
  %v2594 = vunpack.c.h.b16 %v2247
  %v2595 = vunpack.c.l.b16 %v2248
  %v2596 = vunpack.c.h.b16 %v2248
  %v2597 = vunpack.c.l.b16 %v2249
  %v2598 = vunpack.c.h.b16 %v2249
  %v2599 = vunpack.c.l.b16 %v2250
  %v2600 = vunpack.c.h.b16 %v2250
  %v2601 = vunpack.c.l.b16 %v2251
  %v2602 = vunpack.c.h.b16 %v2251
  %v2603 = vunpack.c.l.b16 %v2252
  %v2604 = vunpack.c.h.b16 %v2252
  %v2605 = vunpack.c.l.b16 %v2253
  %v2606 = vunpack.c.h.b16 %v2253
  %v2607 = vunpack.c.l.b16 %v2254
  %v2608 = vunpack.c.h.b16 %v2254
  %v2609 = vunpack.c.l.b16 %v2255
  %v2610 = vunpack.c.h.b16 %v2255
  %v2611 = vunpack.c.l.b16 %v2256
  %v2612 = vunpack.c.h.b16 %v2256
  %v2613 = vunpack.c.l.b16 %v2257
  %v2614 = vunpack.c.h.b16 %v2257
  %v2615 = vunpack.c.l.b16 %v2258
  %v2616 = vunpack.c.h.b16 %v2258
  %v2617 = vunpack.c.l.b16 %v2259
  %v2618 = vunpack.c.h.b16 %v2259
  %v2619 = vunpack.c.l.b16 %v2260
  %v2620 = vunpack.c.h.b16 %v2260
  %v2621 = vunpack.c.l.b16 %v2261
  %v2622 = vunpack.c.h.b16 %v2261
  %v2623 = vunpack.c.l.b16 %v2262
  %v2624 = vunpack.c.h.b16 %v2262
  %v2625 = vunpack.c.l.b16 %v2263
  %v2626 = vunpack.c.h.b16 %v2263
  %v2627 = vunpack.c.l.b16 %v2264
  %v2628 = vunpack.c.h.b16 %v2264
  %v2629 = vunpack.c.l.b16 %v2265
  %v2630 = vunpack.c.h.b16 %v2265
  %v2631 = vunpack.c.l.b16 %v2266
  %v2632 = vunpack.c.h.b16 %v2266
  %v2633 = vunpack.c.l.b16 %v2267
  %v2634 = vunpack.c.h.b16 %v2267
  %v2635 = vunpack.c.l.b16 %v2268
  %v2636 = vunpack.c.h.b16 %v2268
  %v2637 = vunpack.c.l.b16 %v2269
  %v2638 = vunpack.c.h.b16 %v2269
  %v2639 = vunpack.c.l.b16 %v2270
  %v2640 = vunpack.c.h.b16 %v2270
  %v2641 = vunpack.c.l.b16 %v2271
  %v2642 = vunpack.c.h.b16 %v2271
  %v2643 = vunpack.c.l.b16 %v2272
  %v2644 = vunpack.c.h.b16 %v2272
  %v2645 = vunpack.c.l.b16 %v2273
  %v2646 = vunpack.c.h.b16 %v2273
  %v2647 = vunpack.c.l.b16 %v2274
  %v2648 = vunpack.c.h.b16 %v2274
  %v2649 = vunpack.c.l.b16 %v2275
  %v2650 = vunpack.c.h.b16 %v2275
  %v2651 = vunpack.c.l.b16 %v2276
  %v2652 = vunpack.c.h.b16 %v2276
  %v2653 = vunpack.c.l.b16 %v2277
  %v2654 = vunpack.c.h.b16 %v2277
  %v2655 = vunpack.c.l.b16 %v2278
  %v2656 = vunpack.c.h.b16 %v2278
  %v2657 = vunpack.c.l.b16 %v2279
  %v2658 = vunpack.c.h.b16 %v2279
  %v2659 = vunpack.c.l.b16 %v2280
  %v2660 = vunpack.c.h.b16 %v2280
  %v2661 = vunpack.c.l.b16 %v2281
  %v2662 = vunpack.c.h.b16 %v2281
  %v2663 = vunpack.c.l.b16 %v2282
  %v2664 = vunpack.c.h.b16 %v2282
  %v2665 = vunpack.c.l.b16 %v2283
  %v2666 = vunpack.c.h.b16 %v2283
  %v2667 = vunpack.c.l.b16 %v2284
  %v2668 = vunpack.c.h.b16 %v2284
  %v2669 = vpack.c.b16 %v2413, %v2413
  %v2670 = vpack.c.b16 %v2414, %v2414
  %v2671 = vpack.c.b16 %v2415, %v2415
  %v2672 = vpack.c.b16 %v2416, %v2416
  %v2673 = vpack.c.b16 %v2417, %v2417
  %v2674 = vpack.c.b16 %v2418, %v2418
  %v2675 = vpack.c.b16 %v2419, %v2419
  %v2676 = vpack.c.b16 %v2420, %v2420
  %v2677 = vpack.c.b16 %v2421, %v2421
  %v2678 = vpack.c.b16 %v2422, %v2422
  %v2679 = vpack.c.b16 %v2423, %v2423
  %v2680 = vpack.c.b16 %v2424, %v2424
  %v2681 = vpack.c.b16 %v2425, %v2425
  %v2682 = vpack.c.b16 %v2426, %v2426
  %v2683 = vpack.c.b16 %v2427, %v2427
  %v2684 = vpack.c.b16 %v2428, %v2428
  %v2685 = vpack.c.b16 %v2429, %v2429
  %v2686 = vpack.c.b16 %v2430, %v2430
  %v2687 = vpack.c.b16 %v2431, %v2431
  %v2688 = vpack.c.b16 %v2432, %v2432
  %v2689 = vpack.c.b16 %v2433, %v2433
  %v2690 = vpack.c.b16 %v2434, %v2434
  %v2691 = vpack.c.b16 %v2435, %v2435
  %v2692 = vpack.c.b16 %v2436, %v2436
  %v2693 = vpack.c.b16 %v2437, %v2437
  %v2694 = vpack.c.b16 %v2438, %v2438
  %v2695 = vpack.c.b16 %v2439, %v2439
  %v2696 = vpack.c.b16 %v2440, %v2440
  %v2697 = vpack.c.b16 %v2441, %v2441
  %v2698 = vpack.c.b16 %v2442, %v2442
  %v2699 = vpack.c.b16 %v2443, %v2443
  %v2700 = vpack.c.b16 %v2444, %v2444
  %v2701 = vpack.c.b16 %v2445, %v2445
  %v2702 = vpack.c.b16 %v2446, %v2446
  %v2703 = vpack.c.b16 %v2447, %v2447
  %v2704 = vpack.c.b16 %v2448, %v2448
  %v2705 = vpack.c.b16 %v2449, %v2449
  %v2706 = vpack.c.b16 %v2450, %v2450
  %v2707 = vpack.c.b16 %v2451, %v2451
  %v2708 = vpack.c.b16 %v2452, %v2452
  %v2709 = vpack.c.b16 %v2453, %v2453
  %v2710 = vpack.c.b16 %v2454, %v2454
  %v2711 = vpack.c.b16 %v2455, %v2455
  %v2712 = vpack.c.b16 %v2456, %v2456
  %v2713 = vpack.c.b16 %v2457, %v2457
  %v2714 = vpack.c.b16 %v2458, %v2458
  %v2715 = vpack.c.b16 %v2459, %v2459
  %v2716 = vpack.c.b16 %v2460, %v2460
  %v2717 = vpack.c.b16 %v2461, %v2461
  %v2718 = vpack.c.b16 %v2462, %v2462
  %v2719 = vpack.c.b16 %v2463, %v2463
  %v2720 = vpack.c.b16 %v2464, %v2464
  %v2721 = vpack.c.b16 %v2465, %v2465
  %v2722 = vpack.c.b16 %v2466, %v2466
  %v2723 = vpack.c.b16 %v2467, %v2467
  %v2724 = vpack.c.b16 %v2468, %v2468
  %v2725 = vpack.c.b16 %v2469, %v2469
  %v2726 = vpack.c.b16 %v2470, %v2470
  %v2727 = vpack.c.b16 %v2471, %v2471
  %v2728 = vpack.c.b16 %v2472, %v2472
  %v2729 = vpack.c.b16 %v2473, %v2473
  %v2730 = vpack.c.b16 %v2474, %v2474
  %v2731 = vpack.c.b16 %v2475, %v2475
  %v2732 = vpack.c.b16 %v2476, %v2476
  %v2733 = vpack.c.b16 %v2477, %v2477
  %v2734 = vpack.c.b16 %v2478, %v2478
  %v2735 = vpack.c.b16 %v2479, %v2479
  %v2736 = vpack.c.b16 %v2480, %v2480
  %v2737 = vpack.c.b16 %v2481, %v2481
  %v2738 = vpack.c.b16 %v2482, %v2482
  %v2739 = vpack.c.b16 %v2483, %v2483
  %v2740 = vpack.c.b16 %v2484, %v2484
  %v2741 = vpack.c.b16 %v2485, %v2485
  %v2742 = vpack.c.b16 %v2486, %v2486
  %v2743 = vpack.c.b16 %v2487, %v2487
  %v2744 = vpack.c.b16 %v2488, %v2488
  %v2745 = vpack.c.b16 %v2489, %v2489
  %v2746 = vpack.c.b16 %v2490, %v2490
  %v2747 = vpack.c.b16 %v2491, %v2491
  %v2748 = vpack.c.b16 %v2492, %v2492
  %v2749 = vpack.c.b16 %v2493, %v2493
  %v2750 = vpack.c.b16 %v2494, %v2494
  %v2751 = vpack.c.b16 %v2495, %v2495
  %v2752 = vpack.c.b16 %v2496, %v2496
  %v2753 = vpack.c.b16 %v2497, %v2497
  %v2754 = vpack.c.b16 %v2498, %v2498
  %v2755 = vpack.c.b16 %v2499, %v2499
  %v2756 = vpack.c.b16 %v2500, %v2500
  %v2757 = vpack.c.b16 %v2501, %v2501
  %v2758 = vpack.c.b16 %v2502, %v2502
  %v2759 = vpack.c.b16 %v2503, %v2503
  %v2760 = vpack.c.b16 %v2504, %v2504
  %v2761 = vpack.c.b16 %v2505, %v2505
  %v2762 = vpack.c.b16 %v2506, %v2506
  %v2763 = vpack.c.b16 %v2507, %v2507
  %v2764 = vpack.c.b16 %v2508, %v2508
  %v2765 = vpack.c.b16 %v2509, %v2509
  %v2766 = vpack.c.b16 %v2510, %v2510
  %v2767 = vpack.c.b16 %v2511, %v2511
  %v2768 = vpack.c.b16 %v2512, %v2512
  %v2769 = vpack.c.b16 %v2513, %v2513
  %v2770 = vpack.c.b16 %v2514, %v2514
  %v2771 = vpack.c.b16 %v2515, %v2515
  %v2772 = vpack.c.b16 %v2516, %v2516
  %v2773 = vpack.c.b16 %v2517, %v2517
  %v2774 = vpack.c.b16 %v2518, %v2518
  %v2775 = vpack.c.b16 %v2519, %v2519
  %v2776 = vpack.c.b16 %v2520, %v2520
  %v2777 = vpack.c.b16 %v2521, %v2521
  %v2778 = vpack.c.b16 %v2522, %v2522
  %v2779 = vpack.c.b16 %v2523, %v2523
  %v2780 = vpack.c.b16 %v2524, %v2524
  %v2781 = vpack.c.b16 %v2525, %v2525
  %v2782 = vpack.c.b16 %v2526, %v2526
  %v2783 = vpack.c.b16 %v2527, %v2527
  %v2784 = vpack.c.b16 %v2528, %v2528
  %v2785 = vpack.c.b16 %v2529, %v2529
  %v2786 = vpack.c.b16 %v2530, %v2530
  %v2787 = vpack.c.b16 %v2531, %v2531
  %v2788 = vpack.c.b16 %v2532, %v2532
  %v2789 = vpack.c.b16 %v2533, %v2533
  %v2790 = vpack.c.b16 %v2534, %v2534
  %v2791 = vpack.c.b16 %v2535, %v2535
  %v2792 = vpack.c.b16 %v2536, %v2536
  %v2793 = vpack.c.b16 %v2537, %v2537
  %v2794 = vpack.c.b16 %v2538, %v2538
  %v2795 = vpack.c.b16 %v2539, %v2539
  %v2796 = vpack.c.b16 %v2540, %v2540
  %v2797 = vpack.c.b16 %v2541, %v2541
  %v2798 = vpack.c.b16 %v2542, %v2542
  %v2799 = vpack.c.b16 %v2543, %v2543
  %v2800 = vpack.c.b16 %v2544, %v2544
  %v2801 = vpack.c.b16 %v2545, %v2545
  %v2802 = vpack.c.b16 %v2546, %v2546
  %v2803 = vpack.c.b16 %v2547, %v2547
  %v2804 = vpack.c.b16 %v2548, %v2548
  %v2805 = vpack.c.b16 %v2549, %v2549
  %v2806 = vpack.c.b16 %v2550, %v2550
  %v2807 = vpack.c.b16 %v2551, %v2551
  %v2808 = vpack.c.b16 %v2552, %v2552
  %v2809 = vpack.c.b16 %v2553, %v2553
  %v2810 = vpack.c.b16 %v2554, %v2554
  %v2811 = vpack.c.b16 %v2555, %v2555
  %v2812 = vpack.c.b16 %v2556, %v2556
  %v2813 = vpack.c.b16 %v2557, %v2557
  %v2814 = vpack.c.b16 %v2558, %v2558
  %v2815 = vpack.c.b16 %v2559, %v2559
  %v2816 = vpack.c.b16 %v2560, %v2560
  %v2817 = vpack.c.b16 %v2561, %v2561
  %v2818 = vpack.c.b16 %v2562, %v2562
  %v2819 = vpack.c.b16 %v2563, %v2563
  %v2820 = vpack.c.b16 %v2564, %v2564
  %v2821 = vpack.c.b16 %v2565, %v2565
  %v2822 = vpack.c.b16 %v2566, %v2566
  %v2823 = vpack.c.b16 %v2567, %v2567
  %v2824 = vpack.c.b16 %v2568, %v2568
  %v2825 = vpack.c.b16 %v2569, %v2569
  %v2826 = vpack.c.b16 %v2570, %v2570
  %v2827 = vpack.c.b16 %v2571, %v2571
  %v2828 = vpack.c.b16 %v2572, %v2572
  %v2829 = vpack.c.b16 %v2573, %v2573
  %v2830 = vpack.c.b16 %v2574, %v2574
  %v2831 = vpack.c.b16 %v2575, %v2575
  %v2832 = vpack.c.b16 %v2576, %v2576
  %v2833 = vpack.c.b16 %v2577, %v2577
  %v2834 = vpack.c.b16 %v2578, %v2578
  %v2835 = vpack.c.b16 %v2579, %v2579
  %v2836 = vpack.c.b16 %v2580, %v2580
  %v2837 = vpack.c.b16 %v2581, %v2581
  %v2838 = vpack.c.b16 %v2582, %v2582
  %v2839 = vpack.c.b16 %v2583, %v2583
  %v2840 = vpack.c.b16 %v2584, %v2584
  %v2841 = vpack.c.b16 %v2585, %v2585
  %v2842 = vpack.c.b16 %v2586, %v2586
  %v2843 = vpack.c.b16 %v2587, %v2587
  %v2844 = vpack.c.b16 %v2588, %v2588
  %v2845 = vpack.c.b16 %v2589, %v2589
  %v2846 = vpack.c.b16 %v2590, %v2590
  %v2847 = vpack.c.b16 %v2591, %v2591
  %v2848 = vpack.c.b16 %v2592, %v2592
  %v2849 = vpack.c.b16 %v2593, %v2593
  %v2850 = vpack.c.b16 %v2594, %v2594
  %v2851 = vpack.c.b16 %v2595, %v2595
  %v2852 = vpack.c.b16 %v2596, %v2596
  %v2853 = vpack.c.b16 %v2597, %v2597
  %v2854 = vpack.c.b16 %v2598, %v2598
  %v2855 = vpack.c.b16 %v2599, %v2599
  %v2856 = vpack.c.b16 %v2600, %v2600
  %v2857 = vpack.c.b16 %v2601, %v2601
  %v2858 = vpack.c.b16 %v2602, %v2602
  %v2859 = vpack.c.b16 %v2603, %v2603
  %v2860 = vpack.c.b16 %v2604, %v2604
  %v2861 = vpack.c.b16 %v2605, %v2605
  %v2862 = vpack.c.b16 %v2606, %v2606
  %v2863 = vpack.c.b16 %v2607, %v2607
  %v2864 = vpack.c.b16 %v2608, %v2608
  %v2865 = vpack.c.b16 %v2609, %v2609
  %v2866 = vpack.c.b16 %v2610, %v2610
  %v2867 = vpack.c.b16 %v2611, %v2611
  %v2868 = vpack.c.b16 %v2612, %v2612
  %v2869 = vpack.c.b16 %v2613, %v2613
  %v2870 = vpack.c.b16 %v2614, %v2614
  %v2871 = vpack.c.b16 %v2615, %v2615
  %v2872 = vpack.c.b16 %v2616, %v2616
  %v2873 = vpack.c.b16 %v2617, %v2617
  %v2874 = vpack.c.b16 %v2618, %v2618
  %v2875 = vpack.c.b16 %v2619, %v2619
  %v2876 = vpack.c.b16 %v2620, %v2620
  %v2877 = vpack.c.b16 %v2621, %v2621
  %v2878 = vpack.c.b16 %v2622, %v2622
  %v2879 = vpack.c.b16 %v2623, %v2623
  %v2880 = vpack.c.b16 %v2624, %v2624
  %v2881 = vpack.c.b16 %v2625, %v2625
  %v2882 = vpack.c.b16 %v2626, %v2626
  %v2883 = vpack.c.b16 %v2627, %v2627
  %v2884 = vpack.c.b16 %v2628, %v2628
  %v2885 = vpack.c.b16 %v2629, %v2629
  %v2886 = vpack.c.b16 %v2630, %v2630
  %v2887 = vpack.c.b16 %v2631, %v2631
  %v2888 = vpack.c.b16 %v2632, %v2632
  %v2889 = vpack.c.b16 %v2633, %v2633
  %v2890 = vpack.c.b16 %v2634, %v2634
  %v2891 = vpack.c.b16 %v2635, %v2635
  %v2892 = vpack.c.b16 %v2636, %v2636
  %v2893 = vpack.c.b16 %v2637, %v2637
  %v2894 = vpack.c.b16 %v2638, %v2638
  %v2895 = vpack.c.b16 %v2639, %v2639
  %v2896 = vpack.c.b16 %v2640, %v2640
  %v2897 = vpack.c.b16 %v2641, %v2641
  %v2898 = vpack.c.b16 %v2642, %v2642
  %v2899 = vpack.c.b16 %v2643, %v2643
  %v2900 = vpack.c.b16 %v2644, %v2644
  %v2901 = vpack.c.b16 %v2645, %v2645
  %v2902 = vpack.c.b16 %v2646, %v2646
  %v2903 = vpack.c.b16 %v2647, %v2647
  %v2904 = vpack.c.b16 %v2648, %v2648
  %v2905 = vpack.c.b16 %v2649, %v2649
  %v2906 = vpack.c.b16 %v2650, %v2650
  %v2907 = vpack.c.b16 %v2651, %v2651
  %v2908 = vpack.c.b16 %v2652, %v2652
  %v2909 = vpack.c.b16 %v2653, %v2653
  %v2910 = vpack.c.b16 %v2654, %v2654
  %v2911 = vpack.c.b16 %v2655, %v2655
  %v2912 = vpack.c.b16 %v2656, %v2656
  %v2913 = vpack.c.b16 %v2657, %v2657
  %v2914 = vpack.c.b16 %v2658, %v2658
  %v2915 = vpack.c.b16 %v2659, %v2659
  %v2916 = vpack.c.b16 %v2660, %v2660
  %v2917 = vpack.c.b16 %v2661, %v2661
  %v2918 = vpack.c.b16 %v2662, %v2662
  %v2919 = vpack.c.b16 %v2663, %v2663
  %v2920 = vpack.c.b16 %v2664, %v2664
  %v2921 = vpack.c.b16 %v2665, %v2665
  %v2922 = vpack.c.b16 %v2666, %v2666
  %v2923 = vpack.c.b16 %v2667, %v2667
  %v2924 = vpack.c.b16 %v2668, %v2668
  %3181 = vst [vmem:[%s2] sm:$0xf] %v2669
  %3182 = vst [vmem:[%s2 + $0x4] sm:$0xf] %v2670
  %3183 = vst [vmem:[%s2 + $0x8] sm:$0xf] %v2671
  %3184 = vst [vmem:[%s2 + $0xc] sm:$0xf] %v2672
  %3185 = vst [vmem:[%s2 + $0x10] sm:$0xf] %v2673
  %3186 = vst [vmem:[%s2 + $0x14] sm:$0xf] %v2674
  %3187 = vst [vmem:[%s2 + $0x18] sm:$0xf] %v2675
  %3188 = vst [vmem:[%s2 + $0x1c] sm:$0xf] %v2676
  %3189 = vst [vmem:[%s2 + $0x20] sm:$0xf] %v2677
  %3190 = vst [vmem:[%s2 + $0x24] sm:$0xf] %v2678
  %3191 = vst [vmem:[%s2 + $0x28] sm:$0xf] %v2679
  %3192 = vst [vmem:[%s2 + $0x2c] sm:$0xf] %v2680
  %3193 = vst [vmem:[%s2 + $0x30] sm:$0xf] %v2681
  %3194 = vst [vmem:[%s2 + $0x34] sm:$0xf] %v2682
  %3195 = vst [vmem:[%s2 + $0x38] sm:$0xf] %v2683
  %3196 = vst [vmem:[%s2 + $0x3c] sm:$0xf] %v2684
  %3197 = vst [vmem:[%s2 + $0x40] sm:$0xf] %v2685
  %3198 = vst [vmem:[%s2 + $0x44] sm:$0xf] %v2686
  %3199 = vst [vmem:[%s2 + $0x48] sm:$0xf] %v2687
  %3200 = vst [vmem:[%s2 + $0x4c] sm:$0xf] %v2688
  %3201 = vst [vmem:[%s2 + $0x50] sm:$0xf] %v2689
  %3202 = vst [vmem:[%s2 + $0x54] sm:$0xf] %v2690
  %3203 = vst [vmem:[%s2 + $0x58] sm:$0xf] %v2691
  %3204 = vst [vmem:[%s2 + $0x5c] sm:$0xf] %v2692
  %3205 = vst [vmem:[%s2 + $0x60] sm:$0xf] %v2693
  %3206 = vst [vmem:[%s2 + $0x64] sm:$0xf] %v2694
  %3207 = vst [vmem:[%s2 + $0x68] sm:$0xf] %v2695
  %3208 = vst [vmem:[%s2 + $0x6c] sm:$0xf] %v2696
  %3209 = vst [vmem:[%s2 + $0x70] sm:$0xf] %v2697
  %3210 = vst [vmem:[%s2 + $0x74] sm:$0xf] %v2698
  %3211 = vst [vmem:[%s2 + $0x78] sm:$0xf] %v2699
  %3212 = vst [vmem:[%s2 + $0x7c] sm:$0xf] %v2700
  %3213 = vst [vmem:[%s2 + $0x80] sm:$0xf] %v2701
  %3214 = vst [vmem:[%s2 + $0x84] sm:$0xf] %v2702
  %3215 = vst [vmem:[%s2 + $0x88] sm:$0xf] %v2703
  %3216 = vst [vmem:[%s2 + $0x8c] sm:$0xf] %v2704
  %3217 = vst [vmem:[%s2 + $0x90] sm:$0xf] %v2705
  %3218 = vst [vmem:[%s2 + $0x94] sm:$0xf] %v2706
  %3219 = vst [vmem:[%s2 + $0x98] sm:$0xf] %v2707
  %3220 = vst [vmem:[%s2 + $0x9c] sm:$0xf] %v2708
  %3221 = vst [vmem:[%s2 + $0xa0] sm:$0xf] %v2709
  %3222 = vst [vmem:[%s2 + $0xa4] sm:$0xf] %v2710
  %3223 = vst [vmem:[%s2 + $0xa8] sm:$0xf] %v2711
  %3224 = vst [vmem:[%s2 + $0xac] sm:$0xf] %v2712
  %3225 = vst [vmem:[%s2 + $0xb0] sm:$0xf] %v2713
  %3226 = vst [vmem:[%s2 + $0xb4] sm:$0xf] %v2714
  %3227 = vst [vmem:[%s2 + $0xb8] sm:$0xf] %v2715
  %3228 = vst [vmem:[%s2 + $0xbc] sm:$0xf] %v2716
  %3229 = vst [vmem:[%s2 + $0xc0] sm:$0xf] %v2717
  %3230 = vst [vmem:[%s2 + $0xc4] sm:$0xf] %v2718
  %3231 = vst [vmem:[%s2 + $0xc8] sm:$0xf] %v2719
  %3232 = vst [vmem:[%s2 + $0xcc] sm:$0xf] %v2720
  %3233 = vst [vmem:[%s2 + $0xd0] sm:$0xf] %v2721
  %3234 = vst [vmem:[%s2 + $0xd4] sm:$0xf] %v2722
  %3235 = vst [vmem:[%s2 + $0xd8] sm:$0xf] %v2723
  %3236 = vst [vmem:[%s2 + $0xdc] sm:$0xf] %v2724
  %3237 = vst [vmem:[%s2 + $0xe0] sm:$0xf] %v2725
  %3238 = vst [vmem:[%s2 + $0xe4] sm:$0xf] %v2726
  %3239 = vst [vmem:[%s2 + $0xe8] sm:$0xf] %v2727
  %3240 = vst [vmem:[%s2 + $0xec] sm:$0xf] %v2728
  %3241 = vst [vmem:[%s2 + $0xf0] sm:$0xf] %v2729
  %3242 = vst [vmem:[%s2 + $0xf4] sm:$0xf] %v2730
  %3243 = vst [vmem:[%s2 + $0xf8] sm:$0xf] %v2731
  %3244 = vst [vmem:[%s2 + $0xfc] sm:$0xf] %v2732
  %3245 = vst [vmem:[%s2 + $0x100] sm:$0xf] %v2733
  %3246 = vst [vmem:[%s2 + $0x104] sm:$0xf] %v2734
  %3247 = vst [vmem:[%s2 + $0x108] sm:$0xf] %v2735
  %3248 = vst [vmem:[%s2 + $0x10c] sm:$0xf] %v2736
  %3249 = vst [vmem:[%s2 + $0x110] sm:$0xf] %v2737
  %3250 = vst [vmem:[%s2 + $0x114] sm:$0xf] %v2738
  %3251 = vst [vmem:[%s2 + $0x118] sm:$0xf] %v2739
  %3252 = vst [vmem:[%s2 + $0x11c] sm:$0xf] %v2740
  %3253 = vst [vmem:[%s2 + $0x120] sm:$0xf] %v2741
  %3254 = vst [vmem:[%s2 + $0x124] sm:$0xf] %v2742
  %3255 = vst [vmem:[%s2 + $0x128] sm:$0xf] %v2743
  %3256 = vst [vmem:[%s2 + $0x12c] sm:$0xf] %v2744
  %3257 = vst [vmem:[%s2 + $0x130] sm:$0xf] %v2745
  %3258 = vst [vmem:[%s2 + $0x134] sm:$0xf] %v2746
  %3259 = vst [vmem:[%s2 + $0x138] sm:$0xf] %v2747
  %3260 = vst [vmem:[%s2 + $0x13c] sm:$0xf] %v2748
  %3261 = vst [vmem:[%s2 + $0x140] sm:$0xf] %v2749
  %3262 = vst [vmem:[%s2 + $0x144] sm:$0xf] %v2750
  %3263 = vst [vmem:[%s2 + $0x148] sm:$0xf] %v2751
  %3264 = vst [vmem:[%s2 + $0x14c] sm:$0xf] %v2752
  %3265 = vst [vmem:[%s2 + $0x150] sm:$0xf] %v2753
  %3266 = vst [vmem:[%s2 + $0x154] sm:$0xf] %v2754
  %3267 = vst [vmem:[%s2 + $0x158] sm:$0xf] %v2755
  %3268 = vst [vmem:[%s2 + $0x15c] sm:$0xf] %v2756
  %3269 = vst [vmem:[%s2 + $0x160] sm:$0xf] %v2757
  %3270 = vst [vmem:[%s2 + $0x164] sm:$0xf] %v2758
  %3271 = vst [vmem:[%s2 + $0x168] sm:$0xf] %v2759
  %3272 = vst [vmem:[%s2 + $0x16c] sm:$0xf] %v2760
  %3273 = vst [vmem:[%s2 + $0x170] sm:$0xf] %v2761
  %3274 = vst [vmem:[%s2 + $0x174] sm:$0xf] %v2762
  %3275 = vst [vmem:[%s2 + $0x178] sm:$0xf] %v2763
  %3276 = vst [vmem:[%s2 + $0x17c] sm:$0xf] %v2764
  %3277 = vst [vmem:[%s2 + $0x180] sm:$0xf] %v2765
  %3278 = vst [vmem:[%s2 + $0x184] sm:$0xf] %v2766
  %3279 = vst [vmem:[%s2 + $0x188] sm:$0xf] %v2767
  %3280 = vst [vmem:[%s2 + $0x18c] sm:$0xf] %v2768
  %3281 = vst [vmem:[%s2 + $0x190] sm:$0xf] %v2769
  %3282 = vst [vmem:[%s2 + $0x194] sm:$0xf] %v2770
  %3283 = vst [vmem:[%s2 + $0x198] sm:$0xf] %v2771
  %3284 = vst [vmem:[%s2 + $0x19c] sm:$0xf] %v2772
  %3285 = vst [vmem:[%s2 + $0x1a0] sm:$0xf] %v2773
  %3286 = vst [vmem:[%s2 + $0x1a4] sm:$0xf] %v2774
  %3287 = vst [vmem:[%s2 + $0x1a8] sm:$0xf] %v2775
  %3288 = vst [vmem:[%s2 + $0x1ac] sm:$0xf] %v2776
  %3289 = vst [vmem:[%s2 + $0x1b0] sm:$0xf] %v2777
  %3290 = vst [vmem:[%s2 + $0x1b4] sm:$0xf] %v2778
  %3291 = vst [vmem:[%s2 + $0x1b8] sm:$0xf] %v2779
  %3292 = vst [vmem:[%s2 + $0x1bc] sm:$0xf] %v2780
  %3293 = vst [vmem:[%s2 + $0x1c0] sm:$0xf] %v2781
  %3294 = vst [vmem:[%s2 + $0x1c4] sm:$0xf] %v2782
  %3295 = vst [vmem:[%s2 + $0x1c8] sm:$0xf] %v2783
  %3296 = vst [vmem:[%s2 + $0x1cc] sm:$0xf] %v2784
  %3297 = vst [vmem:[%s2 + $0x1d0] sm:$0xf] %v2785
  %3298 = vst [vmem:[%s2 + $0x1d4] sm:$0xf] %v2786
  %3299 = vst [vmem:[%s2 + $0x1d8] sm:$0xf] %v2787
  %3300 = vst [vmem:[%s2 + $0x1dc] sm:$0xf] %v2788
  %3301 = vst [vmem:[%s2 + $0x1e0] sm:$0xf] %v2789
  %3302 = vst [vmem:[%s2 + $0x1e4] sm:$0xf] %v2790
  %3303 = vst [vmem:[%s2 + $0x1e8] sm:$0xf] %v2791
  %3304 = vst [vmem:[%s2 + $0x1ec] sm:$0xf] %v2792
  %3305 = vst [vmem:[%s2 + $0x1f0] sm:$0xf] %v2793
  %3306 = vst [vmem:[%s2 + $0x1f4] sm:$0xf] %v2794
  %3307 = vst [vmem:[%s2 + $0x1f8] sm:$0xf] %v2795
  %3308 = vst [vmem:[%s2 + $0x1fc] sm:$0xf] %v2796
  %3309 = vst [vmem:[%s2 + $0x200] sm:$0xf] %v2797
  %3310 = vst [vmem:[%s2 + $0x204] sm:$0xf] %v2798
  %3311 = vst [vmem:[%s2 + $0x208] sm:$0xf] %v2799
  %3312 = vst [vmem:[%s2 + $0x20c] sm:$0xf] %v2800
  %3313 = vst [vmem:[%s2 + $0x210] sm:$0xf] %v2801
  %3314 = vst [vmem:[%s2 + $0x214] sm:$0xf] %v2802
  %3315 = vst [vmem:[%s2 + $0x218] sm:$0xf] %v2803
  %3316 = vst [vmem:[%s2 + $0x21c] sm:$0xf] %v2804
  %3317 = vst [vmem:[%s2 + $0x220] sm:$0xf] %v2805
  %3318 = vst [vmem:[%s2 + $0x224] sm:$0xf] %v2806
  %3319 = vst [vmem:[%s2 + $0x228] sm:$0xf] %v2807
  %3320 = vst [vmem:[%s2 + $0x22c] sm:$0xf] %v2808
  %3321 = vst [vmem:[%s2 + $0x230] sm:$0xf] %v2809
  %3322 = vst [vmem:[%s2 + $0x234] sm:$0xf] %v2810
  %3323 = vst [vmem:[%s2 + $0x238] sm:$0xf] %v2811
  %3324 = vst [vmem:[%s2 + $0x23c] sm:$0xf] %v2812
  %3325 = vst [vmem:[%s2 + $0x240] sm:$0xf] %v2813
  %3326 = vst [vmem:[%s2 + $0x244] sm:$0xf] %v2814
  %3327 = vst [vmem:[%s2 + $0x248] sm:$0xf] %v2815
  %3328 = vst [vmem:[%s2 + $0x24c] sm:$0xf] %v2816
  %3329 = vst [vmem:[%s2 + $0x250] sm:$0xf] %v2817
  %3330 = vst [vmem:[%s2 + $0x254] sm:$0xf] %v2818
  %3331 = vst [vmem:[%s2 + $0x258] sm:$0xf] %v2819
  %3332 = vst [vmem:[%s2 + $0x25c] sm:$0xf] %v2820
  %3333 = vst [vmem:[%s2 + $0x260] sm:$0xf] %v2821
  %3334 = vst [vmem:[%s2 + $0x264] sm:$0xf] %v2822
  %3335 = vst [vmem:[%s2 + $0x268] sm:$0xf] %v2823
  %3336 = vst [vmem:[%s2 + $0x26c] sm:$0xf] %v2824
  %3337 = vst [vmem:[%s2 + $0x270] sm:$0xf] %v2825
  %3338 = vst [vmem:[%s2 + $0x274] sm:$0xf] %v2826
  %3339 = vst [vmem:[%s2 + $0x278] sm:$0xf] %v2827
  %3340 = vst [vmem:[%s2 + $0x27c] sm:$0xf] %v2828
  %3341 = vst [vmem:[%s2 + $0x280] sm:$0xf] %v2829
  %3342 = vst [vmem:[%s2 + $0x284] sm:$0xf] %v2830
  %3343 = vst [vmem:[%s2 + $0x288] sm:$0xf] %v2831
  %3344 = vst [vmem:[%s2 + $0x28c] sm:$0xf] %v2832
  %3345 = vst [vmem:[%s2 + $0x290] sm:$0xf] %v2833
  %3346 = vst [vmem:[%s2 + $0x294] sm:$0xf] %v2834
  %3347 = vst [vmem:[%s2 + $0x298] sm:$0xf] %v2835
  %3348 = vst [vmem:[%s2 + $0x29c] sm:$0xf] %v2836
  %3349 = vst [vmem:[%s2 + $0x2a0] sm:$0xf] %v2837
  %3350 = vst [vmem:[%s2 + $0x2a4] sm:$0xf] %v2838
  %3351 = vst [vmem:[%s2 + $0x2a8] sm:$0xf] %v2839
  %3352 = vst [vmem:[%s2 + $0x2ac] sm:$0xf] %v2840
  %3353 = vst [vmem:[%s2 + $0x2b0] sm:$0xf] %v2841
  %3354 = vst [vmem:[%s2 + $0x2b4] sm:$0xf] %v2842
  %3355 = vst [vmem:[%s2 + $0x2b8] sm:$0xf] %v2843
  %3356 = vst [vmem:[%s2 + $0x2bc] sm:$0xf] %v2844
  %3357 = vst [vmem:[%s2 + $0x2c0] sm:$0xf] %v2845
  %3358 = vst [vmem:[%s2 + $0x2c4] sm:$0xf] %v2846
  %3359 = vst [vmem:[%s2 + $0x2c8] sm:$0xf] %v2847
  %3360 = vst [vmem:[%s2 + $0x2cc] sm:$0xf] %v2848
  %3361 = vst [vmem:[%s2 + $0x2d0] sm:$0xf] %v2849
  %3362 = vst [vmem:[%s2 + $0x2d4] sm:$0xf] %v2850
  %3363 = vst [vmem:[%s2 + $0x2d8] sm:$0xf] %v2851
  %3364 = vst [vmem:[%s2 + $0x2dc] sm:$0xf] %v2852
  %3365 = vst [vmem:[%s2 + $0x2e0] sm:$0xf] %v2853
  %3366 = vst [vmem:[%s2 + $0x2e4] sm:$0xf] %v2854
  %3367 = vst [vmem:[%s2 + $0x2e8] sm:$0xf] %v2855
  %3368 = vst [vmem:[%s2 + $0x2ec] sm:$0xf] %v2856
  %3369 = vst [vmem:[%s2 + $0x2f0] sm:$0xf] %v2857
  %3370 = vst [vmem:[%s2 + $0x2f4] sm:$0xf] %v2858
  %3371 = vst [vmem:[%s2 + $0x2f8] sm:$0xf] %v2859
  %3372 = vst [vmem:[%s2 + $0x2fc] sm:$0xf] %v2860
  %3373 = vst [vmem:[%s2 + $0x300] sm:$0xf] %v2861
  %3374 = vst [vmem:[%s2 + $0x304] sm:$0xf] %v2862
  %3375 = vst [vmem:[%s2 + $0x308] sm:$0xf] %v2863
  %3376 = vst [vmem:[%s2 + $0x30c] sm:$0xf] %v2864
  %3377 = vst [vmem:[%s2 + $0x310] sm:$0xf] %v2865
  %3378 = vst [vmem:[%s2 + $0x314] sm:$0xf] %v2866
  %3379 = vst [vmem:[%s2 + $0x318] sm:$0xf] %v2867
  %3380 = vst [vmem:[%s2 + $0x31c] sm:$0xf] %v2868
  %3381 = vst [vmem:[%s2 + $0x320] sm:$0xf] %v2869
  %3382 = vst [vmem:[%s2 + $0x324] sm:$0xf] %v2870
  %3383 = vst [vmem:[%s2 + $0x328] sm:$0xf] %v2871
  %3384 = vst [vmem:[%s2 + $0x32c] sm:$0xf] %v2872
  %3385 = vst [vmem:[%s2 + $0x330] sm:$0xf] %v2873
  %3386 = vst [vmem:[%s2 + $0x334] sm:$0xf] %v2874
  %3387 = vst [vmem:[%s2 + $0x338] sm:$0xf] %v2875
  %3388 = vst [vmem:[%s2 + $0x33c] sm:$0xf] %v2876
  %3389 = vst [vmem:[%s2 + $0x340] sm:$0xf] %v2877
  %3390 = vst [vmem:[%s2 + $0x344] sm:$0xf] %v2878
  %3391 = vst [vmem:[%s2 + $0x348] sm:$0xf] %v2879
  %3392 = vst [vmem:[%s2 + $0x34c] sm:$0xf] %v2880
  %3393 = vst [vmem:[%s2 + $0x350] sm:$0xf] %v2881
  %3394 = vst [vmem:[%s2 + $0x354] sm:$0xf] %v2882
  %3395 = vst [vmem:[%s2 + $0x358] sm:$0xf] %v2883
  %3396 = vst [vmem:[%s2 + $0x35c] sm:$0xf] %v2884
  %3397 = vst [vmem:[%s2 + $0x360] sm:$0xf] %v2885
  %3398 = vst [vmem:[%s2 + $0x364] sm:$0xf] %v2886
  %3399 = vst [vmem:[%s2 + $0x368] sm:$0xf] %v2887
  %3400 = vst [vmem:[%s2 + $0x36c] sm:$0xf] %v2888
  %3401 = vst [vmem:[%s2 + $0x370] sm:$0xf] %v2889
  %3402 = vst [vmem:[%s2 + $0x374] sm:$0xf] %v2890
  %3403 = vst [vmem:[%s2 + $0x378] sm:$0xf] %v2891
  %3404 = vst [vmem:[%s2 + $0x37c] sm:$0xf] %v2892
  %3405 = vst [vmem:[%s2 + $0x380] sm:$0xf] %v2893
  %3406 = vst [vmem:[%s2 + $0x384] sm:$0xf] %v2894
  %3407 = vst [vmem:[%s2 + $0x388] sm:$0xf] %v2895
  %3408 = vst [vmem:[%s2 + $0x38c] sm:$0xf] %v2896
  %3409 = vst [vmem:[%s2 + $0x390] sm:$0xf] %v2897
  %3410 = vst [vmem:[%s2 + $0x394] sm:$0xf] %v2898
  %3411 = vst [vmem:[%s2 + $0x398] sm:$0xf] %v2899
  %3412 = vst [vmem:[%s2 + $0x39c] sm:$0xf] %v2900
  %3413 = vst [vmem:[%s2 + $0x3a0] sm:$0xf] %v2901
  %3414 = vst [vmem:[%s2 + $0x3a4] sm:$0xf] %v2902
  %3415 = vst [vmem:[%s2 + $0x3a8] sm:$0xf] %v2903
  %3416 = vst [vmem:[%s2 + $0x3ac] sm:$0xf] %v2904
  %3417 = vst [vmem:[%s2 + $0x3b0] sm:$0xf] %v2905
  %3418 = vst [vmem:[%s2 + $0x3b4] sm:$0xf] %v2906
  %3419 = vst [vmem:[%s2 + $0x3b8] sm:$0xf] %v2907
  %3420 = vst [vmem:[%s2 + $0x3bc] sm:$0xf] %v2908
  %3421 = vst [vmem:[%s2 + $0x3c0] sm:$0xf] %v2909
  %3422 = vst [vmem:[%s2 + $0x3c4] sm:$0xf] %v2910
  %3423 = vst [vmem:[%s2 + $0x3c8] sm:$0xf] %v2911
  %3424 = vst [vmem:[%s2 + $0x3cc] sm:$0xf] %v2912
  %3425 = vst [vmem:[%s2 + $0x3d0] sm:$0xf] %v2913
  %3426 = vst [vmem:[%s2 + $0x3d4] sm:$0xf] %v2914
  %3427 = vst [vmem:[%s2 + $0x3d8] sm:$0xf] %v2915
  %3428 = vst [vmem:[%s2 + $0x3dc] sm:$0xf] %v2916
  %3429 = vst [vmem:[%s2 + $0x3e0] sm:$0xf] %v2917
  %3430 = vst [vmem:[%s2 + $0x3e4] sm:$0xf] %v2918
  %3431 = vst [vmem:[%s2 + $0x3e8] sm:$0xf] %v2919
  %3432 = vst [vmem:[%s2 + $0x3ec] sm:$0xf] %v2920
  %3433 = vst [vmem:[%s2 + $0x3f0] sm:$0xf] %v2921
  %3434 = vst [vmem:[%s2 + $0x3f4] sm:$0xf] %v2922
  %3435 = vst [vmem:[%s2 + $0x3f8] sm:$0xf] %v2923
  %3436 = vst [vmem:[%s2 + $0x3fc] sm:$0xf] %v2924
  // Predicated region
  $region10: #{discriminator_forward.5} parent=0 // pred_check
    _
  $region11: #{discriminator_forward.5} parent=0 // pred_check_branch
    %3438 = sbr.rel (0) target = $region13
  $region12: #{discriminator_forward.5} parent=0 // pred_region
    _
  $region13: #{discriminator_forward.5} parent=0 // pred_fallthru
    _
  // Predicated region
  $region14: #{discriminator_forward.5} parent=0 // pred_check
    _
  $region15: #{discriminator_forward.5} parent=0 // pred_check_branch
    %3440 = sbr.rel (0) target = $region17
  $region16: #{discriminator_forward.5} parent=0 // pred_region
    _
  $region17: #{discriminator_forward.5} parent=0 // pred_fallthru
    _

// kernel: discriminator_forward.6
$region0: #{discriminator_forward.6}
  #allocation0 [shape = 'u32[]', space=smem, size = 0x4, offset = 0x4, fixed_abs, tag = 'smem constant byte address 0x4 - core index']
  #allocation1 [shape = 'u32[144,128]{1,0:T(1,128)}', space=vmem, size = 0x12000, scoped, tag = 'internal scratch']
  %s0 = inlined_call_operand.vmem [shape: bf16[512,128], index: 0, kind: input, shape index: {}]
  %s1 = inlined_call_operand.vmem [shape: bf16[128,128], index: 1, kind: input, shape index: {}]
  %s2 = inlined_call_operand.vmem [shape: bf16[512,128], index: 2, kind: output, shape index: {}]
  %s3 = sld [smem:[#allocation0]]
  $region18: #{discriminator_forward.6} parent=0
    _
  %s5 = ssub.s32 1, %s3
  %s6 = scalar_select 0, %s5, %s3
  // Predicated region
  $region2: #{discriminator_forward.6} parent=0 // pred_check
    _
  $region3: #{discriminator_forward.6} parent=0 // pred_check_branch
    %8 = sbr.rel (0) target = $region5
  $region4: #{discriminator_forward.6} parent=0 // pred_region
    _
  $region5: #{discriminator_forward.6} parent=0 // pred_fallthru
    _
  // Predicated region
  $region6: #{discriminator_forward.6} parent=0 // pred_check
    _
  $region7: #{discriminator_forward.6} parent=0 // pred_check_branch
    %10 = sbr.rel (0) target = $region9
  $region8: #{discriminator_forward.6} parent=0 // pred_region
    _
  $region9: #{discriminator_forward.6} parent=0 // pred_fallthru
    _
  %v12 = vld [vmem:[%s0] sm:$0xf]
  %v13 = vld [vmem:[%s0 + $0x4] sm:$0xf]
  %v14 = vld [vmem:[%s0 + $0x8] sm:$0xf]
  %v15 = vld [vmem:[%s0 + $0xc] sm:$0xf]
  %v16 = vld [vmem:[%s0 + $0x10] sm:$0xf]
  %v17 = vld [vmem:[%s0 + $0x14] sm:$0xf]
  %v18 = vld [vmem:[%s0 + $0x18] sm:$0xf]
  %v19 = vld [vmem:[%s0 + $0x1c] sm:$0xf]
  %v20 = vld [vmem:[%s0 + $0x20] sm:$0xf]
  %v21 = vld [vmem:[%s0 + $0x24] sm:$0xf]
  %v22 = vld [vmem:[%s0 + $0x28] sm:$0xf]
  %v23 = vld [vmem:[%s0 + $0x2c] sm:$0xf]
  %v24 = vld [vmem:[%s0 + $0x30] sm:$0xf]
  %v25 = vld [vmem:[%s0 + $0x34] sm:$0xf]
  %v26 = vld [vmem:[%s0 + $0x38] sm:$0xf]
  %v27 = vld [vmem:[%s0 + $0x3c] sm:$0xf]
  %v28 = vld [vmem:[%s0 + $0x40] sm:$0xf]
  %v29 = vld [vmem:[%s0 + $0x44] sm:$0xf]
  %v30 = vld [vmem:[%s0 + $0x48] sm:$0xf]
  %v31 = vld [vmem:[%s0 + $0x4c] sm:$0xf]
  %v32 = vld [vmem:[%s0 + $0x50] sm:$0xf]
  %v33 = vld [vmem:[%s0 + $0x54] sm:$0xf]
  %v34 = vld [vmem:[%s0 + $0x58] sm:$0xf]
  %v35 = vld [vmem:[%s0 + $0x5c] sm:$0xf]
  %v36 = vld [vmem:[%s0 + $0x60] sm:$0xf]
  %v37 = vld [vmem:[%s0 + $0x64] sm:$0xf]
  %v38 = vld [vmem:[%s0 + $0x68] sm:$0xf]
  %v39 = vld [vmem:[%s0 + $0x6c] sm:$0xf]
  %v40 = vld [vmem:[%s0 + $0x70] sm:$0xf]
  %v41 = vld [vmem:[%s0 + $0x74] sm:$0xf]
  %v42 = vld [vmem:[%s0 + $0x78] sm:$0xf]
  %v43 = vld [vmem:[%s0 + $0x7c] sm:$0xf]
  %v44 = vld [vmem:[%s0 + $0x80] sm:$0xf]
  %v45 = vld [vmem:[%s0 + $0x84] sm:$0xf]
  %v46 = vld [vmem:[%s0 + $0x88] sm:$0xf]
  %v47 = vld [vmem:[%s0 + $0x8c] sm:$0xf]
  %v48 = vld [vmem:[%s0 + $0x90] sm:$0xf]
  %v49 = vld [vmem:[%s0 + $0x94] sm:$0xf]
  %v50 = vld [vmem:[%s0 + $0x98] sm:$0xf]
  %v51 = vld [vmem:[%s0 + $0x9c] sm:$0xf]
  %v52 = vld [vmem:[%s0 + $0xa0] sm:$0xf]
  %v53 = vld [vmem:[%s0 + $0xa4] sm:$0xf]
  %v54 = vld [vmem:[%s0 + $0xa8] sm:$0xf]
  %v55 = vld [vmem:[%s0 + $0xac] sm:$0xf]
  %v56 = vld [vmem:[%s0 + $0xb0] sm:$0xf]
  %v57 = vld [vmem:[%s0 + $0xb4] sm:$0xf]
  %v58 = vld [vmem:[%s0 + $0xb8] sm:$0xf]
  %v59 = vld [vmem:[%s0 + $0xbc] sm:$0xf]
  %v60 = vld [vmem:[%s0 + $0xc0] sm:$0xf]
  %v61 = vld [vmem:[%s0 + $0xc4] sm:$0xf]
  %v62 = vld [vmem:[%s0 + $0xc8] sm:$0xf]
  %v63 = vld [vmem:[%s0 + $0xcc] sm:$0xf]
  %v64 = vld [vmem:[%s0 + $0xd0] sm:$0xf]
  %v65 = vld [vmem:[%s0 + $0xd4] sm:$0xf]
  %v66 = vld [vmem:[%s0 + $0xd8] sm:$0xf]
  %v67 = vld [vmem:[%s0 + $0xdc] sm:$0xf]
  %v68 = vld [vmem:[%s0 + $0xe0] sm:$0xf]
  %v69 = vld [vmem:[%s0 + $0xe4] sm:$0xf]
  %v70 = vld [vmem:[%s0 + $0xe8] sm:$0xf]
  %v71 = vld [vmem:[%s0 + $0xec] sm:$0xf]
  %v72 = vld [vmem:[%s0 + $0xf0] sm:$0xf]
  %v73 = vld [vmem:[%s0 + $0xf4] sm:$0xf]
  %v74 = vld [vmem:[%s0 + $0xf8] sm:$0xf]
  %v75 = vld [vmem:[%s0 + $0xfc] sm:$0xf]
  %v76 = vld [vmem:[%s1] sm:$0xf]
  %v77 = vld [vmem:[%s1 + $0x4] sm:$0xf]
  %v78 = vld [vmem:[%s1 + $0x8] sm:$0xf]
  %v79 = vld [vmem:[%s1 + $0xc] sm:$0xf]
  %v80 = vld [vmem:[%s1 + $0x10] sm:$0xf]
  %v81 = vld [vmem:[%s1 + $0x14] sm:$0xf]
  %v82 = vld [vmem:[%s1 + $0x18] sm:$0xf]
  %v83 = vld [vmem:[%s1 + $0x1c] sm:$0xf]
  %v84 = vld [vmem:[%s1 + $0x20] sm:$0xf]
  %v85 = vld [vmem:[%s1 + $0x24] sm:$0xf]
  %v86 = vld [vmem:[%s1 + $0x28] sm:$0xf]
  %v87 = vld [vmem:[%s1 + $0x2c] sm:$0xf]
  %v88 = vld [vmem:[%s1 + $0x30] sm:$0xf]
  %v89 = vld [vmem:[%s1 + $0x34] sm:$0xf]
  %v90 = vld [vmem:[%s1 + $0x38] sm:$0xf]
  %v91 = vld [vmem:[%s1 + $0x3c] sm:$0xf]
  %v156 = vunpack.c.l.b16 %v12
  %v157 = vunpack.c.l.b16 %v13
  %v158 = vunpack.c.l.b16 %v14
  %v159 = vunpack.c.l.b16 %v15
  %v160 = vunpack.c.l.b16 %v16
  %v161 = vunpack.c.l.b16 %v17
  %v162 = vunpack.c.l.b16 %v18
  %v163 = vunpack.c.l.b16 %v19
  %v164 = vunpack.c.l.b16 %v20
  %v165 = vunpack.c.l.b16 %v21
  %v166 = vunpack.c.l.b16 %v22
  %v167 = vunpack.c.l.b16 %v23
  %v168 = vunpack.c.l.b16 %v24
  %v169 = vunpack.c.l.b16 %v25
  %v170 = vunpack.c.l.b16 %v26
  %v171 = vunpack.c.l.b16 %v27
  %v172 = vunpack.c.l.b16 %v28
  %v173 = vunpack.c.l.b16 %v29
  %v174 = vunpack.c.l.b16 %v30
  %v175 = vunpack.c.l.b16 %v31
  %v176 = vunpack.c.l.b16 %v32
  %v177 = vunpack.c.l.b16 %v33
  %v178 = vunpack.c.l.b16 %v34
  %v179 = vunpack.c.l.b16 %v35
  %v180 = vunpack.c.l.b16 %v36
  %v181 = vunpack.c.l.b16 %v37
  %v182 = vunpack.c.l.b16 %v38
  %v183 = vunpack.c.l.b16 %v39
  %v184 = vunpack.c.l.b16 %v40
  %v185 = vunpack.c.l.b16 %v41
  %v186 = vunpack.c.l.b16 %v42
  %v187 = vunpack.c.l.b16 %v43
  %v188 = vunpack.c.l.b16 %v44
  %v189 = vunpack.c.l.b16 %v45
  %v190 = vunpack.c.l.b16 %v46
  %v191 = vunpack.c.l.b16 %v47
  %v192 = vunpack.c.l.b16 %v48
  %v193 = vunpack.c.l.b16 %v49
  %v194 = vunpack.c.l.b16 %v50
  %v195 = vunpack.c.l.b16 %v51
  %v196 = vunpack.c.l.b16 %v52
  %v197 = vunpack.c.l.b16 %v53
  %v198 = vunpack.c.l.b16 %v54
  %v199 = vunpack.c.l.b16 %v55
  %v200 = vunpack.c.l.b16 %v56
  %v201 = vunpack.c.l.b16 %v57
  %v202 = vunpack.c.l.b16 %v58
  %v203 = vunpack.c.l.b16 %v59
  %v204 = vunpack.c.l.b16 %v60
  %v205 = vunpack.c.l.b16 %v61
  %v206 = vunpack.c.l.b16 %v62
  %v207 = vunpack.c.l.b16 %v63
  %v208 = vunpack.c.l.b16 %v64
  %v209 = vunpack.c.l.b16 %v65
  %v210 = vunpack.c.l.b16 %v66
  %v211 = vunpack.c.l.b16 %v67
  %v212 = vunpack.c.l.b16 %v68
  %v213 = vunpack.c.l.b16 %v69
  %v214 = vunpack.c.l.b16 %v70
  %v215 = vunpack.c.l.b16 %v71
  %v216 = vunpack.c.l.b16 %v72
  %v217 = vunpack.c.l.b16 %v73
  %v218 = vunpack.c.l.b16 %v74
  %v219 = vunpack.c.l.b16 %v75
  %v220 = vpack.c.b16 %v157, %v156
  %v221 = vpack.c.b16 %v159, %v158
  %v222 = vpack.c.b16 %v161, %v160
  %v223 = vpack.c.b16 %v163, %v162
  %v224 = vpack.c.b16 %v165, %v164
  %v225 = vpack.c.b16 %v167, %v166
  %v226 = vpack.c.b16 %v169, %v168
  %v227 = vpack.c.b16 %v171, %v170
  %v228 = vpack.c.b16 %v173, %v172
  %v229 = vpack.c.b16 %v175, %v174
  %v230 = vpack.c.b16 %v177, %v176
  %v231 = vpack.c.b16 %v179, %v178
  %v232 = vpack.c.b16 %v181, %v180
  %v233 = vpack.c.b16 %v183, %v182
  %v234 = vpack.c.b16 %v185, %v184
  %v235 = vpack.c.b16 %v187, %v186
  %v236 = vpack.c.b16 %v189, %v188
  %v237 = vpack.c.b16 %v191, %v190
  %v238 = vpack.c.b16 %v193, %v192
  %v239 = vpack.c.b16 %v195, %v194
  %v240 = vpack.c.b16 %v197, %v196
  %v241 = vpack.c.b16 %v199, %v198
  %v242 = vpack.c.b16 %v201, %v200
  %v243 = vpack.c.b16 %v203, %v202
  %v244 = vpack.c.b16 %v205, %v204
  %v245 = vpack.c.b16 %v207, %v206
  %v246 = vpack.c.b16 %v209, %v208
  %v247 = vpack.c.b16 %v211, %v210
  %v248 = vpack.c.b16 %v213, %v212
  %v249 = vpack.c.b16 %v215, %v214
  %v250 = vpack.c.b16 %v217, %v216
  %v251 = vpack.c.b16 %v219, %v218
  %v300 = vunpack.c.l.b16 %v76
  %v301 = vunpack.c.l.b16 %v77
  %v302 = vunpack.c.l.b16 %v78
  %v303 = vunpack.c.l.b16 %v79
  %v304 = vunpack.c.l.b16 %v80
  %v305 = vunpack.c.l.b16 %v81
  %v306 = vunpack.c.l.b16 %v82
  %v307 = vunpack.c.l.b16 %v83
  %v308 = vunpack.c.l.b16 %v84
  %v309 = vunpack.c.l.b16 %v85
  %v310 = vunpack.c.l.b16 %v86
  %v311 = vunpack.c.l.b16 %v87
  %v312 = vunpack.c.l.b16 %v88
  %v313 = vunpack.c.l.b16 %v89
  %v314 = vunpack.c.l.b16 %v90
  %v315 = vunpack.c.l.b16 %v91
  %v316 = vpack.c.b16 %v301, %v300
  %v317 = vpack.c.b16 %v303, %v302
  %v318 = vpack.c.b16 %v305, %v304
  %v319 = vpack.c.b16 %v307, %v306
  %v320 = vpack.c.b16 %v309, %v308
  %v321 = vpack.c.b16 %v311, %v310
  %v322 = vpack.c.b16 %v313, %v312
  %v323 = vpack.c.b16 %v315, %v314
  %332 = vmatprep.subr.bf16.mxu0 0
  %333 = vmatpush1.bf16.msra.mxu0 %v323
  %334 = vmatprep.subr.bf16.mxu0 0
  %335 = vmatpush1.bf16.msra.mxu0 %v322
  %336 = vmatprep.subr.bf16.mxu0 0
  %337 = vmatpush1.bf16.msra.mxu0 %v321
  %338 = vmatprep.subr.bf16.mxu0 0
  %339 = vmatpush1.bf16.msra.mxu0 %v320
  %340 = vmatprep.subr.bf16.mxu0 0
  %341 = vmatpush1.bf16.msra.mxu0 %v319
  %342 = vmatprep.subr.bf16.mxu0 0
  %343 = vmatpush1.bf16.msra.mxu0 %v318
  %344 = vmatprep.subr.bf16.mxu0 0
  %345 = vmatpush1.bf16.msra.mxu0 %v317
  %346 = vmatprep.subr.bf16.mxu0 0
  %347 = vmatpush1.bf16.msra.mxu0 %v316
  %348 = vmatprep.subr.bf16.mxu0 0
  %349 = vmatpush2.bf16.msra.mxu0 0
  %350 = vmatprep.subr.bf16.mxu0 0
  %351 = vmatpush2.bf16.msra.mxu0 0
  %352 = vmatprep.subr.bf16.mxu0 0
  %353 = vmatpush2.bf16.msra.mxu0 0
  %354 = vmatprep.subr.bf16.mxu0 0
  %355 = vmatpush2.bf16.msra.mxu0 0
  %356 = vmatprep.subr.bf16.mxu0 0
  %357 = vmatpush2.bf16.msra.mxu0 0
  %358 = vmatprep.subr.bf16.mxu0 0
  %359 = vmatpush2.bf16.msra.mxu0 0
  %360 = vmatprep.subr.bf16.mxu0 0
  %361 = vmatpush2.bf16.msra.mxu0 0
  %362 = vmatprep.subr.bf16.mxu0 0
  %363 = vmatpush2.bf16.msra.mxu0 0
  %364 = vmatprep.mubr.bf16.mxu0 0
  %365 = vmatmul.mubr.bf16.gmra.mxu0 %v220
  %v366 = vpop.f32.mrf.mxu0
  %v367 = vadd.f32 0.0, %v366
  %v368 = vpop.f32.mrf.mxu0
  %v369 = vpop.f32.mrf.mxu0
  %v370 = vadd.f32 0.0, %v369
  %v371 = vpop.f32.mrf.mxu0
  %372 = vmatprep.mubr.bf16.mxu0 0
  %373 = vmatmul.mubr.bf16.gmra.mxu0 %v221
  %v374 = vpop.f32.mrf.mxu0
  %v375 = vadd.f32 0.0, %v374
  %v376 = vpop.f32.mrf.mxu0
  %v377 = vpop.f32.mrf.mxu0
  %v378 = vadd.f32 0.0, %v377
  %v379 = vpop.f32.mrf.mxu0
  %380 = vmatprep.mubr.bf16.mxu0 0
  %381 = vmatmul.mubr.bf16.gmra.mxu0 %v222
  %v382 = vpop.f32.mrf.mxu0
  %v383 = vadd.f32 0.0, %v382
  %v384 = vpop.f32.mrf.mxu0
  %v385 = vpop.f32.mrf.mxu0
  %v386 = vadd.f32 0.0, %v385
  %v387 = vpop.f32.mrf.mxu0
  %388 = vmatprep.mubr.bf16.mxu0 0
  %389 = vmatmul.mubr.bf16.gmra.mxu0 %v223
  %v390 = vpop.f32.mrf.mxu0
  %v391 = vadd.f32 0.0, %v390
  %v392 = vpop.f32.mrf.mxu0
  %v393 = vpop.f32.mrf.mxu0
  %v394 = vadd.f32 0.0, %v393
  %v395 = vpop.f32.mrf.mxu0
  %396 = vmatprep.mubr.bf16.mxu0 0
  %397 = vmatmul.mubr.bf16.gmra.mxu0 %v224
  %v398 = vpop.f32.mrf.mxu0
  %v399 = vadd.f32 0.0, %v398
  %v400 = vpop.f32.mrf.mxu0
  %v401 = vpop.f32.mrf.mxu0
  %v402 = vadd.f32 0.0, %v401
  %v403 = vpop.f32.mrf.mxu0
  %404 = vmatprep.mubr.bf16.mxu0 0
  %405 = vmatmul.mubr.bf16.gmra.mxu0 %v225
  %v406 = vpop.f32.mrf.mxu0
  %v407 = vadd.f32 0.0, %v406
  %v408 = vpop.f32.mrf.mxu0
  %v409 = vpop.f32.mrf.mxu0
  %v410 = vadd.f32 0.0, %v409
  %v411 = vpop.f32.mrf.mxu0
  %412 = vmatprep.mubr.bf16.mxu0 0
  %413 = vmatmul.mubr.bf16.gmra.mxu0 %v226
  %v414 = vpop.f32.mrf.mxu0
  %v415 = vadd.f32 0.0, %v414
  %v416 = vpop.f32.mrf.mxu0
  %v417 = vpop.f32.mrf.mxu0
  %v418 = vadd.f32 0.0, %v417
  %v419 = vpop.f32.mrf.mxu0
  %420 = vmatprep.mubr.bf16.mxu0 0
  %421 = vmatmul.mubr.bf16.gmra.mxu0 %v227
  %v422 = vpop.f32.mrf.mxu0
  %v423 = vadd.f32 0.0, %v422
  %v424 = vpop.f32.mrf.mxu0
  %v425 = vpop.f32.mrf.mxu0
  %v426 = vadd.f32 0.0, %v425
  %v427 = vpop.f32.mrf.mxu0
  %428 = vmatprep.mubr.bf16.mxu0 0
  %429 = vmatmul.mubr.bf16.gmra.mxu0 %v228
  %v430 = vpop.f32.mrf.mxu0
  %v431 = vadd.f32 0.0, %v430
  %v432 = vpop.f32.mrf.mxu0
  %v433 = vpop.f32.mrf.mxu0
  %v434 = vadd.f32 0.0, %v433
  %v435 = vpop.f32.mrf.mxu0
  %436 = vmatprep.mubr.bf16.mxu0 0
  %437 = vmatmul.mubr.bf16.gmra.mxu0 %v229
  %v438 = vpop.f32.mrf.mxu0
  %v439 = vadd.f32 0.0, %v438
  %v440 = vpop.f32.mrf.mxu0
  %v441 = vpop.f32.mrf.mxu0
  %v442 = vadd.f32 0.0, %v441
  %v443 = vpop.f32.mrf.mxu0
  %444 = vmatprep.mubr.bf16.mxu0 0
  %445 = vmatmul.mubr.bf16.gmra.mxu0 %v230
  %v446 = vpop.f32.mrf.mxu0
  %v447 = vadd.f32 0.0, %v446
  %v448 = vpop.f32.mrf.mxu0
  %v449 = vpop.f32.mrf.mxu0
  %v450 = vadd.f32 0.0, %v449
  %v451 = vpop.f32.mrf.mxu0
  %452 = vmatprep.mubr.bf16.mxu0 0
  %453 = vmatmul.mubr.bf16.gmra.mxu0 %v231
  %v454 = vpop.f32.mrf.mxu0
  %v455 = vadd.f32 0.0, %v454
  %v456 = vpop.f32.mrf.mxu0
  %v457 = vpop.f32.mrf.mxu0
  %v458 = vadd.f32 0.0, %v457
  %v459 = vpop.f32.mrf.mxu0
  %460 = vmatprep.mubr.bf16.mxu0 0
  %461 = vmatmul.mubr.bf16.gmra.mxu0 %v232
  %v462 = vpop.f32.mrf.mxu0
  %v463 = vadd.f32 0.0, %v462
  %v464 = vpop.f32.mrf.mxu0
  %v465 = vpop.f32.mrf.mxu0
  %v466 = vadd.f32 0.0, %v465
  %v467 = vpop.f32.mrf.mxu0
  %468 = vmatprep.mubr.bf16.mxu0 0
  %469 = vmatmul.mubr.bf16.gmra.mxu0 %v233
  %v470 = vpop.f32.mrf.mxu0
  %v471 = vadd.f32 0.0, %v470
  %v472 = vpop.f32.mrf.mxu0
  %v473 = vpop.f32.mrf.mxu0
  %v474 = vadd.f32 0.0, %v473
  %v475 = vpop.f32.mrf.mxu0
  %476 = vmatprep.mubr.bf16.mxu0 0
  %477 = vmatmul.mubr.bf16.gmra.mxu0 %v234
  %v478 = vpop.f32.mrf.mxu0
  %v479 = vadd.f32 0.0, %v478
  %v480 = vpop.f32.mrf.mxu0
  %v481 = vpop.f32.mrf.mxu0
  %v482 = vadd.f32 0.0, %v481
  %v483 = vpop.f32.mrf.mxu0
  %484 = vmatprep.mubr.bf16.mxu0 0
  %485 = vmatmul.mubr.bf16.gmra.mxu0 %v235
  %v486 = vpop.f32.mrf.mxu0
  %v487 = vadd.f32 0.0, %v486
  %v488 = vpop.f32.mrf.mxu0
  %v489 = vpop.f32.mrf.mxu0
  %v490 = vadd.f32 0.0, %v489
  %v491 = vpop.f32.mrf.mxu0
  %492 = vmatprep.mubr.bf16.mxu0 0
  %493 = vmatmul.mubr.bf16.gmra.mxu0 %v236
  %v494 = vpop.f32.mrf.mxu0
  %v495 = vadd.f32 0.0, %v494
  %v496 = vpop.f32.mrf.mxu0
  %v497 = vpop.f32.mrf.mxu0
  %v498 = vadd.f32 0.0, %v497
  %v499 = vpop.f32.mrf.mxu0
  %500 = vmatprep.mubr.bf16.mxu0 0
  %501 = vmatmul.mubr.bf16.gmra.mxu0 %v237
  %v502 = vpop.f32.mrf.mxu0
  %v503 = vadd.f32 0.0, %v502
  %v504 = vpop.f32.mrf.mxu0
  %v505 = vpop.f32.mrf.mxu0
  %v506 = vadd.f32 0.0, %v505
  %v507 = vpop.f32.mrf.mxu0
  %508 = vmatprep.mubr.bf16.mxu0 0
  %509 = vmatmul.mubr.bf16.gmra.mxu0 %v238
  %v510 = vpop.f32.mrf.mxu0
  %v511 = vadd.f32 0.0, %v510
  %v512 = vpop.f32.mrf.mxu0
  %v513 = vpop.f32.mrf.mxu0
  %v514 = vadd.f32 0.0, %v513
  %v515 = vpop.f32.mrf.mxu0
  %516 = vmatprep.mubr.bf16.mxu0 0
  %517 = vmatmul.mubr.bf16.gmra.mxu0 %v239
  %v518 = vpop.f32.mrf.mxu0
  %v519 = vadd.f32 0.0, %v518
  %v520 = vpop.f32.mrf.mxu0
  %v521 = vpop.f32.mrf.mxu0
  %v522 = vadd.f32 0.0, %v521
  %v523 = vpop.f32.mrf.mxu0
  %524 = vmatprep.mubr.bf16.mxu0 0
  %525 = vmatmul.mubr.bf16.gmra.mxu0 %v240
  %v526 = vpop.f32.mrf.mxu0
  %v527 = vadd.f32 0.0, %v526
  %v528 = vpop.f32.mrf.mxu0
  %v529 = vpop.f32.mrf.mxu0
  %v530 = vadd.f32 0.0, %v529
  %v531 = vpop.f32.mrf.mxu0
  %532 = vmatprep.mubr.bf16.mxu0 0
  %533 = vmatmul.mubr.bf16.gmra.mxu0 %v241
  %v534 = vpop.f32.mrf.mxu0
  %v535 = vadd.f32 0.0, %v534
  %v536 = vpop.f32.mrf.mxu0
  %v537 = vpop.f32.mrf.mxu0
  %v538 = vadd.f32 0.0, %v537
  %v539 = vpop.f32.mrf.mxu0
  %540 = vmatprep.mubr.bf16.mxu0 0
  %541 = vmatmul.mubr.bf16.gmra.mxu0 %v242
  %v542 = vpop.f32.mrf.mxu0
  %v543 = vadd.f32 0.0, %v542
  %v544 = vpop.f32.mrf.mxu0
  %v545 = vpop.f32.mrf.mxu0
  %v546 = vadd.f32 0.0, %v545
  %v547 = vpop.f32.mrf.mxu0
  %548 = vmatprep.mubr.bf16.mxu0 0
  %549 = vmatmul.mubr.bf16.gmra.mxu0 %v243
  %v550 = vpop.f32.mrf.mxu0
  %v551 = vadd.f32 0.0, %v550
  %v552 = vpop.f32.mrf.mxu0
  %v553 = vpop.f32.mrf.mxu0
  %v554 = vadd.f32 0.0, %v553
  %v555 = vpop.f32.mrf.mxu0
  %556 = vmatprep.mubr.bf16.mxu0 0
  %557 = vmatmul.mubr.bf16.gmra.mxu0 %v244
  %v558 = vpop.f32.mrf.mxu0
  %v559 = vadd.f32 0.0, %v558
  %v560 = vpop.f32.mrf.mxu0
  %v561 = vpop.f32.mrf.mxu0
  %v562 = vadd.f32 0.0, %v561
  %v563 = vpop.f32.mrf.mxu0
  %564 = vmatprep.mubr.bf16.mxu0 0
  %565 = vmatmul.mubr.bf16.gmra.mxu0 %v245
  %v566 = vpop.f32.mrf.mxu0
  %v567 = vadd.f32 0.0, %v566
  %v568 = vpop.f32.mrf.mxu0
  %v569 = vpop.f32.mrf.mxu0
  %v570 = vadd.f32 0.0, %v569
  %v571 = vpop.f32.mrf.mxu0
  %572 = vmatprep.mubr.bf16.mxu0 0
  %573 = vmatmul.mubr.bf16.gmra.mxu0 %v246
  %v574 = vpop.f32.mrf.mxu0
  %v575 = vadd.f32 0.0, %v574
  %v576 = vpop.f32.mrf.mxu0
  %v577 = vpop.f32.mrf.mxu0
  %v578 = vadd.f32 0.0, %v577
  %v579 = vpop.f32.mrf.mxu0
  %580 = vmatprep.mubr.bf16.mxu0 0
  %581 = vmatmul.mubr.bf16.gmra.mxu0 %v247
  %v582 = vpop.f32.mrf.mxu0
  %v583 = vadd.f32 0.0, %v582
  %v584 = vpop.f32.mrf.mxu0
  %v585 = vpop.f32.mrf.mxu0
  %v586 = vadd.f32 0.0, %v585
  %v587 = vpop.f32.mrf.mxu0
  %588 = vmatprep.mubr.bf16.mxu0 0
  %589 = vmatmul.mubr.bf16.gmra.mxu0 %v248
  %v590 = vpop.f32.mrf.mxu0
  %v591 = vadd.f32 0.0, %v590
  %v592 = vpop.f32.mrf.mxu0
  %v593 = vpop.f32.mrf.mxu0
  %v594 = vadd.f32 0.0, %v593
  %v595 = vpop.f32.mrf.mxu0
  %596 = vmatprep.mubr.bf16.mxu0 0
  %597 = vmatmul.mubr.bf16.gmra.mxu0 %v249
  %v598 = vpop.f32.mrf.mxu0
  %v599 = vadd.f32 0.0, %v598
  %v600 = vpop.f32.mrf.mxu0
  %v601 = vpop.f32.mrf.mxu0
  %v602 = vadd.f32 0.0, %v601
  %v603 = vpop.f32.mrf.mxu0
  %604 = vmatprep.mubr.bf16.mxu0 0
  %605 = vmatmul.mubr.bf16.gmra.mxu0 %v250
  %v606 = vpop.f32.mrf.mxu0
  %v607 = vadd.f32 0.0, %v606
  %v608 = vpop.f32.mrf.mxu0
  %v609 = vpop.f32.mrf.mxu0
  %v610 = vadd.f32 0.0, %v609
  %v611 = vpop.f32.mrf.mxu0
  %612 = vmatprep.mubr.bf16.mxu0 0
  %613 = vmatmul.mubr.bf16.gmra.mxu0 %v251
  %v614 = vpop.f32.mrf.mxu0
  %v615 = vadd.f32 0.0, %v614
  %v616 = vpop.f32.mrf.mxu0
  %v617 = vpop.f32.mrf.mxu0
  %v618 = vadd.f32 0.0, %v617
  %v619 = vpop.f32.mrf.mxu0
  %620 = vdwg.mxu0
  %v621 = vpack.c.bf16 %v370, %v367
  %v622 = vpack.c.bf16 %v378, %v375
  %v623 = vpack.c.bf16 %v386, %v383
  %v624 = vpack.c.bf16 %v394, %v391
  %v625 = vpack.c.bf16 %v402, %v399
  %v626 = vpack.c.bf16 %v410, %v407
  %v627 = vpack.c.bf16 %v418, %v415
  %v628 = vpack.c.bf16 %v426, %v423
  %v629 = vpack.c.bf16 %v434, %v431
  %v630 = vpack.c.bf16 %v442, %v439
  %v631 = vpack.c.bf16 %v450, %v447
  %v632 = vpack.c.bf16 %v458, %v455
  %v633 = vpack.c.bf16 %v466, %v463
  %v634 = vpack.c.bf16 %v474, %v471
  %v635 = vpack.c.bf16 %v482, %v479
  %v636 = vpack.c.bf16 %v490, %v487
  %v637 = vpack.c.bf16 %v498, %v495
  %v638 = vpack.c.bf16 %v506, %v503
  %v639 = vpack.c.bf16 %v514, %v511
  %v640 = vpack.c.bf16 %v522, %v519
  %v641 = vpack.c.bf16 %v530, %v527
  %v642 = vpack.c.bf16 %v538, %v535
  %v643 = vpack.c.bf16 %v546, %v543
  %v644 = vpack.c.bf16 %v554, %v551
  %v645 = vpack.c.bf16 %v562, %v559
  %v646 = vpack.c.bf16 %v570, %v567
  %v647 = vpack.c.bf16 %v578, %v575
  %v648 = vpack.c.bf16 %v586, %v583
  %v649 = vpack.c.bf16 %v594, %v591
  %v650 = vpack.c.bf16 %v602, %v599
  %v651 = vpack.c.bf16 %v610, %v607
  %v652 = vpack.c.bf16 %v618, %v615
  %v685 = vunpack.c.l.b16 %v621
  %v686 = vunpack.c.h.b16 %v621
  %v687 = vunpack.c.l.b16 %v622
  %v688 = vunpack.c.h.b16 %v622
  %v689 = vunpack.c.l.b16 %v623
  %v690 = vunpack.c.h.b16 %v623
  %v691 = vunpack.c.l.b16 %v624
  %v692 = vunpack.c.h.b16 %v624
  %v693 = vunpack.c.l.b16 %v625
  %v694 = vunpack.c.h.b16 %v625
  %v695 = vunpack.c.l.b16 %v626
  %v696 = vunpack.c.h.b16 %v626
  %v697 = vunpack.c.l.b16 %v627
  %v698 = vunpack.c.h.b16 %v627
  %v699 = vunpack.c.l.b16 %v628
  %v700 = vunpack.c.h.b16 %v628
  %v701 = vunpack.c.l.b16 %v629
  %v702 = vunpack.c.h.b16 %v629
  %v703 = vunpack.c.l.b16 %v630
  %v704 = vunpack.c.h.b16 %v630
  %v705 = vunpack.c.l.b16 %v631
  %v706 = vunpack.c.h.b16 %v631
  %v707 = vunpack.c.l.b16 %v632
  %v708 = vunpack.c.h.b16 %v632
  %v709 = vunpack.c.l.b16 %v633
  %v710 = vunpack.c.h.b16 %v633
  %v711 = vunpack.c.l.b16 %v634
  %v712 = vunpack.c.h.b16 %v634
  %v713 = vunpack.c.l.b16 %v635
  %v714 = vunpack.c.h.b16 %v635
  %v715 = vunpack.c.l.b16 %v636
  %v716 = vunpack.c.h.b16 %v636
  %v717 = vunpack.c.l.b16 %v637
  %v718 = vunpack.c.h.b16 %v637
  %v719 = vunpack.c.l.b16 %v638
  %v720 = vunpack.c.h.b16 %v638
  %v721 = vunpack.c.l.b16 %v639
  %v722 = vunpack.c.h.b16 %v639
  %v723 = vunpack.c.l.b16 %v640
  %v724 = vunpack.c.h.b16 %v640
  %v725 = vunpack.c.l.b16 %v641
  %v726 = vunpack.c.h.b16 %v641
  %v727 = vunpack.c.l.b16 %v642
  %v728 = vunpack.c.h.b16 %v642
  %v729 = vunpack.c.l.b16 %v643
  %v730 = vunpack.c.h.b16 %v643
  %v731 = vunpack.c.l.b16 %v644
  %v732 = vunpack.c.h.b16 %v644
  %v733 = vunpack.c.l.b16 %v645
  %v734 = vunpack.c.h.b16 %v645
  %v735 = vunpack.c.l.b16 %v646
  %v736 = vunpack.c.h.b16 %v646
  %v737 = vunpack.c.l.b16 %v647
  %v738 = vunpack.c.h.b16 %v647
  %v739 = vunpack.c.l.b16 %v648
  %v740 = vunpack.c.h.b16 %v648
  %v741 = vunpack.c.l.b16 %v649
  %v742 = vunpack.c.h.b16 %v649
  %v743 = vunpack.c.l.b16 %v650
  %v744 = vunpack.c.h.b16 %v650
  %v745 = vunpack.c.l.b16 %v651
  %v746 = vunpack.c.h.b16 %v651
  %v747 = vunpack.c.l.b16 %v652
  %v748 = vunpack.c.h.b16 %v652
  %v749 = vpack.c.b16 %v685, %v685
  %v750 = vpack.c.b16 %v686, %v686
  %v751 = vpack.c.b16 %v687, %v687
  %v752 = vpack.c.b16 %v688, %v688
  %v753 = vpack.c.b16 %v689, %v689
  %v754 = vpack.c.b16 %v690, %v690
  %v755 = vpack.c.b16 %v691, %v691
  %v756 = vpack.c.b16 %v692, %v692
  %v757 = vpack.c.b16 %v693, %v693
  %v758 = vpack.c.b16 %v694, %v694
  %v759 = vpack.c.b16 %v695, %v695
  %v760 = vpack.c.b16 %v696, %v696
  %v761 = vpack.c.b16 %v697, %v697
  %v762 = vpack.c.b16 %v698, %v698
  %v763 = vpack.c.b16 %v699, %v699
  %v764 = vpack.c.b16 %v700, %v700
  %v765 = vpack.c.b16 %v701, %v701
  %v766 = vpack.c.b16 %v702, %v702
  %v767 = vpack.c.b16 %v703, %v703
  %v768 = vpack.c.b16 %v704, %v704
  %v769 = vpack.c.b16 %v705, %v705
  %v770 = vpack.c.b16 %v706, %v706
  %v771 = vpack.c.b16 %v707, %v707
  %v772 = vpack.c.b16 %v708, %v708
  %v773 = vpack.c.b16 %v709, %v709
  %v774 = vpack.c.b16 %v710, %v710
  %v775 = vpack.c.b16 %v711, %v711
  %v776 = vpack.c.b16 %v712, %v712
  %v777 = vpack.c.b16 %v713, %v713
  %v778 = vpack.c.b16 %v714, %v714
  %v779 = vpack.c.b16 %v715, %v715
  %v780 = vpack.c.b16 %v716, %v716
  %v781 = vpack.c.b16 %v717, %v717
  %v782 = vpack.c.b16 %v718, %v718
  %v783 = vpack.c.b16 %v719, %v719
  %v784 = vpack.c.b16 %v720, %v720
  %v785 = vpack.c.b16 %v721, %v721
  %v786 = vpack.c.b16 %v722, %v722
  %v787 = vpack.c.b16 %v723, %v723
  %v788 = vpack.c.b16 %v724, %v724
  %v789 = vpack.c.b16 %v725, %v725
  %v790 = vpack.c.b16 %v726, %v726
  %v791 = vpack.c.b16 %v727, %v727
  %v792 = vpack.c.b16 %v728, %v728
  %v793 = vpack.c.b16 %v729, %v729
  %v794 = vpack.c.b16 %v730, %v730
  %v795 = vpack.c.b16 %v731, %v731
  %v796 = vpack.c.b16 %v732, %v732
  %v797 = vpack.c.b16 %v733, %v733
  %v798 = vpack.c.b16 %v734, %v734
  %v799 = vpack.c.b16 %v735, %v735
  %v800 = vpack.c.b16 %v736, %v736
  %v801 = vpack.c.b16 %v737, %v737
  %v802 = vpack.c.b16 %v738, %v738
  %v803 = vpack.c.b16 %v739, %v739
  %v804 = vpack.c.b16 %v740, %v740
  %v805 = vpack.c.b16 %v741, %v741
  %v806 = vpack.c.b16 %v742, %v742
  %v807 = vpack.c.b16 %v743, %v743
  %v808 = vpack.c.b16 %v744, %v744
  %v809 = vpack.c.b16 %v745, %v745
  %v810 = vpack.c.b16 %v746, %v746
  %v811 = vpack.c.b16 %v747, %v747
  %v812 = vpack.c.b16 %v748, %v748
  %877 = vst [vmem:[%s2] sm:$0xf] %v749
  %878 = vst [vmem:[%s2 + $0x4] sm:$0xf] %v750
  %879 = vst [vmem:[%s2 + $0x8] sm:$0xf] %v751
  %880 = vst [vmem:[%s2 + $0xc] sm:$0xf] %v752
  %881 = vst [vmem:[%s2 + $0x10] sm:$0xf] %v753
  %882 = vst [vmem:[%s2 + $0x14] sm:$0xf] %v754
  %883 = vst [vmem:[%s2 + $0x18] sm:$0xf] %v755
  %884 = vst [vmem:[%s2 + $0x1c] sm:$0xf] %v756
  %885 = vst [vmem:[%s2 + $0x20] sm:$0xf] %v757
  %886 = vst [vmem:[%s2 + $0x24] sm:$0xf] %v758
  %887 = vst [vmem:[%s2 + $0x28] sm:$0xf] %v759
  %888 = vst [vmem:[%s2 + $0x2c] sm:$0xf] %v760
  %889 = vst [vmem:[%s2 + $0x30] sm:$0xf] %v761
  %890 = vst [vmem:[%s2 + $0x34] sm:$0xf] %v762
  %891 = vst [vmem:[%s2 + $0x38] sm:$0xf] %v763
  %892 = vst [vmem:[%s2 + $0x3c] sm:$0xf] %v764
  %893 = vst [vmem:[%s2 + $0x40] sm:$0xf] %v765
  %894 = vst [vmem:[%s2 + $0x44] sm:$0xf] %v766
  %895 = vst [vmem:[%s2 + $0x48] sm:$0xf] %v767
  %896 = vst [vmem:[%s2 + $0x4c] sm:$0xf] %v768
  %897 = vst [vmem:[%s2 + $0x50] sm:$0xf] %v769
  %898 = vst [vmem:[%s2 + $0x54] sm:$0xf] %v770
  %899 = vst [vmem:[%s2 + $0x58] sm:$0xf] %v771
  %900 = vst [vmem:[%s2 + $0x5c] sm:$0xf] %v772
  %901 = vst [vmem:[%s2 + $0x60] sm:$0xf] %v773
  %902 = vst [vmem:[%s2 + $0x64] sm:$0xf] %v774
  %903 = vst [vmem:[%s2 + $0x68] sm:$0xf] %v775
  %904 = vst [vmem:[%s2 + $0x6c] sm:$0xf] %v776
  %905 = vst [vmem:[%s2 + $0x70] sm:$0xf] %v777
  %906 = vst [vmem:[%s2 + $0x74] sm:$0xf] %v778
  %907 = vst [vmem:[%s2 + $0x78] sm:$0xf] %v779
  %908 = vst [vmem:[%s2 + $0x7c] sm:$0xf] %v780
  %909 = vst [vmem:[%s2 + $0x80] sm:$0xf] %v781
  %910 = vst [vmem:[%s2 + $0x84] sm:$0xf] %v782
  %911 = vst [vmem:[%s2 + $0x88] sm:$0xf] %v783
  %912 = vst [vmem:[%s2 + $0x8c] sm:$0xf] %v784
  %913 = vst [vmem:[%s2 + $0x90] sm:$0xf] %v785
  %914 = vst [vmem:[%s2 + $0x94] sm:$0xf] %v786
  %915 = vst [vmem:[%s2 + $0x98] sm:$0xf] %v787
  %916 = vst [vmem:[%s2 + $0x9c] sm:$0xf] %v788
  %917 = vst [vmem:[%s2 + $0xa0] sm:$0xf] %v789
  %918 = vst [vmem:[%s2 + $0xa4] sm:$0xf] %v790
  %919 = vst [vmem:[%s2 + $0xa8] sm:$0xf] %v791
  %920 = vst [vmem:[%s2 + $0xac] sm:$0xf] %v792
  %921 = vst [vmem:[%s2 + $0xb0] sm:$0xf] %v793
  %922 = vst [vmem:[%s2 + $0xb4] sm:$0xf] %v794
  %923 = vst [vmem:[%s2 + $0xb8] sm:$0xf] %v795
  %924 = vst [vmem:[%s2 + $0xbc] sm:$0xf] %v796
  %925 = vst [vmem:[%s2 + $0xc0] sm:$0xf] %v797
  %926 = vst [vmem:[%s2 + $0xc4] sm:$0xf] %v798
  %927 = vst [vmem:[%s2 + $0xc8] sm:$0xf] %v799
  %928 = vst [vmem:[%s2 + $0xcc] sm:$0xf] %v800
  %929 = vst [vmem:[%s2 + $0xd0] sm:$0xf] %v801
  %930 = vst [vmem:[%s2 + $0xd4] sm:$0xf] %v802
  %931 = vst [vmem:[%s2 + $0xd8] sm:$0xf] %v803
  %932 = vst [vmem:[%s2 + $0xdc] sm:$0xf] %v804
  %933 = vst [vmem:[%s2 + $0xe0] sm:$0xf] %v805
  %934 = vst [vmem:[%s2 + $0xe4] sm:$0xf] %v806
  %935 = vst [vmem:[%s2 + $0xe8] sm:$0xf] %v807
  %936 = vst [vmem:[%s2 + $0xec] sm:$0xf] %v808
  %937 = vst [vmem:[%s2 + $0xf0] sm:$0xf] %v809
  %938 = vst [vmem:[%s2 + $0xf4] sm:$0xf] %v810
  %939 = vst [vmem:[%s2 + $0xf8] sm:$0xf] %v811
  %940 = vst [vmem:[%s2 + $0xfc] sm:$0xf] %v812
  // Predicated region
  $region10: #{discriminator_forward.6} parent=0 // pred_check
    _
  $region11: #{discriminator_forward.6} parent=0 // pred_check_branch
    %942 = sbr.rel (0) target = $region13
  $region12: #{discriminator_forward.6} parent=0 // pred_region
    _
  $region13: #{discriminator_forward.6} parent=0 // pred_fallthru
    _
  // Predicated region
  $region14: #{discriminator_forward.6} parent=0 // pred_check
    _
  $region15: #{discriminator_forward.6} parent=0 // pred_check_branch
    %944 = sbr.rel (0) target = $region17
  $region16: #{discriminator_forward.6} parent=0 // pred_region
    _
  $region17: #{discriminator_forward.6} parent=0 // pred_fallthru
    _

// kernel: discriminator_forward.7
$region0: #{discriminator_forward.7}
  #allocation0 [shape = 'u32[]', space=smem, size = 0x4, offset = 0x4, fixed_abs, tag = 'smem constant byte address 0x4 - core index']
  #allocation1 [shape = 'u32[144,128]{1,0:T(1,128)}', space=vmem, size = 0x12000, scoped, tag = 'internal scratch']
  %s0 = inlined_call_operand.vmem [shape: bf16[128,256], index: 0, kind: input, shape index: {}]
  %s1 = inlined_call_operand.vmem [shape: bf16[256,128], index: 1, kind: input, shape index: {}]
  %s2 = inlined_call_operand.vmem [shape: f32[128,128], index: 2, kind: input, shape index: {}]
  %s3 = inlined_call_operand.vmem [shape: f32[2,128], index: 3, kind: input, shape index: {}]
  %s4 = inlined_call_operand.vmem [shape: f32[2,1], index: 4, kind: output, shape index: {}]
  %s5 = sld [smem:[#allocation0]]
  $region26: #{discriminator_forward.7} parent=0
    _
  %s7 = ssub.s32 1, %s5
  %s8 = scalar_select 0, %s7, %s5
  // Predicated region
  $region2: #{discriminator_forward.7} parent=0 // pred_check
    _
  $region3: #{discriminator_forward.7} parent=0 // pred_check_branch
    %10 = sbr.rel (0) target = $region5
  $region4: #{discriminator_forward.7} parent=0 // pred_region
    _
  $region5: #{discriminator_forward.7} parent=0 // pred_fallthru
    _
  // Predicated region
  $region6: #{discriminator_forward.7} parent=0 // pred_check
    _
  $region7: #{discriminator_forward.7} parent=0 // pred_check_branch
    %12 = sbr.rel (0) target = $region9
  $region8: #{discriminator_forward.7} parent=0 // pred_region
    _
  $region9: #{discriminator_forward.7} parent=0 // pred_fallthru
    _
  // Predicated region
  $region10: #{discriminator_forward.7} parent=0 // pred_check
    _
  $region11: #{discriminator_forward.7} parent=0 // pred_check_branch
    %14 = sbr.rel (0) target = $region13
  $region12: #{discriminator_forward.7} parent=0 // pred_region
    _
  $region13: #{discriminator_forward.7} parent=0 // pred_fallthru
    _
  // Predicated region
  $region14: #{discriminator_forward.7} parent=0 // pred_check
    _
  $region15: #{discriminator_forward.7} parent=0 // pred_check_branch
    %16 = sbr.rel (0) target = $region17
  $region16: #{discriminator_forward.7} parent=0 // pred_region
    _
  $region17: #{discriminator_forward.7} parent=0 // pred_fallthru
    _
  %v18 = vld [vmem:[%s0] sm:$0xff]
  %v19 = vld [vmem:[%s0 + $0x8] sm:$0xff]
  %v20 = vld [vmem:[%s0 + $0x10] sm:$0xff]
  %v21 = vld [vmem:[%s0 + $0x18] sm:$0xff]
  %v22 = vld [vmem:[%s0 + $0x20] sm:$0xff]
  %v23 = vld [vmem:[%s0 + $0x28] sm:$0xff]
  %v24 = vld [vmem:[%s0 + $0x30] sm:$0xff]
  %v25 = vld [vmem:[%s0 + $0x38] sm:$0xff]
  %v26 = vld [vmem:[%s0 + $0x40] sm:$0xff]
  %v27 = vld [vmem:[%s0 + $0x48] sm:$0xff]
  %v28 = vld [vmem:[%s0 + $0x50] sm:$0xff]
  %v29 = vld [vmem:[%s0 + $0x58] sm:$0xff]
  %v30 = vld [vmem:[%s0 + $0x60] sm:$0xff]
  %v31 = vld [vmem:[%s0 + $0x68] sm:$0xff]
  %v32 = vld [vmem:[%s0 + $0x70] sm:$0xff]
  %v33 = vld [vmem:[%s0 + $0x78] sm:$0xff]
  %v34 = vld [vmem:[%s1] sm:$0xf]
  %v35 = vld [vmem:[%s1 + $0x4] sm:$0xf]
  %v36 = vld [vmem:[%s1 + $0x8] sm:$0xf]
  %v37 = vld [vmem:[%s1 + $0xc] sm:$0xf]
  %v38 = vld [vmem:[%s1 + $0x10] sm:$0xf]
  %v39 = vld [vmem:[%s1 + $0x14] sm:$0xf]
  %v40 = vld [vmem:[%s1 + $0x18] sm:$0xf]
  %v41 = vld [vmem:[%s1 + $0x1c] sm:$0xf]
  %v42 = vld [vmem:[%s1 + $0x20] sm:$0xf]
  %v43 = vld [vmem:[%s1 + $0x24] sm:$0xf]
  %v44 = vld [vmem:[%s1 + $0x28] sm:$0xf]
  %v45 = vld [vmem:[%s1 + $0x2c] sm:$0xf]
  %v46 = vld [vmem:[%s1 + $0x30] sm:$0xf]
  %v47 = vld [vmem:[%s1 + $0x34] sm:$0xf]
  %v48 = vld [vmem:[%s1 + $0x38] sm:$0xf]
  %v49 = vld [vmem:[%s1 + $0x3c] sm:$0xf]
  %v50 = vld [vmem:[%s1 + $0x40] sm:$0xf]
  %v51 = vld [vmem:[%s1 + $0x44] sm:$0xf]
  %v52 = vld [vmem:[%s1 + $0x48] sm:$0xf]
  %v53 = vld [vmem:[%s1 + $0x4c] sm:$0xf]
  %v54 = vld [vmem:[%s1 + $0x50] sm:$0xf]
  %v55 = vld [vmem:[%s1 + $0x54] sm:$0xf]
  %v56 = vld [vmem:[%s1 + $0x58] sm:$0xf]
  %v57 = vld [vmem:[%s1 + $0x5c] sm:$0xf]
  %v58 = vld [vmem:[%s1 + $0x60] sm:$0xf]
  %v59 = vld [vmem:[%s1 + $0x64] sm:$0xf]
  %v60 = vld [vmem:[%s1 + $0x68] sm:$0xf]
  %v61 = vld [vmem:[%s1 + $0x6c] sm:$0xf]
  %v62 = vld [vmem:[%s1 + $0x70] sm:$0xf]
  %v63 = vld [vmem:[%s1 + $0x74] sm:$0xf]
  %v64 = vld [vmem:[%s1 + $0x78] sm:$0xf]
  %v65 = vld [vmem:[%s1 + $0x7c] sm:$0xf]
  %v82 = vunpack.c.l.b16 %v18
  %v83 = vunpack.c.h.b16 %v18
  %v84 = vunpack.c.l.b16 %v19
  %v85 = vunpack.c.h.b16 %v19
  %v86 = vunpack.c.l.b16 %v20
  %v87 = vunpack.c.h.b16 %v20
  %v88 = vunpack.c.l.b16 %v21
  %v89 = vunpack.c.h.b16 %v21
  %v90 = vunpack.c.l.b16 %v22
  %v91 = vunpack.c.h.b16 %v22
  %v92 = vunpack.c.l.b16 %v23
  %v93 = vunpack.c.h.b16 %v23
  %v94 = vunpack.c.l.b16 %v24
  %v95 = vunpack.c.h.b16 %v24
  %v96 = vunpack.c.l.b16 %v25
  %v97 = vunpack.c.h.b16 %v25
  %v98 = vunpack.c.l.b16 %v26
  %v99 = vunpack.c.h.b16 %v26
  %v100 = vunpack.c.l.b16 %v27
  %v101 = vunpack.c.h.b16 %v27
  %v102 = vunpack.c.l.b16 %v28
  %v103 = vunpack.c.h.b16 %v28
  %v104 = vunpack.c.l.b16 %v29
  %v105 = vunpack.c.h.b16 %v29
  %v106 = vunpack.c.l.b16 %v30
  %v107 = vunpack.c.h.b16 %v30
  %v108 = vunpack.c.l.b16 %v31
  %v109 = vunpack.c.h.b16 %v31
  %v110 = vunpack.c.l.b16 %v32
  %v111 = vunpack.c.h.b16 %v32
  %v112 = vunpack.c.l.b16 %v33
  %v113 = vunpack.c.h.b16 %v33
  %v114 = vpack.c.b16 %v84, %v82
  %v115 = vpack.c.b16 %v85, %v83
  %v116 = vpack.c.b16 %v88, %v86
  %v117 = vpack.c.b16 %v89, %v87
  %v118 = vpack.c.b16 %v92, %v90
  %v119 = vpack.c.b16 %v93, %v91
  %v120 = vpack.c.b16 %v96, %v94
  %v121 = vpack.c.b16 %v97, %v95
  %v122 = vpack.c.b16 %v100, %v98
  %v123 = vpack.c.b16 %v101, %v99
  %v124 = vpack.c.b16 %v104, %v102
  %v125 = vpack.c.b16 %v105, %v103
  %v126 = vpack.c.b16 %v108, %v106
  %v127 = vpack.c.b16 %v109, %v107
  %v128 = vpack.c.b16 %v112, %v110
  %v129 = vpack.c.b16 %v113, %v111
  %v178 = vunpack.c.l.b16 %v34
  %v179 = vunpack.c.l.b16 %v35
  %v180 = vunpack.c.l.b16 %v36
  %v181 = vunpack.c.l.b16 %v37
  %v182 = vunpack.c.l.b16 %v38
  %v183 = vunpack.c.l.b16 %v39
  %v184 = vunpack.c.l.b16 %v40
  %v185 = vunpack.c.l.b16 %v41
  %v186 = vunpack.c.l.b16 %v42
  %v187 = vunpack.c.l.b16 %v43
  %v188 = vunpack.c.l.b16 %v44
  %v189 = vunpack.c.l.b16 %v45
  %v190 = vunpack.c.l.b16 %v46
  %v191 = vunpack.c.l.b16 %v47
  %v192 = vunpack.c.l.b16 %v48
  %v193 = vunpack.c.l.b16 %v49
  %v194 = vunpack.c.l.b16 %v50
  %v195 = vunpack.c.l.b16 %v51
  %v196 = vunpack.c.l.b16 %v52
  %v197 = vunpack.c.l.b16 %v53
  %v198 = vunpack.c.l.b16 %v54
  %v199 = vunpack.c.l.b16 %v55
  %v200 = vunpack.c.l.b16 %v56
  %v201 = vunpack.c.l.b16 %v57
  %v202 = vunpack.c.l.b16 %v58
  %v203 = vunpack.c.l.b16 %v59
  %v204 = vunpack.c.l.b16 %v60
  %v205 = vunpack.c.l.b16 %v61
  %v206 = vunpack.c.l.b16 %v62
  %v207 = vunpack.c.l.b16 %v63
  %v208 = vunpack.c.l.b16 %v64
  %v209 = vunpack.c.l.b16 %v65
  %v210 = vpack.c.b16 %v179, %v178
  %v211 = vpack.c.b16 %v181, %v180
  %v212 = vpack.c.b16 %v183, %v182
  %v213 = vpack.c.b16 %v185, %v184
  %v214 = vpack.c.b16 %v187, %v186
  %v215 = vpack.c.b16 %v189, %v188
  %v216 = vpack.c.b16 %v191, %v190
  %v217 = vpack.c.b16 %v193, %v192
  %v218 = vpack.c.b16 %v195, %v194
  %v219 = vpack.c.b16 %v197, %v196
  %v220 = vpack.c.b16 %v199, %v198
  %v221 = vpack.c.b16 %v201, %v200
  %v222 = vpack.c.b16 %v203, %v202
  %v223 = vpack.c.b16 %v205, %v204
  %v224 = vpack.c.b16 %v207, %v206
  %v225 = vpack.c.b16 %v209, %v208
  %242 = vmatprep.subr.bf16.mxu0 0
  %243 = vmatpush1.bf16.msra.mxu0 %v217
  %244 = vmatprep.subr.bf16.mxu0 0
  %245 = vmatpush1.bf16.msra.mxu0 %v216
  %246 = vmatprep.subr.bf16.mxu0 0
  %247 = vmatpush1.bf16.msra.mxu0 %v215
  %248 = vmatprep.subr.bf16.mxu0 0
  %249 = vmatpush1.bf16.msra.mxu0 %v214
  %250 = vmatprep.subr.bf16.mxu0 0
  %251 = vmatpush1.bf16.msra.mxu0 %v213
  %252 = vmatprep.subr.bf16.mxu0 0
  %253 = vmatpush1.bf16.msra.mxu0 %v212
  %254 = vmatprep.subr.bf16.mxu0 0
  %255 = vmatpush1.bf16.msra.mxu0 %v211
  %256 = vmatprep.subr.bf16.mxu0 0
  %257 = vmatpush1.bf16.msra.mxu0 %v210
  %258 = vmatprep.subr.bf16.mxu0 0
  %259 = vmatpush2.bf16.msra.mxu0 %v225
  %260 = vmatprep.subr.bf16.mxu0 0
  %261 = vmatpush2.bf16.msra.mxu0 %v224
  %262 = vmatprep.subr.bf16.mxu0 0
  %263 = vmatpush2.bf16.msra.mxu0 %v223
  %264 = vmatprep.subr.bf16.mxu0 0
  %265 = vmatpush2.bf16.msra.mxu0 %v222
  %266 = vmatprep.subr.bf16.mxu0 0
  %267 = vmatpush2.bf16.msra.mxu0 %v221
  %268 = vmatprep.subr.bf16.mxu0 0
  %269 = vmatpush2.bf16.msra.mxu0 %v220
  %270 = vmatprep.subr.bf16.mxu0 0
  %271 = vmatpush2.bf16.msra.mxu0 %v219
  %272 = vmatprep.subr.bf16.mxu0 0
  %273 = vmatpush2.bf16.msra.mxu0 %v218
  %274 = vmatprep.mubr.bf16.mxu0 %v115
  %275 = vmatmul.mubr.bf16.gmra.mxu0 %v114
  %v276 = vpop.f32.mrf.mxu0
  %v277 = vadd.f32 0.0, %v276
  %v278 = vpop.f32.mrf.mxu0
  %v279 = vpop.f32.mrf.mxu0
  %v280 = vadd.f32 0.0, %v279
  %v281 = vpop.f32.mrf.mxu0
  %282 = vmatprep.mubr.bf16.mxu0 %v117
  %283 = vmatmul.mubr.bf16.gmra.mxu0 %v116
  %v284 = vpop.f32.mrf.mxu0
  %v285 = vadd.f32 0.0, %v284
  %v286 = vpop.f32.mrf.mxu0
  %v287 = vpop.f32.mrf.mxu0
  %v288 = vadd.f32 0.0, %v287
  %v289 = vpop.f32.mrf.mxu0
  %290 = vmatprep.mubr.bf16.mxu0 %v119
  %291 = vmatmul.mubr.bf16.gmra.mxu0 %v118
  %v292 = vpop.f32.mrf.mxu0
  %v293 = vadd.f32 0.0, %v292
  %v294 = vpop.f32.mrf.mxu0
  %v295 = vpop.f32.mrf.mxu0
  %v296 = vadd.f32 0.0, %v295
  %v297 = vpop.f32.mrf.mxu0
  %298 = vmatprep.mubr.bf16.mxu0 %v121
  %299 = vmatmul.mubr.bf16.gmra.mxu0 %v120
  %v300 = vpop.f32.mrf.mxu0
  %v301 = vadd.f32 0.0, %v300
  %v302 = vpop.f32.mrf.mxu0
  %v303 = vpop.f32.mrf.mxu0
  %v304 = vadd.f32 0.0, %v303
  %v305 = vpop.f32.mrf.mxu0
  %306 = vmatprep.mubr.bf16.mxu0 %v123
  %307 = vmatmul.mubr.bf16.gmra.mxu0 %v122
  %v308 = vpop.f32.mrf.mxu0
  %v309 = vadd.f32 0.0, %v308
  %v310 = vpop.f32.mrf.mxu0
  %v311 = vpop.f32.mrf.mxu0
  %v312 = vadd.f32 0.0, %v311
  %v313 = vpop.f32.mrf.mxu0
  %314 = vmatprep.mubr.bf16.mxu0 %v125
  %315 = vmatmul.mubr.bf16.gmra.mxu0 %v124
  %v316 = vpop.f32.mrf.mxu0
  %v317 = vadd.f32 0.0, %v316
  %v318 = vpop.f32.mrf.mxu0
  %v319 = vpop.f32.mrf.mxu0
  %v320 = vadd.f32 0.0, %v319
  %v321 = vpop.f32.mrf.mxu0
  %322 = vmatprep.mubr.bf16.mxu0 %v127
  %323 = vmatmul.mubr.bf16.gmra.mxu0 %v126
  %v324 = vpop.f32.mrf.mxu0
  %v325 = vadd.f32 0.0, %v324
  %v326 = vpop.f32.mrf.mxu0
  %v327 = vpop.f32.mrf.mxu0
  %v328 = vadd.f32 0.0, %v327
  %v329 = vpop.f32.mrf.mxu0
  %330 = vmatprep.mubr.bf16.mxu0 %v129
  %331 = vmatmul.mubr.bf16.gmra.mxu0 %v128
  %v332 = vpop.f32.mrf.mxu0
  %v333 = vadd.f32 0.0, %v332
  %v334 = vpop.f32.mrf.mxu0
  %v335 = vpop.f32.mrf.mxu0
  %v336 = vadd.f32 0.0, %v335
  %v337 = vpop.f32.mrf.mxu0
  %338 = vdwg.mxu0
  %v339 = vld [vmem:[%s2] sm:$0xff]
  %v340 = vld [vmem:[%s2 + $0x8] sm:$0xff]
  %v341 = vld [vmem:[%s2 + $0x10] sm:$0xff]
  %v342 = vld [vmem:[%s2 + $0x18] sm:$0xff]
  %v343 = vld [vmem:[%s2 + $0x20] sm:$0xff]
  %v344 = vld [vmem:[%s2 + $0x28] sm:$0xff]
  %v345 = vld [vmem:[%s2 + $0x30] sm:$0xff]
  %v346 = vld [vmem:[%s2 + $0x38] sm:$0xff]
  %v347 = vld [vmem:[%s2 + $0x40] sm:$0xff]
  %v348 = vld [vmem:[%s2 + $0x48] sm:$0xff]
  %v349 = vld [vmem:[%s2 + $0x50] sm:$0xff]
  %v350 = vld [vmem:[%s2 + $0x58] sm:$0xff]
  %v351 = vld [vmem:[%s2 + $0x60] sm:$0xff]
  %v352 = vld [vmem:[%s2 + $0x68] sm:$0xff]
  %v353 = vld [vmem:[%s2 + $0x70] sm:$0xff]
  %v354 = vld [vmem:[%s2 + $0x78] sm:$0xff]
  %v355 = vmul.f32 %v277, %v339
  %v356 = vmul.f32 %v280, %v340
  %v357 = vmul.f32 %v285, %v341
  %v358 = vmul.f32 %v288, %v342
  %v359 = vmul.f32 %v293, %v343
  %v360 = vmul.f32 %v296, %v344
  %v361 = vmul.f32 %v301, %v345
  %v362 = vmul.f32 %v304, %v346
  %v363 = vmul.f32 %v309, %v347
  %v364 = vmul.f32 %v312, %v348
  %v365 = vmul.f32 %v317, %v349
  %v366 = vmul.f32 %v320, %v350
  %v367 = vmul.f32 %v325, %v351
  %v368 = vmul.f32 %v328, %v352
  %v369 = vmul.f32 %v333, %v353
  %v370 = vmul.f32 %v336, %v354
  %371 = vadd.xlane.f32.xlu0 %v355
  %v372 = vpop.xlane.xlu0 %371
  %373 = vadd.xlane.f32.xlu0 %v356
  %v374 = vpop.xlane.xlu0 %373
  %375 = vadd.xlane.f32.xlu0 %v357
  %v376 = vpop.xlane.xlu0 %375
  %377 = vadd.xlane.f32.xlu0 %v358
  %v378 = vpop.xlane.xlu0 %377
  %379 = vadd.xlane.f32.xlu0 %v359
  %v380 = vpop.xlane.xlu0 %379
  %381 = vadd.xlane.f32.xlu0 %v360
  %v382 = vpop.xlane.xlu0 %381
  %383 = vadd.xlane.f32.xlu0 %v361
  %v384 = vpop.xlane.xlu0 %383
  %385 = vadd.xlane.f32.xlu0 %v362
  %v386 = vpop.xlane.xlu0 %385
  %387 = vadd.xlane.f32.xlu0 %v363
  %v388 = vpop.xlane.xlu0 %387
  %389 = vadd.xlane.f32.xlu0 %v364
  %v390 = vpop.xlane.xlu0 %389
  %391 = vadd.xlane.f32.xlu0 %v365
  %v392 = vpop.xlane.xlu0 %391
  %393 = vadd.xlane.f32.xlu0 %v366
  %v394 = vpop.xlane.xlu0 %393
  %395 = vadd.xlane.f32.xlu0 %v367
  %v396 = vpop.xlane.xlu0 %395
  %397 = vadd.xlane.f32.xlu0 %v368
  %v398 = vpop.xlane.xlu0 %397
  %399 = vadd.xlane.f32.xlu0 %v369
  %v400 = vpop.xlane.xlu0 %399
  %401 = vadd.xlane.f32.xlu0 %v370
  %v402 = vpop.xlane.xlu0 %401
  %v403 = vld [vmem:[%s3] sm:$0x3]
  %404 = vmatprep.subr.mxu0 0.0
  %405 = vmatpush1.msra.mxu0 %v402
  %406 = vmatprep.subr.mxu0 0.0
  %407 = vmatpush1.msra.mxu0 %v400
  %408 = vmatprep.subr.mxu0 0.0
  %409 = vmatpush1.msra.mxu0 %v398
  %410 = vmatprep.subr.mxu0 0.0
  %411 = vmatpush1.msra.mxu0 %v396
  %412 = vmatprep.subr.mxu0 0.0
  %413 = vmatpush1.msra.mxu0 %v394
  %414 = vmatprep.subr.mxu0 0.0
  %415 = vmatpush1.msra.mxu0 %v392
  %416 = vmatprep.subr.mxu0 0.0
  %417 = vmatpush1.msra.mxu0 %v390
  %418 = vmatprep.subr.mxu0 0.0
  %419 = vmatpush1.msra.mxu0 %v388
  %420 = vmatprep.subr.mxu0 0.0
  %421 = vmatpush1.msra.mxu0 %v386
  %422 = vmatprep.subr.mxu0 0.0
  %423 = vmatpush1.msra.mxu0 %v384
  %424 = vmatprep.subr.mxu0 0.0
  %425 = vmatpush1.msra.mxu0 %v382
  %426 = vmatprep.subr.mxu0 0.0
  %427 = vmatpush1.msra.mxu0 %v380
  %428 = vmatprep.subr.mxu0 0.0
  %429 = vmatpush1.msra.mxu0 %v378
  %430 = vmatprep.subr.mxu0 0.0
  %431 = vmatpush1.msra.mxu0 %v376
  %432 = vmatprep.subr.mxu0 0.0
  %433 = vmatpush1.msra.mxu0 %v374
  %434 = vmatprep.subr.mxu0 0.0
  %435 = vmatpush1.msra.mxu0 %v372
  %436 = vmatprep.subr.mxu0 0.0
  %437 = vmatpush2.msra.mxu0 0.0
  %438 = vmatprep.subr.mxu0 0.0
  %439 = vmatpush2.msra.mxu0 0.0
  %440 = vmatprep.subr.mxu0 0.0
  %441 = vmatpush2.msra.mxu0 0.0
  %442 = vmatprep.subr.mxu0 0.0
  %443 = vmatpush2.msra.mxu0 0.0
  %444 = vmatprep.subr.mxu0 0.0
  %445 = vmatpush2.msra.mxu0 0.0
  %446 = vmatprep.subr.mxu0 0.0
  %447 = vmatpush2.msra.mxu0 0.0
  %448 = vmatprep.subr.mxu0 0.0
  %449 = vmatpush2.msra.mxu0 0.0
  %450 = vmatprep.subr.mxu0 0.0
  %451 = vmatpush2.msra.mxu0 0.0
  %452 = vmatprep.subr.mxu0 0.0
  %453 = vmatpush2.msra.mxu0 0.0
  %454 = vmatprep.subr.mxu0 0.0
  %455 = vmatpush2.msra.mxu0 0.0
  %456 = vmatprep.subr.mxu0 0.0
  %457 = vmatpush2.msra.mxu0 0.0
  %458 = vmatprep.subr.mxu0 0.0
  %459 = vmatpush2.msra.mxu0 0.0
  %460 = vmatprep.subr.mxu0 0.0
  %461 = vmatpush2.msra.mxu0 0.0
  %462 = vmatprep.subr.mxu0 0.0
  %463 = vmatpush2.msra.mxu0 0.0
  %464 = vmatprep.subr.mxu0 0.0
  %465 = vmatpush2.msra.mxu0 0.0
  %466 = vmatprep.subr.mxu0 0.0
  %467 = vmatpush2.msra.mxu0 0.0
  %468 = vmatprep.mubr.f32.mxu0 0.0
  %469 = vmatmul.mubr.f32.gmra.mxu0 %v403
  %v470 = vpop.f32.mrf.mxu0
  %v471 = vadd.f32 0.0, %v470
  %v472 = vpop.f32.mrf.mxu0
  %473 = vdwg.mxu0
  %v474 = vsub.f32 0.0, %v471
  %v475 = vmul.f32 %v474, 1.442695
  %v476 = vpow.pop %v475
  %v477 = vadd.f32 %v476, 1.0
  %v478 = vrcp.pop %v477
  %v479 = vmul.f32 1.0, %v478
  %vm480 = vcmask 1024
  %481 = vst.msk [vmem:[%s4] sm:$0x3] %vm480, %v479
  // Predicated region
  $region18: #{discriminator_forward.7} parent=0 // pred_check
    _
  $region19: #{discriminator_forward.7} parent=0 // pred_check_branch
    %483 = sbr.rel (0) target = $region21
  $region20: #{discriminator_forward.7} parent=0 // pred_region
    _
  $region21: #{discriminator_forward.7} parent=0 // pred_fallthru
    _
  // Predicated region
  $region22: #{discriminator_forward.7} parent=0 // pred_check
    _
  $region23: #{discriminator_forward.7} parent=0 // pred_check_branch
    %485 = sbr.rel (0) target = $region25
  $region24: #{discriminator_forward.7} parent=0 // pred_region
    _
  $region25: #{discriminator_forward.7} parent=0 // pred_fallthru
    _

</llo_original>
